<compile_context>
chip_gen: v7x
topology: tpu7x:2x2x1
jax: 0.10.0
libtpu: 0.0.40
codegen_flags: <defaults>
</compile_context>

<pallas_src>
import jax
import jax.numpy as jnp
from jax.experimental import pallas as pl
from jax.experimental.pallas import tpu as pltpu

_LANE = 512                             # lane-dense width (multiple of 128)
_TARGET_TILE_BYTES = 4 * 1024 * 1024    # ~4 MiB per input/output buffer
_MIN_PALLAS_ELEMS = 8 * _LANE           # below this, plain XLA fusion wins


def _my_feature_kernel(beta_ref, alpha_ref, x_ref, y_ref, o_ref):
    # jnp.pi is a weakly-typed Python float: computation stays in input dtype.
    api = alpha_ref[...] * jnp.pi       # hoisted: alpha*pi used by both sins
    o_ref[...] = (
        beta_ref[...] * jnp.sin(api * x_ref[...]) * jnp.sin(api * y_ref[...])
    )


def _sublane_multiple(dtype):
    # f32 -> 8, bf16 -> 16, int8/fp8 -> 32 (sub-32-bit dtypes pack sublanes).
    itemsize = jnp.dtype(dtype).itemsize
    return max(8, 32 // max(1, itemsize))


def _vmem_cap_bytes():
    # Generation-aware VMEM ceiling: ~75% of physical capacity, conservative
    # fallback sized for v7x (64 MiB physical).
    try:
        info = pltpu.get_tpu_info()
        cap = getattr(info, "vmem_capacity_bytes", None)
        if cap:
            return int(0.75 * int(cap))
    except Exception:
        pass
    return 48 * 1024 * 1024


def my_feature(beta, alpha, x, y):
    """beta * sin(alpha*x*pi) * sin(alpha*y*pi), elementwise, any shape."""
    assert beta.shape == alpha.shape == x.shape == y.shape
    assert beta.dtype == alpha.dtype == x.dtype == y.dtype

    orig_shape = x.shape
    dtype = x.dtype
    itemsize = jnp.dtype(dtype).itemsize
    total = x.size

    # Tiny inputs: launch + padding overhead dominates and XLA's fused
    # elementwise is already at the HBM roofline.
    if total < _MIN_PALLAS_ELEMS:
        return beta * jnp.sin(alpha * x * jnp.pi) * jnp.sin(alpha * y * jnp.pi)

    L = _LANE
    pad = (-total) % L                    # <= L-1 elements, 0 on the fast path
    padded_total = total + pad
    rows = padded_total // L

    sub = _sublane_multiple(dtype)
    target_rows = max(sub, _TARGET_TILE_BYTES // (L * itemsize))
    target_rows = ((target_rows + sub - 1) // sub) * sub
    rows_up = ((rows + sub - 1) // sub) * sub
    block_rows = int(min(target_rows, rows_up))   # multiple of `sub`

    def to_slab(a):
        a = a.reshape(-1)                 # zero-copy flatten
        if pad:
            a = jnp.pad(a, (0, pad))      # unaligned only: <= 511 zeros
        return a.reshape(rows, L)         # zero-copy on the aligned path

    beta2, alpha2, x2, y2 = (to_slab(a) for a in (beta, alpha, x, y))

    # VMEM budget: 5 arrays x 2 pipeline buffers x tile, generation-aware cap.
    tile_bytes = block_rows * L * itemsize
    vmem_needed = 10 * tile_bytes
    vmem_limit = int(min(max(int(vmem_needed * 1.25), 16 * 1024 * 1024),
                         _vmem_cap_bytes()))

    spec = pl.BlockSpec((block_rows, L), lambda i: (i, 0))
    grid = (pl.cdiv(rows, block_rows),)   # partial last block is masked

    cost = pl.CostEstimate(
        flops=5 * padded_total,
        transcendentals=2 * padded_total,
        bytes_accessed=5 * padded_total * itemsize,
    )

    out = pl.pallas_call(
        _my_feature_kernel,
        out_shape=jax.ShapeDtypeStruct((rows, L), dtype),
        grid=grid,
        in_specs=[spec, spec, spec, spec],
        out_specs=spec,
        compiler_params=pltpu.CompilerParams(
            dimension_semantics=("parallel",),
            vmem_limit_bytes=vmem_limit,
        ),
        cost_estimate=cost,
    )(beta2, alpha2, x2, y2)

    if pad:
        return out.reshape(-1)[:total].reshape(orig_shape)
    return out.reshape(orig_shape)        # zero-copy on the aligned path


def my_feature_dict(inputs):
    """Mirror the PyTorch forward(x) signature: x is a dict of tensors."""
    return my_feature(inputs["beta"], inputs["alpha"], inputs["x"], inputs["y"])


def _reference(beta, alpha, x, y):
    return beta * jnp.sin(alpha * x * jnp.pi) * jnp.sin(alpha * y * jnp.pi)


if __name__ == "__main__":
    key = jax.random.PRNGKey(0)
    k_beta, k_alpha, k_x, k_y = jax.random.split(key, 4)

    # 1) Lane-aligned shape (exercises the zero-copy Pallas fast path).
    N, D = 256, 128
    beta = jax.random.normal(k_beta, (N, D), dtype=jnp.float32)
    alpha = jax.random.uniform(k_alpha, (N, D), dtype=jnp.float32,
                               minval=0.5, maxval=2.0)
    x = jax.random.uniform(k_x, (N, D), dtype=jnp.float32)
    y = jax.random.uniform(k_y, (N, D), dtype=jnp.float32)

    inputs = {"beta": beta, "alpha": alpha, "x": x, "y": y}
    out = jax.block_until_ready(my_feature_dict(inputs))
    ref = _reference(beta, alpha, x, y)
    assert out.shape == ref.shape and out.dtype == ref.dtype
    assert jnp.allclose(out, ref, atol=1e-5, rtol=1e-5)

    # 2) Non-lane-aligned shape (exercises the small-pad + masked-block path).
    M = 1000 * 17 + 3
    b2 = jax.random.normal(k_beta, (M,), dtype=jnp.float32)
    a2 = jax.random.uniform(k_alpha, (M,), dtype=jnp.float32,
                            minval=0.5, maxval=2.0)
    x2 = jax.random.uniform(k_x, (M,), dtype=jnp.float32)
    y2 = jax.random.uniform(k_y, (M,), dtype=jnp.float32)
    out2 = jax.block_until_ready(my_feature(b2, a2, x2, y2))
    assert jnp.allclose(out2, _reference(b2, a2, x2, y2), atol=1e-5, rtol=1e-5)

    # 3) Tiny shape (exercises the plain-XLA bypass).
    T = 37
    b3 = jax.random.normal(k_beta, (T,), dtype=jnp.float32)
    a3 = jax.random.uniform(k_alpha, (T,), dtype=jnp.float32,
                            minval=0.5, maxval=2.0)
    x3 = jax.random.uniform(k_x, (T,), dtype=jnp.float32)
    y3 = jax.random.uniform(k_y, (T,), dtype=jnp.float32)
    out3 = jax.block_until_ready(my_feature(b3, a3, x3, y3))
    assert jnp.allclose(out3, _reference(b3, a3, x3, y3), atol=1e-5, rtol=1e-5)

    print("KERNEL_OK")
</pallas_src>

<mosaic_0001>
module attributes {stable_mosaic.version = 11 : i64} {
  func.func @_my_feature_kernel(%arg0: i32, %arg1: memref<64x512xf32, #tpu.memory_space<vmem>>, %arg2: memref<64x512xf32, #tpu.memory_space<vmem>>, %arg3: memref<64x512xf32, #tpu.memory_space<vmem>>, %arg4: memref<64x512xf32, #tpu.memory_space<vmem>>, %arg5: memref<64x512xf32, #tpu.memory_space<vmem>>) attributes {dimension_semantics = [#tpu.dimension_semantics<parallel>], iteration_bounds = array<i64: 1>, scalar_prefetch = 0 : i64, scratch_operands = 0 : i64, tpu.core_type = #tpu.core_type<tc>, window_params = [{transform_indices = @transform_0, window_bounds = array<i64: 64, 512>}, {transform_indices = @transform_1, window_bounds = array<i64: 64, 512>}, {transform_indices = @transform_2, window_bounds = array<i64: 64, 512>}, {transform_indices = @transform_3, window_bounds = array<i64: 64, 512>}, {transform_indices = @transform_4, window_bounds = array<i64: 64, 512>}]} {
    %c0 = arith.constant 0 : index
    %c0_0 = arith.constant 0 : index
    %0 = vector.load %arg2[%c0, %c0_0] : memref<64x512xf32, #tpu.memory_space<vmem>>, vector<64x512xf32>
    %cst = arith.constant 3.14159274 : f32
    %1 = vector.broadcast %cst : f32 to vector<64x512xf32>
    %2 = arith.mulf %0, %1 : vector<64x512xf32>
    %c0_1 = arith.constant 0 : index
    %c0_2 = arith.constant 0 : index
    %3 = vector.load %arg1[%c0_1, %c0_2] : memref<64x512xf32, #tpu.memory_space<vmem>>, vector<64x512xf32>
    %c0_3 = arith.constant 0 : index
    %c0_4 = arith.constant 0 : index
    %4 = vector.load %arg3[%c0_3, %c0_4] : memref<64x512xf32, #tpu.memory_space<vmem>>, vector<64x512xf32>
    %5 = arith.mulf %2, %4 : vector<64x512xf32>
    %6 = math.sin %5 : vector<64x512xf32>
    %7 = arith.mulf %3, %6 : vector<64x512xf32>
    %c0_5 = arith.constant 0 : index
    %c0_6 = arith.constant 0 : index
    %8 = vector.load %arg4[%c0_5, %c0_6] : memref<64x512xf32, #tpu.memory_space<vmem>>, vector<64x512xf32>
    %9 = arith.mulf %2, %8 : vector<64x512xf32>
    %10 = math.sin %9 : vector<64x512xf32>
    %11 = arith.mulf %7, %10 : vector<64x512xf32>
    %c0_7 = arith.constant 0 : index
    %c0_8 = arith.constant 0 : index
    %12 = vector.load %arg5[%c0_7, %c0_8] : memref<64x512xf32, #tpu.memory_space<vmem>>, vector<64x512xf32>
    tpu.vector_store %arg5[%c0_7, %c0_8], %11 {strides = array<i32>} : memref<64x512xf32, #tpu.memory_space<vmem>>, vector<64x512xf32>,
    return
  }
  func.func @transform_0(%arg0: i32) -> (i32, i32) {
    %c0_i32 = arith.constant 0 : i32
    %c0_i32_0 = arith.constant 0 : i32
    return %arg0, %c0_i32 : i32, i32
  }
  func.func @transform_1(%arg0: i32) -> (i32, i32) {
    %c0_i32 = arith.constant 0 : i32
    %c0_i32_0 = arith.constant 0 : i32
    return %arg0, %c0_i32 : i32, i32
  }
  func.func @transform_2(%arg0: i32) -> (i32, i32) {
    %c0_i32 = arith.constant 0 : i32
    %c0_i32_0 = arith.constant 0 : i32
    return %arg0, %c0_i32 : i32, i32
  }
  func.func @transform_3(%arg0: i32) -> (i32, i32) {
    %c0_i32 = arith.constant 0 : i32
    %c0_i32_0 = arith.constant 0 : i32
    return %arg0, %c0_i32 : i32, i32
  }
  func.func @transform_4(%arg0: i32) -> (i32, i32) {
    %c0_i32 = arith.constant 0 : i32
    %c0_i32_0 = arith.constant 0 : i32
    return %arg0, %c0_i32 : i32, i32
  }
}

</mosaic_0001>

<llo_original>
// kernel: tpu_custom_call.1
$region0: #{tpu_custom_call.1}
  #allocation0 [shape = 'u32[]', space=smem, size = 0x4, offset = 0x4, fixed_abs, tag = 'smem constant byte address 0x4 - core index']
  #allocation1 [shape = 'u32[144,128]{1,0:T(1,128)}', space=vmem, size = 0x12000, scoped, tag = 'internal scratch']
  %s0 = inlined_call_operand.hbm [shape: f32[64,512], index: 0, kind: input, shape index: {}]
  %s1 = inlined_call_operand.hbm [shape: f32[64,512], index: 1, kind: input, shape index: {}]
  %s2 = inlined_call_operand.hbm [shape: f32[64,512], index: 2, kind: input, shape index: {}]
  %s3 = inlined_call_operand.hbm [shape: f32[64,512], index: 3, kind: input, shape index: {}]
  %s4 = inlined_call_operand.hbm [shape: f32[64,512], index: 4, kind: output, shape index: {}]
  %s5 = sld [smem:[#allocation0]]
  $region42: #{tpu_custom_call.1} parent=0
    _
  %s7 = ssub.s32 1, %s5
  %s8 = scalar_select 0, %s7, %s5
  $region1: #{tpu_custom_call.1} parent=0
    #allocation2 [shape = 'u8[131072]{0}', space=vmem, size = 0x20000, scoped, tag = 'input window, operand 0, single buffered']
    #allocation3 [shape = 's32[1]{0}', space=sflag, size = 0x4, scoped, tag = 'scoped memory for tpu_custom_call.1']
    #allocation4 [shape = 's32[1]{0}', space=sflag, size = 0x4, scoped, tag = 'scoped memory for tpu_custom_call.1']
    #allocation5 [shape = 'u8[131072]{0}', space=vmem, size = 0x20000, scoped, tag = 'input window, operand 1, single buffered']
    #allocation6 [shape = 's32[1]{0}', space=sflag, size = 0x4, scoped, tag = 'scoped memory for tpu_custom_call.1']
    #allocation7 [shape = 'u8[131072]{0}', space=vmem, size = 0x20000, scoped, tag = 'input window, operand 2, single buffered']
    #allocation8 [shape = 'u8[131072]{0}', space=vmem, size = 0x20000, scoped, tag = 'input window, operand 3, single buffered']
    #allocation9 [shape = 's32[1]{0}', space=sflag, size = 0x4, scoped, tag = 'scoped memory for tpu_custom_call.1']
    #allocation10 [shape = 'u8[131072]{0}', space=vmem, size = 0x20000, scoped, tag = 'output window, operand 0, single buffered']
    %9 = vsyncpa [#allocation3], 0
    %10 = vsyncpa [#allocation6], 0
    %11 = vsyncpa [#allocation9], 0
    %12 = vsyncpa [#allocation4], 0
    // Predicated region
    $region2: #{tpu_custom_call.1} parent=1 // pred_check
      _
    $region3: #{tpu_custom_call.1} parent=1 // pred_check_branch
      %14 = sbr.rel (0) target = $region5
    $region4: #{tpu_custom_call.1} parent=1 // pred_region
      %s16 = ssub.s32 4096, 4096
      %17 = vsyncadd [#allocation3], %s16
      %s18 = sshll.u32 [#allocation2], 4
      %s19 = int_to_ptr.vmem [resolvable:$true] %s18
      %24 = dma.hbm_to_vmem [thread:$0]  %s0, 4096, %s19, [#allocation3], 512, 512, 32
    $region5: #{tpu_custom_call.1} parent=1 // pred_fallthru
      _
    // Predicated region
    $region6: #{tpu_custom_call.1} parent=1 // pred_check
      _
    $region7: #{tpu_custom_call.1} parent=1 // pred_check_branch
      %26 = sbr.rel (0) target = $region9
    $region8: #{tpu_custom_call.1} parent=1 // pred_region
      %s28 = ssub.s32 4096, 4096
      %29 = vsyncadd [#allocation6], %s28
      %s30 = sshll.u32 [#allocation5], 4
      %s31 = int_to_ptr.vmem [resolvable:$true] %s30
      %36 = dma.hbm_to_vmem [thread:$0]  %s1, 4096, %s31, [#allocation6], 512, 512, 32
    $region9: #{tpu_custom_call.1} parent=1 // pred_fallthru
      _
    // Predicated region
    $region10: #{tpu_custom_call.1} parent=1 // pred_check
      _
    $region11: #{tpu_custom_call.1} parent=1 // pred_check_branch
      %38 = sbr.rel (0) target = $region13
    $region12: #{tpu_custom_call.1} parent=1 // pred_region
      %s40 = ssub.s32 4096, 4096
      %41 = vsyncadd [#allocation6], %s40
      %s42 = sshll.u32 [#allocation7], 4
      %s43 = int_to_ptr.vmem [resolvable:$true] %s42
      %48 = dma.hbm_to_vmem [thread:$0]  %s2, 4096, %s43, [#allocation6], 512, 512, 32
    $region13: #{tpu_custom_call.1} parent=1 // pred_fallthru
      _
    // Predicated region
    $region14: #{tpu_custom_call.1} parent=1 // pred_check
      _
    $region15: #{tpu_custom_call.1} parent=1 // pred_check_branch
      %50 = sbr.rel (0) target = $region17
    $region16: #{tpu_custom_call.1} parent=1 // pred_region
      %s52 = ssub.s32 4096, 4096
      %53 = vsyncadd [#allocation9], %s52
      %s54 = sshll.u32 [#allocation8], 4
      %s55 = int_to_ptr.vmem [resolvable:$true] %s54
      %60 = dma.hbm_to_vmem [thread:$0]  %s3, 4096, %s55, [#allocation9], 512, 512, 32
    $region17: #{tpu_custom_call.1} parent=1 // pred_fallthru
      _
    // Predicated region
    $region18: #{tpu_custom_call.1} parent=1 // pred_check
      _
    $region19: #{tpu_custom_call.1} parent=1 // pred_check_branch
      %62 = sbr.rel (0) target = $region21
    $region20: #{tpu_custom_call.1} parent=1 // pred_region
      %63 = dma.done [#allocation3], 4096
    $region21: #{tpu_custom_call.1} parent=1 // pred_fallthru
      _
    // Predicated region
    $region22: #{tpu_custom_call.1} parent=1 // pred_check
      _
    $region23: #{tpu_custom_call.1} parent=1 // pred_check_branch
      %65 = sbr.rel (0) target = $region25
    $region24: #{tpu_custom_call.1} parent=1 // pred_region
      %66 = dma.done [#allocation6], 4096
    $region25: #{tpu_custom_call.1} parent=1 // pred_fallthru
      _
    // Predicated region
    $region26: #{tpu_custom_call.1} parent=1 // pred_check
      _
    $region27: #{tpu_custom_call.1} parent=1 // pred_check_branch
      %68 = sbr.rel (0) target = $region29
    $region28: #{tpu_custom_call.1} parent=1 // pred_region
      %69 = dma.done [#allocation6], 4096
    $region29: #{tpu_custom_call.1} parent=1 // pred_fallthru
      _
    // Predicated region
    $region30: #{tpu_custom_call.1} parent=1 // pred_check
      _
    $region31: #{tpu_custom_call.1} parent=1 // pred_check_branch
      %71 = sbr.rel (0) target = $region33
    $region32: #{tpu_custom_call.1} parent=1 // pred_region
      %72 = dma.done [#allocation9], 4096
    $region33: #{tpu_custom_call.1} parent=1 // pred_fallthru
      _
    %v73 = vld [vmem:[#allocation5] sm:$0xff]
    %v74 = vld [vmem:[#allocation5 + $0x8] sm:$0xff]
    %v75 = vld [vmem:[#allocation5 + $0x10] sm:$0xff]
    %v76 = vld [vmem:[#allocation5 + $0x18] sm:$0xff]
    %v77 = vld [vmem:[#allocation5 + $0x20] sm:$0xff]
    %v78 = vld [vmem:[#allocation5 + $0x28] sm:$0xff]
    %v79 = vld [vmem:[#allocation5 + $0x30] sm:$0xff]
    %v80 = vld [vmem:[#allocation5 + $0x38] sm:$0xff]
    %v81 = vld [vmem:[#allocation5 + $0x40] sm:$0xff]
    %v82 = vld [vmem:[#allocation5 + $0x48] sm:$0xff]
    %v83 = vld [vmem:[#allocation5 + $0x50] sm:$0xff]
    %v84 = vld [vmem:[#allocation5 + $0x58] sm:$0xff]
    %v85 = vld [vmem:[#allocation5 + $0x60] sm:$0xff]
    %v86 = vld [vmem:[#allocation5 + $0x68] sm:$0xff]
    %v87 = vld [vmem:[#allocation5 + $0x70] sm:$0xff]
    %v88 = vld [vmem:[#allocation5 + $0x78] sm:$0xff]
    %v89 = vld [vmem:[#allocation5 + $0x80] sm:$0xff]
    %v90 = vld [vmem:[#allocation5 + $0x88] sm:$0xff]
    %v91 = vld [vmem:[#allocation5 + $0x90] sm:$0xff]
    %v92 = vld [vmem:[#allocation5 + $0x98] sm:$0xff]
    %v93 = vld [vmem:[#allocation5 + $0xa0] sm:$0xff]
    %v94 = vld [vmem:[#allocation5 + $0xa8] sm:$0xff]
    %v95 = vld [vmem:[#allocation5 + $0xb0] sm:$0xff]
    %v96 = vld [vmem:[#allocation5 + $0xb8] sm:$0xff]
    %v97 = vld [vmem:[#allocation5 + $0xc0] sm:$0xff]
    %v98 = vld [vmem:[#allocation5 + $0xc8] sm:$0xff]
    %v99 = vld [vmem:[#allocation5 + $0xd0] sm:$0xff]
    %v100 = vld [vmem:[#allocation5 + $0xd8] sm:$0xff]
    %v101 = vld [vmem:[#allocation5 + $0xe0] sm:$0xff]
    %v102 = vld [vmem:[#allocation5 + $0xe8] sm:$0xff]
    %v103 = vld [vmem:[#allocation5 + $0xf0] sm:$0xff]
    %v104 = vld [vmem:[#allocation5 + $0xf8] sm:$0xff]
    %v105 = vmul.f32 %v73, 3.1415927
    %v106 = vmul.f32 %v74, 3.1415927
    %v107 = vmul.f32 %v75, 3.1415927
    %v108 = vmul.f32 %v76, 3.1415927
    %v109 = vmul.f32 %v77, 3.1415927
    %v110 = vmul.f32 %v78, 3.1415927
    %v111 = vmul.f32 %v79, 3.1415927
    %v112 = vmul.f32 %v80, 3.1415927
    %v113 = vmul.f32 %v81, 3.1415927
    %v114 = vmul.f32 %v82, 3.1415927
    %v115 = vmul.f32 %v83, 3.1415927
    %v116 = vmul.f32 %v84, 3.1415927
    %v117 = vmul.f32 %v85, 3.1415927
    %v118 = vmul.f32 %v86, 3.1415927
    %v119 = vmul.f32 %v87, 3.1415927
    %v120 = vmul.f32 %v88, 3.1415927
    %v121 = vmul.f32 %v89, 3.1415927
    %v122 = vmul.f32 %v90, 3.1415927
    %v123 = vmul.f32 %v91, 3.1415927
    %v124 = vmul.f32 %v92, 3.1415927
    %v125 = vmul.f32 %v93, 3.1415927
    %v126 = vmul.f32 %v94, 3.1415927
    %v127 = vmul.f32 %v95, 3.1415927
    %v128 = vmul.f32 %v96, 3.1415927
    %v129 = vmul.f32 %v97, 3.1415927
    %v130 = vmul.f32 %v98, 3.1415927
    %v131 = vmul.f32 %v99, 3.1415927
    %v132 = vmul.f32 %v100, 3.1415927
    %v133 = vmul.f32 %v101, 3.1415927
    %v134 = vmul.f32 %v102, 3.1415927
    %v135 = vmul.f32 %v103, 3.1415927
    %v136 = vmul.f32 %v104, 3.1415927
    %v137 = vld [vmem:[#allocation2] sm:$0xff]
    %v138 = vld [vmem:[#allocation2 + $0x8] sm:$0xff]
    %v139 = vld [vmem:[#allocation2 + $0x10] sm:$0xff]
    %v140 = vld [vmem:[#allocation2 + $0x18] sm:$0xff]
    %v141 = vld [vmem:[#allocation2 + $0x20] sm:$0xff]
    %v142 = vld [vmem:[#allocation2 + $0x28] sm:$0xff]
    %v143 = vld [vmem:[#allocation2 + $0x30] sm:$0xff]
    %v144 = vld [vmem:[#allocation2 + $0x38] sm:$0xff]
    %v145 = vld [vmem:[#allocation2 + $0x40] sm:$0xff]
    %v146 = vld [vmem:[#allocation2 + $0x48] sm:$0xff]
    %v147 = vld [vmem:[#allocation2 + $0x50] sm:$0xff]
    %v148 = vld [vmem:[#allocation2 + $0x58] sm:$0xff]
    %v149 = vld [vmem:[#allocation2 + $0x60] sm:$0xff]
    %v150 = vld [vmem:[#allocation2 + $0x68] sm:$0xff]
    %v151 = vld [vmem:[#allocation2 + $0x70] sm:$0xff]
    %v152 = vld [vmem:[#allocation2 + $0x78] sm:$0xff]
    %v153 = vld [vmem:[#allocation2 + $0x80] sm:$0xff]
    %v154 = vld [vmem:[#allocation2 + $0x88] sm:$0xff]
    %v155 = vld [vmem:[#allocation2 + $0x90] sm:$0xff]
    %v156 = vld [vmem:[#allocation2 + $0x98] sm:$0xff]
    %v157 = vld [vmem:[#allocation2 + $0xa0] sm:$0xff]
    %v158 = vld [vmem:[#allocation2 + $0xa8] sm:$0xff]
    %v159 = vld [vmem:[#allocation2 + $0xb0] sm:$0xff]
    %v160 = vld [vmem:[#allocation2 + $0xb8] sm:$0xff]
    %v161 = vld [vmem:[#allocation2 + $0xc0] sm:$0xff]
    %v162 = vld [vmem:[#allocation2 + $0xc8] sm:$0xff]
    %v163 = vld [vmem:[#allocation2 + $0xd0] sm:$0xff]
    %v164 = vld [vmem:[#allocation2 + $0xd8] sm:$0xff]
    %v165 = vld [vmem:[#allocation2 + $0xe0] sm:$0xff]
    %v166 = vld [vmem:[#allocation2 + $0xe8] sm:$0xff]
    %v167 = vld [vmem:[#allocation2 + $0xf0] sm:$0xff]
    %v168 = vld [vmem:[#allocation2 + $0xf8] sm:$0xff]
    %v169 = vld [vmem:[#allocation7] sm:$0xff]
    %v170 = vld [vmem:[#allocation7 + $0x8] sm:$0xff]
    %v171 = vld [vmem:[#allocation7 + $0x10] sm:$0xff]
    %v172 = vld [vmem:[#allocation7 + $0x18] sm:$0xff]
    %v173 = vld [vmem:[#allocation7 + $0x20] sm:$0xff]
    %v174 = vld [vmem:[#allocation7 + $0x28] sm:$0xff]
    %v175 = vld [vmem:[#allocation7 + $0x30] sm:$0xff]
    %v176 = vld [vmem:[#allocation7 + $0x38] sm:$0xff]
    %v177 = vld [vmem:[#allocation7 + $0x40] sm:$0xff]
    %v178 = vld [vmem:[#allocation7 + $0x48] sm:$0xff]
    %v179 = vld [vmem:[#allocation7 + $0x50] sm:$0xff]
    %v180 = vld [vmem:[#allocation7 + $0x58] sm:$0xff]
    %v181 = vld [vmem:[#allocation7 + $0x60] sm:$0xff]
    %v182 = vld [vmem:[#allocation7 + $0x68] sm:$0xff]
    %v183 = vld [vmem:[#allocation7 + $0x70] sm:$0xff]
    %v184 = vld [vmem:[#allocation7 + $0x78] sm:$0xff]
    %v185 = vld [vmem:[#allocation7 + $0x80] sm:$0xff]
    %v186 = vld [vmem:[#allocation7 + $0x88] sm:$0xff]
    %v187 = vld [vmem:[#allocation7 + $0x90] sm:$0xff]
    %v188 = vld [vmem:[#allocation7 + $0x98] sm:$0xff]
    %v189 = vld [vmem:[#allocation7 + $0xa0] sm:$0xff]
    %v190 = vld [vmem:[#allocation7 + $0xa8] sm:$0xff]
    %v191 = vld [vmem:[#allocation7 + $0xb0] sm:$0xff]
    %v192 = vld [vmem:[#allocation7 + $0xb8] sm:$0xff]
    %v193 = vld [vmem:[#allocation7 + $0xc0] sm:$0xff]
    %v194 = vld [vmem:[#allocation7 + $0xc8] sm:$0xff]
    %v195 = vld [vmem:[#allocation7 + $0xd0] sm:$0xff]
    %v196 = vld [vmem:[#allocation7 + $0xd8] sm:$0xff]
    %v197 = vld [vmem:[#allocation7 + $0xe0] sm:$0xff]
    %v198 = vld [vmem:[#allocation7 + $0xe8] sm:$0xff]
    %v199 = vld [vmem:[#allocation7 + $0xf0] sm:$0xff]
    %v200 = vld [vmem:[#allocation7 + $0xf8] sm:$0xff]
    %v201 = vmul.f32 %v105, %v169
    %v202 = vmul.f32 %v106, %v170
    %v203 = vmul.f32 %v107, %v171
    %v204 = vmul.f32 %v108, %v172
    %v205 = vmul.f32 %v109, %v173
    %v206 = vmul.f32 %v110, %v174
    %v207 = vmul.f32 %v111, %v175
    %v208 = vmul.f32 %v112, %v176
    %v209 = vmul.f32 %v113, %v177
    %v210 = vmul.f32 %v114, %v178
    %v211 = vmul.f32 %v115, %v179
    %v212 = vmul.f32 %v116, %v180
    %v213 = vmul.f32 %v117, %v181
    %v214 = vmul.f32 %v118, %v182
    %v215 = vmul.f32 %v119, %v183
    %v216 = vmul.f32 %v120, %v184
    %v217 = vmul.f32 %v121, %v185
    %v218 = vmul.f32 %v122, %v186
    %v219 = vmul.f32 %v123, %v187
    %v220 = vmul.f32 %v124, %v188
    %v221 = vmul.f32 %v125, %v189
    %v222 = vmul.f32 %v126, %v190
    %v223 = vmul.f32 %v127, %v191
    %v224 = vmul.f32 %v128, %v192
    %v225 = vmul.f32 %v129, %v193
    %v226 = vmul.f32 %v130, %v194
    %v227 = vmul.f32 %v131, %v195
    %v228 = vmul.f32 %v132, %v196
    %v229 = vmul.f32 %v133, %v197
    %v230 = vmul.f32 %v134, %v198
    %v231 = vmul.f32 %v135, %v199
    %v232 = vmul.f32 %v136, %v200
    %v233 = vand.u32 2147483647, %v201
    %vm234 = vcmp.le.f32.partialorder %v233, 0.7853982
    %vm235 = vcmp.lt.s32.totalorder %v201, 0
    %v236 = vand.u32 %v201, 2139095040
    %v237 = vshrl.u32 %v236, 23
    %v238 = vsub.s32 %v237, 127
    %v239 = vand.u32 2147483647, %v201
    %v240 = vand.u32 %v239, 8388607
    %v241 = vor.u32 %v240, 8388608
    %v242 = vsub.s32 0, %v241
    %v243 = vadd.s32 %v238, 1
    %vm244 = vcmp.gt.s32.totalorder %v243, 0
    %v245 = vsel %vm244, %v243, 0
    %v246 = vshrl.u32 %v245, 5
    %v247 = vand.u32 %v245, 31
    %v248 = vsub.s32 32, %v247
    %v249 = vshrl.u32 683565275, %v248
    %v250 = vshll.u32 683565275, %v247
    %v251 = vshrl.u32 2475754826, %v248
    %v252 = vor.u32 %v250, %v251
    %v253 = vshll.u32 2475754826, %v247
    %v254 = vshrl.u32 2131351028, %v248
    %v255 = vor.u32 %v253, %v254
    %v256 = vshll.u32 2131351028, %v247
    %v257 = vshrl.u32 2102212464, %v248
    %v258 = vor.u32 %v256, %v257
    %v259 = vshll.u32 2102212464, %v247
    %v260 = vshrl.u32 920167782, %v248
    %v261 = vor.u32 %v259, %v260
    %v262 = vshll.u32 920167782, %v247
    %v263 = vshrl.u32 1326507024, %v248
    %v264 = vor.u32 %v262, %v263
    %vm265 = vcmp.lt.s32.totalorder %v246, 1
    %vm266 = vcmp.lt.s32.totalorder %v246, 2
    %vm267 = vcmp.lt.s32.totalorder %v246, 3
    %vm268 = vcmp.lt.s32.totalorder %v246, 4
    %v269 = vsel %vm265, %v249, %v252
    %v270 = vsel %vm268, %v258, 2102212464
    %v271 = vsel %vm267, %v255, %v270
    %v272 = vsel %vm266, %v269, %v271
    %v273 = vsel %vm265, %v252, %v255
    %v274 = vsel %vm268, %v261, 920167782
    %v275 = vsel %vm267, %v258, %v274
    %v276 = vsel %vm266, %v273, %v275
    %v277 = vsel %vm265, %v255, %v258
    %v278 = vsel %vm268, %v264, 1326507024
    %v279 = vsel %vm267, %v261, %v278
    %v280 = vsel %vm266, %v277, %v279
    %v281 = vshll.u32 %v241, 8
    %v282 = vmul.u32.u64.compose %v281, %v280
    %v283 = vextract.low.u32 %v282
    %v284 = vextract.high.u32 %v282
    %v285 = vmul.u32.u64.compose %v281, %v276
    %v286 = vextract.low.u32 %v285
    %v287 = vextract.high.u32 %v285
    %v288 = vmul.u32 %v281, %v272
    %v289 = vadd.s32 %v284, %v286
    %vm290 = vc.u32 %v284, %v286
    %v291 = vadd.s32 %v287, 1
    %v292 = vsel %vm290, %v291, %v287
    %v293 = vadd.s32 %v288, %v292
    %v294 = vadd.s32 %v293, 536870912
    %v295 = vshrl.u32 %v294, 30
    %v296 = vshll.u32 %v295, 30
    %v297 = vsub.s32 %v293, %v296
    %vm298 = vcmp.lt.s32.totalorder %v297, 0
    %v299 = vsub.s32 0, %v297
    %v300 = vsel %vm298, %v299, %v297
    %v301 = vclz %v300
    %v302 = vsub.s32 %v301, 2
    %vm303 = vcmp.gt.s32.totalorder 0, %v302
    %v304 = vsel %vm303, 0, %v302
    %v305 = vsub.s32 32, %v304
    %v306 = vshll.u32 %v297, %v304
    %v307 = vshrl.u32 %v289, %v305
    %v308 = vor.u32 %v306, %v307
    %v309 = vsub.s32 4294967266, %v304
    %v310 = vadd.s32 %v309, 127
    %v311 = vshll.u32 %v310, 23
    %v312 = vor.u32 4788187, %v311
    %v313 = vand.u32 2147483647, %v312
    %v315 = vcvt.s32.f32 %v308
    %v316 = vmul.f32 %v315, %v313
    %v317 = vxor.u32 %v316, 2147483648
    %v318 = vsel %vm235, %v317, %v316
    %v319 = vsub.s32 4, %v295
    %v320 = vsel %vm235, %v319, %v295
    %v321 = vsel %vm234, %v201, %v318
    %v322 = vsel %vm234, 0, %v320
    %v323 = vcosq.f32.pop %v321
    %v324 = vsinq.f32.pop %v321
    %vm325 = vweird.f32 %v201
    %v326 = vadd.s32 %v322, 3
    %v327 = vand.u32 %v326, 3
    %vm328 = vcmp.lt.s32.totalorder %v327, 2
    %vm329 = vcmp.eq.s32.totalorder %v327, 0
    %v330 = vxor.u32 %v324, 2147483648
    %v331 = vsel %vm329, %v323, %v330
    %vm332 = vcmp.eq.s32.totalorder %v327, 2
    %v333 = vxor.u32 %v323, 2147483648
    %v334 = vsel %vm332, %v333, %v324
    %v335 = vsel %vm328, %v331, %v334
    %v336 = vsel %vm325, nan, %v335
    %v337 = vand.u32 2147483647, %v202
    %vm338 = vcmp.le.f32.partialorder %v337, 0.7853982
    %vm339 = vcmp.lt.s32.totalorder %v202, 0
    %v340 = vand.u32 %v202, 2139095040
    %v341 = vshrl.u32 %v340, 23
    %v342 = vsub.s32 %v341, 127
    %v343 = vand.u32 2147483647, %v202
    %v344 = vand.u32 %v343, 8388607
    %v345 = vor.u32 %v344, 8388608
    %v346 = vsub.s32 0, %v345
    %v347 = vadd.s32 %v342, 1
    %vm348 = vcmp.gt.s32.totalorder %v347, 0
    %v349 = vsel %vm348, %v347, 0
    %v350 = vshrl.u32 %v349, 5
    %v351 = vand.u32 %v349, 31
    %v352 = vsub.s32 32, %v351
    %v353 = vshrl.u32 683565275, %v352
    %v354 = vshll.u32 683565275, %v351
    %v355 = vshrl.u32 2475754826, %v352
    %v356 = vor.u32 %v354, %v355
    %v357 = vshll.u32 2475754826, %v351
    %v358 = vshrl.u32 2131351028, %v352
    %v359 = vor.u32 %v357, %v358
    %v360 = vshll.u32 2131351028, %v351
    %v361 = vshrl.u32 2102212464, %v352
    %v362 = vor.u32 %v360, %v361
    %v363 = vshll.u32 2102212464, %v351
    %v364 = vshrl.u32 920167782, %v352
    %v365 = vor.u32 %v363, %v364
    %v366 = vshll.u32 920167782, %v351
    %v367 = vshrl.u32 1326507024, %v352
    %v368 = vor.u32 %v366, %v367
    %vm369 = vcmp.lt.s32.totalorder %v350, 1
    %vm370 = vcmp.lt.s32.totalorder %v350, 2
    %vm371 = vcmp.lt.s32.totalorder %v350, 3
    %vm372 = vcmp.lt.s32.totalorder %v350, 4
    %v373 = vsel %vm369, %v353, %v356
    %v374 = vsel %vm372, %v362, 2102212464
    %v375 = vsel %vm371, %v359, %v374
    %v376 = vsel %vm370, %v373, %v375
    %v377 = vsel %vm369, %v356, %v359
    %v378 = vsel %vm372, %v365, 920167782
    %v379 = vsel %vm371, %v362, %v378
    %v380 = vsel %vm370, %v377, %v379
    %v381 = vsel %vm369, %v359, %v362
    %v382 = vsel %vm372, %v368, 1326507024
    %v383 = vsel %vm371, %v365, %v382
    %v384 = vsel %vm370, %v381, %v383
    %v385 = vshll.u32 %v345, 8
    %v386 = vmul.u32.u64.compose %v385, %v384
    %v387 = vextract.low.u32 %v386
    %v388 = vextract.high.u32 %v386
    %v389 = vmul.u32.u64.compose %v385, %v380
    %v390 = vextract.low.u32 %v389
    %v391 = vextract.high.u32 %v389
    %v392 = vmul.u32 %v385, %v376
    %v393 = vadd.s32 %v388, %v390
    %vm394 = vc.u32 %v388, %v390
    %v395 = vadd.s32 %v391, 1
    %v396 = vsel %vm394, %v395, %v391
    %v397 = vadd.s32 %v392, %v396
    %v398 = vadd.s32 %v397, 536870912
    %v399 = vshrl.u32 %v398, 30
    %v400 = vshll.u32 %v399, 30
    %v401 = vsub.s32 %v397, %v400
    %vm402 = vcmp.lt.s32.totalorder %v401, 0
    %v403 = vsub.s32 0, %v401
    %v404 = vsel %vm402, %v403, %v401
    %v405 = vclz %v404
    %v406 = vsub.s32 %v405, 2
    %vm407 = vcmp.gt.s32.totalorder 0, %v406
    %v408 = vsel %vm407, 0, %v406
    %v409 = vsub.s32 32, %v408
    %v410 = vshll.u32 %v401, %v408
    %v411 = vshrl.u32 %v393, %v409
    %v412 = vor.u32 %v410, %v411
    %v413 = vsub.s32 4294967266, %v408
    %v414 = vadd.s32 %v413, 127
    %v415 = vshll.u32 %v414, 23
    %v416 = vor.u32 4788187, %v415
    %v417 = vand.u32 2147483647, %v416
    %v419 = vcvt.s32.f32 %v412
    %v420 = vmul.f32 %v419, %v417
    %v421 = vxor.u32 %v420, 2147483648
    %v422 = vsel %vm339, %v421, %v420
    %v423 = vsub.s32 4, %v399
    %v424 = vsel %vm339, %v423, %v399
    %v425 = vsel %vm338, %v202, %v422
    %v426 = vsel %vm338, 0, %v424
    %v427 = vcosq.f32.pop %v425
    %v428 = vsinq.f32.pop %v425
    %vm429 = vweird.f32 %v202
    %v430 = vadd.s32 %v426, 3
    %v431 = vand.u32 %v430, 3
    %vm432 = vcmp.lt.s32.totalorder %v431, 2
    %vm433 = vcmp.eq.s32.totalorder %v431, 0
    %v434 = vxor.u32 %v428, 2147483648
    %v435 = vsel %vm433, %v427, %v434
    %vm436 = vcmp.eq.s32.totalorder %v431, 2
    %v437 = vxor.u32 %v427, 2147483648
    %v438 = vsel %vm436, %v437, %v428
    %v439 = vsel %vm432, %v435, %v438
    %v440 = vsel %vm429, nan, %v439
    %v441 = vand.u32 2147483647, %v203
    %vm442 = vcmp.le.f32.partialorder %v441, 0.7853982
    %vm443 = vcmp.lt.s32.totalorder %v203, 0
    %v444 = vand.u32 %v203, 2139095040
    %v445 = vshrl.u32 %v444, 23
    %v446 = vsub.s32 %v445, 127
    %v447 = vand.u32 2147483647, %v203
    %v448 = vand.u32 %v447, 8388607
    %v449 = vor.u32 %v448, 8388608
    %v450 = vsub.s32 0, %v449
    %v451 = vadd.s32 %v446, 1
    %vm452 = vcmp.gt.s32.totalorder %v451, 0
    %v453 = vsel %vm452, %v451, 0
    %v454 = vshrl.u32 %v453, 5
    %v455 = vand.u32 %v453, 31
    %v456 = vsub.s32 32, %v455
    %v457 = vshrl.u32 683565275, %v456
    %v458 = vshll.u32 683565275, %v455
    %v459 = vshrl.u32 2475754826, %v456
    %v460 = vor.u32 %v458, %v459
    %v461 = vshll.u32 2475754826, %v455
    %v462 = vshrl.u32 2131351028, %v456
    %v463 = vor.u32 %v461, %v462
    %v464 = vshll.u32 2131351028, %v455
    %v465 = vshrl.u32 2102212464, %v456
    %v466 = vor.u32 %v464, %v465
    %v467 = vshll.u32 2102212464, %v455
    %v468 = vshrl.u32 920167782, %v456
    %v469 = vor.u32 %v467, %v468
    %v470 = vshll.u32 920167782, %v455
    %v471 = vshrl.u32 1326507024, %v456
    %v472 = vor.u32 %v470, %v471
    %vm473 = vcmp.lt.s32.totalorder %v454, 1
    %vm474 = vcmp.lt.s32.totalorder %v454, 2
    %vm475 = vcmp.lt.s32.totalorder %v454, 3
    %vm476 = vcmp.lt.s32.totalorder %v454, 4
    %v477 = vsel %vm473, %v457, %v460
    %v478 = vsel %vm476, %v466, 2102212464
    %v479 = vsel %vm475, %v463, %v478
    %v480 = vsel %vm474, %v477, %v479
    %v481 = vsel %vm473, %v460, %v463
    %v482 = vsel %vm476, %v469, 920167782
    %v483 = vsel %vm475, %v466, %v482
    %v484 = vsel %vm474, %v481, %v483
    %v485 = vsel %vm473, %v463, %v466
    %v486 = vsel %vm476, %v472, 1326507024
    %v487 = vsel %vm475, %v469, %v486
    %v488 = vsel %vm474, %v485, %v487
    %v489 = vshll.u32 %v449, 8
    %v490 = vmul.u32.u64.compose %v489, %v488
    %v491 = vextract.low.u32 %v490
    %v492 = vextract.high.u32 %v490
    %v493 = vmul.u32.u64.compose %v489, %v484
    %v494 = vextract.low.u32 %v493
    %v495 = vextract.high.u32 %v493
    %v496 = vmul.u32 %v489, %v480
    %v497 = vadd.s32 %v492, %v494
    %vm498 = vc.u32 %v492, %v494
    %v499 = vadd.s32 %v495, 1
    %v500 = vsel %vm498, %v499, %v495
    %v501 = vadd.s32 %v496, %v500
    %v502 = vadd.s32 %v501, 536870912
    %v503 = vshrl.u32 %v502, 30
    %v504 = vshll.u32 %v503, 30
    %v505 = vsub.s32 %v501, %v504
    %vm506 = vcmp.lt.s32.totalorder %v505, 0
    %v507 = vsub.s32 0, %v505
    %v508 = vsel %vm506, %v507, %v505
    %v509 = vclz %v508
    %v510 = vsub.s32 %v509, 2
    %vm511 = vcmp.gt.s32.totalorder 0, %v510
    %v512 = vsel %vm511, 0, %v510
    %v513 = vsub.s32 32, %v512
    %v514 = vshll.u32 %v505, %v512
    %v515 = vshrl.u32 %v497, %v513
    %v516 = vor.u32 %v514, %v515
    %v517 = vsub.s32 4294967266, %v512
    %v518 = vadd.s32 %v517, 127
    %v519 = vshll.u32 %v518, 23
    %v520 = vor.u32 4788187, %v519
    %v521 = vand.u32 2147483647, %v520
    %v523 = vcvt.s32.f32 %v516
    %v524 = vmul.f32 %v523, %v521
    %v525 = vxor.u32 %v524, 2147483648
    %v526 = vsel %vm443, %v525, %v524
    %v527 = vsub.s32 4, %v503
    %v528 = vsel %vm443, %v527, %v503
    %v529 = vsel %vm442, %v203, %v526
    %v530 = vsel %vm442, 0, %v528
    %v531 = vcosq.f32.pop %v529
    %v532 = vsinq.f32.pop %v529
    %vm533 = vweird.f32 %v203
    %v534 = vadd.s32 %v530, 3
    %v535 = vand.u32 %v534, 3
    %vm536 = vcmp.lt.s32.totalorder %v535, 2
    %vm537 = vcmp.eq.s32.totalorder %v535, 0
    %v538 = vxor.u32 %v532, 2147483648
    %v539 = vsel %vm537, %v531, %v538
    %vm540 = vcmp.eq.s32.totalorder %v535, 2
    %v541 = vxor.u32 %v531, 2147483648
    %v542 = vsel %vm540, %v541, %v532
    %v543 = vsel %vm536, %v539, %v542
    %v544 = vsel %vm533, nan, %v543
    %v545 = vand.u32 2147483647, %v204
    %vm546 = vcmp.le.f32.partialorder %v545, 0.7853982
    %vm547 = vcmp.lt.s32.totalorder %v204, 0
    %v548 = vand.u32 %v204, 2139095040
    %v549 = vshrl.u32 %v548, 23
    %v550 = vsub.s32 %v549, 127
    %v551 = vand.u32 2147483647, %v204
    %v552 = vand.u32 %v551, 8388607
    %v553 = vor.u32 %v552, 8388608
    %v554 = vsub.s32 0, %v553
    %v555 = vadd.s32 %v550, 1
    %vm556 = vcmp.gt.s32.totalorder %v555, 0
    %v557 = vsel %vm556, %v555, 0
    %v558 = vshrl.u32 %v557, 5
    %v559 = vand.u32 %v557, 31
    %v560 = vsub.s32 32, %v559
    %v561 = vshrl.u32 683565275, %v560
    %v562 = vshll.u32 683565275, %v559
    %v563 = vshrl.u32 2475754826, %v560
    %v564 = vor.u32 %v562, %v563
    %v565 = vshll.u32 2475754826, %v559
    %v566 = vshrl.u32 2131351028, %v560
    %v567 = vor.u32 %v565, %v566
    %v568 = vshll.u32 2131351028, %v559
    %v569 = vshrl.u32 2102212464, %v560
    %v570 = vor.u32 %v568, %v569
    %v571 = vshll.u32 2102212464, %v559
    %v572 = vshrl.u32 920167782, %v560
    %v573 = vor.u32 %v571, %v572
    %v574 = vshll.u32 920167782, %v559
    %v575 = vshrl.u32 1326507024, %v560
    %v576 = vor.u32 %v574, %v575
    %vm577 = vcmp.lt.s32.totalorder %v558, 1
    %vm578 = vcmp.lt.s32.totalorder %v558, 2
    %vm579 = vcmp.lt.s32.totalorder %v558, 3
    %vm580 = vcmp.lt.s32.totalorder %v558, 4
    %v581 = vsel %vm577, %v561, %v564
    %v582 = vsel %vm580, %v570, 2102212464
    %v583 = vsel %vm579, %v567, %v582
    %v584 = vsel %vm578, %v581, %v583
    %v585 = vsel %vm577, %v564, %v567
    %v586 = vsel %vm580, %v573, 920167782
    %v587 = vsel %vm579, %v570, %v586
    %v588 = vsel %vm578, %v585, %v587
    %v589 = vsel %vm577, %v567, %v570
    %v590 = vsel %vm580, %v576, 1326507024
    %v591 = vsel %vm579, %v573, %v590
    %v592 = vsel %vm578, %v589, %v591
    %v593 = vshll.u32 %v553, 8
    %v594 = vmul.u32.u64.compose %v593, %v592
    %v595 = vextract.low.u32 %v594
    %v596 = vextract.high.u32 %v594
    %v597 = vmul.u32.u64.compose %v593, %v588
    %v598 = vextract.low.u32 %v597
    %v599 = vextract.high.u32 %v597
    %v600 = vmul.u32 %v593, %v584
    %v601 = vadd.s32 %v596, %v598
    %vm602 = vc.u32 %v596, %v598
    %v603 = vadd.s32 %v599, 1
    %v604 = vsel %vm602, %v603, %v599
    %v605 = vadd.s32 %v600, %v604
    %v606 = vadd.s32 %v605, 536870912
    %v607 = vshrl.u32 %v606, 30
    %v608 = vshll.u32 %v607, 30
    %v609 = vsub.s32 %v605, %v608
    %vm610 = vcmp.lt.s32.totalorder %v609, 0
    %v611 = vsub.s32 0, %v609
    %v612 = vsel %vm610, %v611, %v609
    %v613 = vclz %v612
    %v614 = vsub.s32 %v613, 2
    %vm615 = vcmp.gt.s32.totalorder 0, %v614
    %v616 = vsel %vm615, 0, %v614
    %v617 = vsub.s32 32, %v616
    %v618 = vshll.u32 %v609, %v616
    %v619 = vshrl.u32 %v601, %v617
    %v620 = vor.u32 %v618, %v619
    %v621 = vsub.s32 4294967266, %v616
    %v622 = vadd.s32 %v621, 127
    %v623 = vshll.u32 %v622, 23
    %v624 = vor.u32 4788187, %v623
    %v625 = vand.u32 2147483647, %v624
    %v627 = vcvt.s32.f32 %v620
    %v628 = vmul.f32 %v627, %v625
    %v629 = vxor.u32 %v628, 2147483648
    %v630 = vsel %vm547, %v629, %v628
    %v631 = vsub.s32 4, %v607
    %v632 = vsel %vm547, %v631, %v607
    %v633 = vsel %vm546, %v204, %v630
    %v634 = vsel %vm546, 0, %v632
    %v635 = vcosq.f32.pop %v633
    %v636 = vsinq.f32.pop %v633
    %vm637 = vweird.f32 %v204
    %v638 = vadd.s32 %v634, 3
    %v639 = vand.u32 %v638, 3
    %vm640 = vcmp.lt.s32.totalorder %v639, 2
    %vm641 = vcmp.eq.s32.totalorder %v639, 0
    %v642 = vxor.u32 %v636, 2147483648
    %v643 = vsel %vm641, %v635, %v642
    %vm644 = vcmp.eq.s32.totalorder %v639, 2
    %v645 = vxor.u32 %v635, 2147483648
    %v646 = vsel %vm644, %v645, %v636
    %v647 = vsel %vm640, %v643, %v646
    %v648 = vsel %vm637, nan, %v647
    %v649 = vand.u32 2147483647, %v205
    %vm650 = vcmp.le.f32.partialorder %v649, 0.7853982
    %vm651 = vcmp.lt.s32.totalorder %v205, 0
    %v652 = vand.u32 %v205, 2139095040
    %v653 = vshrl.u32 %v652, 23
    %v654 = vsub.s32 %v653, 127
    %v655 = vand.u32 2147483647, %v205
    %v656 = vand.u32 %v655, 8388607
    %v657 = vor.u32 %v656, 8388608
    %v658 = vsub.s32 0, %v657
    %v659 = vadd.s32 %v654, 1
    %vm660 = vcmp.gt.s32.totalorder %v659, 0
    %v661 = vsel %vm660, %v659, 0
    %v662 = vshrl.u32 %v661, 5
    %v663 = vand.u32 %v661, 31
    %v664 = vsub.s32 32, %v663
    %v665 = vshrl.u32 683565275, %v664
    %v666 = vshll.u32 683565275, %v663
    %v667 = vshrl.u32 2475754826, %v664
    %v668 = vor.u32 %v666, %v667
    %v669 = vshll.u32 2475754826, %v663
    %v670 = vshrl.u32 2131351028, %v664
    %v671 = vor.u32 %v669, %v670
    %v672 = vshll.u32 2131351028, %v663
    %v673 = vshrl.u32 2102212464, %v664
    %v674 = vor.u32 %v672, %v673
    %v675 = vshll.u32 2102212464, %v663
    %v676 = vshrl.u32 920167782, %v664
    %v677 = vor.u32 %v675, %v676
    %v678 = vshll.u32 920167782, %v663
    %v679 = vshrl.u32 1326507024, %v664
    %v680 = vor.u32 %v678, %v679
    %vm681 = vcmp.lt.s32.totalorder %v662, 1
    %vm682 = vcmp.lt.s32.totalorder %v662, 2
    %vm683 = vcmp.lt.s32.totalorder %v662, 3
    %vm684 = vcmp.lt.s32.totalorder %v662, 4
    %v685 = vsel %vm681, %v665, %v668
    %v686 = vsel %vm684, %v674, 2102212464
    %v687 = vsel %vm683, %v671, %v686
    %v688 = vsel %vm682, %v685, %v687
    %v689 = vsel %vm681, %v668, %v671
    %v690 = vsel %vm684, %v677, 920167782
    %v691 = vsel %vm683, %v674, %v690
    %v692 = vsel %vm682, %v689, %v691
    %v693 = vsel %vm681, %v671, %v674
    %v694 = vsel %vm684, %v680, 1326507024
    %v695 = vsel %vm683, %v677, %v694
    %v696 = vsel %vm682, %v693, %v695
    %v697 = vshll.u32 %v657, 8
    %v698 = vmul.u32.u64.compose %v697, %v696
    %v699 = vextract.low.u32 %v698
    %v700 = vextract.high.u32 %v698
    %v701 = vmul.u32.u64.compose %v697, %v692
    %v702 = vextract.low.u32 %v701
    %v703 = vextract.high.u32 %v701
    %v704 = vmul.u32 %v697, %v688
    %v705 = vadd.s32 %v700, %v702
    %vm706 = vc.u32 %v700, %v702
    %v707 = vadd.s32 %v703, 1
    %v708 = vsel %vm706, %v707, %v703
    %v709 = vadd.s32 %v704, %v708
    %v710 = vadd.s32 %v709, 536870912
    %v711 = vshrl.u32 %v710, 30
    %v712 = vshll.u32 %v711, 30
    %v713 = vsub.s32 %v709, %v712
    %vm714 = vcmp.lt.s32.totalorder %v713, 0
    %v715 = vsub.s32 0, %v713
    %v716 = vsel %vm714, %v715, %v713
    %v717 = vclz %v716
    %v718 = vsub.s32 %v717, 2
    %vm719 = vcmp.gt.s32.totalorder 0, %v718
    %v720 = vsel %vm719, 0, %v718
    %v721 = vsub.s32 32, %v720
    %v722 = vshll.u32 %v713, %v720
    %v723 = vshrl.u32 %v705, %v721
    %v724 = vor.u32 %v722, %v723
    %v725 = vsub.s32 4294967266, %v720
    %v726 = vadd.s32 %v725, 127
    %v727 = vshll.u32 %v726, 23
    %v728 = vor.u32 4788187, %v727
    %v729 = vand.u32 2147483647, %v728
    %v731 = vcvt.s32.f32 %v724
    %v732 = vmul.f32 %v731, %v729
    %v733 = vxor.u32 %v732, 2147483648
    %v734 = vsel %vm651, %v733, %v732
    %v735 = vsub.s32 4, %v711
    %v736 = vsel %vm651, %v735, %v711
    %v737 = vsel %vm650, %v205, %v734
    %v738 = vsel %vm650, 0, %v736
    %v739 = vcosq.f32.pop %v737
    %v740 = vsinq.f32.pop %v737
    %vm741 = vweird.f32 %v205
    %v742 = vadd.s32 %v738, 3
    %v743 = vand.u32 %v742, 3
    %vm744 = vcmp.lt.s32.totalorder %v743, 2
    %vm745 = vcmp.eq.s32.totalorder %v743, 0
    %v746 = vxor.u32 %v740, 2147483648
    %v747 = vsel %vm745, %v739, %v746
    %vm748 = vcmp.eq.s32.totalorder %v743, 2
    %v749 = vxor.u32 %v739, 2147483648
    %v750 = vsel %vm748, %v749, %v740
    %v751 = vsel %vm744, %v747, %v750
    %v752 = vsel %vm741, nan, %v751
    %v753 = vand.u32 2147483647, %v206
    %vm754 = vcmp.le.f32.partialorder %v753, 0.7853982
    %vm755 = vcmp.lt.s32.totalorder %v206, 0
    %v756 = vand.u32 %v206, 2139095040
    %v757 = vshrl.u32 %v756, 23
    %v758 = vsub.s32 %v757, 127
    %v759 = vand.u32 2147483647, %v206
    %v760 = vand.u32 %v759, 8388607
    %v761 = vor.u32 %v760, 8388608
    %v762 = vsub.s32 0, %v761
    %v763 = vadd.s32 %v758, 1
    %vm764 = vcmp.gt.s32.totalorder %v763, 0
    %v765 = vsel %vm764, %v763, 0
    %v766 = vshrl.u32 %v765, 5
    %v767 = vand.u32 %v765, 31
    %v768 = vsub.s32 32, %v767
    %v769 = vshrl.u32 683565275, %v768
    %v770 = vshll.u32 683565275, %v767
    %v771 = vshrl.u32 2475754826, %v768
    %v772 = vor.u32 %v770, %v771
    %v773 = vshll.u32 2475754826, %v767
    %v774 = vshrl.u32 2131351028, %v768
    %v775 = vor.u32 %v773, %v774
    %v776 = vshll.u32 2131351028, %v767
    %v777 = vshrl.u32 2102212464, %v768
    %v778 = vor.u32 %v776, %v777
    %v779 = vshll.u32 2102212464, %v767
    %v780 = vshrl.u32 920167782, %v768
    %v781 = vor.u32 %v779, %v780
    %v782 = vshll.u32 920167782, %v767
    %v783 = vshrl.u32 1326507024, %v768
    %v784 = vor.u32 %v782, %v783
    %vm785 = vcmp.lt.s32.totalorder %v766, 1
    %vm786 = vcmp.lt.s32.totalorder %v766, 2
    %vm787 = vcmp.lt.s32.totalorder %v766, 3
    %vm788 = vcmp.lt.s32.totalorder %v766, 4
    %v789 = vsel %vm785, %v769, %v772
    %v790 = vsel %vm788, %v778, 2102212464
    %v791 = vsel %vm787, %v775, %v790
    %v792 = vsel %vm786, %v789, %v791
    %v793 = vsel %vm785, %v772, %v775
    %v794 = vsel %vm788, %v781, 920167782
    %v795 = vsel %vm787, %v778, %v794
    %v796 = vsel %vm786, %v793, %v795
    %v797 = vsel %vm785, %v775, %v778
    %v798 = vsel %vm788, %v784, 1326507024
    %v799 = vsel %vm787, %v781, %v798
    %v800 = vsel %vm786, %v797, %v799
    %v801 = vshll.u32 %v761, 8
    %v802 = vmul.u32.u64.compose %v801, %v800
    %v803 = vextract.low.u32 %v802
    %v804 = vextract.high.u32 %v802
    %v805 = vmul.u32.u64.compose %v801, %v796
    %v806 = vextract.low.u32 %v805
    %v807 = vextract.high.u32 %v805
    %v808 = vmul.u32 %v801, %v792
    %v809 = vadd.s32 %v804, %v806
    %vm810 = vc.u32 %v804, %v806
    %v811 = vadd.s32 %v807, 1
    %v812 = vsel %vm810, %v811, %v807
    %v813 = vadd.s32 %v808, %v812
    %v814 = vadd.s32 %v813, 536870912
    %v815 = vshrl.u32 %v814, 30
    %v816 = vshll.u32 %v815, 30
    %v817 = vsub.s32 %v813, %v816
    %vm818 = vcmp.lt.s32.totalorder %v817, 0
    %v819 = vsub.s32 0, %v817
    %v820 = vsel %vm818, %v819, %v817
    %v821 = vclz %v820
    %v822 = vsub.s32 %v821, 2
    %vm823 = vcmp.gt.s32.totalorder 0, %v822
    %v824 = vsel %vm823, 0, %v822
    %v825 = vsub.s32 32, %v824
    %v826 = vshll.u32 %v817, %v824
    %v827 = vshrl.u32 %v809, %v825
    %v828 = vor.u32 %v826, %v827
    %v829 = vsub.s32 4294967266, %v824
    %v830 = vadd.s32 %v829, 127
    %v831 = vshll.u32 %v830, 23
    %v832 = vor.u32 4788187, %v831
    %v833 = vand.u32 2147483647, %v832
    %v835 = vcvt.s32.f32 %v828
    %v836 = vmul.f32 %v835, %v833
    %v837 = vxor.u32 %v836, 2147483648
    %v838 = vsel %vm755, %v837, %v836
    %v839 = vsub.s32 4, %v815
    %v840 = vsel %vm755, %v839, %v815
    %v841 = vsel %vm754, %v206, %v838
    %v842 = vsel %vm754, 0, %v840
    %v843 = vcosq.f32.pop %v841
    %v844 = vsinq.f32.pop %v841
    %vm845 = vweird.f32 %v206
    %v846 = vadd.s32 %v842, 3
    %v847 = vand.u32 %v846, 3
    %vm848 = vcmp.lt.s32.totalorder %v847, 2
    %vm849 = vcmp.eq.s32.totalorder %v847, 0
    %v850 = vxor.u32 %v844, 2147483648
    %v851 = vsel %vm849, %v843, %v850
    %vm852 = vcmp.eq.s32.totalorder %v847, 2
    %v853 = vxor.u32 %v843, 2147483648
    %v854 = vsel %vm852, %v853, %v844
    %v855 = vsel %vm848, %v851, %v854
    %v856 = vsel %vm845, nan, %v855
    %v857 = vand.u32 2147483647, %v207
    %vm858 = vcmp.le.f32.partialorder %v857, 0.7853982
    %vm859 = vcmp.lt.s32.totalorder %v207, 0
    %v860 = vand.u32 %v207, 2139095040
    %v861 = vshrl.u32 %v860, 23
    %v862 = vsub.s32 %v861, 127
    %v863 = vand.u32 2147483647, %v207
    %v864 = vand.u32 %v863, 8388607
    %v865 = vor.u32 %v864, 8388608
    %v866 = vsub.s32 0, %v865
    %v867 = vadd.s32 %v862, 1
    %vm868 = vcmp.gt.s32.totalorder %v867, 0
    %v869 = vsel %vm868, %v867, 0
    %v870 = vshrl.u32 %v869, 5
    %v871 = vand.u32 %v869, 31
    %v872 = vsub.s32 32, %v871
    %v873 = vshrl.u32 683565275, %v872
    %v874 = vshll.u32 683565275, %v871
    %v875 = vshrl.u32 2475754826, %v872
    %v876 = vor.u32 %v874, %v875
    %v877 = vshll.u32 2475754826, %v871
    %v878 = vshrl.u32 2131351028, %v872
    %v879 = vor.u32 %v877, %v878
    %v880 = vshll.u32 2131351028, %v871
    %v881 = vshrl.u32 2102212464, %v872
    %v882 = vor.u32 %v880, %v881
    %v883 = vshll.u32 2102212464, %v871
    %v884 = vshrl.u32 920167782, %v872
    %v885 = vor.u32 %v883, %v884
    %v886 = vshll.u32 920167782, %v871
    %v887 = vshrl.u32 1326507024, %v872
    %v888 = vor.u32 %v886, %v887
    %vm889 = vcmp.lt.s32.totalorder %v870, 1
    %vm890 = vcmp.lt.s32.totalorder %v870, 2
    %vm891 = vcmp.lt.s32.totalorder %v870, 3
    %vm892 = vcmp.lt.s32.totalorder %v870, 4
    %v893 = vsel %vm889, %v873, %v876
    %v894 = vsel %vm892, %v882, 2102212464
    %v895 = vsel %vm891, %v879, %v894
    %v896 = vsel %vm890, %v893, %v895
    %v897 = vsel %vm889, %v876, %v879
    %v898 = vsel %vm892, %v885, 920167782
    %v899 = vsel %vm891, %v882, %v898
    %v900 = vsel %vm890, %v897, %v899
    %v901 = vsel %vm889, %v879, %v882
    %v902 = vsel %vm892, %v888, 1326507024
    %v903 = vsel %vm891, %v885, %v902
    %v904 = vsel %vm890, %v901, %v903
    %v905 = vshll.u32 %v865, 8
    %v906 = vmul.u32.u64.compose %v905, %v904
    %v907 = vextract.low.u32 %v906
    %v908 = vextract.high.u32 %v906
    %v909 = vmul.u32.u64.compose %v905, %v900
    %v910 = vextract.low.u32 %v909
    %v911 = vextract.high.u32 %v909
    %v912 = vmul.u32 %v905, %v896
    %v913 = vadd.s32 %v908, %v910
    %vm914 = vc.u32 %v908, %v910
    %v915 = vadd.s32 %v911, 1
    %v916 = vsel %vm914, %v915, %v911
    %v917 = vadd.s32 %v912, %v916
    %v918 = vadd.s32 %v917, 536870912
    %v919 = vshrl.u32 %v918, 30
    %v920 = vshll.u32 %v919, 30
    %v921 = vsub.s32 %v917, %v920
    %vm922 = vcmp.lt.s32.totalorder %v921, 0
    %v923 = vsub.s32 0, %v921
    %v924 = vsel %vm922, %v923, %v921
    %v925 = vclz %v924
    %v926 = vsub.s32 %v925, 2
    %vm927 = vcmp.gt.s32.totalorder 0, %v926
    %v928 = vsel %vm927, 0, %v926
    %v929 = vsub.s32 32, %v928
    %v930 = vshll.u32 %v921, %v928
    %v931 = vshrl.u32 %v913, %v929
    %v932 = vor.u32 %v930, %v931
    %v933 = vsub.s32 4294967266, %v928
    %v934 = vadd.s32 %v933, 127
    %v935 = vshll.u32 %v934, 23
    %v936 = vor.u32 4788187, %v935
    %v937 = vand.u32 2147483647, %v936
    %v939 = vcvt.s32.f32 %v932
    %v940 = vmul.f32 %v939, %v937
    %v941 = vxor.u32 %v940, 2147483648
    %v942 = vsel %vm859, %v941, %v940
    %v943 = vsub.s32 4, %v919
    %v944 = vsel %vm859, %v943, %v919
    %v945 = vsel %vm858, %v207, %v942
    %v946 = vsel %vm858, 0, %v944
    %v947 = vcosq.f32.pop %v945
    %v948 = vsinq.f32.pop %v945
    %vm949 = vweird.f32 %v207
    %v950 = vadd.s32 %v946, 3
    %v951 = vand.u32 %v950, 3
    %vm952 = vcmp.lt.s32.totalorder %v951, 2
    %vm953 = vcmp.eq.s32.totalorder %v951, 0
    %v954 = vxor.u32 %v948, 2147483648
    %v955 = vsel %vm953, %v947, %v954
    %vm956 = vcmp.eq.s32.totalorder %v951, 2
    %v957 = vxor.u32 %v947, 2147483648
    %v958 = vsel %vm956, %v957, %v948
    %v959 = vsel %vm952, %v955, %v958
    %v960 = vsel %vm949, nan, %v959
    %v961 = vand.u32 2147483647, %v208
    %vm962 = vcmp.le.f32.partialorder %v961, 0.7853982
    %vm963 = vcmp.lt.s32.totalorder %v208, 0
    %v964 = vand.u32 %v208, 2139095040
    %v965 = vshrl.u32 %v964, 23
    %v966 = vsub.s32 %v965, 127
    %v967 = vand.u32 2147483647, %v208
    %v968 = vand.u32 %v967, 8388607
    %v969 = vor.u32 %v968, 8388608
    %v970 = vsub.s32 0, %v969
    %v971 = vadd.s32 %v966, 1
    %vm972 = vcmp.gt.s32.totalorder %v971, 0
    %v973 = vsel %vm972, %v971, 0
    %v974 = vshrl.u32 %v973, 5
    %v975 = vand.u32 %v973, 31
    %v976 = vsub.s32 32, %v975
    %v977 = vshrl.u32 683565275, %v976
    %v978 = vshll.u32 683565275, %v975
    %v979 = vshrl.u32 2475754826, %v976
    %v980 = vor.u32 %v978, %v979
    %v981 = vshll.u32 2475754826, %v975
    %v982 = vshrl.u32 2131351028, %v976
    %v983 = vor.u32 %v981, %v982
    %v984 = vshll.u32 2131351028, %v975
    %v985 = vshrl.u32 2102212464, %v976
    %v986 = vor.u32 %v984, %v985
    %v987 = vshll.u32 2102212464, %v975
    %v988 = vshrl.u32 920167782, %v976
    %v989 = vor.u32 %v987, %v988
    %v990 = vshll.u32 920167782, %v975
    %v991 = vshrl.u32 1326507024, %v976
    %v992 = vor.u32 %v990, %v991
    %vm993 = vcmp.lt.s32.totalorder %v974, 1
    %vm994 = vcmp.lt.s32.totalorder %v974, 2
    %vm995 = vcmp.lt.s32.totalorder %v974, 3
    %vm996 = vcmp.lt.s32.totalorder %v974, 4
    %v997 = vsel %vm993, %v977, %v980
    %v998 = vsel %vm996, %v986, 2102212464
    %v999 = vsel %vm995, %v983, %v998
    %v1000 = vsel %vm994, %v997, %v999
    %v1001 = vsel %vm993, %v980, %v983
    %v1002 = vsel %vm996, %v989, 920167782
    %v1003 = vsel %vm995, %v986, %v1002
    %v1004 = vsel %vm994, %v1001, %v1003
    %v1005 = vsel %vm993, %v983, %v986
    %v1006 = vsel %vm996, %v992, 1326507024
    %v1007 = vsel %vm995, %v989, %v1006
    %v1008 = vsel %vm994, %v1005, %v1007
    %v1009 = vshll.u32 %v969, 8
    %v1010 = vmul.u32.u64.compose %v1009, %v1008
    %v1011 = vextract.low.u32 %v1010
    %v1012 = vextract.high.u32 %v1010
    %v1013 = vmul.u32.u64.compose %v1009, %v1004
    %v1014 = vextract.low.u32 %v1013
    %v1015 = vextract.high.u32 %v1013
    %v1016 = vmul.u32 %v1009, %v1000
    %v1017 = vadd.s32 %v1012, %v1014
    %vm1018 = vc.u32 %v1012, %v1014
    %v1019 = vadd.s32 %v1015, 1
    %v1020 = vsel %vm1018, %v1019, %v1015
    %v1021 = vadd.s32 %v1016, %v1020
    %v1022 = vadd.s32 %v1021, 536870912
    %v1023 = vshrl.u32 %v1022, 30
    %v1024 = vshll.u32 %v1023, 30
    %v1025 = vsub.s32 %v1021, %v1024
    %vm1026 = vcmp.lt.s32.totalorder %v1025, 0
    %v1027 = vsub.s32 0, %v1025
    %v1028 = vsel %vm1026, %v1027, %v1025
    %v1029 = vclz %v1028
    %v1030 = vsub.s32 %v1029, 2
    %vm1031 = vcmp.gt.s32.totalorder 0, %v1030
    %v1032 = vsel %vm1031, 0, %v1030
    %v1033 = vsub.s32 32, %v1032
    %v1034 = vshll.u32 %v1025, %v1032
    %v1035 = vshrl.u32 %v1017, %v1033
    %v1036 = vor.u32 %v1034, %v1035
    %v1037 = vsub.s32 4294967266, %v1032
    %v1038 = vadd.s32 %v1037, 127
    %v1039 = vshll.u32 %v1038, 23
    %v1040 = vor.u32 4788187, %v1039
    %v1041 = vand.u32 2147483647, %v1040
    %v1043 = vcvt.s32.f32 %v1036
    %v1044 = vmul.f32 %v1043, %v1041
    %v1045 = vxor.u32 %v1044, 2147483648
    %v1046 = vsel %vm963, %v1045, %v1044
    %v1047 = vsub.s32 4, %v1023
    %v1048 = vsel %vm963, %v1047, %v1023
    %v1049 = vsel %vm962, %v208, %v1046
    %v1050 = vsel %vm962, 0, %v1048
    %v1051 = vcosq.f32.pop %v1049
    %v1052 = vsinq.f32.pop %v1049
    %vm1053 = vweird.f32 %v208
    %v1054 = vadd.s32 %v1050, 3
    %v1055 = vand.u32 %v1054, 3
    %vm1056 = vcmp.lt.s32.totalorder %v1055, 2
    %vm1057 = vcmp.eq.s32.totalorder %v1055, 0
    %v1058 = vxor.u32 %v1052, 2147483648
    %v1059 = vsel %vm1057, %v1051, %v1058
    %vm1060 = vcmp.eq.s32.totalorder %v1055, 2
    %v1061 = vxor.u32 %v1051, 2147483648
    %v1062 = vsel %vm1060, %v1061, %v1052
    %v1063 = vsel %vm1056, %v1059, %v1062
    %v1064 = vsel %vm1053, nan, %v1063
    %v1065 = vand.u32 2147483647, %v209
    %vm1066 = vcmp.le.f32.partialorder %v1065, 0.7853982
    %vm1067 = vcmp.lt.s32.totalorder %v209, 0
    %v1068 = vand.u32 %v209, 2139095040
    %v1069 = vshrl.u32 %v1068, 23
    %v1070 = vsub.s32 %v1069, 127
    %v1071 = vand.u32 2147483647, %v209
    %v1072 = vand.u32 %v1071, 8388607
    %v1073 = vor.u32 %v1072, 8388608
    %v1074 = vsub.s32 0, %v1073
    %v1075 = vadd.s32 %v1070, 1
    %vm1076 = vcmp.gt.s32.totalorder %v1075, 0
    %v1077 = vsel %vm1076, %v1075, 0
    %v1078 = vshrl.u32 %v1077, 5
    %v1079 = vand.u32 %v1077, 31
    %v1080 = vsub.s32 32, %v1079
    %v1081 = vshrl.u32 683565275, %v1080
    %v1082 = vshll.u32 683565275, %v1079
    %v1083 = vshrl.u32 2475754826, %v1080
    %v1084 = vor.u32 %v1082, %v1083
    %v1085 = vshll.u32 2475754826, %v1079
    %v1086 = vshrl.u32 2131351028, %v1080
    %v1087 = vor.u32 %v1085, %v1086
    %v1088 = vshll.u32 2131351028, %v1079
    %v1089 = vshrl.u32 2102212464, %v1080
    %v1090 = vor.u32 %v1088, %v1089
    %v1091 = vshll.u32 2102212464, %v1079
    %v1092 = vshrl.u32 920167782, %v1080
    %v1093 = vor.u32 %v1091, %v1092
    %v1094 = vshll.u32 920167782, %v1079
    %v1095 = vshrl.u32 1326507024, %v1080
    %v1096 = vor.u32 %v1094, %v1095
    %vm1097 = vcmp.lt.s32.totalorder %v1078, 1
    %vm1098 = vcmp.lt.s32.totalorder %v1078, 2
    %vm1099 = vcmp.lt.s32.totalorder %v1078, 3
    %vm1100 = vcmp.lt.s32.totalorder %v1078, 4
    %v1101 = vsel %vm1097, %v1081, %v1084
    %v1102 = vsel %vm1100, %v1090, 2102212464
    %v1103 = vsel %vm1099, %v1087, %v1102
    %v1104 = vsel %vm1098, %v1101, %v1103
    %v1105 = vsel %vm1097, %v1084, %v1087
    %v1106 = vsel %vm1100, %v1093, 920167782
    %v1107 = vsel %vm1099, %v1090, %v1106
    %v1108 = vsel %vm1098, %v1105, %v1107
    %v1109 = vsel %vm1097, %v1087, %v1090
    %v1110 = vsel %vm1100, %v1096, 1326507024
    %v1111 = vsel %vm1099, %v1093, %v1110
    %v1112 = vsel %vm1098, %v1109, %v1111
    %v1113 = vshll.u32 %v1073, 8
    %v1114 = vmul.u32.u64.compose %v1113, %v1112
    %v1115 = vextract.low.u32 %v1114
    %v1116 = vextract.high.u32 %v1114
    %v1117 = vmul.u32.u64.compose %v1113, %v1108
    %v1118 = vextract.low.u32 %v1117
    %v1119 = vextract.high.u32 %v1117
    %v1120 = vmul.u32 %v1113, %v1104
    %v1121 = vadd.s32 %v1116, %v1118
    %vm1122 = vc.u32 %v1116, %v1118
    %v1123 = vadd.s32 %v1119, 1
    %v1124 = vsel %vm1122, %v1123, %v1119
    %v1125 = vadd.s32 %v1120, %v1124
    %v1126 = vadd.s32 %v1125, 536870912
    %v1127 = vshrl.u32 %v1126, 30
    %v1128 = vshll.u32 %v1127, 30
    %v1129 = vsub.s32 %v1125, %v1128
    %vm1130 = vcmp.lt.s32.totalorder %v1129, 0
    %v1131 = vsub.s32 0, %v1129
    %v1132 = vsel %vm1130, %v1131, %v1129
    %v1133 = vclz %v1132
    %v1134 = vsub.s32 %v1133, 2
    %vm1135 = vcmp.gt.s32.totalorder 0, %v1134
    %v1136 = vsel %vm1135, 0, %v1134
    %v1137 = vsub.s32 32, %v1136
    %v1138 = vshll.u32 %v1129, %v1136
    %v1139 = vshrl.u32 %v1121, %v1137
    %v1140 = vor.u32 %v1138, %v1139
    %v1141 = vsub.s32 4294967266, %v1136
    %v1142 = vadd.s32 %v1141, 127
    %v1143 = vshll.u32 %v1142, 23
    %v1144 = vor.u32 4788187, %v1143
    %v1145 = vand.u32 2147483647, %v1144
    %v1147 = vcvt.s32.f32 %v1140
    %v1148 = vmul.f32 %v1147, %v1145
    %v1149 = vxor.u32 %v1148, 2147483648
    %v1150 = vsel %vm1067, %v1149, %v1148
    %v1151 = vsub.s32 4, %v1127
    %v1152 = vsel %vm1067, %v1151, %v1127
    %v1153 = vsel %vm1066, %v209, %v1150
    %v1154 = vsel %vm1066, 0, %v1152
    %v1155 = vcosq.f32.pop %v1153
    %v1156 = vsinq.f32.pop %v1153
    %vm1157 = vweird.f32 %v209
    %v1158 = vadd.s32 %v1154, 3
    %v1159 = vand.u32 %v1158, 3
    %vm1160 = vcmp.lt.s32.totalorder %v1159, 2
    %vm1161 = vcmp.eq.s32.totalorder %v1159, 0
    %v1162 = vxor.u32 %v1156, 2147483648
    %v1163 = vsel %vm1161, %v1155, %v1162
    %vm1164 = vcmp.eq.s32.totalorder %v1159, 2
    %v1165 = vxor.u32 %v1155, 2147483648
    %v1166 = vsel %vm1164, %v1165, %v1156
    %v1167 = vsel %vm1160, %v1163, %v1166
    %v1168 = vsel %vm1157, nan, %v1167
    %v1169 = vand.u32 2147483647, %v210
    %vm1170 = vcmp.le.f32.partialorder %v1169, 0.7853982
    %vm1171 = vcmp.lt.s32.totalorder %v210, 0
    %v1172 = vand.u32 %v210, 2139095040
    %v1173 = vshrl.u32 %v1172, 23
    %v1174 = vsub.s32 %v1173, 127
    %v1175 = vand.u32 2147483647, %v210
    %v1176 = vand.u32 %v1175, 8388607
    %v1177 = vor.u32 %v1176, 8388608
    %v1178 = vsub.s32 0, %v1177
    %v1179 = vadd.s32 %v1174, 1
    %vm1180 = vcmp.gt.s32.totalorder %v1179, 0
    %v1181 = vsel %vm1180, %v1179, 0
    %v1182 = vshrl.u32 %v1181, 5
    %v1183 = vand.u32 %v1181, 31
    %v1184 = vsub.s32 32, %v1183
    %v1185 = vshrl.u32 683565275, %v1184
    %v1186 = vshll.u32 683565275, %v1183
    %v1187 = vshrl.u32 2475754826, %v1184
    %v1188 = vor.u32 %v1186, %v1187
    %v1189 = vshll.u32 2475754826, %v1183
    %v1190 = vshrl.u32 2131351028, %v1184
    %v1191 = vor.u32 %v1189, %v1190
    %v1192 = vshll.u32 2131351028, %v1183
    %v1193 = vshrl.u32 2102212464, %v1184
    %v1194 = vor.u32 %v1192, %v1193
    %v1195 = vshll.u32 2102212464, %v1183
    %v1196 = vshrl.u32 920167782, %v1184
    %v1197 = vor.u32 %v1195, %v1196
    %v1198 = vshll.u32 920167782, %v1183
    %v1199 = vshrl.u32 1326507024, %v1184
    %v1200 = vor.u32 %v1198, %v1199
    %vm1201 = vcmp.lt.s32.totalorder %v1182, 1
    %vm1202 = vcmp.lt.s32.totalorder %v1182, 2
    %vm1203 = vcmp.lt.s32.totalorder %v1182, 3
    %vm1204 = vcmp.lt.s32.totalorder %v1182, 4
    %v1205 = vsel %vm1201, %v1185, %v1188
    %v1206 = vsel %vm1204, %v1194, 2102212464
    %v1207 = vsel %vm1203, %v1191, %v1206
    %v1208 = vsel %vm1202, %v1205, %v1207
    %v1209 = vsel %vm1201, %v1188, %v1191
    %v1210 = vsel %vm1204, %v1197, 920167782
    %v1211 = vsel %vm1203, %v1194, %v1210
    %v1212 = vsel %vm1202, %v1209, %v1211
    %v1213 = vsel %vm1201, %v1191, %v1194
    %v1214 = vsel %vm1204, %v1200, 1326507024
    %v1215 = vsel %vm1203, %v1197, %v1214
    %v1216 = vsel %vm1202, %v1213, %v1215
    %v1217 = vshll.u32 %v1177, 8
    %v1218 = vmul.u32.u64.compose %v1217, %v1216
    %v1219 = vextract.low.u32 %v1218
    %v1220 = vextract.high.u32 %v1218
    %v1221 = vmul.u32.u64.compose %v1217, %v1212
    %v1222 = vextract.low.u32 %v1221
    %v1223 = vextract.high.u32 %v1221
    %v1224 = vmul.u32 %v1217, %v1208
    %v1225 = vadd.s32 %v1220, %v1222
    %vm1226 = vc.u32 %v1220, %v1222
    %v1227 = vadd.s32 %v1223, 1
    %v1228 = vsel %vm1226, %v1227, %v1223
    %v1229 = vadd.s32 %v1224, %v1228
    %v1230 = vadd.s32 %v1229, 536870912
    %v1231 = vshrl.u32 %v1230, 30
    %v1232 = vshll.u32 %v1231, 30
    %v1233 = vsub.s32 %v1229, %v1232
    %vm1234 = vcmp.lt.s32.totalorder %v1233, 0
    %v1235 = vsub.s32 0, %v1233
    %v1236 = vsel %vm1234, %v1235, %v1233
    %v1237 = vclz %v1236
    %v1238 = vsub.s32 %v1237, 2
    %vm1239 = vcmp.gt.s32.totalorder 0, %v1238
    %v1240 = vsel %vm1239, 0, %v1238
    %v1241 = vsub.s32 32, %v1240
    %v1242 = vshll.u32 %v1233, %v1240
    %v1243 = vshrl.u32 %v1225, %v1241
    %v1244 = vor.u32 %v1242, %v1243
    %v1245 = vsub.s32 4294967266, %v1240
    %v1246 = vadd.s32 %v1245, 127
    %v1247 = vshll.u32 %v1246, 23
    %v1248 = vor.u32 4788187, %v1247
    %v1249 = vand.u32 2147483647, %v1248
    %v1251 = vcvt.s32.f32 %v1244
    %v1252 = vmul.f32 %v1251, %v1249
    %v1253 = vxor.u32 %v1252, 2147483648
    %v1254 = vsel %vm1171, %v1253, %v1252
    %v1255 = vsub.s32 4, %v1231
    %v1256 = vsel %vm1171, %v1255, %v1231
    %v1257 = vsel %vm1170, %v210, %v1254
    %v1258 = vsel %vm1170, 0, %v1256
    %v1259 = vcosq.f32.pop %v1257
    %v1260 = vsinq.f32.pop %v1257
    %vm1261 = vweird.f32 %v210
    %v1262 = vadd.s32 %v1258, 3
    %v1263 = vand.u32 %v1262, 3
    %vm1264 = vcmp.lt.s32.totalorder %v1263, 2
    %vm1265 = vcmp.eq.s32.totalorder %v1263, 0
    %v1266 = vxor.u32 %v1260, 2147483648
    %v1267 = vsel %vm1265, %v1259, %v1266
    %vm1268 = vcmp.eq.s32.totalorder %v1263, 2
    %v1269 = vxor.u32 %v1259, 2147483648
    %v1270 = vsel %vm1268, %v1269, %v1260
    %v1271 = vsel %vm1264, %v1267, %v1270
    %v1272 = vsel %vm1261, nan, %v1271
    %v1273 = vand.u32 2147483647, %v211
    %vm1274 = vcmp.le.f32.partialorder %v1273, 0.7853982
    %vm1275 = vcmp.lt.s32.totalorder %v211, 0
    %v1276 = vand.u32 %v211, 2139095040
    %v1277 = vshrl.u32 %v1276, 23
    %v1278 = vsub.s32 %v1277, 127
    %v1279 = vand.u32 2147483647, %v211
    %v1280 = vand.u32 %v1279, 8388607
    %v1281 = vor.u32 %v1280, 8388608
    %v1282 = vsub.s32 0, %v1281
    %v1283 = vadd.s32 %v1278, 1
    %vm1284 = vcmp.gt.s32.totalorder %v1283, 0
    %v1285 = vsel %vm1284, %v1283, 0
    %v1286 = vshrl.u32 %v1285, 5
    %v1287 = vand.u32 %v1285, 31
    %v1288 = vsub.s32 32, %v1287
    %v1289 = vshrl.u32 683565275, %v1288
    %v1290 = vshll.u32 683565275, %v1287
    %v1291 = vshrl.u32 2475754826, %v1288
    %v1292 = vor.u32 %v1290, %v1291
    %v1293 = vshll.u32 2475754826, %v1287
    %v1294 = vshrl.u32 2131351028, %v1288
    %v1295 = vor.u32 %v1293, %v1294
    %v1296 = vshll.u32 2131351028, %v1287
    %v1297 = vshrl.u32 2102212464, %v1288
    %v1298 = vor.u32 %v1296, %v1297
    %v1299 = vshll.u32 2102212464, %v1287
    %v1300 = vshrl.u32 920167782, %v1288
    %v1301 = vor.u32 %v1299, %v1300
    %v1302 = vshll.u32 920167782, %v1287
    %v1303 = vshrl.u32 1326507024, %v1288
    %v1304 = vor.u32 %v1302, %v1303
    %vm1305 = vcmp.lt.s32.totalorder %v1286, 1
    %vm1306 = vcmp.lt.s32.totalorder %v1286, 2
    %vm1307 = vcmp.lt.s32.totalorder %v1286, 3
    %vm1308 = vcmp.lt.s32.totalorder %v1286, 4
    %v1309 = vsel %vm1305, %v1289, %v1292
    %v1310 = vsel %vm1308, %v1298, 2102212464
    %v1311 = vsel %vm1307, %v1295, %v1310
    %v1312 = vsel %vm1306, %v1309, %v1311
    %v1313 = vsel %vm1305, %v1292, %v1295
    %v1314 = vsel %vm1308, %v1301, 920167782
    %v1315 = vsel %vm1307, %v1298, %v1314
    %v1316 = vsel %vm1306, %v1313, %v1315
    %v1317 = vsel %vm1305, %v1295, %v1298
    %v1318 = vsel %vm1308, %v1304, 1326507024
    %v1319 = vsel %vm1307, %v1301, %v1318
    %v1320 = vsel %vm1306, %v1317, %v1319
    %v1321 = vshll.u32 %v1281, 8
    %v1322 = vmul.u32.u64.compose %v1321, %v1320
    %v1323 = vextract.low.u32 %v1322
    %v1324 = vextract.high.u32 %v1322
    %v1325 = vmul.u32.u64.compose %v1321, %v1316
    %v1326 = vextract.low.u32 %v1325
    %v1327 = vextract.high.u32 %v1325
    %v1328 = vmul.u32 %v1321, %v1312
    %v1329 = vadd.s32 %v1324, %v1326
    %vm1330 = vc.u32 %v1324, %v1326
    %v1331 = vadd.s32 %v1327, 1
    %v1332 = vsel %vm1330, %v1331, %v1327
    %v1333 = vadd.s32 %v1328, %v1332
    %v1334 = vadd.s32 %v1333, 536870912
    %v1335 = vshrl.u32 %v1334, 30
    %v1336 = vshll.u32 %v1335, 30
    %v1337 = vsub.s32 %v1333, %v1336
    %vm1338 = vcmp.lt.s32.totalorder %v1337, 0
    %v1339 = vsub.s32 0, %v1337
    %v1340 = vsel %vm1338, %v1339, %v1337
    %v1341 = vclz %v1340
    %v1342 = vsub.s32 %v1341, 2
    %vm1343 = vcmp.gt.s32.totalorder 0, %v1342
    %v1344 = vsel %vm1343, 0, %v1342
    %v1345 = vsub.s32 32, %v1344
    %v1346 = vshll.u32 %v1337, %v1344
    %v1347 = vshrl.u32 %v1329, %v1345
    %v1348 = vor.u32 %v1346, %v1347
    %v1349 = vsub.s32 4294967266, %v1344
    %v1350 = vadd.s32 %v1349, 127
    %v1351 = vshll.u32 %v1350, 23
    %v1352 = vor.u32 4788187, %v1351
    %v1353 = vand.u32 2147483647, %v1352
    %v1355 = vcvt.s32.f32 %v1348
    %v1356 = vmul.f32 %v1355, %v1353
    %v1357 = vxor.u32 %v1356, 2147483648
    %v1358 = vsel %vm1275, %v1357, %v1356
    %v1359 = vsub.s32 4, %v1335
    %v1360 = vsel %vm1275, %v1359, %v1335
    %v1361 = vsel %vm1274, %v211, %v1358
    %v1362 = vsel %vm1274, 0, %v1360
    %v1363 = vcosq.f32.pop %v1361
    %v1364 = vsinq.f32.pop %v1361
    %vm1365 = vweird.f32 %v211
    %v1366 = vadd.s32 %v1362, 3
    %v1367 = vand.u32 %v1366, 3
    %vm1368 = vcmp.lt.s32.totalorder %v1367, 2
    %vm1369 = vcmp.eq.s32.totalorder %v1367, 0
    %v1370 = vxor.u32 %v1364, 2147483648
    %v1371 = vsel %vm1369, %v1363, %v1370
    %vm1372 = vcmp.eq.s32.totalorder %v1367, 2
    %v1373 = vxor.u32 %v1363, 2147483648
    %v1374 = vsel %vm1372, %v1373, %v1364
    %v1375 = vsel %vm1368, %v1371, %v1374
    %v1376 = vsel %vm1365, nan, %v1375
    %v1377 = vand.u32 2147483647, %v212
    %vm1378 = vcmp.le.f32.partialorder %v1377, 0.7853982
    %vm1379 = vcmp.lt.s32.totalorder %v212, 0
    %v1380 = vand.u32 %v212, 2139095040
    %v1381 = vshrl.u32 %v1380, 23
    %v1382 = vsub.s32 %v1381, 127
    %v1383 = vand.u32 2147483647, %v212
    %v1384 = vand.u32 %v1383, 8388607
    %v1385 = vor.u32 %v1384, 8388608
    %v1386 = vsub.s32 0, %v1385
    %v1387 = vadd.s32 %v1382, 1
    %vm1388 = vcmp.gt.s32.totalorder %v1387, 0
    %v1389 = vsel %vm1388, %v1387, 0
    %v1390 = vshrl.u32 %v1389, 5
    %v1391 = vand.u32 %v1389, 31
    %v1392 = vsub.s32 32, %v1391
    %v1393 = vshrl.u32 683565275, %v1392
    %v1394 = vshll.u32 683565275, %v1391
    %v1395 = vshrl.u32 2475754826, %v1392
    %v1396 = vor.u32 %v1394, %v1395
    %v1397 = vshll.u32 2475754826, %v1391
    %v1398 = vshrl.u32 2131351028, %v1392
    %v1399 = vor.u32 %v1397, %v1398
    %v1400 = vshll.u32 2131351028, %v1391
    %v1401 = vshrl.u32 2102212464, %v1392
    %v1402 = vor.u32 %v1400, %v1401
    %v1403 = vshll.u32 2102212464, %v1391
    %v1404 = vshrl.u32 920167782, %v1392
    %v1405 = vor.u32 %v1403, %v1404
    %v1406 = vshll.u32 920167782, %v1391
    %v1407 = vshrl.u32 1326507024, %v1392
    %v1408 = vor.u32 %v1406, %v1407
    %vm1409 = vcmp.lt.s32.totalorder %v1390, 1
    %vm1410 = vcmp.lt.s32.totalorder %v1390, 2
    %vm1411 = vcmp.lt.s32.totalorder %v1390, 3
    %vm1412 = vcmp.lt.s32.totalorder %v1390, 4
    %v1413 = vsel %vm1409, %v1393, %v1396
    %v1414 = vsel %vm1412, %v1402, 2102212464
    %v1415 = vsel %vm1411, %v1399, %v1414
    %v1416 = vsel %vm1410, %v1413, %v1415
    %v1417 = vsel %vm1409, %v1396, %v1399
    %v1418 = vsel %vm1412, %v1405, 920167782
    %v1419 = vsel %vm1411, %v1402, %v1418
    %v1420 = vsel %vm1410, %v1417, %v1419
    %v1421 = vsel %vm1409, %v1399, %v1402
    %v1422 = vsel %vm1412, %v1408, 1326507024
    %v1423 = vsel %vm1411, %v1405, %v1422
    %v1424 = vsel %vm1410, %v1421, %v1423
    %v1425 = vshll.u32 %v1385, 8
    %v1426 = vmul.u32.u64.compose %v1425, %v1424
    %v1427 = vextract.low.u32 %v1426
    %v1428 = vextract.high.u32 %v1426
    %v1429 = vmul.u32.u64.compose %v1425, %v1420
    %v1430 = vextract.low.u32 %v1429
    %v1431 = vextract.high.u32 %v1429
    %v1432 = vmul.u32 %v1425, %v1416
    %v1433 = vadd.s32 %v1428, %v1430
    %vm1434 = vc.u32 %v1428, %v1430
    %v1435 = vadd.s32 %v1431, 1
    %v1436 = vsel %vm1434, %v1435, %v1431
    %v1437 = vadd.s32 %v1432, %v1436
    %v1438 = vadd.s32 %v1437, 536870912
    %v1439 = vshrl.u32 %v1438, 30
    %v1440 = vshll.u32 %v1439, 30
    %v1441 = vsub.s32 %v1437, %v1440
    %vm1442 = vcmp.lt.s32.totalorder %v1441, 0
    %v1443 = vsub.s32 0, %v1441
    %v1444 = vsel %vm1442, %v1443, %v1441
    %v1445 = vclz %v1444
    %v1446 = vsub.s32 %v1445, 2
    %vm1447 = vcmp.gt.s32.totalorder 0, %v1446
    %v1448 = vsel %vm1447, 0, %v1446
    %v1449 = vsub.s32 32, %v1448
    %v1450 = vshll.u32 %v1441, %v1448
    %v1451 = vshrl.u32 %v1433, %v1449
    %v1452 = vor.u32 %v1450, %v1451
    %v1453 = vsub.s32 4294967266, %v1448
    %v1454 = vadd.s32 %v1453, 127
    %v1455 = vshll.u32 %v1454, 23
    %v1456 = vor.u32 4788187, %v1455
    %v1457 = vand.u32 2147483647, %v1456
    %v1459 = vcvt.s32.f32 %v1452
    %v1460 = vmul.f32 %v1459, %v1457
    %v1461 = vxor.u32 %v1460, 2147483648
    %v1462 = vsel %vm1379, %v1461, %v1460
    %v1463 = vsub.s32 4, %v1439
    %v1464 = vsel %vm1379, %v1463, %v1439
    %v1465 = vsel %vm1378, %v212, %v1462
    %v1466 = vsel %vm1378, 0, %v1464
    %v1467 = vcosq.f32.pop %v1465
    %v1468 = vsinq.f32.pop %v1465
    %vm1469 = vweird.f32 %v212
    %v1470 = vadd.s32 %v1466, 3
    %v1471 = vand.u32 %v1470, 3
    %vm1472 = vcmp.lt.s32.totalorder %v1471, 2
    %vm1473 = vcmp.eq.s32.totalorder %v1471, 0
    %v1474 = vxor.u32 %v1468, 2147483648
    %v1475 = vsel %vm1473, %v1467, %v1474
    %vm1476 = vcmp.eq.s32.totalorder %v1471, 2
    %v1477 = vxor.u32 %v1467, 2147483648
    %v1478 = vsel %vm1476, %v1477, %v1468
    %v1479 = vsel %vm1472, %v1475, %v1478
    %v1480 = vsel %vm1469, nan, %v1479
    %v1481 = vand.u32 2147483647, %v213
    %vm1482 = vcmp.le.f32.partialorder %v1481, 0.7853982
    %vm1483 = vcmp.lt.s32.totalorder %v213, 0
    %v1484 = vand.u32 %v213, 2139095040
    %v1485 = vshrl.u32 %v1484, 23
    %v1486 = vsub.s32 %v1485, 127
    %v1487 = vand.u32 2147483647, %v213
    %v1488 = vand.u32 %v1487, 8388607
    %v1489 = vor.u32 %v1488, 8388608
    %v1490 = vsub.s32 0, %v1489
    %v1491 = vadd.s32 %v1486, 1
    %vm1492 = vcmp.gt.s32.totalorder %v1491, 0
    %v1493 = vsel %vm1492, %v1491, 0
    %v1494 = vshrl.u32 %v1493, 5
    %v1495 = vand.u32 %v1493, 31
    %v1496 = vsub.s32 32, %v1495
    %v1497 = vshrl.u32 683565275, %v1496
    %v1498 = vshll.u32 683565275, %v1495
    %v1499 = vshrl.u32 2475754826, %v1496
    %v1500 = vor.u32 %v1498, %v1499
    %v1501 = vshll.u32 2475754826, %v1495
    %v1502 = vshrl.u32 2131351028, %v1496
    %v1503 = vor.u32 %v1501, %v1502
    %v1504 = vshll.u32 2131351028, %v1495
    %v1505 = vshrl.u32 2102212464, %v1496
    %v1506 = vor.u32 %v1504, %v1505
    %v1507 = vshll.u32 2102212464, %v1495
    %v1508 = vshrl.u32 920167782, %v1496
    %v1509 = vor.u32 %v1507, %v1508
    %v1510 = vshll.u32 920167782, %v1495
    %v1511 = vshrl.u32 1326507024, %v1496
    %v1512 = vor.u32 %v1510, %v1511
    %vm1513 = vcmp.lt.s32.totalorder %v1494, 1
    %vm1514 = vcmp.lt.s32.totalorder %v1494, 2
    %vm1515 = vcmp.lt.s32.totalorder %v1494, 3
    %vm1516 = vcmp.lt.s32.totalorder %v1494, 4
    %v1517 = vsel %vm1513, %v1497, %v1500
    %v1518 = vsel %vm1516, %v1506, 2102212464
    %v1519 = vsel %vm1515, %v1503, %v1518
    %v1520 = vsel %vm1514, %v1517, %v1519
    %v1521 = vsel %vm1513, %v1500, %v1503
    %v1522 = vsel %vm1516, %v1509, 920167782
    %v1523 = vsel %vm1515, %v1506, %v1522
    %v1524 = vsel %vm1514, %v1521, %v1523
    %v1525 = vsel %vm1513, %v1503, %v1506
    %v1526 = vsel %vm1516, %v1512, 1326507024
    %v1527 = vsel %vm1515, %v1509, %v1526
    %v1528 = vsel %vm1514, %v1525, %v1527
    %v1529 = vshll.u32 %v1489, 8
    %v1530 = vmul.u32.u64.compose %v1529, %v1528
    %v1531 = vextract.low.u32 %v1530
    %v1532 = vextract.high.u32 %v1530
    %v1533 = vmul.u32.u64.compose %v1529, %v1524
    %v1534 = vextract.low.u32 %v1533
    %v1535 = vextract.high.u32 %v1533
    %v1536 = vmul.u32 %v1529, %v1520
    %v1537 = vadd.s32 %v1532, %v1534
    %vm1538 = vc.u32 %v1532, %v1534
    %v1539 = vadd.s32 %v1535, 1
    %v1540 = vsel %vm1538, %v1539, %v1535
    %v1541 = vadd.s32 %v1536, %v1540
    %v1542 = vadd.s32 %v1541, 536870912
    %v1543 = vshrl.u32 %v1542, 30
    %v1544 = vshll.u32 %v1543, 30
    %v1545 = vsub.s32 %v1541, %v1544
    %vm1546 = vcmp.lt.s32.totalorder %v1545, 0
    %v1547 = vsub.s32 0, %v1545
    %v1548 = vsel %vm1546, %v1547, %v1545
    %v1549 = vclz %v1548
    %v1550 = vsub.s32 %v1549, 2
    %vm1551 = vcmp.gt.s32.totalorder 0, %v1550
    %v1552 = vsel %vm1551, 0, %v1550
    %v1553 = vsub.s32 32, %v1552
    %v1554 = vshll.u32 %v1545, %v1552
    %v1555 = vshrl.u32 %v1537, %v1553
    %v1556 = vor.u32 %v1554, %v1555
    %v1557 = vsub.s32 4294967266, %v1552
    %v1558 = vadd.s32 %v1557, 127
    %v1559 = vshll.u32 %v1558, 23
    %v1560 = vor.u32 4788187, %v1559
    %v1561 = vand.u32 2147483647, %v1560
    %v1563 = vcvt.s32.f32 %v1556
    %v1564 = vmul.f32 %v1563, %v1561
    %v1565 = vxor.u32 %v1564, 2147483648
    %v1566 = vsel %vm1483, %v1565, %v1564
    %v1567 = vsub.s32 4, %v1543
    %v1568 = vsel %vm1483, %v1567, %v1543
    %v1569 = vsel %vm1482, %v213, %v1566
    %v1570 = vsel %vm1482, 0, %v1568
    %v1571 = vcosq.f32.pop %v1569
    %v1572 = vsinq.f32.pop %v1569
    %vm1573 = vweird.f32 %v213
    %v1574 = vadd.s32 %v1570, 3
    %v1575 = vand.u32 %v1574, 3
    %vm1576 = vcmp.lt.s32.totalorder %v1575, 2
    %vm1577 = vcmp.eq.s32.totalorder %v1575, 0
    %v1578 = vxor.u32 %v1572, 2147483648
    %v1579 = vsel %vm1577, %v1571, %v1578
    %vm1580 = vcmp.eq.s32.totalorder %v1575, 2
    %v1581 = vxor.u32 %v1571, 2147483648
    %v1582 = vsel %vm1580, %v1581, %v1572
    %v1583 = vsel %vm1576, %v1579, %v1582
    %v1584 = vsel %vm1573, nan, %v1583
    %v1585 = vand.u32 2147483647, %v214
    %vm1586 = vcmp.le.f32.partialorder %v1585, 0.7853982
    %vm1587 = vcmp.lt.s32.totalorder %v214, 0
    %v1588 = vand.u32 %v214, 2139095040
    %v1589 = vshrl.u32 %v1588, 23
    %v1590 = vsub.s32 %v1589, 127
    %v1591 = vand.u32 2147483647, %v214
    %v1592 = vand.u32 %v1591, 8388607
    %v1593 = vor.u32 %v1592, 8388608
    %v1594 = vsub.s32 0, %v1593
    %v1595 = vadd.s32 %v1590, 1
    %vm1596 = vcmp.gt.s32.totalorder %v1595, 0
    %v1597 = vsel %vm1596, %v1595, 0
    %v1598 = vshrl.u32 %v1597, 5
    %v1599 = vand.u32 %v1597, 31
    %v1600 = vsub.s32 32, %v1599
    %v1601 = vshrl.u32 683565275, %v1600
    %v1602 = vshll.u32 683565275, %v1599
    %v1603 = vshrl.u32 2475754826, %v1600
    %v1604 = vor.u32 %v1602, %v1603
    %v1605 = vshll.u32 2475754826, %v1599
    %v1606 = vshrl.u32 2131351028, %v1600
    %v1607 = vor.u32 %v1605, %v1606
    %v1608 = vshll.u32 2131351028, %v1599
    %v1609 = vshrl.u32 2102212464, %v1600
    %v1610 = vor.u32 %v1608, %v1609
    %v1611 = vshll.u32 2102212464, %v1599
    %v1612 = vshrl.u32 920167782, %v1600
    %v1613 = vor.u32 %v1611, %v1612
    %v1614 = vshll.u32 920167782, %v1599
    %v1615 = vshrl.u32 1326507024, %v1600
    %v1616 = vor.u32 %v1614, %v1615
    %vm1617 = vcmp.lt.s32.totalorder %v1598, 1
    %vm1618 = vcmp.lt.s32.totalorder %v1598, 2
    %vm1619 = vcmp.lt.s32.totalorder %v1598, 3
    %vm1620 = vcmp.lt.s32.totalorder %v1598, 4
    %v1621 = vsel %vm1617, %v1601, %v1604
    %v1622 = vsel %vm1620, %v1610, 2102212464
    %v1623 = vsel %vm1619, %v1607, %v1622
    %v1624 = vsel %vm1618, %v1621, %v1623
    %v1625 = vsel %vm1617, %v1604, %v1607
    %v1626 = vsel %vm1620, %v1613, 920167782
    %v1627 = vsel %vm1619, %v1610, %v1626
    %v1628 = vsel %vm1618, %v1625, %v1627
    %v1629 = vsel %vm1617, %v1607, %v1610
    %v1630 = vsel %vm1620, %v1616, 1326507024
    %v1631 = vsel %vm1619, %v1613, %v1630
    %v1632 = vsel %vm1618, %v1629, %v1631
    %v1633 = vshll.u32 %v1593, 8
    %v1634 = vmul.u32.u64.compose %v1633, %v1632
    %v1635 = vextract.low.u32 %v1634
    %v1636 = vextract.high.u32 %v1634
    %v1637 = vmul.u32.u64.compose %v1633, %v1628
    %v1638 = vextract.low.u32 %v1637
    %v1639 = vextract.high.u32 %v1637
    %v1640 = vmul.u32 %v1633, %v1624
    %v1641 = vadd.s32 %v1636, %v1638
    %vm1642 = vc.u32 %v1636, %v1638
    %v1643 = vadd.s32 %v1639, 1
    %v1644 = vsel %vm1642, %v1643, %v1639
    %v1645 = vadd.s32 %v1640, %v1644
    %v1646 = vadd.s32 %v1645, 536870912
    %v1647 = vshrl.u32 %v1646, 30
    %v1648 = vshll.u32 %v1647, 30
    %v1649 = vsub.s32 %v1645, %v1648
    %vm1650 = vcmp.lt.s32.totalorder %v1649, 0
    %v1651 = vsub.s32 0, %v1649
    %v1652 = vsel %vm1650, %v1651, %v1649
    %v1653 = vclz %v1652
    %v1654 = vsub.s32 %v1653, 2
    %vm1655 = vcmp.gt.s32.totalorder 0, %v1654
    %v1656 = vsel %vm1655, 0, %v1654
    %v1657 = vsub.s32 32, %v1656
    %v1658 = vshll.u32 %v1649, %v1656
    %v1659 = vshrl.u32 %v1641, %v1657
    %v1660 = vor.u32 %v1658, %v1659
    %v1661 = vsub.s32 4294967266, %v1656
    %v1662 = vadd.s32 %v1661, 127
    %v1663 = vshll.u32 %v1662, 23
    %v1664 = vor.u32 4788187, %v1663
    %v1665 = vand.u32 2147483647, %v1664
    %v1667 = vcvt.s32.f32 %v1660
    %v1668 = vmul.f32 %v1667, %v1665
    %v1669 = vxor.u32 %v1668, 2147483648
    %v1670 = vsel %vm1587, %v1669, %v1668
    %v1671 = vsub.s32 4, %v1647
    %v1672 = vsel %vm1587, %v1671, %v1647
    %v1673 = vsel %vm1586, %v214, %v1670
    %v1674 = vsel %vm1586, 0, %v1672
    %v1675 = vcosq.f32.pop %v1673
    %v1676 = vsinq.f32.pop %v1673
    %vm1677 = vweird.f32 %v214
    %v1678 = vadd.s32 %v1674, 3
    %v1679 = vand.u32 %v1678, 3
    %vm1680 = vcmp.lt.s32.totalorder %v1679, 2
    %vm1681 = vcmp.eq.s32.totalorder %v1679, 0
    %v1682 = vxor.u32 %v1676, 2147483648
    %v1683 = vsel %vm1681, %v1675, %v1682
    %vm1684 = vcmp.eq.s32.totalorder %v1679, 2
    %v1685 = vxor.u32 %v1675, 2147483648
    %v1686 = vsel %vm1684, %v1685, %v1676
    %v1687 = vsel %vm1680, %v1683, %v1686
    %v1688 = vsel %vm1677, nan, %v1687
    %v1689 = vand.u32 2147483647, %v215
    %vm1690 = vcmp.le.f32.partialorder %v1689, 0.7853982
    %vm1691 = vcmp.lt.s32.totalorder %v215, 0
    %v1692 = vand.u32 %v215, 2139095040
    %v1693 = vshrl.u32 %v1692, 23
    %v1694 = vsub.s32 %v1693, 127
    %v1695 = vand.u32 2147483647, %v215
    %v1696 = vand.u32 %v1695, 8388607
    %v1697 = vor.u32 %v1696, 8388608
    %v1698 = vsub.s32 0, %v1697
    %v1699 = vadd.s32 %v1694, 1
    %vm1700 = vcmp.gt.s32.totalorder %v1699, 0
    %v1701 = vsel %vm1700, %v1699, 0
    %v1702 = vshrl.u32 %v1701, 5
    %v1703 = vand.u32 %v1701, 31
    %v1704 = vsub.s32 32, %v1703
    %v1705 = vshrl.u32 683565275, %v1704
    %v1706 = vshll.u32 683565275, %v1703
    %v1707 = vshrl.u32 2475754826, %v1704
    %v1708 = vor.u32 %v1706, %v1707
    %v1709 = vshll.u32 2475754826, %v1703
    %v1710 = vshrl.u32 2131351028, %v1704
    %v1711 = vor.u32 %v1709, %v1710
    %v1712 = vshll.u32 2131351028, %v1703
    %v1713 = vshrl.u32 2102212464, %v1704
    %v1714 = vor.u32 %v1712, %v1713
    %v1715 = vshll.u32 2102212464, %v1703
    %v1716 = vshrl.u32 920167782, %v1704
    %v1717 = vor.u32 %v1715, %v1716
    %v1718 = vshll.u32 920167782, %v1703
    %v1719 = vshrl.u32 1326507024, %v1704
    %v1720 = vor.u32 %v1718, %v1719
    %vm1721 = vcmp.lt.s32.totalorder %v1702, 1
    %vm1722 = vcmp.lt.s32.totalorder %v1702, 2
    %vm1723 = vcmp.lt.s32.totalorder %v1702, 3
    %vm1724 = vcmp.lt.s32.totalorder %v1702, 4
    %v1725 = vsel %vm1721, %v1705, %v1708
    %v1726 = vsel %vm1724, %v1714, 2102212464
    %v1727 = vsel %vm1723, %v1711, %v1726
    %v1728 = vsel %vm1722, %v1725, %v1727
    %v1729 = vsel %vm1721, %v1708, %v1711
    %v1730 = vsel %vm1724, %v1717, 920167782
    %v1731 = vsel %vm1723, %v1714, %v1730
    %v1732 = vsel %vm1722, %v1729, %v1731
    %v1733 = vsel %vm1721, %v1711, %v1714
    %v1734 = vsel %vm1724, %v1720, 1326507024
    %v1735 = vsel %vm1723, %v1717, %v1734
    %v1736 = vsel %vm1722, %v1733, %v1735
    %v1737 = vshll.u32 %v1697, 8
    %v1738 = vmul.u32.u64.compose %v1737, %v1736
    %v1739 = vextract.low.u32 %v1738
    %v1740 = vextract.high.u32 %v1738
    %v1741 = vmul.u32.u64.compose %v1737, %v1732
    %v1742 = vextract.low.u32 %v1741
    %v1743 = vextract.high.u32 %v1741
    %v1744 = vmul.u32 %v1737, %v1728
    %v1745 = vadd.s32 %v1740, %v1742
    %vm1746 = vc.u32 %v1740, %v1742
    %v1747 = vadd.s32 %v1743, 1
    %v1748 = vsel %vm1746, %v1747, %v1743
    %v1749 = vadd.s32 %v1744, %v1748
    %v1750 = vadd.s32 %v1749, 536870912
    %v1751 = vshrl.u32 %v1750, 30
    %v1752 = vshll.u32 %v1751, 30
    %v1753 = vsub.s32 %v1749, %v1752
    %vm1754 = vcmp.lt.s32.totalorder %v1753, 0
    %v1755 = vsub.s32 0, %v1753
    %v1756 = vsel %vm1754, %v1755, %v1753
    %v1757 = vclz %v1756
    %v1758 = vsub.s32 %v1757, 2
    %vm1759 = vcmp.gt.s32.totalorder 0, %v1758
    %v1760 = vsel %vm1759, 0, %v1758
    %v1761 = vsub.s32 32, %v1760
    %v1762 = vshll.u32 %v1753, %v1760
    %v1763 = vshrl.u32 %v1745, %v1761
    %v1764 = vor.u32 %v1762, %v1763
    %v1765 = vsub.s32 4294967266, %v1760
    %v1766 = vadd.s32 %v1765, 127
    %v1767 = vshll.u32 %v1766, 23
    %v1768 = vor.u32 4788187, %v1767
    %v1769 = vand.u32 2147483647, %v1768
    %v1771 = vcvt.s32.f32 %v1764
    %v1772 = vmul.f32 %v1771, %v1769
    %v1773 = vxor.u32 %v1772, 2147483648
    %v1774 = vsel %vm1691, %v1773, %v1772
    %v1775 = vsub.s32 4, %v1751
    %v1776 = vsel %vm1691, %v1775, %v1751
    %v1777 = vsel %vm1690, %v215, %v1774
    %v1778 = vsel %vm1690, 0, %v1776
    %v1779 = vcosq.f32.pop %v1777
    %v1780 = vsinq.f32.pop %v1777
    %vm1781 = vweird.f32 %v215
    %v1782 = vadd.s32 %v1778, 3
    %v1783 = vand.u32 %v1782, 3
    %vm1784 = vcmp.lt.s32.totalorder %v1783, 2
    %vm1785 = vcmp.eq.s32.totalorder %v1783, 0
    %v1786 = vxor.u32 %v1780, 2147483648
    %v1787 = vsel %vm1785, %v1779, %v1786
    %vm1788 = vcmp.eq.s32.totalorder %v1783, 2
    %v1789 = vxor.u32 %v1779, 2147483648
    %v1790 = vsel %vm1788, %v1789, %v1780
    %v1791 = vsel %vm1784, %v1787, %v1790
    %v1792 = vsel %vm1781, nan, %v1791
    %v1793 = vand.u32 2147483647, %v216
    %vm1794 = vcmp.le.f32.partialorder %v1793, 0.7853982
    %vm1795 = vcmp.lt.s32.totalorder %v216, 0
    %v1796 = vand.u32 %v216, 2139095040
    %v1797 = vshrl.u32 %v1796, 23
    %v1798 = vsub.s32 %v1797, 127
    %v1799 = vand.u32 2147483647, %v216
    %v1800 = vand.u32 %v1799, 8388607
    %v1801 = vor.u32 %v1800, 8388608
    %v1802 = vsub.s32 0, %v1801
    %v1803 = vadd.s32 %v1798, 1
    %vm1804 = vcmp.gt.s32.totalorder %v1803, 0
    %v1805 = vsel %vm1804, %v1803, 0
    %v1806 = vshrl.u32 %v1805, 5
    %v1807 = vand.u32 %v1805, 31
    %v1808 = vsub.s32 32, %v1807
    %v1809 = vshrl.u32 683565275, %v1808
    %v1810 = vshll.u32 683565275, %v1807
    %v1811 = vshrl.u32 2475754826, %v1808
    %v1812 = vor.u32 %v1810, %v1811
    %v1813 = vshll.u32 2475754826, %v1807
    %v1814 = vshrl.u32 2131351028, %v1808
    %v1815 = vor.u32 %v1813, %v1814
    %v1816 = vshll.u32 2131351028, %v1807
    %v1817 = vshrl.u32 2102212464, %v1808
    %v1818 = vor.u32 %v1816, %v1817
    %v1819 = vshll.u32 2102212464, %v1807
    %v1820 = vshrl.u32 920167782, %v1808
    %v1821 = vor.u32 %v1819, %v1820
    %v1822 = vshll.u32 920167782, %v1807
    %v1823 = vshrl.u32 1326507024, %v1808
    %v1824 = vor.u32 %v1822, %v1823
    %vm1825 = vcmp.lt.s32.totalorder %v1806, 1
    %vm1826 = vcmp.lt.s32.totalorder %v1806, 2
    %vm1827 = vcmp.lt.s32.totalorder %v1806, 3
    %vm1828 = vcmp.lt.s32.totalorder %v1806, 4
    %v1829 = vsel %vm1825, %v1809, %v1812
    %v1830 = vsel %vm1828, %v1818, 2102212464
    %v1831 = vsel %vm1827, %v1815, %v1830
    %v1832 = vsel %vm1826, %v1829, %v1831
    %v1833 = vsel %vm1825, %v1812, %v1815
    %v1834 = vsel %vm1828, %v1821, 920167782
    %v1835 = vsel %vm1827, %v1818, %v1834
    %v1836 = vsel %vm1826, %v1833, %v1835
    %v1837 = vsel %vm1825, %v1815, %v1818
    %v1838 = vsel %vm1828, %v1824, 1326507024
    %v1839 = vsel %vm1827, %v1821, %v1838
    %v1840 = vsel %vm1826, %v1837, %v1839
    %v1841 = vshll.u32 %v1801, 8
    %v1842 = vmul.u32.u64.compose %v1841, %v1840
    %v1843 = vextract.low.u32 %v1842
    %v1844 = vextract.high.u32 %v1842
    %v1845 = vmul.u32.u64.compose %v1841, %v1836
    %v1846 = vextract.low.u32 %v1845
    %v1847 = vextract.high.u32 %v1845
    %v1848 = vmul.u32 %v1841, %v1832
    %v1849 = vadd.s32 %v1844, %v1846
    %vm1850 = vc.u32 %v1844, %v1846
    %v1851 = vadd.s32 %v1847, 1
    %v1852 = vsel %vm1850, %v1851, %v1847
    %v1853 = vadd.s32 %v1848, %v1852
    %v1854 = vadd.s32 %v1853, 536870912
    %v1855 = vshrl.u32 %v1854, 30
    %v1856 = vshll.u32 %v1855, 30
    %v1857 = vsub.s32 %v1853, %v1856
    %vm1858 = vcmp.lt.s32.totalorder %v1857, 0
    %v1859 = vsub.s32 0, %v1857
    %v1860 = vsel %vm1858, %v1859, %v1857
    %v1861 = vclz %v1860
    %v1862 = vsub.s32 %v1861, 2
    %vm1863 = vcmp.gt.s32.totalorder 0, %v1862
    %v1864 = vsel %vm1863, 0, %v1862
    %v1865 = vsub.s32 32, %v1864
    %v1866 = vshll.u32 %v1857, %v1864
    %v1867 = vshrl.u32 %v1849, %v1865
    %v1868 = vor.u32 %v1866, %v1867
    %v1869 = vsub.s32 4294967266, %v1864
    %v1870 = vadd.s32 %v1869, 127
    %v1871 = vshll.u32 %v1870, 23
    %v1872 = vor.u32 4788187, %v1871
    %v1873 = vand.u32 2147483647, %v1872
    %v1875 = vcvt.s32.f32 %v1868
    %v1876 = vmul.f32 %v1875, %v1873
    %v1877 = vxor.u32 %v1876, 2147483648
    %v1878 = vsel %vm1795, %v1877, %v1876
    %v1879 = vsub.s32 4, %v1855
    %v1880 = vsel %vm1795, %v1879, %v1855
    %v1881 = vsel %vm1794, %v216, %v1878
    %v1882 = vsel %vm1794, 0, %v1880
    %v1883 = vcosq.f32.pop %v1881
    %v1884 = vsinq.f32.pop %v1881
    %vm1885 = vweird.f32 %v216
    %v1886 = vadd.s32 %v1882, 3
    %v1887 = vand.u32 %v1886, 3
    %vm1888 = vcmp.lt.s32.totalorder %v1887, 2
    %vm1889 = vcmp.eq.s32.totalorder %v1887, 0
    %v1890 = vxor.u32 %v1884, 2147483648
    %v1891 = vsel %vm1889, %v1883, %v1890
    %vm1892 = vcmp.eq.s32.totalorder %v1887, 2
    %v1893 = vxor.u32 %v1883, 2147483648
    %v1894 = vsel %vm1892, %v1893, %v1884
    %v1895 = vsel %vm1888, %v1891, %v1894
    %v1896 = vsel %vm1885, nan, %v1895
    %v1897 = vand.u32 2147483647, %v217
    %vm1898 = vcmp.le.f32.partialorder %v1897, 0.7853982
    %vm1899 = vcmp.lt.s32.totalorder %v217, 0
    %v1900 = vand.u32 %v217, 2139095040
    %v1901 = vshrl.u32 %v1900, 23
    %v1902 = vsub.s32 %v1901, 127
    %v1903 = vand.u32 2147483647, %v217
    %v1904 = vand.u32 %v1903, 8388607
    %v1905 = vor.u32 %v1904, 8388608
    %v1906 = vsub.s32 0, %v1905
    %v1907 = vadd.s32 %v1902, 1
    %vm1908 = vcmp.gt.s32.totalorder %v1907, 0
    %v1909 = vsel %vm1908, %v1907, 0
    %v1910 = vshrl.u32 %v1909, 5
    %v1911 = vand.u32 %v1909, 31
    %v1912 = vsub.s32 32, %v1911
    %v1913 = vshrl.u32 683565275, %v1912
    %v1914 = vshll.u32 683565275, %v1911
    %v1915 = vshrl.u32 2475754826, %v1912
    %v1916 = vor.u32 %v1914, %v1915
    %v1917 = vshll.u32 2475754826, %v1911
    %v1918 = vshrl.u32 2131351028, %v1912
    %v1919 = vor.u32 %v1917, %v1918
    %v1920 = vshll.u32 2131351028, %v1911
    %v1921 = vshrl.u32 2102212464, %v1912
    %v1922 = vor.u32 %v1920, %v1921
    %v1923 = vshll.u32 2102212464, %v1911
    %v1924 = vshrl.u32 920167782, %v1912
    %v1925 = vor.u32 %v1923, %v1924
    %v1926 = vshll.u32 920167782, %v1911
    %v1927 = vshrl.u32 1326507024, %v1912
    %v1928 = vor.u32 %v1926, %v1927
    %vm1929 = vcmp.lt.s32.totalorder %v1910, 1
    %vm1930 = vcmp.lt.s32.totalorder %v1910, 2
    %vm1931 = vcmp.lt.s32.totalorder %v1910, 3
    %vm1932 = vcmp.lt.s32.totalorder %v1910, 4
    %v1933 = vsel %vm1929, %v1913, %v1916
    %v1934 = vsel %vm1932, %v1922, 2102212464
    %v1935 = vsel %vm1931, %v1919, %v1934
    %v1936 = vsel %vm1930, %v1933, %v1935
    %v1937 = vsel %vm1929, %v1916, %v1919
    %v1938 = vsel %vm1932, %v1925, 920167782
    %v1939 = vsel %vm1931, %v1922, %v1938
    %v1940 = vsel %vm1930, %v1937, %v1939
    %v1941 = vsel %vm1929, %v1919, %v1922
    %v1942 = vsel %vm1932, %v1928, 1326507024
    %v1943 = vsel %vm1931, %v1925, %v1942
    %v1944 = vsel %vm1930, %v1941, %v1943
    %v1945 = vshll.u32 %v1905, 8
    %v1946 = vmul.u32.u64.compose %v1945, %v1944
    %v1947 = vextract.low.u32 %v1946
    %v1948 = vextract.high.u32 %v1946
    %v1949 = vmul.u32.u64.compose %v1945, %v1940
    %v1950 = vextract.low.u32 %v1949
    %v1951 = vextract.high.u32 %v1949
    %v1952 = vmul.u32 %v1945, %v1936
    %v1953 = vadd.s32 %v1948, %v1950
    %vm1954 = vc.u32 %v1948, %v1950
    %v1955 = vadd.s32 %v1951, 1
    %v1956 = vsel %vm1954, %v1955, %v1951
    %v1957 = vadd.s32 %v1952, %v1956
    %v1958 = vadd.s32 %v1957, 536870912
    %v1959 = vshrl.u32 %v1958, 30
    %v1960 = vshll.u32 %v1959, 30
    %v1961 = vsub.s32 %v1957, %v1960
    %vm1962 = vcmp.lt.s32.totalorder %v1961, 0
    %v1963 = vsub.s32 0, %v1961
    %v1964 = vsel %vm1962, %v1963, %v1961
    %v1965 = vclz %v1964
    %v1966 = vsub.s32 %v1965, 2
    %vm1967 = vcmp.gt.s32.totalorder 0, %v1966
    %v1968 = vsel %vm1967, 0, %v1966
    %v1969 = vsub.s32 32, %v1968
    %v1970 = vshll.u32 %v1961, %v1968
    %v1971 = vshrl.u32 %v1953, %v1969
    %v1972 = vor.u32 %v1970, %v1971
    %v1973 = vsub.s32 4294967266, %v1968
    %v1974 = vadd.s32 %v1973, 127
    %v1975 = vshll.u32 %v1974, 23
    %v1976 = vor.u32 4788187, %v1975
    %v1977 = vand.u32 2147483647, %v1976
    %v1979 = vcvt.s32.f32 %v1972
    %v1980 = vmul.f32 %v1979, %v1977
    %v1981 = vxor.u32 %v1980, 2147483648
    %v1982 = vsel %vm1899, %v1981, %v1980
    %v1983 = vsub.s32 4, %v1959
    %v1984 = vsel %vm1899, %v1983, %v1959
    %v1985 = vsel %vm1898, %v217, %v1982
    %v1986 = vsel %vm1898, 0, %v1984
    %v1987 = vcosq.f32.pop %v1985
    %v1988 = vsinq.f32.pop %v1985
    %vm1989 = vweird.f32 %v217
    %v1990 = vadd.s32 %v1986, 3
    %v1991 = vand.u32 %v1990, 3
    %vm1992 = vcmp.lt.s32.totalorder %v1991, 2
    %vm1993 = vcmp.eq.s32.totalorder %v1991, 0
    %v1994 = vxor.u32 %v1988, 2147483648
    %v1995 = vsel %vm1993, %v1987, %v1994
    %vm1996 = vcmp.eq.s32.totalorder %v1991, 2
    %v1997 = vxor.u32 %v1987, 2147483648
    %v1998 = vsel %vm1996, %v1997, %v1988
    %v1999 = vsel %vm1992, %v1995, %v1998
    %v2000 = vsel %vm1989, nan, %v1999
    %v2001 = vand.u32 2147483647, %v218
    %vm2002 = vcmp.le.f32.partialorder %v2001, 0.7853982
    %vm2003 = vcmp.lt.s32.totalorder %v218, 0
    %v2004 = vand.u32 %v218, 2139095040
    %v2005 = vshrl.u32 %v2004, 23
    %v2006 = vsub.s32 %v2005, 127
    %v2007 = vand.u32 2147483647, %v218
    %v2008 = vand.u32 %v2007, 8388607
    %v2009 = vor.u32 %v2008, 8388608
    %v2010 = vsub.s32 0, %v2009
    %v2011 = vadd.s32 %v2006, 1
    %vm2012 = vcmp.gt.s32.totalorder %v2011, 0
    %v2013 = vsel %vm2012, %v2011, 0
    %v2014 = vshrl.u32 %v2013, 5
    %v2015 = vand.u32 %v2013, 31
    %v2016 = vsub.s32 32, %v2015
    %v2017 = vshrl.u32 683565275, %v2016
    %v2018 = vshll.u32 683565275, %v2015
    %v2019 = vshrl.u32 2475754826, %v2016
    %v2020 = vor.u32 %v2018, %v2019
    %v2021 = vshll.u32 2475754826, %v2015
    %v2022 = vshrl.u32 2131351028, %v2016
    %v2023 = vor.u32 %v2021, %v2022
    %v2024 = vshll.u32 2131351028, %v2015
    %v2025 = vshrl.u32 2102212464, %v2016
    %v2026 = vor.u32 %v2024, %v2025
    %v2027 = vshll.u32 2102212464, %v2015
    %v2028 = vshrl.u32 920167782, %v2016
    %v2029 = vor.u32 %v2027, %v2028
    %v2030 = vshll.u32 920167782, %v2015
    %v2031 = vshrl.u32 1326507024, %v2016
    %v2032 = vor.u32 %v2030, %v2031
    %vm2033 = vcmp.lt.s32.totalorder %v2014, 1
    %vm2034 = vcmp.lt.s32.totalorder %v2014, 2
    %vm2035 = vcmp.lt.s32.totalorder %v2014, 3
    %vm2036 = vcmp.lt.s32.totalorder %v2014, 4
    %v2037 = vsel %vm2033, %v2017, %v2020
    %v2038 = vsel %vm2036, %v2026, 2102212464
    %v2039 = vsel %vm2035, %v2023, %v2038
    %v2040 = vsel %vm2034, %v2037, %v2039
    %v2041 = vsel %vm2033, %v2020, %v2023
    %v2042 = vsel %vm2036, %v2029, 920167782
    %v2043 = vsel %vm2035, %v2026, %v2042
    %v2044 = vsel %vm2034, %v2041, %v2043
    %v2045 = vsel %vm2033, %v2023, %v2026
    %v2046 = vsel %vm2036, %v2032, 1326507024
    %v2047 = vsel %vm2035, %v2029, %v2046
    %v2048 = vsel %vm2034, %v2045, %v2047
    %v2049 = vshll.u32 %v2009, 8
    %v2050 = vmul.u32.u64.compose %v2049, %v2048
    %v2051 = vextract.low.u32 %v2050
    %v2052 = vextract.high.u32 %v2050
    %v2053 = vmul.u32.u64.compose %v2049, %v2044
    %v2054 = vextract.low.u32 %v2053
    %v2055 = vextract.high.u32 %v2053
    %v2056 = vmul.u32 %v2049, %v2040
    %v2057 = vadd.s32 %v2052, %v2054
    %vm2058 = vc.u32 %v2052, %v2054
    %v2059 = vadd.s32 %v2055, 1
    %v2060 = vsel %vm2058, %v2059, %v2055
    %v2061 = vadd.s32 %v2056, %v2060
    %v2062 = vadd.s32 %v2061, 536870912
    %v2063 = vshrl.u32 %v2062, 30
    %v2064 = vshll.u32 %v2063, 30
    %v2065 = vsub.s32 %v2061, %v2064
    %vm2066 = vcmp.lt.s32.totalorder %v2065, 0
    %v2067 = vsub.s32 0, %v2065
    %v2068 = vsel %vm2066, %v2067, %v2065
    %v2069 = vclz %v2068
    %v2070 = vsub.s32 %v2069, 2
    %vm2071 = vcmp.gt.s32.totalorder 0, %v2070
    %v2072 = vsel %vm2071, 0, %v2070
    %v2073 = vsub.s32 32, %v2072
    %v2074 = vshll.u32 %v2065, %v2072
    %v2075 = vshrl.u32 %v2057, %v2073
    %v2076 = vor.u32 %v2074, %v2075
    %v2077 = vsub.s32 4294967266, %v2072
    %v2078 = vadd.s32 %v2077, 127
    %v2079 = vshll.u32 %v2078, 23
    %v2080 = vor.u32 4788187, %v2079
    %v2081 = vand.u32 2147483647, %v2080
    %v2083 = vcvt.s32.f32 %v2076
    %v2084 = vmul.f32 %v2083, %v2081
    %v2085 = vxor.u32 %v2084, 2147483648
    %v2086 = vsel %vm2003, %v2085, %v2084
    %v2087 = vsub.s32 4, %v2063
    %v2088 = vsel %vm2003, %v2087, %v2063
    %v2089 = vsel %vm2002, %v218, %v2086
    %v2090 = vsel %vm2002, 0, %v2088
    %v2091 = vcosq.f32.pop %v2089
    %v2092 = vsinq.f32.pop %v2089
    %vm2093 = vweird.f32 %v218
    %v2094 = vadd.s32 %v2090, 3
    %v2095 = vand.u32 %v2094, 3
    %vm2096 = vcmp.lt.s32.totalorder %v2095, 2
    %vm2097 = vcmp.eq.s32.totalorder %v2095, 0
    %v2098 = vxor.u32 %v2092, 2147483648
    %v2099 = vsel %vm2097, %v2091, %v2098
    %vm2100 = vcmp.eq.s32.totalorder %v2095, 2
    %v2101 = vxor.u32 %v2091, 2147483648
    %v2102 = vsel %vm2100, %v2101, %v2092
    %v2103 = vsel %vm2096, %v2099, %v2102
    %v2104 = vsel %vm2093, nan, %v2103
    %v2105 = vand.u32 2147483647, %v219
    %vm2106 = vcmp.le.f32.partialorder %v2105, 0.7853982
    %vm2107 = vcmp.lt.s32.totalorder %v219, 0
    %v2108 = vand.u32 %v219, 2139095040
    %v2109 = vshrl.u32 %v2108, 23
    %v2110 = vsub.s32 %v2109, 127
    %v2111 = vand.u32 2147483647, %v219
    %v2112 = vand.u32 %v2111, 8388607
    %v2113 = vor.u32 %v2112, 8388608
    %v2114 = vsub.s32 0, %v2113
    %v2115 = vadd.s32 %v2110, 1
    %vm2116 = vcmp.gt.s32.totalorder %v2115, 0
    %v2117 = vsel %vm2116, %v2115, 0
    %v2118 = vshrl.u32 %v2117, 5
    %v2119 = vand.u32 %v2117, 31
    %v2120 = vsub.s32 32, %v2119
    %v2121 = vshrl.u32 683565275, %v2120
    %v2122 = vshll.u32 683565275, %v2119
    %v2123 = vshrl.u32 2475754826, %v2120
    %v2124 = vor.u32 %v2122, %v2123
    %v2125 = vshll.u32 2475754826, %v2119
    %v2126 = vshrl.u32 2131351028, %v2120
    %v2127 = vor.u32 %v2125, %v2126
    %v2128 = vshll.u32 2131351028, %v2119
    %v2129 = vshrl.u32 2102212464, %v2120
    %v2130 = vor.u32 %v2128, %v2129
    %v2131 = vshll.u32 2102212464, %v2119
    %v2132 = vshrl.u32 920167782, %v2120
    %v2133 = vor.u32 %v2131, %v2132
    %v2134 = vshll.u32 920167782, %v2119
    %v2135 = vshrl.u32 1326507024, %v2120
    %v2136 = vor.u32 %v2134, %v2135
    %vm2137 = vcmp.lt.s32.totalorder %v2118, 1
    %vm2138 = vcmp.lt.s32.totalorder %v2118, 2
    %vm2139 = vcmp.lt.s32.totalorder %v2118, 3
    %vm2140 = vcmp.lt.s32.totalorder %v2118, 4
    %v2141 = vsel %vm2137, %v2121, %v2124
    %v2142 = vsel %vm2140, %v2130, 2102212464
    %v2143 = vsel %vm2139, %v2127, %v2142
    %v2144 = vsel %vm2138, %v2141, %v2143
    %v2145 = vsel %vm2137, %v2124, %v2127
    %v2146 = vsel %vm2140, %v2133, 920167782
    %v2147 = vsel %vm2139, %v2130, %v2146
    %v2148 = vsel %vm2138, %v2145, %v2147
    %v2149 = vsel %vm2137, %v2127, %v2130
    %v2150 = vsel %vm2140, %v2136, 1326507024
    %v2151 = vsel %vm2139, %v2133, %v2150
    %v2152 = vsel %vm2138, %v2149, %v2151
    %v2153 = vshll.u32 %v2113, 8
    %v2154 = vmul.u32.u64.compose %v2153, %v2152
    %v2155 = vextract.low.u32 %v2154
    %v2156 = vextract.high.u32 %v2154
    %v2157 = vmul.u32.u64.compose %v2153, %v2148
    %v2158 = vextract.low.u32 %v2157
    %v2159 = vextract.high.u32 %v2157
    %v2160 = vmul.u32 %v2153, %v2144
    %v2161 = vadd.s32 %v2156, %v2158
    %vm2162 = vc.u32 %v2156, %v2158
    %v2163 = vadd.s32 %v2159, 1
    %v2164 = vsel %vm2162, %v2163, %v2159
    %v2165 = vadd.s32 %v2160, %v2164
    %v2166 = vadd.s32 %v2165, 536870912
    %v2167 = vshrl.u32 %v2166, 30
    %v2168 = vshll.u32 %v2167, 30
    %v2169 = vsub.s32 %v2165, %v2168
    %vm2170 = vcmp.lt.s32.totalorder %v2169, 0
    %v2171 = vsub.s32 0, %v2169
    %v2172 = vsel %vm2170, %v2171, %v2169
    %v2173 = vclz %v2172
    %v2174 = vsub.s32 %v2173, 2
    %vm2175 = vcmp.gt.s32.totalorder 0, %v2174
    %v2176 = vsel %vm2175, 0, %v2174
    %v2177 = vsub.s32 32, %v2176
    %v2178 = vshll.u32 %v2169, %v2176
    %v2179 = vshrl.u32 %v2161, %v2177
    %v2180 = vor.u32 %v2178, %v2179
    %v2181 = vsub.s32 4294967266, %v2176
    %v2182 = vadd.s32 %v2181, 127
    %v2183 = vshll.u32 %v2182, 23
    %v2184 = vor.u32 4788187, %v2183
    %v2185 = vand.u32 2147483647, %v2184
    %v2187 = vcvt.s32.f32 %v2180
    %v2188 = vmul.f32 %v2187, %v2185
    %v2189 = vxor.u32 %v2188, 2147483648
    %v2190 = vsel %vm2107, %v2189, %v2188
    %v2191 = vsub.s32 4, %v2167
    %v2192 = vsel %vm2107, %v2191, %v2167
    %v2193 = vsel %vm2106, %v219, %v2190
    %v2194 = vsel %vm2106, 0, %v2192
    %v2195 = vcosq.f32.pop %v2193
    %v2196 = vsinq.f32.pop %v2193
    %vm2197 = vweird.f32 %v219
    %v2198 = vadd.s32 %v2194, 3
    %v2199 = vand.u32 %v2198, 3
    %vm2200 = vcmp.lt.s32.totalorder %v2199, 2
    %vm2201 = vcmp.eq.s32.totalorder %v2199, 0
    %v2202 = vxor.u32 %v2196, 2147483648
    %v2203 = vsel %vm2201, %v2195, %v2202
    %vm2204 = vcmp.eq.s32.totalorder %v2199, 2
    %v2205 = vxor.u32 %v2195, 2147483648
    %v2206 = vsel %vm2204, %v2205, %v2196
    %v2207 = vsel %vm2200, %v2203, %v2206
    %v2208 = vsel %vm2197, nan, %v2207
    %v2209 = vand.u32 2147483647, %v220
    %vm2210 = vcmp.le.f32.partialorder %v2209, 0.7853982
    %vm2211 = vcmp.lt.s32.totalorder %v220, 0
    %v2212 = vand.u32 %v220, 2139095040
    %v2213 = vshrl.u32 %v2212, 23
    %v2214 = vsub.s32 %v2213, 127
    %v2215 = vand.u32 2147483647, %v220
    %v2216 = vand.u32 %v2215, 8388607
    %v2217 = vor.u32 %v2216, 8388608
    %v2218 = vsub.s32 0, %v2217
    %v2219 = vadd.s32 %v2214, 1
    %vm2220 = vcmp.gt.s32.totalorder %v2219, 0
    %v2221 = vsel %vm2220, %v2219, 0
    %v2222 = vshrl.u32 %v2221, 5
    %v2223 = vand.u32 %v2221, 31
    %v2224 = vsub.s32 32, %v2223
    %v2225 = vshrl.u32 683565275, %v2224
    %v2226 = vshll.u32 683565275, %v2223
    %v2227 = vshrl.u32 2475754826, %v2224
    %v2228 = vor.u32 %v2226, %v2227
    %v2229 = vshll.u32 2475754826, %v2223
    %v2230 = vshrl.u32 2131351028, %v2224
    %v2231 = vor.u32 %v2229, %v2230
    %v2232 = vshll.u32 2131351028, %v2223
    %v2233 = vshrl.u32 2102212464, %v2224
    %v2234 = vor.u32 %v2232, %v2233
    %v2235 = vshll.u32 2102212464, %v2223
    %v2236 = vshrl.u32 920167782, %v2224
    %v2237 = vor.u32 %v2235, %v2236
    %v2238 = vshll.u32 920167782, %v2223
    %v2239 = vshrl.u32 1326507024, %v2224
    %v2240 = vor.u32 %v2238, %v2239
    %vm2241 = vcmp.lt.s32.totalorder %v2222, 1
    %vm2242 = vcmp.lt.s32.totalorder %v2222, 2
    %vm2243 = vcmp.lt.s32.totalorder %v2222, 3
    %vm2244 = vcmp.lt.s32.totalorder %v2222, 4
    %v2245 = vsel %vm2241, %v2225, %v2228
    %v2246 = vsel %vm2244, %v2234, 2102212464
    %v2247 = vsel %vm2243, %v2231, %v2246
    %v2248 = vsel %vm2242, %v2245, %v2247
    %v2249 = vsel %vm2241, %v2228, %v2231
    %v2250 = vsel %vm2244, %v2237, 920167782
    %v2251 = vsel %vm2243, %v2234, %v2250
    %v2252 = vsel %vm2242, %v2249, %v2251
    %v2253 = vsel %vm2241, %v2231, %v2234
    %v2254 = vsel %vm2244, %v2240, 1326507024
    %v2255 = vsel %vm2243, %v2237, %v2254
    %v2256 = vsel %vm2242, %v2253, %v2255
    %v2257 = vshll.u32 %v2217, 8
    %v2258 = vmul.u32.u64.compose %v2257, %v2256
    %v2259 = vextract.low.u32 %v2258
    %v2260 = vextract.high.u32 %v2258
    %v2261 = vmul.u32.u64.compose %v2257, %v2252
    %v2262 = vextract.low.u32 %v2261
    %v2263 = vextract.high.u32 %v2261
    %v2264 = vmul.u32 %v2257, %v2248
    %v2265 = vadd.s32 %v2260, %v2262
    %vm2266 = vc.u32 %v2260, %v2262
    %v2267 = vadd.s32 %v2263, 1
    %v2268 = vsel %vm2266, %v2267, %v2263
    %v2269 = vadd.s32 %v2264, %v2268
    %v2270 = vadd.s32 %v2269, 536870912
    %v2271 = vshrl.u32 %v2270, 30
    %v2272 = vshll.u32 %v2271, 30
    %v2273 = vsub.s32 %v2269, %v2272
    %vm2274 = vcmp.lt.s32.totalorder %v2273, 0
    %v2275 = vsub.s32 0, %v2273
    %v2276 = vsel %vm2274, %v2275, %v2273
    %v2277 = vclz %v2276
    %v2278 = vsub.s32 %v2277, 2
    %vm2279 = vcmp.gt.s32.totalorder 0, %v2278
    %v2280 = vsel %vm2279, 0, %v2278
    %v2281 = vsub.s32 32, %v2280
    %v2282 = vshll.u32 %v2273, %v2280
    %v2283 = vshrl.u32 %v2265, %v2281
    %v2284 = vor.u32 %v2282, %v2283
    %v2285 = vsub.s32 4294967266, %v2280
    %v2286 = vadd.s32 %v2285, 127
    %v2287 = vshll.u32 %v2286, 23
    %v2288 = vor.u32 4788187, %v2287
    %v2289 = vand.u32 2147483647, %v2288
    %v2291 = vcvt.s32.f32 %v2284
    %v2292 = vmul.f32 %v2291, %v2289
    %v2293 = vxor.u32 %v2292, 2147483648
    %v2294 = vsel %vm2211, %v2293, %v2292
    %v2295 = vsub.s32 4, %v2271
    %v2296 = vsel %vm2211, %v2295, %v2271
    %v2297 = vsel %vm2210, %v220, %v2294
    %v2298 = vsel %vm2210, 0, %v2296
    %v2299 = vcosq.f32.pop %v2297
    %v2300 = vsinq.f32.pop %v2297
    %vm2301 = vweird.f32 %v220
    %v2302 = vadd.s32 %v2298, 3
    %v2303 = vand.u32 %v2302, 3
    %vm2304 = vcmp.lt.s32.totalorder %v2303, 2
    %vm2305 = vcmp.eq.s32.totalorder %v2303, 0
    %v2306 = vxor.u32 %v2300, 2147483648
    %v2307 = vsel %vm2305, %v2299, %v2306
    %vm2308 = vcmp.eq.s32.totalorder %v2303, 2
    %v2309 = vxor.u32 %v2299, 2147483648
    %v2310 = vsel %vm2308, %v2309, %v2300
    %v2311 = vsel %vm2304, %v2307, %v2310
    %v2312 = vsel %vm2301, nan, %v2311
    %v2313 = vand.u32 2147483647, %v221
    %vm2314 = vcmp.le.f32.partialorder %v2313, 0.7853982
    %vm2315 = vcmp.lt.s32.totalorder %v221, 0
    %v2316 = vand.u32 %v221, 2139095040
    %v2317 = vshrl.u32 %v2316, 23
    %v2318 = vsub.s32 %v2317, 127
    %v2319 = vand.u32 2147483647, %v221
    %v2320 = vand.u32 %v2319, 8388607
    %v2321 = vor.u32 %v2320, 8388608
    %v2322 = vsub.s32 0, %v2321
    %v2323 = vadd.s32 %v2318, 1
    %vm2324 = vcmp.gt.s32.totalorder %v2323, 0
    %v2325 = vsel %vm2324, %v2323, 0
    %v2326 = vshrl.u32 %v2325, 5
    %v2327 = vand.u32 %v2325, 31
    %v2328 = vsub.s32 32, %v2327
    %v2329 = vshrl.u32 683565275, %v2328
    %v2330 = vshll.u32 683565275, %v2327
    %v2331 = vshrl.u32 2475754826, %v2328
    %v2332 = vor.u32 %v2330, %v2331
    %v2333 = vshll.u32 2475754826, %v2327
    %v2334 = vshrl.u32 2131351028, %v2328
    %v2335 = vor.u32 %v2333, %v2334
    %v2336 = vshll.u32 2131351028, %v2327
    %v2337 = vshrl.u32 2102212464, %v2328
    %v2338 = vor.u32 %v2336, %v2337
    %v2339 = vshll.u32 2102212464, %v2327
    %v2340 = vshrl.u32 920167782, %v2328
    %v2341 = vor.u32 %v2339, %v2340
    %v2342 = vshll.u32 920167782, %v2327
    %v2343 = vshrl.u32 1326507024, %v2328
    %v2344 = vor.u32 %v2342, %v2343
    %vm2345 = vcmp.lt.s32.totalorder %v2326, 1
    %vm2346 = vcmp.lt.s32.totalorder %v2326, 2
    %vm2347 = vcmp.lt.s32.totalorder %v2326, 3
    %vm2348 = vcmp.lt.s32.totalorder %v2326, 4
    %v2349 = vsel %vm2345, %v2329, %v2332
    %v2350 = vsel %vm2348, %v2338, 2102212464
    %v2351 = vsel %vm2347, %v2335, %v2350
    %v2352 = vsel %vm2346, %v2349, %v2351
    %v2353 = vsel %vm2345, %v2332, %v2335
    %v2354 = vsel %vm2348, %v2341, 920167782
    %v2355 = vsel %vm2347, %v2338, %v2354
    %v2356 = vsel %vm2346, %v2353, %v2355
    %v2357 = vsel %vm2345, %v2335, %v2338
    %v2358 = vsel %vm2348, %v2344, 1326507024
    %v2359 = vsel %vm2347, %v2341, %v2358
    %v2360 = vsel %vm2346, %v2357, %v2359
    %v2361 = vshll.u32 %v2321, 8
    %v2362 = vmul.u32.u64.compose %v2361, %v2360
    %v2363 = vextract.low.u32 %v2362
    %v2364 = vextract.high.u32 %v2362
    %v2365 = vmul.u32.u64.compose %v2361, %v2356
    %v2366 = vextract.low.u32 %v2365
    %v2367 = vextract.high.u32 %v2365
    %v2368 = vmul.u32 %v2361, %v2352
    %v2369 = vadd.s32 %v2364, %v2366
    %vm2370 = vc.u32 %v2364, %v2366
    %v2371 = vadd.s32 %v2367, 1
    %v2372 = vsel %vm2370, %v2371, %v2367
    %v2373 = vadd.s32 %v2368, %v2372
    %v2374 = vadd.s32 %v2373, 536870912
    %v2375 = vshrl.u32 %v2374, 30
    %v2376 = vshll.u32 %v2375, 30
    %v2377 = vsub.s32 %v2373, %v2376
    %vm2378 = vcmp.lt.s32.totalorder %v2377, 0
    %v2379 = vsub.s32 0, %v2377
    %v2380 = vsel %vm2378, %v2379, %v2377
    %v2381 = vclz %v2380
    %v2382 = vsub.s32 %v2381, 2
    %vm2383 = vcmp.gt.s32.totalorder 0, %v2382
    %v2384 = vsel %vm2383, 0, %v2382
    %v2385 = vsub.s32 32, %v2384
    %v2386 = vshll.u32 %v2377, %v2384
    %v2387 = vshrl.u32 %v2369, %v2385
    %v2388 = vor.u32 %v2386, %v2387
    %v2389 = vsub.s32 4294967266, %v2384
    %v2390 = vadd.s32 %v2389, 127
    %v2391 = vshll.u32 %v2390, 23
    %v2392 = vor.u32 4788187, %v2391
    %v2393 = vand.u32 2147483647, %v2392
    %v2395 = vcvt.s32.f32 %v2388
    %v2396 = vmul.f32 %v2395, %v2393
    %v2397 = vxor.u32 %v2396, 2147483648
    %v2398 = vsel %vm2315, %v2397, %v2396
    %v2399 = vsub.s32 4, %v2375
    %v2400 = vsel %vm2315, %v2399, %v2375
    %v2401 = vsel %vm2314, %v221, %v2398
    %v2402 = vsel %vm2314, 0, %v2400
    %v2403 = vcosq.f32.pop %v2401
    %v2404 = vsinq.f32.pop %v2401
    %vm2405 = vweird.f32 %v221
    %v2406 = vadd.s32 %v2402, 3
    %v2407 = vand.u32 %v2406, 3
    %vm2408 = vcmp.lt.s32.totalorder %v2407, 2
    %vm2409 = vcmp.eq.s32.totalorder %v2407, 0
    %v2410 = vxor.u32 %v2404, 2147483648
    %v2411 = vsel %vm2409, %v2403, %v2410
    %vm2412 = vcmp.eq.s32.totalorder %v2407, 2
    %v2413 = vxor.u32 %v2403, 2147483648
    %v2414 = vsel %vm2412, %v2413, %v2404
    %v2415 = vsel %vm2408, %v2411, %v2414
    %v2416 = vsel %vm2405, nan, %v2415
    %v2417 = vand.u32 2147483647, %v222
    %vm2418 = vcmp.le.f32.partialorder %v2417, 0.7853982
    %vm2419 = vcmp.lt.s32.totalorder %v222, 0
    %v2420 = vand.u32 %v222, 2139095040
    %v2421 = vshrl.u32 %v2420, 23
    %v2422 = vsub.s32 %v2421, 127
    %v2423 = vand.u32 2147483647, %v222
    %v2424 = vand.u32 %v2423, 8388607
    %v2425 = vor.u32 %v2424, 8388608
    %v2426 = vsub.s32 0, %v2425
    %v2427 = vadd.s32 %v2422, 1
    %vm2428 = vcmp.gt.s32.totalorder %v2427, 0
    %v2429 = vsel %vm2428, %v2427, 0
    %v2430 = vshrl.u32 %v2429, 5
    %v2431 = vand.u32 %v2429, 31
    %v2432 = vsub.s32 32, %v2431
    %v2433 = vshrl.u32 683565275, %v2432
    %v2434 = vshll.u32 683565275, %v2431
    %v2435 = vshrl.u32 2475754826, %v2432
    %v2436 = vor.u32 %v2434, %v2435
    %v2437 = vshll.u32 2475754826, %v2431
    %v2438 = vshrl.u32 2131351028, %v2432
    %v2439 = vor.u32 %v2437, %v2438
    %v2440 = vshll.u32 2131351028, %v2431
    %v2441 = vshrl.u32 2102212464, %v2432
    %v2442 = vor.u32 %v2440, %v2441
    %v2443 = vshll.u32 2102212464, %v2431
    %v2444 = vshrl.u32 920167782, %v2432
    %v2445 = vor.u32 %v2443, %v2444
    %v2446 = vshll.u32 920167782, %v2431
    %v2447 = vshrl.u32 1326507024, %v2432
    %v2448 = vor.u32 %v2446, %v2447
    %vm2449 = vcmp.lt.s32.totalorder %v2430, 1
    %vm2450 = vcmp.lt.s32.totalorder %v2430, 2
    %vm2451 = vcmp.lt.s32.totalorder %v2430, 3
    %vm2452 = vcmp.lt.s32.totalorder %v2430, 4
    %v2453 = vsel %vm2449, %v2433, %v2436
    %v2454 = vsel %vm2452, %v2442, 2102212464
    %v2455 = vsel %vm2451, %v2439, %v2454
    %v2456 = vsel %vm2450, %v2453, %v2455
    %v2457 = vsel %vm2449, %v2436, %v2439
    %v2458 = vsel %vm2452, %v2445, 920167782
    %v2459 = vsel %vm2451, %v2442, %v2458
    %v2460 = vsel %vm2450, %v2457, %v2459
    %v2461 = vsel %vm2449, %v2439, %v2442
    %v2462 = vsel %vm2452, %v2448, 1326507024
    %v2463 = vsel %vm2451, %v2445, %v2462
    %v2464 = vsel %vm2450, %v2461, %v2463
    %v2465 = vshll.u32 %v2425, 8
    %v2466 = vmul.u32.u64.compose %v2465, %v2464
    %v2467 = vextract.low.u32 %v2466
    %v2468 = vextract.high.u32 %v2466
    %v2469 = vmul.u32.u64.compose %v2465, %v2460
    %v2470 = vextract.low.u32 %v2469
    %v2471 = vextract.high.u32 %v2469
    %v2472 = vmul.u32 %v2465, %v2456
    %v2473 = vadd.s32 %v2468, %v2470
    %vm2474 = vc.u32 %v2468, %v2470
    %v2475 = vadd.s32 %v2471, 1
    %v2476 = vsel %vm2474, %v2475, %v2471
    %v2477 = vadd.s32 %v2472, %v2476
    %v2478 = vadd.s32 %v2477, 536870912
    %v2479 = vshrl.u32 %v2478, 30
    %v2480 = vshll.u32 %v2479, 30
    %v2481 = vsub.s32 %v2477, %v2480
    %vm2482 = vcmp.lt.s32.totalorder %v2481, 0
    %v2483 = vsub.s32 0, %v2481
    %v2484 = vsel %vm2482, %v2483, %v2481
    %v2485 = vclz %v2484
    %v2486 = vsub.s32 %v2485, 2
    %vm2487 = vcmp.gt.s32.totalorder 0, %v2486
    %v2488 = vsel %vm2487, 0, %v2486
    %v2489 = vsub.s32 32, %v2488
    %v2490 = vshll.u32 %v2481, %v2488
    %v2491 = vshrl.u32 %v2473, %v2489
    %v2492 = vor.u32 %v2490, %v2491
    %v2493 = vsub.s32 4294967266, %v2488
    %v2494 = vadd.s32 %v2493, 127
    %v2495 = vshll.u32 %v2494, 23
    %v2496 = vor.u32 4788187, %v2495
    %v2497 = vand.u32 2147483647, %v2496
    %v2499 = vcvt.s32.f32 %v2492
    %v2500 = vmul.f32 %v2499, %v2497
    %v2501 = vxor.u32 %v2500, 2147483648
    %v2502 = vsel %vm2419, %v2501, %v2500
    %v2503 = vsub.s32 4, %v2479
    %v2504 = vsel %vm2419, %v2503, %v2479
    %v2505 = vsel %vm2418, %v222, %v2502
    %v2506 = vsel %vm2418, 0, %v2504
    %v2507 = vcosq.f32.pop %v2505
    %v2508 = vsinq.f32.pop %v2505
    %vm2509 = vweird.f32 %v222
    %v2510 = vadd.s32 %v2506, 3
    %v2511 = vand.u32 %v2510, 3
    %vm2512 = vcmp.lt.s32.totalorder %v2511, 2
    %vm2513 = vcmp.eq.s32.totalorder %v2511, 0
    %v2514 = vxor.u32 %v2508, 2147483648
    %v2515 = vsel %vm2513, %v2507, %v2514
    %vm2516 = vcmp.eq.s32.totalorder %v2511, 2
    %v2517 = vxor.u32 %v2507, 2147483648
    %v2518 = vsel %vm2516, %v2517, %v2508
    %v2519 = vsel %vm2512, %v2515, %v2518
    %v2520 = vsel %vm2509, nan, %v2519
    %v2521 = vand.u32 2147483647, %v223
    %vm2522 = vcmp.le.f32.partialorder %v2521, 0.7853982
    %vm2523 = vcmp.lt.s32.totalorder %v223, 0
    %v2524 = vand.u32 %v223, 2139095040
    %v2525 = vshrl.u32 %v2524, 23
    %v2526 = vsub.s32 %v2525, 127
    %v2527 = vand.u32 2147483647, %v223
    %v2528 = vand.u32 %v2527, 8388607
    %v2529 = vor.u32 %v2528, 8388608
    %v2530 = vsub.s32 0, %v2529
    %v2531 = vadd.s32 %v2526, 1
    %vm2532 = vcmp.gt.s32.totalorder %v2531, 0
    %v2533 = vsel %vm2532, %v2531, 0
    %v2534 = vshrl.u32 %v2533, 5
    %v2535 = vand.u32 %v2533, 31
    %v2536 = vsub.s32 32, %v2535
    %v2537 = vshrl.u32 683565275, %v2536
    %v2538 = vshll.u32 683565275, %v2535
    %v2539 = vshrl.u32 2475754826, %v2536
    %v2540 = vor.u32 %v2538, %v2539
    %v2541 = vshll.u32 2475754826, %v2535
    %v2542 = vshrl.u32 2131351028, %v2536
    %v2543 = vor.u32 %v2541, %v2542
    %v2544 = vshll.u32 2131351028, %v2535
    %v2545 = vshrl.u32 2102212464, %v2536
    %v2546 = vor.u32 %v2544, %v2545
    %v2547 = vshll.u32 2102212464, %v2535
    %v2548 = vshrl.u32 920167782, %v2536
    %v2549 = vor.u32 %v2547, %v2548
    %v2550 = vshll.u32 920167782, %v2535
    %v2551 = vshrl.u32 1326507024, %v2536
    %v2552 = vor.u32 %v2550, %v2551
    %vm2553 = vcmp.lt.s32.totalorder %v2534, 1
    %vm2554 = vcmp.lt.s32.totalorder %v2534, 2
    %vm2555 = vcmp.lt.s32.totalorder %v2534, 3
    %vm2556 = vcmp.lt.s32.totalorder %v2534, 4
    %v2557 = vsel %vm2553, %v2537, %v2540
    %v2558 = vsel %vm2556, %v2546, 2102212464
    %v2559 = vsel %vm2555, %v2543, %v2558
    %v2560 = vsel %vm2554, %v2557, %v2559
    %v2561 = vsel %vm2553, %v2540, %v2543
    %v2562 = vsel %vm2556, %v2549, 920167782
    %v2563 = vsel %vm2555, %v2546, %v2562
    %v2564 = vsel %vm2554, %v2561, %v2563
    %v2565 = vsel %vm2553, %v2543, %v2546
    %v2566 = vsel %vm2556, %v2552, 1326507024
    %v2567 = vsel %vm2555, %v2549, %v2566
    %v2568 = vsel %vm2554, %v2565, %v2567
    %v2569 = vshll.u32 %v2529, 8
    %v2570 = vmul.u32.u64.compose %v2569, %v2568
    %v2571 = vextract.low.u32 %v2570
    %v2572 = vextract.high.u32 %v2570
    %v2573 = vmul.u32.u64.compose %v2569, %v2564
    %v2574 = vextract.low.u32 %v2573
    %v2575 = vextract.high.u32 %v2573
    %v2576 = vmul.u32 %v2569, %v2560
    %v2577 = vadd.s32 %v2572, %v2574
    %vm2578 = vc.u32 %v2572, %v2574
    %v2579 = vadd.s32 %v2575, 1
    %v2580 = vsel %vm2578, %v2579, %v2575
    %v2581 = vadd.s32 %v2576, %v2580
    %v2582 = vadd.s32 %v2581, 536870912
    %v2583 = vshrl.u32 %v2582, 30
    %v2584 = vshll.u32 %v2583, 30
    %v2585 = vsub.s32 %v2581, %v2584
    %vm2586 = vcmp.lt.s32.totalorder %v2585, 0
    %v2587 = vsub.s32 0, %v2585
    %v2588 = vsel %vm2586, %v2587, %v2585
    %v2589 = vclz %v2588
    %v2590 = vsub.s32 %v2589, 2
    %vm2591 = vcmp.gt.s32.totalorder 0, %v2590
    %v2592 = vsel %vm2591, 0, %v2590
    %v2593 = vsub.s32 32, %v2592
    %v2594 = vshll.u32 %v2585, %v2592
    %v2595 = vshrl.u32 %v2577, %v2593
    %v2596 = vor.u32 %v2594, %v2595
    %v2597 = vsub.s32 4294967266, %v2592
    %v2598 = vadd.s32 %v2597, 127
    %v2599 = vshll.u32 %v2598, 23
    %v2600 = vor.u32 4788187, %v2599
    %v2601 = vand.u32 2147483647, %v2600
    %v2603 = vcvt.s32.f32 %v2596
    %v2604 = vmul.f32 %v2603, %v2601
    %v2605 = vxor.u32 %v2604, 2147483648
    %v2606 = vsel %vm2523, %v2605, %v2604
    %v2607 = vsub.s32 4, %v2583
    %v2608 = vsel %vm2523, %v2607, %v2583
    %v2609 = vsel %vm2522, %v223, %v2606
    %v2610 = vsel %vm2522, 0, %v2608
    %v2611 = vcosq.f32.pop %v2609
    %v2612 = vsinq.f32.pop %v2609
    %vm2613 = vweird.f32 %v223
    %v2614 = vadd.s32 %v2610, 3
    %v2615 = vand.u32 %v2614, 3
    %vm2616 = vcmp.lt.s32.totalorder %v2615, 2
    %vm2617 = vcmp.eq.s32.totalorder %v2615, 0
    %v2618 = vxor.u32 %v2612, 2147483648
    %v2619 = vsel %vm2617, %v2611, %v2618
    %vm2620 = vcmp.eq.s32.totalorder %v2615, 2
    %v2621 = vxor.u32 %v2611, 2147483648
    %v2622 = vsel %vm2620, %v2621, %v2612
    %v2623 = vsel %vm2616, %v2619, %v2622
    %v2624 = vsel %vm2613, nan, %v2623
    %v2625 = vand.u32 2147483647, %v224
    %vm2626 = vcmp.le.f32.partialorder %v2625, 0.7853982
    %vm2627 = vcmp.lt.s32.totalorder %v224, 0
    %v2628 = vand.u32 %v224, 2139095040
    %v2629 = vshrl.u32 %v2628, 23
    %v2630 = vsub.s32 %v2629, 127
    %v2631 = vand.u32 2147483647, %v224
    %v2632 = vand.u32 %v2631, 8388607
    %v2633 = vor.u32 %v2632, 8388608
    %v2634 = vsub.s32 0, %v2633
    %v2635 = vadd.s32 %v2630, 1
    %vm2636 = vcmp.gt.s32.totalorder %v2635, 0
    %v2637 = vsel %vm2636, %v2635, 0
    %v2638 = vshrl.u32 %v2637, 5
    %v2639 = vand.u32 %v2637, 31
    %v2640 = vsub.s32 32, %v2639
    %v2641 = vshrl.u32 683565275, %v2640
    %v2642 = vshll.u32 683565275, %v2639
    %v2643 = vshrl.u32 2475754826, %v2640
    %v2644 = vor.u32 %v2642, %v2643
    %v2645 = vshll.u32 2475754826, %v2639
    %v2646 = vshrl.u32 2131351028, %v2640
    %v2647 = vor.u32 %v2645, %v2646
    %v2648 = vshll.u32 2131351028, %v2639
    %v2649 = vshrl.u32 2102212464, %v2640
    %v2650 = vor.u32 %v2648, %v2649
    %v2651 = vshll.u32 2102212464, %v2639
    %v2652 = vshrl.u32 920167782, %v2640
    %v2653 = vor.u32 %v2651, %v2652
    %v2654 = vshll.u32 920167782, %v2639
    %v2655 = vshrl.u32 1326507024, %v2640
    %v2656 = vor.u32 %v2654, %v2655
    %vm2657 = vcmp.lt.s32.totalorder %v2638, 1
    %vm2658 = vcmp.lt.s32.totalorder %v2638, 2
    %vm2659 = vcmp.lt.s32.totalorder %v2638, 3
    %vm2660 = vcmp.lt.s32.totalorder %v2638, 4
    %v2661 = vsel %vm2657, %v2641, %v2644
    %v2662 = vsel %vm2660, %v2650, 2102212464
    %v2663 = vsel %vm2659, %v2647, %v2662
    %v2664 = vsel %vm2658, %v2661, %v2663
    %v2665 = vsel %vm2657, %v2644, %v2647
    %v2666 = vsel %vm2660, %v2653, 920167782
    %v2667 = vsel %vm2659, %v2650, %v2666
    %v2668 = vsel %vm2658, %v2665, %v2667
    %v2669 = vsel %vm2657, %v2647, %v2650
    %v2670 = vsel %vm2660, %v2656, 1326507024
    %v2671 = vsel %vm2659, %v2653, %v2670
    %v2672 = vsel %vm2658, %v2669, %v2671
    %v2673 = vshll.u32 %v2633, 8
    %v2674 = vmul.u32.u64.compose %v2673, %v2672
    %v2675 = vextract.low.u32 %v2674
    %v2676 = vextract.high.u32 %v2674
    %v2677 = vmul.u32.u64.compose %v2673, %v2668
    %v2678 = vextract.low.u32 %v2677
    %v2679 = vextract.high.u32 %v2677
    %v2680 = vmul.u32 %v2673, %v2664
    %v2681 = vadd.s32 %v2676, %v2678
    %vm2682 = vc.u32 %v2676, %v2678
    %v2683 = vadd.s32 %v2679, 1
    %v2684 = vsel %vm2682, %v2683, %v2679
    %v2685 = vadd.s32 %v2680, %v2684
    %v2686 = vadd.s32 %v2685, 536870912
    %v2687 = vshrl.u32 %v2686, 30
    %v2688 = vshll.u32 %v2687, 30
    %v2689 = vsub.s32 %v2685, %v2688
    %vm2690 = vcmp.lt.s32.totalorder %v2689, 0
    %v2691 = vsub.s32 0, %v2689
    %v2692 = vsel %vm2690, %v2691, %v2689
    %v2693 = vclz %v2692
    %v2694 = vsub.s32 %v2693, 2
    %vm2695 = vcmp.gt.s32.totalorder 0, %v2694
    %v2696 = vsel %vm2695, 0, %v2694
    %v2697 = vsub.s32 32, %v2696
    %v2698 = vshll.u32 %v2689, %v2696
    %v2699 = vshrl.u32 %v2681, %v2697
    %v2700 = vor.u32 %v2698, %v2699
    %v2701 = vsub.s32 4294967266, %v2696
    %v2702 = vadd.s32 %v2701, 127
    %v2703 = vshll.u32 %v2702, 23
    %v2704 = vor.u32 4788187, %v2703
    %v2705 = vand.u32 2147483647, %v2704
    %v2707 = vcvt.s32.f32 %v2700
    %v2708 = vmul.f32 %v2707, %v2705
    %v2709 = vxor.u32 %v2708, 2147483648
    %v2710 = vsel %vm2627, %v2709, %v2708
    %v2711 = vsub.s32 4, %v2687
    %v2712 = vsel %vm2627, %v2711, %v2687
    %v2713 = vsel %vm2626, %v224, %v2710
    %v2714 = vsel %vm2626, 0, %v2712
    %v2715 = vcosq.f32.pop %v2713
    %v2716 = vsinq.f32.pop %v2713
    %vm2717 = vweird.f32 %v224
    %v2718 = vadd.s32 %v2714, 3
    %v2719 = vand.u32 %v2718, 3
    %vm2720 = vcmp.lt.s32.totalorder %v2719, 2
    %vm2721 = vcmp.eq.s32.totalorder %v2719, 0
    %v2722 = vxor.u32 %v2716, 2147483648
    %v2723 = vsel %vm2721, %v2715, %v2722
    %vm2724 = vcmp.eq.s32.totalorder %v2719, 2
    %v2725 = vxor.u32 %v2715, 2147483648
    %v2726 = vsel %vm2724, %v2725, %v2716
    %v2727 = vsel %vm2720, %v2723, %v2726
    %v2728 = vsel %vm2717, nan, %v2727
    %v2729 = vand.u32 2147483647, %v225
    %vm2730 = vcmp.le.f32.partialorder %v2729, 0.7853982
    %vm2731 = vcmp.lt.s32.totalorder %v225, 0
    %v2732 = vand.u32 %v225, 2139095040
    %v2733 = vshrl.u32 %v2732, 23
    %v2734 = vsub.s32 %v2733, 127
    %v2735 = vand.u32 2147483647, %v225
    %v2736 = vand.u32 %v2735, 8388607
    %v2737 = vor.u32 %v2736, 8388608
    %v2738 = vsub.s32 0, %v2737
    %v2739 = vadd.s32 %v2734, 1
    %vm2740 = vcmp.gt.s32.totalorder %v2739, 0
    %v2741 = vsel %vm2740, %v2739, 0
    %v2742 = vshrl.u32 %v2741, 5
    %v2743 = vand.u32 %v2741, 31
    %v2744 = vsub.s32 32, %v2743
    %v2745 = vshrl.u32 683565275, %v2744
    %v2746 = vshll.u32 683565275, %v2743
    %v2747 = vshrl.u32 2475754826, %v2744
    %v2748 = vor.u32 %v2746, %v2747
    %v2749 = vshll.u32 2475754826, %v2743
    %v2750 = vshrl.u32 2131351028, %v2744
    %v2751 = vor.u32 %v2749, %v2750
    %v2752 = vshll.u32 2131351028, %v2743
    %v2753 = vshrl.u32 2102212464, %v2744
    %v2754 = vor.u32 %v2752, %v2753
    %v2755 = vshll.u32 2102212464, %v2743
    %v2756 = vshrl.u32 920167782, %v2744
    %v2757 = vor.u32 %v2755, %v2756
    %v2758 = vshll.u32 920167782, %v2743
    %v2759 = vshrl.u32 1326507024, %v2744
    %v2760 = vor.u32 %v2758, %v2759
    %vm2761 = vcmp.lt.s32.totalorder %v2742, 1
    %vm2762 = vcmp.lt.s32.totalorder %v2742, 2
    %vm2763 = vcmp.lt.s32.totalorder %v2742, 3
    %vm2764 = vcmp.lt.s32.totalorder %v2742, 4
    %v2765 = vsel %vm2761, %v2745, %v2748
    %v2766 = vsel %vm2764, %v2754, 2102212464
    %v2767 = vsel %vm2763, %v2751, %v2766
    %v2768 = vsel %vm2762, %v2765, %v2767
    %v2769 = vsel %vm2761, %v2748, %v2751
    %v2770 = vsel %vm2764, %v2757, 920167782
    %v2771 = vsel %vm2763, %v2754, %v2770
    %v2772 = vsel %vm2762, %v2769, %v2771
    %v2773 = vsel %vm2761, %v2751, %v2754
    %v2774 = vsel %vm2764, %v2760, 1326507024
    %v2775 = vsel %vm2763, %v2757, %v2774
    %v2776 = vsel %vm2762, %v2773, %v2775
    %v2777 = vshll.u32 %v2737, 8
    %v2778 = vmul.u32.u64.compose %v2777, %v2776
    %v2779 = vextract.low.u32 %v2778
    %v2780 = vextract.high.u32 %v2778
    %v2781 = vmul.u32.u64.compose %v2777, %v2772
    %v2782 = vextract.low.u32 %v2781
    %v2783 = vextract.high.u32 %v2781
    %v2784 = vmul.u32 %v2777, %v2768
    %v2785 = vadd.s32 %v2780, %v2782
    %vm2786 = vc.u32 %v2780, %v2782
    %v2787 = vadd.s32 %v2783, 1
    %v2788 = vsel %vm2786, %v2787, %v2783
    %v2789 = vadd.s32 %v2784, %v2788
    %v2790 = vadd.s32 %v2789, 536870912
    %v2791 = vshrl.u32 %v2790, 30
    %v2792 = vshll.u32 %v2791, 30
    %v2793 = vsub.s32 %v2789, %v2792
    %vm2794 = vcmp.lt.s32.totalorder %v2793, 0
    %v2795 = vsub.s32 0, %v2793
    %v2796 = vsel %vm2794, %v2795, %v2793
    %v2797 = vclz %v2796
    %v2798 = vsub.s32 %v2797, 2
    %vm2799 = vcmp.gt.s32.totalorder 0, %v2798
    %v2800 = vsel %vm2799, 0, %v2798
    %v2801 = vsub.s32 32, %v2800
    %v2802 = vshll.u32 %v2793, %v2800
    %v2803 = vshrl.u32 %v2785, %v2801
    %v2804 = vor.u32 %v2802, %v2803
    %v2805 = vsub.s32 4294967266, %v2800
    %v2806 = vadd.s32 %v2805, 127
    %v2807 = vshll.u32 %v2806, 23
    %v2808 = vor.u32 4788187, %v2807
    %v2809 = vand.u32 2147483647, %v2808
    %v2811 = vcvt.s32.f32 %v2804
    %v2812 = vmul.f32 %v2811, %v2809
    %v2813 = vxor.u32 %v2812, 2147483648
    %v2814 = vsel %vm2731, %v2813, %v2812
    %v2815 = vsub.s32 4, %v2791
    %v2816 = vsel %vm2731, %v2815, %v2791
    %v2817 = vsel %vm2730, %v225, %v2814
    %v2818 = vsel %vm2730, 0, %v2816
    %v2819 = vcosq.f32.pop %v2817
    %v2820 = vsinq.f32.pop %v2817
    %vm2821 = vweird.f32 %v225
    %v2822 = vadd.s32 %v2818, 3
    %v2823 = vand.u32 %v2822, 3
    %vm2824 = vcmp.lt.s32.totalorder %v2823, 2
    %vm2825 = vcmp.eq.s32.totalorder %v2823, 0
    %v2826 = vxor.u32 %v2820, 2147483648
    %v2827 = vsel %vm2825, %v2819, %v2826
    %vm2828 = vcmp.eq.s32.totalorder %v2823, 2
    %v2829 = vxor.u32 %v2819, 2147483648
    %v2830 = vsel %vm2828, %v2829, %v2820
    %v2831 = vsel %vm2824, %v2827, %v2830
    %v2832 = vsel %vm2821, nan, %v2831
    %v2833 = vand.u32 2147483647, %v226
    %vm2834 = vcmp.le.f32.partialorder %v2833, 0.7853982
    %vm2835 = vcmp.lt.s32.totalorder %v226, 0
    %v2836 = vand.u32 %v226, 2139095040
    %v2837 = vshrl.u32 %v2836, 23
    %v2838 = vsub.s32 %v2837, 127
    %v2839 = vand.u32 2147483647, %v226
    %v2840 = vand.u32 %v2839, 8388607
    %v2841 = vor.u32 %v2840, 8388608
    %v2842 = vsub.s32 0, %v2841
    %v2843 = vadd.s32 %v2838, 1
    %vm2844 = vcmp.gt.s32.totalorder %v2843, 0
    %v2845 = vsel %vm2844, %v2843, 0
    %v2846 = vshrl.u32 %v2845, 5
    %v2847 = vand.u32 %v2845, 31
    %v2848 = vsub.s32 32, %v2847
    %v2849 = vshrl.u32 683565275, %v2848
    %v2850 = vshll.u32 683565275, %v2847
    %v2851 = vshrl.u32 2475754826, %v2848
    %v2852 = vor.u32 %v2850, %v2851
    %v2853 = vshll.u32 2475754826, %v2847
    %v2854 = vshrl.u32 2131351028, %v2848
    %v2855 = vor.u32 %v2853, %v2854
    %v2856 = vshll.u32 2131351028, %v2847
    %v2857 = vshrl.u32 2102212464, %v2848
    %v2858 = vor.u32 %v2856, %v2857
    %v2859 = vshll.u32 2102212464, %v2847
    %v2860 = vshrl.u32 920167782, %v2848
    %v2861 = vor.u32 %v2859, %v2860
    %v2862 = vshll.u32 920167782, %v2847
    %v2863 = vshrl.u32 1326507024, %v2848
    %v2864 = vor.u32 %v2862, %v2863
    %vm2865 = vcmp.lt.s32.totalorder %v2846, 1
    %vm2866 = vcmp.lt.s32.totalorder %v2846, 2
    %vm2867 = vcmp.lt.s32.totalorder %v2846, 3
    %vm2868 = vcmp.lt.s32.totalorder %v2846, 4
    %v2869 = vsel %vm2865, %v2849, %v2852
    %v2870 = vsel %vm2868, %v2858, 2102212464
    %v2871 = vsel %vm2867, %v2855, %v2870
    %v2872 = vsel %vm2866, %v2869, %v2871
    %v2873 = vsel %vm2865, %v2852, %v2855
    %v2874 = vsel %vm2868, %v2861, 920167782
    %v2875 = vsel %vm2867, %v2858, %v2874
    %v2876 = vsel %vm2866, %v2873, %v2875
    %v2877 = vsel %vm2865, %v2855, %v2858
    %v2878 = vsel %vm2868, %v2864, 1326507024
    %v2879 = vsel %vm2867, %v2861, %v2878
    %v2880 = vsel %vm2866, %v2877, %v2879
    %v2881 = vshll.u32 %v2841, 8
    %v2882 = vmul.u32.u64.compose %v2881, %v2880
    %v2883 = vextract.low.u32 %v2882
    %v2884 = vextract.high.u32 %v2882
    %v2885 = vmul.u32.u64.compose %v2881, %v2876
    %v2886 = vextract.low.u32 %v2885
    %v2887 = vextract.high.u32 %v2885
    %v2888 = vmul.u32 %v2881, %v2872
    %v2889 = vadd.s32 %v2884, %v2886
    %vm2890 = vc.u32 %v2884, %v2886
    %v2891 = vadd.s32 %v2887, 1
    %v2892 = vsel %vm2890, %v2891, %v2887
    %v2893 = vadd.s32 %v2888, %v2892
    %v2894 = vadd.s32 %v2893, 536870912
    %v2895 = vshrl.u32 %v2894, 30
    %v2896 = vshll.u32 %v2895, 30
    %v2897 = vsub.s32 %v2893, %v2896
    %vm2898 = vcmp.lt.s32.totalorder %v2897, 0
    %v2899 = vsub.s32 0, %v2897
    %v2900 = vsel %vm2898, %v2899, %v2897
    %v2901 = vclz %v2900
    %v2902 = vsub.s32 %v2901, 2
    %vm2903 = vcmp.gt.s32.totalorder 0, %v2902
    %v2904 = vsel %vm2903, 0, %v2902
    %v2905 = vsub.s32 32, %v2904
    %v2906 = vshll.u32 %v2897, %v2904
    %v2907 = vshrl.u32 %v2889, %v2905
    %v2908 = vor.u32 %v2906, %v2907
    %v2909 = vsub.s32 4294967266, %v2904
    %v2910 = vadd.s32 %v2909, 127
    %v2911 = vshll.u32 %v2910, 23
    %v2912 = vor.u32 4788187, %v2911
    %v2913 = vand.u32 2147483647, %v2912
    %v2915 = vcvt.s32.f32 %v2908
    %v2916 = vmul.f32 %v2915, %v2913
    %v2917 = vxor.u32 %v2916, 2147483648
    %v2918 = vsel %vm2835, %v2917, %v2916
    %v2919 = vsub.s32 4, %v2895
    %v2920 = vsel %vm2835, %v2919, %v2895
    %v2921 = vsel %vm2834, %v226, %v2918
    %v2922 = vsel %vm2834, 0, %v2920
    %v2923 = vcosq.f32.pop %v2921
    %v2924 = vsinq.f32.pop %v2921
    %vm2925 = vweird.f32 %v226
    %v2926 = vadd.s32 %v2922, 3
    %v2927 = vand.u32 %v2926, 3
    %vm2928 = vcmp.lt.s32.totalorder %v2927, 2
    %vm2929 = vcmp.eq.s32.totalorder %v2927, 0
    %v2930 = vxor.u32 %v2924, 2147483648
    %v2931 = vsel %vm2929, %v2923, %v2930
    %vm2932 = vcmp.eq.s32.totalorder %v2927, 2
    %v2933 = vxor.u32 %v2923, 2147483648
    %v2934 = vsel %vm2932, %v2933, %v2924
    %v2935 = vsel %vm2928, %v2931, %v2934
    %v2936 = vsel %vm2925, nan, %v2935
    %v2937 = vand.u32 2147483647, %v227
    %vm2938 = vcmp.le.f32.partialorder %v2937, 0.7853982
    %vm2939 = vcmp.lt.s32.totalorder %v227, 0
    %v2940 = vand.u32 %v227, 2139095040
    %v2941 = vshrl.u32 %v2940, 23
    %v2942 = vsub.s32 %v2941, 127
    %v2943 = vand.u32 2147483647, %v227
    %v2944 = vand.u32 %v2943, 8388607
    %v2945 = vor.u32 %v2944, 8388608
    %v2946 = vsub.s32 0, %v2945
    %v2947 = vadd.s32 %v2942, 1
    %vm2948 = vcmp.gt.s32.totalorder %v2947, 0
    %v2949 = vsel %vm2948, %v2947, 0
    %v2950 = vshrl.u32 %v2949, 5
    %v2951 = vand.u32 %v2949, 31
    %v2952 = vsub.s32 32, %v2951
    %v2953 = vshrl.u32 683565275, %v2952
    %v2954 = vshll.u32 683565275, %v2951
    %v2955 = vshrl.u32 2475754826, %v2952
    %v2956 = vor.u32 %v2954, %v2955
    %v2957 = vshll.u32 2475754826, %v2951
    %v2958 = vshrl.u32 2131351028, %v2952
    %v2959 = vor.u32 %v2957, %v2958
    %v2960 = vshll.u32 2131351028, %v2951
    %v2961 = vshrl.u32 2102212464, %v2952
    %v2962 = vor.u32 %v2960, %v2961
    %v2963 = vshll.u32 2102212464, %v2951
    %v2964 = vshrl.u32 920167782, %v2952
    %v2965 = vor.u32 %v2963, %v2964
    %v2966 = vshll.u32 920167782, %v2951
    %v2967 = vshrl.u32 1326507024, %v2952
    %v2968 = vor.u32 %v2966, %v2967
    %vm2969 = vcmp.lt.s32.totalorder %v2950, 1
    %vm2970 = vcmp.lt.s32.totalorder %v2950, 2
    %vm2971 = vcmp.lt.s32.totalorder %v2950, 3
    %vm2972 = vcmp.lt.s32.totalorder %v2950, 4
    %v2973 = vsel %vm2969, %v2953, %v2956
    %v2974 = vsel %vm2972, %v2962, 2102212464
    %v2975 = vsel %vm2971, %v2959, %v2974
    %v2976 = vsel %vm2970, %v2973, %v2975
    %v2977 = vsel %vm2969, %v2956, %v2959
    %v2978 = vsel %vm2972, %v2965, 920167782
    %v2979 = vsel %vm2971, %v2962, %v2978
    %v2980 = vsel %vm2970, %v2977, %v2979
    %v2981 = vsel %vm2969, %v2959, %v2962
    %v2982 = vsel %vm2972, %v2968, 1326507024
    %v2983 = vsel %vm2971, %v2965, %v2982
    %v2984 = vsel %vm2970, %v2981, %v2983
    %v2985 = vshll.u32 %v2945, 8
    %v2986 = vmul.u32.u64.compose %v2985, %v2984
    %v2987 = vextract.low.u32 %v2986
    %v2988 = vextract.high.u32 %v2986
    %v2989 = vmul.u32.u64.compose %v2985, %v2980
    %v2990 = vextract.low.u32 %v2989
    %v2991 = vextract.high.u32 %v2989
    %v2992 = vmul.u32 %v2985, %v2976
    %v2993 = vadd.s32 %v2988, %v2990
    %vm2994 = vc.u32 %v2988, %v2990
    %v2995 = vadd.s32 %v2991, 1
    %v2996 = vsel %vm2994, %v2995, %v2991
    %v2997 = vadd.s32 %v2992, %v2996
    %v2998 = vadd.s32 %v2997, 536870912
    %v2999 = vshrl.u32 %v2998, 30
    %v3000 = vshll.u32 %v2999, 30
    %v3001 = vsub.s32 %v2997, %v3000
    %vm3002 = vcmp.lt.s32.totalorder %v3001, 0
    %v3003 = vsub.s32 0, %v3001
    %v3004 = vsel %vm3002, %v3003, %v3001
    %v3005 = vclz %v3004
    %v3006 = vsub.s32 %v3005, 2
    %vm3007 = vcmp.gt.s32.totalorder 0, %v3006
    %v3008 = vsel %vm3007, 0, %v3006
    %v3009 = vsub.s32 32, %v3008
    %v3010 = vshll.u32 %v3001, %v3008
    %v3011 = vshrl.u32 %v2993, %v3009
    %v3012 = vor.u32 %v3010, %v3011
    %v3013 = vsub.s32 4294967266, %v3008
    %v3014 = vadd.s32 %v3013, 127
    %v3015 = vshll.u32 %v3014, 23
    %v3016 = vor.u32 4788187, %v3015
    %v3017 = vand.u32 2147483647, %v3016
    %v3019 = vcvt.s32.f32 %v3012
    %v3020 = vmul.f32 %v3019, %v3017
    %v3021 = vxor.u32 %v3020, 2147483648
    %v3022 = vsel %vm2939, %v3021, %v3020
    %v3023 = vsub.s32 4, %v2999
    %v3024 = vsel %vm2939, %v3023, %v2999
    %v3025 = vsel %vm2938, %v227, %v3022
    %v3026 = vsel %vm2938, 0, %v3024
    %v3027 = vcosq.f32.pop %v3025
    %v3028 = vsinq.f32.pop %v3025
    %vm3029 = vweird.f32 %v227
    %v3030 = vadd.s32 %v3026, 3
    %v3031 = vand.u32 %v3030, 3
    %vm3032 = vcmp.lt.s32.totalorder %v3031, 2
    %vm3033 = vcmp.eq.s32.totalorder %v3031, 0
    %v3034 = vxor.u32 %v3028, 2147483648
    %v3035 = vsel %vm3033, %v3027, %v3034
    %vm3036 = vcmp.eq.s32.totalorder %v3031, 2
    %v3037 = vxor.u32 %v3027, 2147483648
    %v3038 = vsel %vm3036, %v3037, %v3028
    %v3039 = vsel %vm3032, %v3035, %v3038
    %v3040 = vsel %vm3029, nan, %v3039
    %v3041 = vand.u32 2147483647, %v228
    %vm3042 = vcmp.le.f32.partialorder %v3041, 0.7853982
    %vm3043 = vcmp.lt.s32.totalorder %v228, 0
    %v3044 = vand.u32 %v228, 2139095040
    %v3045 = vshrl.u32 %v3044, 23
    %v3046 = vsub.s32 %v3045, 127
    %v3047 = vand.u32 2147483647, %v228
    %v3048 = vand.u32 %v3047, 8388607
    %v3049 = vor.u32 %v3048, 8388608
    %v3050 = vsub.s32 0, %v3049
    %v3051 = vadd.s32 %v3046, 1
    %vm3052 = vcmp.gt.s32.totalorder %v3051, 0
    %v3053 = vsel %vm3052, %v3051, 0
    %v3054 = vshrl.u32 %v3053, 5
    %v3055 = vand.u32 %v3053, 31
    %v3056 = vsub.s32 32, %v3055
    %v3057 = vshrl.u32 683565275, %v3056
    %v3058 = vshll.u32 683565275, %v3055
    %v3059 = vshrl.u32 2475754826, %v3056
    %v3060 = vor.u32 %v3058, %v3059
    %v3061 = vshll.u32 2475754826, %v3055
    %v3062 = vshrl.u32 2131351028, %v3056
    %v3063 = vor.u32 %v3061, %v3062
    %v3064 = vshll.u32 2131351028, %v3055
    %v3065 = vshrl.u32 2102212464, %v3056
    %v3066 = vor.u32 %v3064, %v3065
    %v3067 = vshll.u32 2102212464, %v3055
    %v3068 = vshrl.u32 920167782, %v3056
    %v3069 = vor.u32 %v3067, %v3068
    %v3070 = vshll.u32 920167782, %v3055
    %v3071 = vshrl.u32 1326507024, %v3056
    %v3072 = vor.u32 %v3070, %v3071
    %vm3073 = vcmp.lt.s32.totalorder %v3054, 1
    %vm3074 = vcmp.lt.s32.totalorder %v3054, 2
    %vm3075 = vcmp.lt.s32.totalorder %v3054, 3
    %vm3076 = vcmp.lt.s32.totalorder %v3054, 4
    %v3077 = vsel %vm3073, %v3057, %v3060
    %v3078 = vsel %vm3076, %v3066, 2102212464
    %v3079 = vsel %vm3075, %v3063, %v3078
    %v3080 = vsel %vm3074, %v3077, %v3079
    %v3081 = vsel %vm3073, %v3060, %v3063
    %v3082 = vsel %vm3076, %v3069, 920167782
    %v3083 = vsel %vm3075, %v3066, %v3082
    %v3084 = vsel %vm3074, %v3081, %v3083
    %v3085 = vsel %vm3073, %v3063, %v3066
    %v3086 = vsel %vm3076, %v3072, 1326507024
    %v3087 = vsel %vm3075, %v3069, %v3086
    %v3088 = vsel %vm3074, %v3085, %v3087
    %v3089 = vshll.u32 %v3049, 8
    %v3090 = vmul.u32.u64.compose %v3089, %v3088
    %v3091 = vextract.low.u32 %v3090
    %v3092 = vextract.high.u32 %v3090
    %v3093 = vmul.u32.u64.compose %v3089, %v3084
    %v3094 = vextract.low.u32 %v3093
    %v3095 = vextract.high.u32 %v3093
    %v3096 = vmul.u32 %v3089, %v3080
    %v3097 = vadd.s32 %v3092, %v3094
    %vm3098 = vc.u32 %v3092, %v3094
    %v3099 = vadd.s32 %v3095, 1
    %v3100 = vsel %vm3098, %v3099, %v3095
    %v3101 = vadd.s32 %v3096, %v3100
    %v3102 = vadd.s32 %v3101, 536870912
    %v3103 = vshrl.u32 %v3102, 30
    %v3104 = vshll.u32 %v3103, 30
    %v3105 = vsub.s32 %v3101, %v3104
    %vm3106 = vcmp.lt.s32.totalorder %v3105, 0
    %v3107 = vsub.s32 0, %v3105
    %v3108 = vsel %vm3106, %v3107, %v3105
    %v3109 = vclz %v3108
    %v3110 = vsub.s32 %v3109, 2
    %vm3111 = vcmp.gt.s32.totalorder 0, %v3110
    %v3112 = vsel %vm3111, 0, %v3110
    %v3113 = vsub.s32 32, %v3112
    %v3114 = vshll.u32 %v3105, %v3112
    %v3115 = vshrl.u32 %v3097, %v3113
    %v3116 = vor.u32 %v3114, %v3115
    %v3117 = vsub.s32 4294967266, %v3112
    %v3118 = vadd.s32 %v3117, 127
    %v3119 = vshll.u32 %v3118, 23
    %v3120 = vor.u32 4788187, %v3119
    %v3121 = vand.u32 2147483647, %v3120
    %v3123 = vcvt.s32.f32 %v3116
    %v3124 = vmul.f32 %v3123, %v3121
    %v3125 = vxor.u32 %v3124, 2147483648
    %v3126 = vsel %vm3043, %v3125, %v3124
    %v3127 = vsub.s32 4, %v3103
    %v3128 = vsel %vm3043, %v3127, %v3103
    %v3129 = vsel %vm3042, %v228, %v3126
    %v3130 = vsel %vm3042, 0, %v3128
    %v3131 = vcosq.f32.pop %v3129
    %v3132 = vsinq.f32.pop %v3129
    %vm3133 = vweird.f32 %v228
    %v3134 = vadd.s32 %v3130, 3
    %v3135 = vand.u32 %v3134, 3
    %vm3136 = vcmp.lt.s32.totalorder %v3135, 2
    %vm3137 = vcmp.eq.s32.totalorder %v3135, 0
    %v3138 = vxor.u32 %v3132, 2147483648
    %v3139 = vsel %vm3137, %v3131, %v3138
    %vm3140 = vcmp.eq.s32.totalorder %v3135, 2
    %v3141 = vxor.u32 %v3131, 2147483648
    %v3142 = vsel %vm3140, %v3141, %v3132
    %v3143 = vsel %vm3136, %v3139, %v3142
    %v3144 = vsel %vm3133, nan, %v3143
    %v3145 = vand.u32 2147483647, %v229
    %vm3146 = vcmp.le.f32.partialorder %v3145, 0.7853982
    %vm3147 = vcmp.lt.s32.totalorder %v229, 0
    %v3148 = vand.u32 %v229, 2139095040
    %v3149 = vshrl.u32 %v3148, 23
    %v3150 = vsub.s32 %v3149, 127
    %v3151 = vand.u32 2147483647, %v229
    %v3152 = vand.u32 %v3151, 8388607
    %v3153 = vor.u32 %v3152, 8388608
    %v3154 = vsub.s32 0, %v3153
    %v3155 = vadd.s32 %v3150, 1
    %vm3156 = vcmp.gt.s32.totalorder %v3155, 0
    %v3157 = vsel %vm3156, %v3155, 0
    %v3158 = vshrl.u32 %v3157, 5
    %v3159 = vand.u32 %v3157, 31
    %v3160 = vsub.s32 32, %v3159
    %v3161 = vshrl.u32 683565275, %v3160
    %v3162 = vshll.u32 683565275, %v3159
    %v3163 = vshrl.u32 2475754826, %v3160
    %v3164 = vor.u32 %v3162, %v3163
    %v3165 = vshll.u32 2475754826, %v3159
    %v3166 = vshrl.u32 2131351028, %v3160
    %v3167 = vor.u32 %v3165, %v3166
    %v3168 = vshll.u32 2131351028, %v3159
    %v3169 = vshrl.u32 2102212464, %v3160
    %v3170 = vor.u32 %v3168, %v3169
    %v3171 = vshll.u32 2102212464, %v3159
    %v3172 = vshrl.u32 920167782, %v3160
    %v3173 = vor.u32 %v3171, %v3172
    %v3174 = vshll.u32 920167782, %v3159
    %v3175 = vshrl.u32 1326507024, %v3160
    %v3176 = vor.u32 %v3174, %v3175
    %vm3177 = vcmp.lt.s32.totalorder %v3158, 1
    %vm3178 = vcmp.lt.s32.totalorder %v3158, 2
    %vm3179 = vcmp.lt.s32.totalorder %v3158, 3
    %vm3180 = vcmp.lt.s32.totalorder %v3158, 4
    %v3181 = vsel %vm3177, %v3161, %v3164
    %v3182 = vsel %vm3180, %v3170, 2102212464
    %v3183 = vsel %vm3179, %v3167, %v3182
    %v3184 = vsel %vm3178, %v3181, %v3183
    %v3185 = vsel %vm3177, %v3164, %v3167
    %v3186 = vsel %vm3180, %v3173, 920167782
    %v3187 = vsel %vm3179, %v3170, %v3186
    %v3188 = vsel %vm3178, %v3185, %v3187
    %v3189 = vsel %vm3177, %v3167, %v3170
    %v3190 = vsel %vm3180, %v3176, 1326507024
    %v3191 = vsel %vm3179, %v3173, %v3190
    %v3192 = vsel %vm3178, %v3189, %v3191
    %v3193 = vshll.u32 %v3153, 8
    %v3194 = vmul.u32.u64.compose %v3193, %v3192
    %v3195 = vextract.low.u32 %v3194
    %v3196 = vextract.high.u32 %v3194
    %v3197 = vmul.u32.u64.compose %v3193, %v3188
    %v3198 = vextract.low.u32 %v3197
    %v3199 = vextract.high.u32 %v3197
    %v3200 = vmul.u32 %v3193, %v3184
    %v3201 = vadd.s32 %v3196, %v3198
    %vm3202 = vc.u32 %v3196, %v3198
    %v3203 = vadd.s32 %v3199, 1
    %v3204 = vsel %vm3202, %v3203, %v3199
    %v3205 = vadd.s32 %v3200, %v3204
    %v3206 = vadd.s32 %v3205, 536870912
    %v3207 = vshrl.u32 %v3206, 30
    %v3208 = vshll.u32 %v3207, 30
    %v3209 = vsub.s32 %v3205, %v3208
    %vm3210 = vcmp.lt.s32.totalorder %v3209, 0
    %v3211 = vsub.s32 0, %v3209
    %v3212 = vsel %vm3210, %v3211, %v3209
    %v3213 = vclz %v3212
    %v3214 = vsub.s32 %v3213, 2
    %vm3215 = vcmp.gt.s32.totalorder 0, %v3214
    %v3216 = vsel %vm3215, 0, %v3214
    %v3217 = vsub.s32 32, %v3216
    %v3218 = vshll.u32 %v3209, %v3216
    %v3219 = vshrl.u32 %v3201, %v3217
    %v3220 = vor.u32 %v3218, %v3219
    %v3221 = vsub.s32 4294967266, %v3216
    %v3222 = vadd.s32 %v3221, 127
    %v3223 = vshll.u32 %v3222, 23
    %v3224 = vor.u32 4788187, %v3223
    %v3225 = vand.u32 2147483647, %v3224
    %v3227 = vcvt.s32.f32 %v3220
    %v3228 = vmul.f32 %v3227, %v3225
    %v3229 = vxor.u32 %v3228, 2147483648
    %v3230 = vsel %vm3147, %v3229, %v3228
    %v3231 = vsub.s32 4, %v3207
    %v3232 = vsel %vm3147, %v3231, %v3207
    %v3233 = vsel %vm3146, %v229, %v3230
    %v3234 = vsel %vm3146, 0, %v3232
    %v3235 = vcosq.f32.pop %v3233
    %v3236 = vsinq.f32.pop %v3233
    %vm3237 = vweird.f32 %v229
    %v3238 = vadd.s32 %v3234, 3
    %v3239 = vand.u32 %v3238, 3
    %vm3240 = vcmp.lt.s32.totalorder %v3239, 2
    %vm3241 = vcmp.eq.s32.totalorder %v3239, 0
    %v3242 = vxor.u32 %v3236, 2147483648
    %v3243 = vsel %vm3241, %v3235, %v3242
    %vm3244 = vcmp.eq.s32.totalorder %v3239, 2
    %v3245 = vxor.u32 %v3235, 2147483648
    %v3246 = vsel %vm3244, %v3245, %v3236
    %v3247 = vsel %vm3240, %v3243, %v3246
    %v3248 = vsel %vm3237, nan, %v3247
    %v3249 = vand.u32 2147483647, %v230
    %vm3250 = vcmp.le.f32.partialorder %v3249, 0.7853982
    %vm3251 = vcmp.lt.s32.totalorder %v230, 0
    %v3252 = vand.u32 %v230, 2139095040
    %v3253 = vshrl.u32 %v3252, 23
    %v3254 = vsub.s32 %v3253, 127
    %v3255 = vand.u32 2147483647, %v230
    %v3256 = vand.u32 %v3255, 8388607
    %v3257 = vor.u32 %v3256, 8388608
    %v3258 = vsub.s32 0, %v3257
    %v3259 = vadd.s32 %v3254, 1
    %vm3260 = vcmp.gt.s32.totalorder %v3259, 0
    %v3261 = vsel %vm3260, %v3259, 0
    %v3262 = vshrl.u32 %v3261, 5
    %v3263 = vand.u32 %v3261, 31
    %v3264 = vsub.s32 32, %v3263
    %v3265 = vshrl.u32 683565275, %v3264
    %v3266 = vshll.u32 683565275, %v3263
    %v3267 = vshrl.u32 2475754826, %v3264
    %v3268 = vor.u32 %v3266, %v3267
    %v3269 = vshll.u32 2475754826, %v3263
    %v3270 = vshrl.u32 2131351028, %v3264
    %v3271 = vor.u32 %v3269, %v3270
    %v3272 = vshll.u32 2131351028, %v3263
    %v3273 = vshrl.u32 2102212464, %v3264
    %v3274 = vor.u32 %v3272, %v3273
    %v3275 = vshll.u32 2102212464, %v3263
    %v3276 = vshrl.u32 920167782, %v3264
    %v3277 = vor.u32 %v3275, %v3276
    %v3278 = vshll.u32 920167782, %v3263
    %v3279 = vshrl.u32 1326507024, %v3264
    %v3280 = vor.u32 %v3278, %v3279
    %vm3281 = vcmp.lt.s32.totalorder %v3262, 1
    %vm3282 = vcmp.lt.s32.totalorder %v3262, 2
    %vm3283 = vcmp.lt.s32.totalorder %v3262, 3
    %vm3284 = vcmp.lt.s32.totalorder %v3262, 4
    %v3285 = vsel %vm3281, %v3265, %v3268
    %v3286 = vsel %vm3284, %v3274, 2102212464
    %v3287 = vsel %vm3283, %v3271, %v3286
    %v3288 = vsel %vm3282, %v3285, %v3287
    %v3289 = vsel %vm3281, %v3268, %v3271
    %v3290 = vsel %vm3284, %v3277, 920167782
    %v3291 = vsel %vm3283, %v3274, %v3290
    %v3292 = vsel %vm3282, %v3289, %v3291
    %v3293 = vsel %vm3281, %v3271, %v3274
    %v3294 = vsel %vm3284, %v3280, 1326507024
    %v3295 = vsel %vm3283, %v3277, %v3294
    %v3296 = vsel %vm3282, %v3293, %v3295
    %v3297 = vshll.u32 %v3257, 8
    %v3298 = vmul.u32.u64.compose %v3297, %v3296
    %v3299 = vextract.low.u32 %v3298
    %v3300 = vextract.high.u32 %v3298
    %v3301 = vmul.u32.u64.compose %v3297, %v3292
    %v3302 = vextract.low.u32 %v3301
    %v3303 = vextract.high.u32 %v3301
    %v3304 = vmul.u32 %v3297, %v3288
    %v3305 = vadd.s32 %v3300, %v3302
    %vm3306 = vc.u32 %v3300, %v3302
    %v3307 = vadd.s32 %v3303, 1
    %v3308 = vsel %vm3306, %v3307, %v3303
    %v3309 = vadd.s32 %v3304, %v3308
    %v3310 = vadd.s32 %v3309, 536870912
    %v3311 = vshrl.u32 %v3310, 30
    %v3312 = vshll.u32 %v3311, 30
    %v3313 = vsub.s32 %v3309, %v3312
    %vm3314 = vcmp.lt.s32.totalorder %v3313, 0
    %v3315 = vsub.s32 0, %v3313
    %v3316 = vsel %vm3314, %v3315, %v3313
    %v3317 = vclz %v3316
    %v3318 = vsub.s32 %v3317, 2
    %vm3319 = vcmp.gt.s32.totalorder 0, %v3318
    %v3320 = vsel %vm3319, 0, %v3318
    %v3321 = vsub.s32 32, %v3320
    %v3322 = vshll.u32 %v3313, %v3320
    %v3323 = vshrl.u32 %v3305, %v3321
    %v3324 = vor.u32 %v3322, %v3323
    %v3325 = vsub.s32 4294967266, %v3320
    %v3326 = vadd.s32 %v3325, 127
    %v3327 = vshll.u32 %v3326, 23
    %v3328 = vor.u32 4788187, %v3327
    %v3329 = vand.u32 2147483647, %v3328
    %v3331 = vcvt.s32.f32 %v3324
    %v3332 = vmul.f32 %v3331, %v3329
    %v3333 = vxor.u32 %v3332, 2147483648
    %v3334 = vsel %vm3251, %v3333, %v3332
    %v3335 = vsub.s32 4, %v3311
    %v3336 = vsel %vm3251, %v3335, %v3311
    %v3337 = vsel %vm3250, %v230, %v3334
    %v3338 = vsel %vm3250, 0, %v3336
    %v3339 = vcosq.f32.pop %v3337
    %v3340 = vsinq.f32.pop %v3337
    %vm3341 = vweird.f32 %v230
    %v3342 = vadd.s32 %v3338, 3
    %v3343 = vand.u32 %v3342, 3
    %vm3344 = vcmp.lt.s32.totalorder %v3343, 2
    %vm3345 = vcmp.eq.s32.totalorder %v3343, 0
    %v3346 = vxor.u32 %v3340, 2147483648
    %v3347 = vsel %vm3345, %v3339, %v3346
    %vm3348 = vcmp.eq.s32.totalorder %v3343, 2
    %v3349 = vxor.u32 %v3339, 2147483648
    %v3350 = vsel %vm3348, %v3349, %v3340
    %v3351 = vsel %vm3344, %v3347, %v3350
    %v3352 = vsel %vm3341, nan, %v3351
    %v3353 = vand.u32 2147483647, %v231
    %vm3354 = vcmp.le.f32.partialorder %v3353, 0.7853982
    %vm3355 = vcmp.lt.s32.totalorder %v231, 0
    %v3356 = vand.u32 %v231, 2139095040
    %v3357 = vshrl.u32 %v3356, 23
    %v3358 = vsub.s32 %v3357, 127
    %v3359 = vand.u32 2147483647, %v231
    %v3360 = vand.u32 %v3359, 8388607
    %v3361 = vor.u32 %v3360, 8388608
    %v3362 = vsub.s32 0, %v3361
    %v3363 = vadd.s32 %v3358, 1
    %vm3364 = vcmp.gt.s32.totalorder %v3363, 0
    %v3365 = vsel %vm3364, %v3363, 0
    %v3366 = vshrl.u32 %v3365, 5
    %v3367 = vand.u32 %v3365, 31
    %v3368 = vsub.s32 32, %v3367
    %v3369 = vshrl.u32 683565275, %v3368
    %v3370 = vshll.u32 683565275, %v3367
    %v3371 = vshrl.u32 2475754826, %v3368
    %v3372 = vor.u32 %v3370, %v3371
    %v3373 = vshll.u32 2475754826, %v3367
    %v3374 = vshrl.u32 2131351028, %v3368
    %v3375 = vor.u32 %v3373, %v3374
    %v3376 = vshll.u32 2131351028, %v3367
    %v3377 = vshrl.u32 2102212464, %v3368
    %v3378 = vor.u32 %v3376, %v3377
    %v3379 = vshll.u32 2102212464, %v3367
    %v3380 = vshrl.u32 920167782, %v3368
    %v3381 = vor.u32 %v3379, %v3380
    %v3382 = vshll.u32 920167782, %v3367
    %v3383 = vshrl.u32 1326507024, %v3368
    %v3384 = vor.u32 %v3382, %v3383
    %vm3385 = vcmp.lt.s32.totalorder %v3366, 1
    %vm3386 = vcmp.lt.s32.totalorder %v3366, 2
    %vm3387 = vcmp.lt.s32.totalorder %v3366, 3
    %vm3388 = vcmp.lt.s32.totalorder %v3366, 4
    %v3389 = vsel %vm3385, %v3369, %v3372
    %v3390 = vsel %vm3388, %v3378, 2102212464
    %v3391 = vsel %vm3387, %v3375, %v3390
    %v3392 = vsel %vm3386, %v3389, %v3391
    %v3393 = vsel %vm3385, %v3372, %v3375
    %v3394 = vsel %vm3388, %v3381, 920167782
    %v3395 = vsel %vm3387, %v3378, %v3394
    %v3396 = vsel %vm3386, %v3393, %v3395
    %v3397 = vsel %vm3385, %v3375, %v3378
    %v3398 = vsel %vm3388, %v3384, 1326507024
    %v3399 = vsel %vm3387, %v3381, %v3398
    %v3400 = vsel %vm3386, %v3397, %v3399
    %v3401 = vshll.u32 %v3361, 8
    %v3402 = vmul.u32.u64.compose %v3401, %v3400
    %v3403 = vextract.low.u32 %v3402
    %v3404 = vextract.high.u32 %v3402
    %v3405 = vmul.u32.u64.compose %v3401, %v3396
    %v3406 = vextract.low.u32 %v3405
    %v3407 = vextract.high.u32 %v3405
    %v3408 = vmul.u32 %v3401, %v3392
    %v3409 = vadd.s32 %v3404, %v3406
    %vm3410 = vc.u32 %v3404, %v3406
    %v3411 = vadd.s32 %v3407, 1
    %v3412 = vsel %vm3410, %v3411, %v3407
    %v3413 = vadd.s32 %v3408, %v3412
    %v3414 = vadd.s32 %v3413, 536870912
    %v3415 = vshrl.u32 %v3414, 30
    %v3416 = vshll.u32 %v3415, 30
    %v3417 = vsub.s32 %v3413, %v3416
    %vm3418 = vcmp.lt.s32.totalorder %v3417, 0
    %v3419 = vsub.s32 0, %v3417
    %v3420 = vsel %vm3418, %v3419, %v3417
    %v3421 = vclz %v3420
    %v3422 = vsub.s32 %v3421, 2
    %vm3423 = vcmp.gt.s32.totalorder 0, %v3422
    %v3424 = vsel %vm3423, 0, %v3422
    %v3425 = vsub.s32 32, %v3424
    %v3426 = vshll.u32 %v3417, %v3424
    %v3427 = vshrl.u32 %v3409, %v3425
    %v3428 = vor.u32 %v3426, %v3427
    %v3429 = vsub.s32 4294967266, %v3424
    %v3430 = vadd.s32 %v3429, 127
    %v3431 = vshll.u32 %v3430, 23
    %v3432 = vor.u32 4788187, %v3431
    %v3433 = vand.u32 2147483647, %v3432
    %v3435 = vcvt.s32.f32 %v3428
    %v3436 = vmul.f32 %v3435, %v3433
    %v3437 = vxor.u32 %v3436, 2147483648
    %v3438 = vsel %vm3355, %v3437, %v3436
    %v3439 = vsub.s32 4, %v3415
    %v3440 = vsel %vm3355, %v3439, %v3415
    %v3441 = vsel %vm3354, %v231, %v3438
    %v3442 = vsel %vm3354, 0, %v3440
    %v3443 = vcosq.f32.pop %v3441
    %v3444 = vsinq.f32.pop %v3441
    %vm3445 = vweird.f32 %v231
    %v3446 = vadd.s32 %v3442, 3
    %v3447 = vand.u32 %v3446, 3
    %vm3448 = vcmp.lt.s32.totalorder %v3447, 2
    %vm3449 = vcmp.eq.s32.totalorder %v3447, 0
    %v3450 = vxor.u32 %v3444, 2147483648
    %v3451 = vsel %vm3449, %v3443, %v3450
    %vm3452 = vcmp.eq.s32.totalorder %v3447, 2
    %v3453 = vxor.u32 %v3443, 2147483648
    %v3454 = vsel %vm3452, %v3453, %v3444
    %v3455 = vsel %vm3448, %v3451, %v3454
    %v3456 = vsel %vm3445, nan, %v3455
    %v3457 = vand.u32 2147483647, %v232
    %vm3458 = vcmp.le.f32.partialorder %v3457, 0.7853982
    %vm3459 = vcmp.lt.s32.totalorder %v232, 0
    %v3460 = vand.u32 %v232, 2139095040
    %v3461 = vshrl.u32 %v3460, 23
    %v3462 = vsub.s32 %v3461, 127
    %v3463 = vand.u32 2147483647, %v232
    %v3464 = vand.u32 %v3463, 8388607
    %v3465 = vor.u32 %v3464, 8388608
    %v3466 = vsub.s32 0, %v3465
    %v3467 = vadd.s32 %v3462, 1
    %vm3468 = vcmp.gt.s32.totalorder %v3467, 0
    %v3469 = vsel %vm3468, %v3467, 0
    %v3470 = vshrl.u32 %v3469, 5
    %v3471 = vand.u32 %v3469, 31
    %v3472 = vsub.s32 32, %v3471
    %v3473 = vshrl.u32 683565275, %v3472
    %v3474 = vshll.u32 683565275, %v3471
    %v3475 = vshrl.u32 2475754826, %v3472
    %v3476 = vor.u32 %v3474, %v3475
    %v3477 = vshll.u32 2475754826, %v3471
    %v3478 = vshrl.u32 2131351028, %v3472
    %v3479 = vor.u32 %v3477, %v3478
    %v3480 = vshll.u32 2131351028, %v3471
    %v3481 = vshrl.u32 2102212464, %v3472
    %v3482 = vor.u32 %v3480, %v3481
    %v3483 = vshll.u32 2102212464, %v3471
    %v3484 = vshrl.u32 920167782, %v3472
    %v3485 = vor.u32 %v3483, %v3484
    %v3486 = vshll.u32 920167782, %v3471
    %v3487 = vshrl.u32 1326507024, %v3472
    %v3488 = vor.u32 %v3486, %v3487
    %vm3489 = vcmp.lt.s32.totalorder %v3470, 1
    %vm3490 = vcmp.lt.s32.totalorder %v3470, 2
    %vm3491 = vcmp.lt.s32.totalorder %v3470, 3
    %vm3492 = vcmp.lt.s32.totalorder %v3470, 4
    %v3493 = vsel %vm3489, %v3473, %v3476
    %v3494 = vsel %vm3492, %v3482, 2102212464
    %v3495 = vsel %vm3491, %v3479, %v3494
    %v3496 = vsel %vm3490, %v3493, %v3495
    %v3497 = vsel %vm3489, %v3476, %v3479
    %v3498 = vsel %vm3492, %v3485, 920167782
    %v3499 = vsel %vm3491, %v3482, %v3498
    %v3500 = vsel %vm3490, %v3497, %v3499
    %v3501 = vsel %vm3489, %v3479, %v3482
    %v3502 = vsel %vm3492, %v3488, 1326507024
    %v3503 = vsel %vm3491, %v3485, %v3502
    %v3504 = vsel %vm3490, %v3501, %v3503
    %v3505 = vshll.u32 %v3465, 8
    %v3506 = vmul.u32.u64.compose %v3505, %v3504
    %v3507 = vextract.low.u32 %v3506
    %v3508 = vextract.high.u32 %v3506
    %v3509 = vmul.u32.u64.compose %v3505, %v3500
    %v3510 = vextract.low.u32 %v3509
    %v3511 = vextract.high.u32 %v3509
    %v3512 = vmul.u32 %v3505, %v3496
    %v3513 = vadd.s32 %v3508, %v3510
    %vm3514 = vc.u32 %v3508, %v3510
    %v3515 = vadd.s32 %v3511, 1
    %v3516 = vsel %vm3514, %v3515, %v3511
    %v3517 = vadd.s32 %v3512, %v3516
    %v3518 = vadd.s32 %v3517, 536870912
    %v3519 = vshrl.u32 %v3518, 30
    %v3520 = vshll.u32 %v3519, 30
    %v3521 = vsub.s32 %v3517, %v3520
    %vm3522 = vcmp.lt.s32.totalorder %v3521, 0
    %v3523 = vsub.s32 0, %v3521
    %v3524 = vsel %vm3522, %v3523, %v3521
    %v3525 = vclz %v3524
    %v3526 = vsub.s32 %v3525, 2
    %vm3527 = vcmp.gt.s32.totalorder 0, %v3526
    %v3528 = vsel %vm3527, 0, %v3526
    %v3529 = vsub.s32 32, %v3528
    %v3530 = vshll.u32 %v3521, %v3528
    %v3531 = vshrl.u32 %v3513, %v3529
    %v3532 = vor.u32 %v3530, %v3531
    %v3533 = vsub.s32 4294967266, %v3528
    %v3534 = vadd.s32 %v3533, 127
    %v3535 = vshll.u32 %v3534, 23
    %v3536 = vor.u32 4788187, %v3535
    %v3537 = vand.u32 2147483647, %v3536
    %v3539 = vcvt.s32.f32 %v3532
    %v3540 = vmul.f32 %v3539, %v3537
    %v3541 = vxor.u32 %v3540, 2147483648
    %v3542 = vsel %vm3459, %v3541, %v3540
    %v3543 = vsub.s32 4, %v3519
    %v3544 = vsel %vm3459, %v3543, %v3519
    %v3545 = vsel %vm3458, %v232, %v3542
    %v3546 = vsel %vm3458, 0, %v3544
    %v3547 = vcosq.f32.pop %v3545
    %v3548 = vsinq.f32.pop %v3545
    %vm3549 = vweird.f32 %v232
    %v3550 = vadd.s32 %v3546, 3
    %v3551 = vand.u32 %v3550, 3
    %vm3552 = vcmp.lt.s32.totalorder %v3551, 2
    %vm3553 = vcmp.eq.s32.totalorder %v3551, 0
    %v3554 = vxor.u32 %v3548, 2147483648
    %v3555 = vsel %vm3553, %v3547, %v3554
    %vm3556 = vcmp.eq.s32.totalorder %v3551, 2
    %v3557 = vxor.u32 %v3547, 2147483648
    %v3558 = vsel %vm3556, %v3557, %v3548
    %v3559 = vsel %vm3552, %v3555, %v3558
    %v3560 = vsel %vm3549, nan, %v3559
    %v3561 = vmul.f32 %v137, %v336
    %v3562 = vmul.f32 %v138, %v440
    %v3563 = vmul.f32 %v139, %v544
    %v3564 = vmul.f32 %v140, %v648
    %v3565 = vmul.f32 %v141, %v752
    %v3566 = vmul.f32 %v142, %v856
    %v3567 = vmul.f32 %v143, %v960
    %v3568 = vmul.f32 %v144, %v1064
    %v3569 = vmul.f32 %v145, %v1168
    %v3570 = vmul.f32 %v146, %v1272
    %v3571 = vmul.f32 %v147, %v1376
    %v3572 = vmul.f32 %v148, %v1480
    %v3573 = vmul.f32 %v149, %v1584
    %v3574 = vmul.f32 %v150, %v1688
    %v3575 = vmul.f32 %v151, %v1792
    %v3576 = vmul.f32 %v152, %v1896
    %v3577 = vmul.f32 %v153, %v2000
    %v3578 = vmul.f32 %v154, %v2104
    %v3579 = vmul.f32 %v155, %v2208
    %v3580 = vmul.f32 %v156, %v2312
    %v3581 = vmul.f32 %v157, %v2416
    %v3582 = vmul.f32 %v158, %v2520
    %v3583 = vmul.f32 %v159, %v2624
    %v3584 = vmul.f32 %v160, %v2728
    %v3585 = vmul.f32 %v161, %v2832
    %v3586 = vmul.f32 %v162, %v2936
    %v3587 = vmul.f32 %v163, %v3040
    %v3588 = vmul.f32 %v164, %v3144
    %v3589 = vmul.f32 %v165, %v3248
    %v3590 = vmul.f32 %v166, %v3352
    %v3591 = vmul.f32 %v167, %v3456
    %v3592 = vmul.f32 %v168, %v3560
    %v3593 = vld [vmem:[#allocation8] sm:$0xff]
    %v3594 = vld [vmem:[#allocation8 + $0x8] sm:$0xff]
    %v3595 = vld [vmem:[#allocation8 + $0x10] sm:$0xff]
    %v3596 = vld [vmem:[#allocation8 + $0x18] sm:$0xff]
    %v3597 = vld [vmem:[#allocation8 + $0x20] sm:$0xff]
    %v3598 = vld [vmem:[#allocation8 + $0x28] sm:$0xff]
    %v3599 = vld [vmem:[#allocation8 + $0x30] sm:$0xff]
    %v3600 = vld [vmem:[#allocation8 + $0x38] sm:$0xff]
    %v3601 = vld [vmem:[#allocation8 + $0x40] sm:$0xff]
    %v3602 = vld [vmem:[#allocation8 + $0x48] sm:$0xff]
    %v3603 = vld [vmem:[#allocation8 + $0x50] sm:$0xff]
    %v3604 = vld [vmem:[#allocation8 + $0x58] sm:$0xff]
    %v3605 = vld [vmem:[#allocation8 + $0x60] sm:$0xff]
    %v3606 = vld [vmem:[#allocation8 + $0x68] sm:$0xff]
    %v3607 = vld [vmem:[#allocation8 + $0x70] sm:$0xff]
    %v3608 = vld [vmem:[#allocation8 + $0x78] sm:$0xff]
    %v3609 = vld [vmem:[#allocation8 + $0x80] sm:$0xff]
    %v3610 = vld [vmem:[#allocation8 + $0x88] sm:$0xff]
    %v3611 = vld [vmem:[#allocation8 + $0x90] sm:$0xff]
    %v3612 = vld [vmem:[#allocation8 + $0x98] sm:$0xff]
    %v3613 = vld [vmem:[#allocation8 + $0xa0] sm:$0xff]
    %v3614 = vld [vmem:[#allocation8 + $0xa8] sm:$0xff]
    %v3615 = vld [vmem:[#allocation8 + $0xb0] sm:$0xff]
    %v3616 = vld [vmem:[#allocation8 + $0xb8] sm:$0xff]
    %v3617 = vld [vmem:[#allocation8 + $0xc0] sm:$0xff]
    %v3618 = vld [vmem:[#allocation8 + $0xc8] sm:$0xff]
    %v3619 = vld [vmem:[#allocation8 + $0xd0] sm:$0xff]
    %v3620 = vld [vmem:[#allocation8 + $0xd8] sm:$0xff]
    %v3621 = vld [vmem:[#allocation8 + $0xe0] sm:$0xff]
    %v3622 = vld [vmem:[#allocation8 + $0xe8] sm:$0xff]
    %v3623 = vld [vmem:[#allocation8 + $0xf0] sm:$0xff]
    %v3624 = vld [vmem:[#allocation8 + $0xf8] sm:$0xff]
    %v3625 = vmul.f32 %v105, %v3593
    %v3626 = vmul.f32 %v106, %v3594
    %v3627 = vmul.f32 %v107, %v3595
    %v3628 = vmul.f32 %v108, %v3596
    %v3629 = vmul.f32 %v109, %v3597
    %v3630 = vmul.f32 %v110, %v3598
    %v3631 = vmul.f32 %v111, %v3599
    %v3632 = vmul.f32 %v112, %v3600
    %v3633 = vmul.f32 %v113, %v3601
    %v3634 = vmul.f32 %v114, %v3602
    %v3635 = vmul.f32 %v115, %v3603
    %v3636 = vmul.f32 %v116, %v3604
    %v3637 = vmul.f32 %v117, %v3605
    %v3638 = vmul.f32 %v118, %v3606
    %v3639 = vmul.f32 %v119, %v3607
    %v3640 = vmul.f32 %v120, %v3608
    %v3641 = vmul.f32 %v121, %v3609
    %v3642 = vmul.f32 %v122, %v3610
    %v3643 = vmul.f32 %v123, %v3611
    %v3644 = vmul.f32 %v124, %v3612
    %v3645 = vmul.f32 %v125, %v3613
    %v3646 = vmul.f32 %v126, %v3614
    %v3647 = vmul.f32 %v127, %v3615
    %v3648 = vmul.f32 %v128, %v3616
    %v3649 = vmul.f32 %v129, %v3617
    %v3650 = vmul.f32 %v130, %v3618
    %v3651 = vmul.f32 %v131, %v3619
    %v3652 = vmul.f32 %v132, %v3620
    %v3653 = vmul.f32 %v133, %v3621
    %v3654 = vmul.f32 %v134, %v3622
    %v3655 = vmul.f32 %v135, %v3623
    %v3656 = vmul.f32 %v136, %v3624
    %v3657 = vand.u32 2147483647, %v3625
    %vm3658 = vcmp.le.f32.partialorder %v3657, 0.7853982
    %vm3659 = vcmp.lt.s32.totalorder %v3625, 0
    %v3660 = vand.u32 %v3625, 2139095040
    %v3661 = vshrl.u32 %v3660, 23
    %v3662 = vsub.s32 %v3661, 127
    %v3663 = vand.u32 2147483647, %v3625
    %v3664 = vand.u32 %v3663, 8388607
    %v3665 = vor.u32 %v3664, 8388608
    %v3666 = vsub.s32 0, %v3665
    %v3667 = vadd.s32 %v3662, 1
    %vm3668 = vcmp.gt.s32.totalorder %v3667, 0
    %v3669 = vsel %vm3668, %v3667, 0
    %v3670 = vshrl.u32 %v3669, 5
    %v3671 = vand.u32 %v3669, 31
    %v3672 = vsub.s32 32, %v3671
    %v3673 = vshrl.u32 683565275, %v3672
    %v3674 = vshll.u32 683565275, %v3671
    %v3675 = vshrl.u32 2475754826, %v3672
    %v3676 = vor.u32 %v3674, %v3675
    %v3677 = vshll.u32 2475754826, %v3671
    %v3678 = vshrl.u32 2131351028, %v3672
    %v3679 = vor.u32 %v3677, %v3678
    %v3680 = vshll.u32 2131351028, %v3671
    %v3681 = vshrl.u32 2102212464, %v3672
    %v3682 = vor.u32 %v3680, %v3681
    %v3683 = vshll.u32 2102212464, %v3671
    %v3684 = vshrl.u32 920167782, %v3672
    %v3685 = vor.u32 %v3683, %v3684
    %v3686 = vshll.u32 920167782, %v3671
    %v3687 = vshrl.u32 1326507024, %v3672
    %v3688 = vor.u32 %v3686, %v3687
    %vm3689 = vcmp.lt.s32.totalorder %v3670, 1
    %vm3690 = vcmp.lt.s32.totalorder %v3670, 2
    %vm3691 = vcmp.lt.s32.totalorder %v3670, 3
    %vm3692 = vcmp.lt.s32.totalorder %v3670, 4
    %v3693 = vsel %vm3689, %v3673, %v3676
    %v3694 = vsel %vm3692, %v3682, 2102212464
    %v3695 = vsel %vm3691, %v3679, %v3694
    %v3696 = vsel %vm3690, %v3693, %v3695
    %v3697 = vsel %vm3689, %v3676, %v3679
    %v3698 = vsel %vm3692, %v3685, 920167782
    %v3699 = vsel %vm3691, %v3682, %v3698
    %v3700 = vsel %vm3690, %v3697, %v3699
    %v3701 = vsel %vm3689, %v3679, %v3682
    %v3702 = vsel %vm3692, %v3688, 1326507024
    %v3703 = vsel %vm3691, %v3685, %v3702
    %v3704 = vsel %vm3690, %v3701, %v3703
    %v3705 = vshll.u32 %v3665, 8
    %v3706 = vmul.u32.u64.compose %v3705, %v3704
    %v3707 = vextract.low.u32 %v3706
    %v3708 = vextract.high.u32 %v3706
    %v3709 = vmul.u32.u64.compose %v3705, %v3700
    %v3710 = vextract.low.u32 %v3709
    %v3711 = vextract.high.u32 %v3709
    %v3712 = vmul.u32 %v3705, %v3696
    %v3713 = vadd.s32 %v3708, %v3710
    %vm3714 = vc.u32 %v3708, %v3710
    %v3715 = vadd.s32 %v3711, 1
    %v3716 = vsel %vm3714, %v3715, %v3711
    %v3717 = vadd.s32 %v3712, %v3716
    %v3718 = vadd.s32 %v3717, 536870912
    %v3719 = vshrl.u32 %v3718, 30
    %v3720 = vshll.u32 %v3719, 30
    %v3721 = vsub.s32 %v3717, %v3720
    %vm3722 = vcmp.lt.s32.totalorder %v3721, 0
    %v3723 = vsub.s32 0, %v3721
    %v3724 = vsel %vm3722, %v3723, %v3721
    %v3725 = vclz %v3724
    %v3726 = vsub.s32 %v3725, 2
    %vm3727 = vcmp.gt.s32.totalorder 0, %v3726
    %v3728 = vsel %vm3727, 0, %v3726
    %v3729 = vsub.s32 32, %v3728
    %v3730 = vshll.u32 %v3721, %v3728
    %v3731 = vshrl.u32 %v3713, %v3729
    %v3732 = vor.u32 %v3730, %v3731
    %v3733 = vsub.s32 4294967266, %v3728
    %v3734 = vadd.s32 %v3733, 127
    %v3735 = vshll.u32 %v3734, 23
    %v3736 = vor.u32 4788187, %v3735
    %v3737 = vand.u32 2147483647, %v3736
    %v3739 = vcvt.s32.f32 %v3732
    %v3740 = vmul.f32 %v3739, %v3737
    %v3741 = vxor.u32 %v3740, 2147483648
    %v3742 = vsel %vm3659, %v3741, %v3740
    %v3743 = vsub.s32 4, %v3719
    %v3744 = vsel %vm3659, %v3743, %v3719
    %v3745 = vsel %vm3658, %v3625, %v3742
    %v3746 = vsel %vm3658, 0, %v3744
    %v3747 = vcosq.f32.pop %v3745
    %v3748 = vsinq.f32.pop %v3745
    %vm3749 = vweird.f32 %v3625
    %v3750 = vadd.s32 %v3746, 3
    %v3751 = vand.u32 %v3750, 3
    %vm3752 = vcmp.lt.s32.totalorder %v3751, 2
    %vm3753 = vcmp.eq.s32.totalorder %v3751, 0
    %v3754 = vxor.u32 %v3748, 2147483648
    %v3755 = vsel %vm3753, %v3747, %v3754
    %vm3756 = vcmp.eq.s32.totalorder %v3751, 2
    %v3757 = vxor.u32 %v3747, 2147483648
    %v3758 = vsel %vm3756, %v3757, %v3748
    %v3759 = vsel %vm3752, %v3755, %v3758
    %v3760 = vsel %vm3749, nan, %v3759
    %v3761 = vand.u32 2147483647, %v3626
    %vm3762 = vcmp.le.f32.partialorder %v3761, 0.7853982
    %vm3763 = vcmp.lt.s32.totalorder %v3626, 0
    %v3764 = vand.u32 %v3626, 2139095040
    %v3765 = vshrl.u32 %v3764, 23
    %v3766 = vsub.s32 %v3765, 127
    %v3767 = vand.u32 2147483647, %v3626
    %v3768 = vand.u32 %v3767, 8388607
    %v3769 = vor.u32 %v3768, 8388608
    %v3770 = vsub.s32 0, %v3769
    %v3771 = vadd.s32 %v3766, 1
    %vm3772 = vcmp.gt.s32.totalorder %v3771, 0
    %v3773 = vsel %vm3772, %v3771, 0
    %v3774 = vshrl.u32 %v3773, 5
    %v3775 = vand.u32 %v3773, 31
    %v3776 = vsub.s32 32, %v3775
    %v3777 = vshrl.u32 683565275, %v3776
    %v3778 = vshll.u32 683565275, %v3775
    %v3779 = vshrl.u32 2475754826, %v3776
    %v3780 = vor.u32 %v3778, %v3779
    %v3781 = vshll.u32 2475754826, %v3775
    %v3782 = vshrl.u32 2131351028, %v3776
    %v3783 = vor.u32 %v3781, %v3782
    %v3784 = vshll.u32 2131351028, %v3775
    %v3785 = vshrl.u32 2102212464, %v3776
    %v3786 = vor.u32 %v3784, %v3785
    %v3787 = vshll.u32 2102212464, %v3775
    %v3788 = vshrl.u32 920167782, %v3776
    %v3789 = vor.u32 %v3787, %v3788
    %v3790 = vshll.u32 920167782, %v3775
    %v3791 = vshrl.u32 1326507024, %v3776
    %v3792 = vor.u32 %v3790, %v3791
    %vm3793 = vcmp.lt.s32.totalorder %v3774, 1
    %vm3794 = vcmp.lt.s32.totalorder %v3774, 2
    %vm3795 = vcmp.lt.s32.totalorder %v3774, 3
    %vm3796 = vcmp.lt.s32.totalorder %v3774, 4
    %v3797 = vsel %vm3793, %v3777, %v3780
    %v3798 = vsel %vm3796, %v3786, 2102212464
    %v3799 = vsel %vm3795, %v3783, %v3798
    %v3800 = vsel %vm3794, %v3797, %v3799
    %v3801 = vsel %vm3793, %v3780, %v3783
    %v3802 = vsel %vm3796, %v3789, 920167782
    %v3803 = vsel %vm3795, %v3786, %v3802
    %v3804 = vsel %vm3794, %v3801, %v3803
    %v3805 = vsel %vm3793, %v3783, %v3786
    %v3806 = vsel %vm3796, %v3792, 1326507024
    %v3807 = vsel %vm3795, %v3789, %v3806
    %v3808 = vsel %vm3794, %v3805, %v3807
    %v3809 = vshll.u32 %v3769, 8
    %v3810 = vmul.u32.u64.compose %v3809, %v3808
    %v3811 = vextract.low.u32 %v3810
    %v3812 = vextract.high.u32 %v3810
    %v3813 = vmul.u32.u64.compose %v3809, %v3804
    %v3814 = vextract.low.u32 %v3813
    %v3815 = vextract.high.u32 %v3813
    %v3816 = vmul.u32 %v3809, %v3800
    %v3817 = vadd.s32 %v3812, %v3814
    %vm3818 = vc.u32 %v3812, %v3814
    %v3819 = vadd.s32 %v3815, 1
    %v3820 = vsel %vm3818, %v3819, %v3815
    %v3821 = vadd.s32 %v3816, %v3820
    %v3822 = vadd.s32 %v3821, 536870912
    %v3823 = vshrl.u32 %v3822, 30
    %v3824 = vshll.u32 %v3823, 30
    %v3825 = vsub.s32 %v3821, %v3824
    %vm3826 = vcmp.lt.s32.totalorder %v3825, 0
    %v3827 = vsub.s32 0, %v3825
    %v3828 = vsel %vm3826, %v3827, %v3825
    %v3829 = vclz %v3828
    %v3830 = vsub.s32 %v3829, 2
    %vm3831 = vcmp.gt.s32.totalorder 0, %v3830
    %v3832 = vsel %vm3831, 0, %v3830
    %v3833 = vsub.s32 32, %v3832
    %v3834 = vshll.u32 %v3825, %v3832
    %v3835 = vshrl.u32 %v3817, %v3833
    %v3836 = vor.u32 %v3834, %v3835
    %v3837 = vsub.s32 4294967266, %v3832
    %v3838 = vadd.s32 %v3837, 127
    %v3839 = vshll.u32 %v3838, 23
    %v3840 = vor.u32 4788187, %v3839
    %v3841 = vand.u32 2147483647, %v3840
    %v3843 = vcvt.s32.f32 %v3836
    %v3844 = vmul.f32 %v3843, %v3841
    %v3845 = vxor.u32 %v3844, 2147483648
    %v3846 = vsel %vm3763, %v3845, %v3844
    %v3847 = vsub.s32 4, %v3823
    %v3848 = vsel %vm3763, %v3847, %v3823
    %v3849 = vsel %vm3762, %v3626, %v3846
    %v3850 = vsel %vm3762, 0, %v3848
    %v3851 = vcosq.f32.pop %v3849
    %v3852 = vsinq.f32.pop %v3849
    %vm3853 = vweird.f32 %v3626
    %v3854 = vadd.s32 %v3850, 3
    %v3855 = vand.u32 %v3854, 3
    %vm3856 = vcmp.lt.s32.totalorder %v3855, 2
    %vm3857 = vcmp.eq.s32.totalorder %v3855, 0
    %v3858 = vxor.u32 %v3852, 2147483648
    %v3859 = vsel %vm3857, %v3851, %v3858
    %vm3860 = vcmp.eq.s32.totalorder %v3855, 2
    %v3861 = vxor.u32 %v3851, 2147483648
    %v3862 = vsel %vm3860, %v3861, %v3852
    %v3863 = vsel %vm3856, %v3859, %v3862
    %v3864 = vsel %vm3853, nan, %v3863
    %v3865 = vand.u32 2147483647, %v3627
    %vm3866 = vcmp.le.f32.partialorder %v3865, 0.7853982
    %vm3867 = vcmp.lt.s32.totalorder %v3627, 0
    %v3868 = vand.u32 %v3627, 2139095040
    %v3869 = vshrl.u32 %v3868, 23
    %v3870 = vsub.s32 %v3869, 127
    %v3871 = vand.u32 2147483647, %v3627
    %v3872 = vand.u32 %v3871, 8388607
    %v3873 = vor.u32 %v3872, 8388608
    %v3874 = vsub.s32 0, %v3873
    %v3875 = vadd.s32 %v3870, 1
    %vm3876 = vcmp.gt.s32.totalorder %v3875, 0
    %v3877 = vsel %vm3876, %v3875, 0
    %v3878 = vshrl.u32 %v3877, 5
    %v3879 = vand.u32 %v3877, 31
    %v3880 = vsub.s32 32, %v3879
    %v3881 = vshrl.u32 683565275, %v3880
    %v3882 = vshll.u32 683565275, %v3879
    %v3883 = vshrl.u32 2475754826, %v3880
    %v3884 = vor.u32 %v3882, %v3883
    %v3885 = vshll.u32 2475754826, %v3879
    %v3886 = vshrl.u32 2131351028, %v3880
    %v3887 = vor.u32 %v3885, %v3886
    %v3888 = vshll.u32 2131351028, %v3879
    %v3889 = vshrl.u32 2102212464, %v3880
    %v3890 = vor.u32 %v3888, %v3889
    %v3891 = vshll.u32 2102212464, %v3879
    %v3892 = vshrl.u32 920167782, %v3880
    %v3893 = vor.u32 %v3891, %v3892
    %v3894 = vshll.u32 920167782, %v3879
    %v3895 = vshrl.u32 1326507024, %v3880
    %v3896 = vor.u32 %v3894, %v3895
    %vm3897 = vcmp.lt.s32.totalorder %v3878, 1
    %vm3898 = vcmp.lt.s32.totalorder %v3878, 2
    %vm3899 = vcmp.lt.s32.totalorder %v3878, 3
    %vm3900 = vcmp.lt.s32.totalorder %v3878, 4
    %v3901 = vsel %vm3897, %v3881, %v3884
    %v3902 = vsel %vm3900, %v3890, 2102212464
    %v3903 = vsel %vm3899, %v3887, %v3902
    %v3904 = vsel %vm3898, %v3901, %v3903
    %v3905 = vsel %vm3897, %v3884, %v3887
    %v3906 = vsel %vm3900, %v3893, 920167782
    %v3907 = vsel %vm3899, %v3890, %v3906
    %v3908 = vsel %vm3898, %v3905, %v3907
    %v3909 = vsel %vm3897, %v3887, %v3890
    %v3910 = vsel %vm3900, %v3896, 1326507024
    %v3911 = vsel %vm3899, %v3893, %v3910
    %v3912 = vsel %vm3898, %v3909, %v3911
    %v3913 = vshll.u32 %v3873, 8
    %v3914 = vmul.u32.u64.compose %v3913, %v3912
    %v3915 = vextract.low.u32 %v3914
    %v3916 = vextract.high.u32 %v3914
    %v3917 = vmul.u32.u64.compose %v3913, %v3908
    %v3918 = vextract.low.u32 %v3917
    %v3919 = vextract.high.u32 %v3917
    %v3920 = vmul.u32 %v3913, %v3904
    %v3921 = vadd.s32 %v3916, %v3918
    %vm3922 = vc.u32 %v3916, %v3918
    %v3923 = vadd.s32 %v3919, 1
    %v3924 = vsel %vm3922, %v3923, %v3919
    %v3925 = vadd.s32 %v3920, %v3924
    %v3926 = vadd.s32 %v3925, 536870912
    %v3927 = vshrl.u32 %v3926, 30
    %v3928 = vshll.u32 %v3927, 30
    %v3929 = vsub.s32 %v3925, %v3928
    %vm3930 = vcmp.lt.s32.totalorder %v3929, 0
    %v3931 = vsub.s32 0, %v3929
    %v3932 = vsel %vm3930, %v3931, %v3929
    %v3933 = vclz %v3932
    %v3934 = vsub.s32 %v3933, 2
    %vm3935 = vcmp.gt.s32.totalorder 0, %v3934
    %v3936 = vsel %vm3935, 0, %v3934
    %v3937 = vsub.s32 32, %v3936
    %v3938 = vshll.u32 %v3929, %v3936
    %v3939 = vshrl.u32 %v3921, %v3937
    %v3940 = vor.u32 %v3938, %v3939
    %v3941 = vsub.s32 4294967266, %v3936
    %v3942 = vadd.s32 %v3941, 127
    %v3943 = vshll.u32 %v3942, 23
    %v3944 = vor.u32 4788187, %v3943
    %v3945 = vand.u32 2147483647, %v3944
    %v3947 = vcvt.s32.f32 %v3940
    %v3948 = vmul.f32 %v3947, %v3945
    %v3949 = vxor.u32 %v3948, 2147483648
    %v3950 = vsel %vm3867, %v3949, %v3948
    %v3951 = vsub.s32 4, %v3927
    %v3952 = vsel %vm3867, %v3951, %v3927
    %v3953 = vsel %vm3866, %v3627, %v3950
    %v3954 = vsel %vm3866, 0, %v3952
    %v3955 = vcosq.f32.pop %v3953
    %v3956 = vsinq.f32.pop %v3953
    %vm3957 = vweird.f32 %v3627
    %v3958 = vadd.s32 %v3954, 3
    %v3959 = vand.u32 %v3958, 3
    %vm3960 = vcmp.lt.s32.totalorder %v3959, 2
    %vm3961 = vcmp.eq.s32.totalorder %v3959, 0
    %v3962 = vxor.u32 %v3956, 2147483648
    %v3963 = vsel %vm3961, %v3955, %v3962
    %vm3964 = vcmp.eq.s32.totalorder %v3959, 2
    %v3965 = vxor.u32 %v3955, 2147483648
    %v3966 = vsel %vm3964, %v3965, %v3956
    %v3967 = vsel %vm3960, %v3963, %v3966
    %v3968 = vsel %vm3957, nan, %v3967
    %v3969 = vand.u32 2147483647, %v3628
    %vm3970 = vcmp.le.f32.partialorder %v3969, 0.7853982
    %vm3971 = vcmp.lt.s32.totalorder %v3628, 0
    %v3972 = vand.u32 %v3628, 2139095040
    %v3973 = vshrl.u32 %v3972, 23
    %v3974 = vsub.s32 %v3973, 127
    %v3975 = vand.u32 2147483647, %v3628
    %v3976 = vand.u32 %v3975, 8388607
    %v3977 = vor.u32 %v3976, 8388608
    %v3978 = vsub.s32 0, %v3977
    %v3979 = vadd.s32 %v3974, 1
    %vm3980 = vcmp.gt.s32.totalorder %v3979, 0
    %v3981 = vsel %vm3980, %v3979, 0
    %v3982 = vshrl.u32 %v3981, 5
    %v3983 = vand.u32 %v3981, 31
    %v3984 = vsub.s32 32, %v3983
    %v3985 = vshrl.u32 683565275, %v3984
    %v3986 = vshll.u32 683565275, %v3983
    %v3987 = vshrl.u32 2475754826, %v3984
    %v3988 = vor.u32 %v3986, %v3987
    %v3989 = vshll.u32 2475754826, %v3983
    %v3990 = vshrl.u32 2131351028, %v3984
    %v3991 = vor.u32 %v3989, %v3990
    %v3992 = vshll.u32 2131351028, %v3983
    %v3993 = vshrl.u32 2102212464, %v3984
    %v3994 = vor.u32 %v3992, %v3993
    %v3995 = vshll.u32 2102212464, %v3983
    %v3996 = vshrl.u32 920167782, %v3984
    %v3997 = vor.u32 %v3995, %v3996
    %v3998 = vshll.u32 920167782, %v3983
    %v3999 = vshrl.u32 1326507024, %v3984
    %v4000 = vor.u32 %v3998, %v3999
    %vm4001 = vcmp.lt.s32.totalorder %v3982, 1
    %vm4002 = vcmp.lt.s32.totalorder %v3982, 2
    %vm4003 = vcmp.lt.s32.totalorder %v3982, 3
    %vm4004 = vcmp.lt.s32.totalorder %v3982, 4
    %v4005 = vsel %vm4001, %v3985, %v3988
    %v4006 = vsel %vm4004, %v3994, 2102212464
    %v4007 = vsel %vm4003, %v3991, %v4006
    %v4008 = vsel %vm4002, %v4005, %v4007
    %v4009 = vsel %vm4001, %v3988, %v3991
    %v4010 = vsel %vm4004, %v3997, 920167782
    %v4011 = vsel %vm4003, %v3994, %v4010
    %v4012 = vsel %vm4002, %v4009, %v4011
    %v4013 = vsel %vm4001, %v3991, %v3994
    %v4014 = vsel %vm4004, %v4000, 1326507024
    %v4015 = vsel %vm4003, %v3997, %v4014
    %v4016 = vsel %vm4002, %v4013, %v4015
    %v4017 = vshll.u32 %v3977, 8
    %v4018 = vmul.u32.u64.compose %v4017, %v4016
    %v4019 = vextract.low.u32 %v4018
    %v4020 = vextract.high.u32 %v4018
    %v4021 = vmul.u32.u64.compose %v4017, %v4012
    %v4022 = vextract.low.u32 %v4021
    %v4023 = vextract.high.u32 %v4021
    %v4024 = vmul.u32 %v4017, %v4008
    %v4025 = vadd.s32 %v4020, %v4022
    %vm4026 = vc.u32 %v4020, %v4022
    %v4027 = vadd.s32 %v4023, 1
    %v4028 = vsel %vm4026, %v4027, %v4023
    %v4029 = vadd.s32 %v4024, %v4028
    %v4030 = vadd.s32 %v4029, 536870912
    %v4031 = vshrl.u32 %v4030, 30
    %v4032 = vshll.u32 %v4031, 30
    %v4033 = vsub.s32 %v4029, %v4032
    %vm4034 = vcmp.lt.s32.totalorder %v4033, 0
    %v4035 = vsub.s32 0, %v4033
    %v4036 = vsel %vm4034, %v4035, %v4033
    %v4037 = vclz %v4036
    %v4038 = vsub.s32 %v4037, 2
    %vm4039 = vcmp.gt.s32.totalorder 0, %v4038
    %v4040 = vsel %vm4039, 0, %v4038
    %v4041 = vsub.s32 32, %v4040
    %v4042 = vshll.u32 %v4033, %v4040
    %v4043 = vshrl.u32 %v4025, %v4041
    %v4044 = vor.u32 %v4042, %v4043
    %v4045 = vsub.s32 4294967266, %v4040
    %v4046 = vadd.s32 %v4045, 127
    %v4047 = vshll.u32 %v4046, 23
    %v4048 = vor.u32 4788187, %v4047
    %v4049 = vand.u32 2147483647, %v4048
    %v4051 = vcvt.s32.f32 %v4044
    %v4052 = vmul.f32 %v4051, %v4049
    %v4053 = vxor.u32 %v4052, 2147483648
    %v4054 = vsel %vm3971, %v4053, %v4052
    %v4055 = vsub.s32 4, %v4031
    %v4056 = vsel %vm3971, %v4055, %v4031
    %v4057 = vsel %vm3970, %v3628, %v4054
    %v4058 = vsel %vm3970, 0, %v4056
    %v4059 = vcosq.f32.pop %v4057
    %v4060 = vsinq.f32.pop %v4057
    %vm4061 = vweird.f32 %v3628
    %v4062 = vadd.s32 %v4058, 3
    %v4063 = vand.u32 %v4062, 3
    %vm4064 = vcmp.lt.s32.totalorder %v4063, 2
    %vm4065 = vcmp.eq.s32.totalorder %v4063, 0
    %v4066 = vxor.u32 %v4060, 2147483648
    %v4067 = vsel %vm4065, %v4059, %v4066
    %vm4068 = vcmp.eq.s32.totalorder %v4063, 2
    %v4069 = vxor.u32 %v4059, 2147483648
    %v4070 = vsel %vm4068, %v4069, %v4060
    %v4071 = vsel %vm4064, %v4067, %v4070
    %v4072 = vsel %vm4061, nan, %v4071
    %v4073 = vand.u32 2147483647, %v3629
    %vm4074 = vcmp.le.f32.partialorder %v4073, 0.7853982
    %vm4075 = vcmp.lt.s32.totalorder %v3629, 0
    %v4076 = vand.u32 %v3629, 2139095040
    %v4077 = vshrl.u32 %v4076, 23
    %v4078 = vsub.s32 %v4077, 127
    %v4079 = vand.u32 2147483647, %v3629
    %v4080 = vand.u32 %v4079, 8388607
    %v4081 = vor.u32 %v4080, 8388608
    %v4082 = vsub.s32 0, %v4081
    %v4083 = vadd.s32 %v4078, 1
    %vm4084 = vcmp.gt.s32.totalorder %v4083, 0
    %v4085 = vsel %vm4084, %v4083, 0
    %v4086 = vshrl.u32 %v4085, 5
    %v4087 = vand.u32 %v4085, 31
    %v4088 = vsub.s32 32, %v4087
    %v4089 = vshrl.u32 683565275, %v4088
    %v4090 = vshll.u32 683565275, %v4087
    %v4091 = vshrl.u32 2475754826, %v4088
    %v4092 = vor.u32 %v4090, %v4091
    %v4093 = vshll.u32 2475754826, %v4087
    %v4094 = vshrl.u32 2131351028, %v4088
    %v4095 = vor.u32 %v4093, %v4094
    %v4096 = vshll.u32 2131351028, %v4087
    %v4097 = vshrl.u32 2102212464, %v4088
    %v4098 = vor.u32 %v4096, %v4097
    %v4099 = vshll.u32 2102212464, %v4087
    %v4100 = vshrl.u32 920167782, %v4088
    %v4101 = vor.u32 %v4099, %v4100
    %v4102 = vshll.u32 920167782, %v4087
    %v4103 = vshrl.u32 1326507024, %v4088
    %v4104 = vor.u32 %v4102, %v4103
    %vm4105 = vcmp.lt.s32.totalorder %v4086, 1
    %vm4106 = vcmp.lt.s32.totalorder %v4086, 2
    %vm4107 = vcmp.lt.s32.totalorder %v4086, 3
    %vm4108 = vcmp.lt.s32.totalorder %v4086, 4
    %v4109 = vsel %vm4105, %v4089, %v4092
    %v4110 = vsel %vm4108, %v4098, 2102212464
    %v4111 = vsel %vm4107, %v4095, %v4110
    %v4112 = vsel %vm4106, %v4109, %v4111
    %v4113 = vsel %vm4105, %v4092, %v4095
    %v4114 = vsel %vm4108, %v4101, 920167782
    %v4115 = vsel %vm4107, %v4098, %v4114
    %v4116 = vsel %vm4106, %v4113, %v4115
    %v4117 = vsel %vm4105, %v4095, %v4098
    %v4118 = vsel %vm4108, %v4104, 1326507024
    %v4119 = vsel %vm4107, %v4101, %v4118
    %v4120 = vsel %vm4106, %v4117, %v4119
    %v4121 = vshll.u32 %v4081, 8
    %v4122 = vmul.u32.u64.compose %v4121, %v4120
    %v4123 = vextract.low.u32 %v4122
    %v4124 = vextract.high.u32 %v4122
    %v4125 = vmul.u32.u64.compose %v4121, %v4116
    %v4126 = vextract.low.u32 %v4125
    %v4127 = vextract.high.u32 %v4125
    %v4128 = vmul.u32 %v4121, %v4112
    %v4129 = vadd.s32 %v4124, %v4126
    %vm4130 = vc.u32 %v4124, %v4126
    %v4131 = vadd.s32 %v4127, 1
    %v4132 = vsel %vm4130, %v4131, %v4127
    %v4133 = vadd.s32 %v4128, %v4132
    %v4134 = vadd.s32 %v4133, 536870912
    %v4135 = vshrl.u32 %v4134, 30
    %v4136 = vshll.u32 %v4135, 30
    %v4137 = vsub.s32 %v4133, %v4136
    %vm4138 = vcmp.lt.s32.totalorder %v4137, 0
    %v4139 = vsub.s32 0, %v4137
    %v4140 = vsel %vm4138, %v4139, %v4137
    %v4141 = vclz %v4140
    %v4142 = vsub.s32 %v4141, 2
    %vm4143 = vcmp.gt.s32.totalorder 0, %v4142
    %v4144 = vsel %vm4143, 0, %v4142
    %v4145 = vsub.s32 32, %v4144
    %v4146 = vshll.u32 %v4137, %v4144
    %v4147 = vshrl.u32 %v4129, %v4145
    %v4148 = vor.u32 %v4146, %v4147
    %v4149 = vsub.s32 4294967266, %v4144
    %v4150 = vadd.s32 %v4149, 127
    %v4151 = vshll.u32 %v4150, 23
    %v4152 = vor.u32 4788187, %v4151
    %v4153 = vand.u32 2147483647, %v4152
    %v4155 = vcvt.s32.f32 %v4148
    %v4156 = vmul.f32 %v4155, %v4153
    %v4157 = vxor.u32 %v4156, 2147483648
    %v4158 = vsel %vm4075, %v4157, %v4156
    %v4159 = vsub.s32 4, %v4135
    %v4160 = vsel %vm4075, %v4159, %v4135
    %v4161 = vsel %vm4074, %v3629, %v4158
    %v4162 = vsel %vm4074, 0, %v4160
    %v4163 = vcosq.f32.pop %v4161
    %v4164 = vsinq.f32.pop %v4161
    %vm4165 = vweird.f32 %v3629
    %v4166 = vadd.s32 %v4162, 3
    %v4167 = vand.u32 %v4166, 3
    %vm4168 = vcmp.lt.s32.totalorder %v4167, 2
    %vm4169 = vcmp.eq.s32.totalorder %v4167, 0
    %v4170 = vxor.u32 %v4164, 2147483648
    %v4171 = vsel %vm4169, %v4163, %v4170
    %vm4172 = vcmp.eq.s32.totalorder %v4167, 2
    %v4173 = vxor.u32 %v4163, 2147483648
    %v4174 = vsel %vm4172, %v4173, %v4164
    %v4175 = vsel %vm4168, %v4171, %v4174
    %v4176 = vsel %vm4165, nan, %v4175
    %v4177 = vand.u32 2147483647, %v3630
    %vm4178 = vcmp.le.f32.partialorder %v4177, 0.7853982
    %vm4179 = vcmp.lt.s32.totalorder %v3630, 0
    %v4180 = vand.u32 %v3630, 2139095040
    %v4181 = vshrl.u32 %v4180, 23
    %v4182 = vsub.s32 %v4181, 127
    %v4183 = vand.u32 2147483647, %v3630
    %v4184 = vand.u32 %v4183, 8388607
    %v4185 = vor.u32 %v4184, 8388608
    %v4186 = vsub.s32 0, %v4185
    %v4187 = vadd.s32 %v4182, 1
    %vm4188 = vcmp.gt.s32.totalorder %v4187, 0
    %v4189 = vsel %vm4188, %v4187, 0
    %v4190 = vshrl.u32 %v4189, 5
    %v4191 = vand.u32 %v4189, 31
    %v4192 = vsub.s32 32, %v4191
    %v4193 = vshrl.u32 683565275, %v4192
    %v4194 = vshll.u32 683565275, %v4191
    %v4195 = vshrl.u32 2475754826, %v4192
    %v4196 = vor.u32 %v4194, %v4195
    %v4197 = vshll.u32 2475754826, %v4191
    %v4198 = vshrl.u32 2131351028, %v4192
    %v4199 = vor.u32 %v4197, %v4198
    %v4200 = vshll.u32 2131351028, %v4191
    %v4201 = vshrl.u32 2102212464, %v4192
    %v4202 = vor.u32 %v4200, %v4201
    %v4203 = vshll.u32 2102212464, %v4191
    %v4204 = vshrl.u32 920167782, %v4192
    %v4205 = vor.u32 %v4203, %v4204
    %v4206 = vshll.u32 920167782, %v4191
    %v4207 = vshrl.u32 1326507024, %v4192
    %v4208 = vor.u32 %v4206, %v4207
    %vm4209 = vcmp.lt.s32.totalorder %v4190, 1
    %vm4210 = vcmp.lt.s32.totalorder %v4190, 2
    %vm4211 = vcmp.lt.s32.totalorder %v4190, 3
    %vm4212 = vcmp.lt.s32.totalorder %v4190, 4
    %v4213 = vsel %vm4209, %v4193, %v4196
    %v4214 = vsel %vm4212, %v4202, 2102212464
    %v4215 = vsel %vm4211, %v4199, %v4214
    %v4216 = vsel %vm4210, %v4213, %v4215
    %v4217 = vsel %vm4209, %v4196, %v4199
    %v4218 = vsel %vm4212, %v4205, 920167782
    %v4219 = vsel %vm4211, %v4202, %v4218
    %v4220 = vsel %vm4210, %v4217, %v4219
    %v4221 = vsel %vm4209, %v4199, %v4202
    %v4222 = vsel %vm4212, %v4208, 1326507024
    %v4223 = vsel %vm4211, %v4205, %v4222
    %v4224 = vsel %vm4210, %v4221, %v4223
    %v4225 = vshll.u32 %v4185, 8
    %v4226 = vmul.u32.u64.compose %v4225, %v4224
    %v4227 = vextract.low.u32 %v4226
    %v4228 = vextract.high.u32 %v4226
    %v4229 = vmul.u32.u64.compose %v4225, %v4220
    %v4230 = vextract.low.u32 %v4229
    %v4231 = vextract.high.u32 %v4229
    %v4232 = vmul.u32 %v4225, %v4216
    %v4233 = vadd.s32 %v4228, %v4230
    %vm4234 = vc.u32 %v4228, %v4230
    %v4235 = vadd.s32 %v4231, 1
    %v4236 = vsel %vm4234, %v4235, %v4231
    %v4237 = vadd.s32 %v4232, %v4236
    %v4238 = vadd.s32 %v4237, 536870912
    %v4239 = vshrl.u32 %v4238, 30
    %v4240 = vshll.u32 %v4239, 30
    %v4241 = vsub.s32 %v4237, %v4240
    %vm4242 = vcmp.lt.s32.totalorder %v4241, 0
    %v4243 = vsub.s32 0, %v4241
    %v4244 = vsel %vm4242, %v4243, %v4241
    %v4245 = vclz %v4244
    %v4246 = vsub.s32 %v4245, 2
    %vm4247 = vcmp.gt.s32.totalorder 0, %v4246
    %v4248 = vsel %vm4247, 0, %v4246
    %v4249 = vsub.s32 32, %v4248
    %v4250 = vshll.u32 %v4241, %v4248
    %v4251 = vshrl.u32 %v4233, %v4249
    %v4252 = vor.u32 %v4250, %v4251
    %v4253 = vsub.s32 4294967266, %v4248
    %v4254 = vadd.s32 %v4253, 127
    %v4255 = vshll.u32 %v4254, 23
    %v4256 = vor.u32 4788187, %v4255
    %v4257 = vand.u32 2147483647, %v4256
    %v4259 = vcvt.s32.f32 %v4252
    %v4260 = vmul.f32 %v4259, %v4257
    %v4261 = vxor.u32 %v4260, 2147483648
    %v4262 = vsel %vm4179, %v4261, %v4260
    %v4263 = vsub.s32 4, %v4239
    %v4264 = vsel %vm4179, %v4263, %v4239
    %v4265 = vsel %vm4178, %v3630, %v4262
    %v4266 = vsel %vm4178, 0, %v4264
    %v4267 = vcosq.f32.pop %v4265
    %v4268 = vsinq.f32.pop %v4265
    %vm4269 = vweird.f32 %v3630
    %v4270 = vadd.s32 %v4266, 3
    %v4271 = vand.u32 %v4270, 3
    %vm4272 = vcmp.lt.s32.totalorder %v4271, 2
    %vm4273 = vcmp.eq.s32.totalorder %v4271, 0
    %v4274 = vxor.u32 %v4268, 2147483648
    %v4275 = vsel %vm4273, %v4267, %v4274
    %vm4276 = vcmp.eq.s32.totalorder %v4271, 2
    %v4277 = vxor.u32 %v4267, 2147483648
    %v4278 = vsel %vm4276, %v4277, %v4268
    %v4279 = vsel %vm4272, %v4275, %v4278
    %v4280 = vsel %vm4269, nan, %v4279
    %v4281 = vand.u32 2147483647, %v3631
    %vm4282 = vcmp.le.f32.partialorder %v4281, 0.7853982
    %vm4283 = vcmp.lt.s32.totalorder %v3631, 0
    %v4284 = vand.u32 %v3631, 2139095040
    %v4285 = vshrl.u32 %v4284, 23
    %v4286 = vsub.s32 %v4285, 127
    %v4287 = vand.u32 2147483647, %v3631
    %v4288 = vand.u32 %v4287, 8388607
    %v4289 = vor.u32 %v4288, 8388608
    %v4290 = vsub.s32 0, %v4289
    %v4291 = vadd.s32 %v4286, 1
    %vm4292 = vcmp.gt.s32.totalorder %v4291, 0
    %v4293 = vsel %vm4292, %v4291, 0
    %v4294 = vshrl.u32 %v4293, 5
    %v4295 = vand.u32 %v4293, 31
    %v4296 = vsub.s32 32, %v4295
    %v4297 = vshrl.u32 683565275, %v4296
    %v4298 = vshll.u32 683565275, %v4295
    %v4299 = vshrl.u32 2475754826, %v4296
    %v4300 = vor.u32 %v4298, %v4299
    %v4301 = vshll.u32 2475754826, %v4295
    %v4302 = vshrl.u32 2131351028, %v4296
    %v4303 = vor.u32 %v4301, %v4302
    %v4304 = vshll.u32 2131351028, %v4295
    %v4305 = vshrl.u32 2102212464, %v4296
    %v4306 = vor.u32 %v4304, %v4305
    %v4307 = vshll.u32 2102212464, %v4295
    %v4308 = vshrl.u32 920167782, %v4296
    %v4309 = vor.u32 %v4307, %v4308
    %v4310 = vshll.u32 920167782, %v4295
    %v4311 = vshrl.u32 1326507024, %v4296
    %v4312 = vor.u32 %v4310, %v4311
    %vm4313 = vcmp.lt.s32.totalorder %v4294, 1
    %vm4314 = vcmp.lt.s32.totalorder %v4294, 2
    %vm4315 = vcmp.lt.s32.totalorder %v4294, 3
    %vm4316 = vcmp.lt.s32.totalorder %v4294, 4
    %v4317 = vsel %vm4313, %v4297, %v4300
    %v4318 = vsel %vm4316, %v4306, 2102212464
    %v4319 = vsel %vm4315, %v4303, %v4318
    %v4320 = vsel %vm4314, %v4317, %v4319
    %v4321 = vsel %vm4313, %v4300, %v4303
    %v4322 = vsel %vm4316, %v4309, 920167782
    %v4323 = vsel %vm4315, %v4306, %v4322
    %v4324 = vsel %vm4314, %v4321, %v4323
    %v4325 = vsel %vm4313, %v4303, %v4306
    %v4326 = vsel %vm4316, %v4312, 1326507024
    %v4327 = vsel %vm4315, %v4309, %v4326
    %v4328 = vsel %vm4314, %v4325, %v4327
    %v4329 = vshll.u32 %v4289, 8
    %v4330 = vmul.u32.u64.compose %v4329, %v4328
    %v4331 = vextract.low.u32 %v4330
    %v4332 = vextract.high.u32 %v4330
    %v4333 = vmul.u32.u64.compose %v4329, %v4324
    %v4334 = vextract.low.u32 %v4333
    %v4335 = vextract.high.u32 %v4333
    %v4336 = vmul.u32 %v4329, %v4320
    %v4337 = vadd.s32 %v4332, %v4334
    %vm4338 = vc.u32 %v4332, %v4334
    %v4339 = vadd.s32 %v4335, 1
    %v4340 = vsel %vm4338, %v4339, %v4335
    %v4341 = vadd.s32 %v4336, %v4340
    %v4342 = vadd.s32 %v4341, 536870912
    %v4343 = vshrl.u32 %v4342, 30
    %v4344 = vshll.u32 %v4343, 30
    %v4345 = vsub.s32 %v4341, %v4344
    %vm4346 = vcmp.lt.s32.totalorder %v4345, 0
    %v4347 = vsub.s32 0, %v4345
    %v4348 = vsel %vm4346, %v4347, %v4345
    %v4349 = vclz %v4348
    %v4350 = vsub.s32 %v4349, 2
    %vm4351 = vcmp.gt.s32.totalorder 0, %v4350
    %v4352 = vsel %vm4351, 0, %v4350
    %v4353 = vsub.s32 32, %v4352
    %v4354 = vshll.u32 %v4345, %v4352
    %v4355 = vshrl.u32 %v4337, %v4353
    %v4356 = vor.u32 %v4354, %v4355
    %v4357 = vsub.s32 4294967266, %v4352
    %v4358 = vadd.s32 %v4357, 127
    %v4359 = vshll.u32 %v4358, 23
    %v4360 = vor.u32 4788187, %v4359
    %v4361 = vand.u32 2147483647, %v4360
    %v4363 = vcvt.s32.f32 %v4356
    %v4364 = vmul.f32 %v4363, %v4361
    %v4365 = vxor.u32 %v4364, 2147483648
    %v4366 = vsel %vm4283, %v4365, %v4364
    %v4367 = vsub.s32 4, %v4343
    %v4368 = vsel %vm4283, %v4367, %v4343
    %v4369 = vsel %vm4282, %v3631, %v4366
    %v4370 = vsel %vm4282, 0, %v4368
    %v4371 = vcosq.f32.pop %v4369
    %v4372 = vsinq.f32.pop %v4369
    %vm4373 = vweird.f32 %v3631
    %v4374 = vadd.s32 %v4370, 3
    %v4375 = vand.u32 %v4374, 3
    %vm4376 = vcmp.lt.s32.totalorder %v4375, 2
    %vm4377 = vcmp.eq.s32.totalorder %v4375, 0
    %v4378 = vxor.u32 %v4372, 2147483648
    %v4379 = vsel %vm4377, %v4371, %v4378
    %vm4380 = vcmp.eq.s32.totalorder %v4375, 2
    %v4381 = vxor.u32 %v4371, 2147483648
    %v4382 = vsel %vm4380, %v4381, %v4372
    %v4383 = vsel %vm4376, %v4379, %v4382
    %v4384 = vsel %vm4373, nan, %v4383
    %v4385 = vand.u32 2147483647, %v3632
    %vm4386 = vcmp.le.f32.partialorder %v4385, 0.7853982
    %vm4387 = vcmp.lt.s32.totalorder %v3632, 0
    %v4388 = vand.u32 %v3632, 2139095040
    %v4389 = vshrl.u32 %v4388, 23
    %v4390 = vsub.s32 %v4389, 127
    %v4391 = vand.u32 2147483647, %v3632
    %v4392 = vand.u32 %v4391, 8388607
    %v4393 = vor.u32 %v4392, 8388608
    %v4394 = vsub.s32 0, %v4393
    %v4395 = vadd.s32 %v4390, 1
    %vm4396 = vcmp.gt.s32.totalorder %v4395, 0
    %v4397 = vsel %vm4396, %v4395, 0
    %v4398 = vshrl.u32 %v4397, 5
    %v4399 = vand.u32 %v4397, 31
    %v4400 = vsub.s32 32, %v4399
    %v4401 = vshrl.u32 683565275, %v4400
    %v4402 = vshll.u32 683565275, %v4399
    %v4403 = vshrl.u32 2475754826, %v4400
    %v4404 = vor.u32 %v4402, %v4403
    %v4405 = vshll.u32 2475754826, %v4399
    %v4406 = vshrl.u32 2131351028, %v4400
    %v4407 = vor.u32 %v4405, %v4406
    %v4408 = vshll.u32 2131351028, %v4399
    %v4409 = vshrl.u32 2102212464, %v4400
    %v4410 = vor.u32 %v4408, %v4409
    %v4411 = vshll.u32 2102212464, %v4399
    %v4412 = vshrl.u32 920167782, %v4400
    %v4413 = vor.u32 %v4411, %v4412
    %v4414 = vshll.u32 920167782, %v4399
    %v4415 = vshrl.u32 1326507024, %v4400
    %v4416 = vor.u32 %v4414, %v4415
    %vm4417 = vcmp.lt.s32.totalorder %v4398, 1
    %vm4418 = vcmp.lt.s32.totalorder %v4398, 2
    %vm4419 = vcmp.lt.s32.totalorder %v4398, 3
    %vm4420 = vcmp.lt.s32.totalorder %v4398, 4
    %v4421 = vsel %vm4417, %v4401, %v4404
    %v4422 = vsel %vm4420, %v4410, 2102212464
    %v4423 = vsel %vm4419, %v4407, %v4422
    %v4424 = vsel %vm4418, %v4421, %v4423
    %v4425 = vsel %vm4417, %v4404, %v4407
    %v4426 = vsel %vm4420, %v4413, 920167782
    %v4427 = vsel %vm4419, %v4410, %v4426
    %v4428 = vsel %vm4418, %v4425, %v4427
    %v4429 = vsel %vm4417, %v4407, %v4410
    %v4430 = vsel %vm4420, %v4416, 1326507024
    %v4431 = vsel %vm4419, %v4413, %v4430
    %v4432 = vsel %vm4418, %v4429, %v4431
    %v4433 = vshll.u32 %v4393, 8
    %v4434 = vmul.u32.u64.compose %v4433, %v4432
    %v4435 = vextract.low.u32 %v4434
    %v4436 = vextract.high.u32 %v4434
    %v4437 = vmul.u32.u64.compose %v4433, %v4428
    %v4438 = vextract.low.u32 %v4437
    %v4439 = vextract.high.u32 %v4437
    %v4440 = vmul.u32 %v4433, %v4424
    %v4441 = vadd.s32 %v4436, %v4438
    %vm4442 = vc.u32 %v4436, %v4438
    %v4443 = vadd.s32 %v4439, 1
    %v4444 = vsel %vm4442, %v4443, %v4439
    %v4445 = vadd.s32 %v4440, %v4444
    %v4446 = vadd.s32 %v4445, 536870912
    %v4447 = vshrl.u32 %v4446, 30
    %v4448 = vshll.u32 %v4447, 30
    %v4449 = vsub.s32 %v4445, %v4448
    %vm4450 = vcmp.lt.s32.totalorder %v4449, 0
    %v4451 = vsub.s32 0, %v4449
    %v4452 = vsel %vm4450, %v4451, %v4449
    %v4453 = vclz %v4452
    %v4454 = vsub.s32 %v4453, 2
    %vm4455 = vcmp.gt.s32.totalorder 0, %v4454
    %v4456 = vsel %vm4455, 0, %v4454
    %v4457 = vsub.s32 32, %v4456
    %v4458 = vshll.u32 %v4449, %v4456
    %v4459 = vshrl.u32 %v4441, %v4457
    %v4460 = vor.u32 %v4458, %v4459
    %v4461 = vsub.s32 4294967266, %v4456
    %v4462 = vadd.s32 %v4461, 127
    %v4463 = vshll.u32 %v4462, 23
    %v4464 = vor.u32 4788187, %v4463
    %v4465 = vand.u32 2147483647, %v4464
    %v4467 = vcvt.s32.f32 %v4460
    %v4468 = vmul.f32 %v4467, %v4465
    %v4469 = vxor.u32 %v4468, 2147483648
    %v4470 = vsel %vm4387, %v4469, %v4468
    %v4471 = vsub.s32 4, %v4447
    %v4472 = vsel %vm4387, %v4471, %v4447
    %v4473 = vsel %vm4386, %v3632, %v4470
    %v4474 = vsel %vm4386, 0, %v4472
    %v4475 = vcosq.f32.pop %v4473
    %v4476 = vsinq.f32.pop %v4473
    %vm4477 = vweird.f32 %v3632
    %v4478 = vadd.s32 %v4474, 3
    %v4479 = vand.u32 %v4478, 3
    %vm4480 = vcmp.lt.s32.totalorder %v4479, 2
    %vm4481 = vcmp.eq.s32.totalorder %v4479, 0
    %v4482 = vxor.u32 %v4476, 2147483648
    %v4483 = vsel %vm4481, %v4475, %v4482
    %vm4484 = vcmp.eq.s32.totalorder %v4479, 2
    %v4485 = vxor.u32 %v4475, 2147483648
    %v4486 = vsel %vm4484, %v4485, %v4476
    %v4487 = vsel %vm4480, %v4483, %v4486
    %v4488 = vsel %vm4477, nan, %v4487
    %v4489 = vand.u32 2147483647, %v3633
    %vm4490 = vcmp.le.f32.partialorder %v4489, 0.7853982
    %vm4491 = vcmp.lt.s32.totalorder %v3633, 0
    %v4492 = vand.u32 %v3633, 2139095040
    %v4493 = vshrl.u32 %v4492, 23
    %v4494 = vsub.s32 %v4493, 127
    %v4495 = vand.u32 2147483647, %v3633
    %v4496 = vand.u32 %v4495, 8388607
    %v4497 = vor.u32 %v4496, 8388608
    %v4498 = vsub.s32 0, %v4497
    %v4499 = vadd.s32 %v4494, 1
    %vm4500 = vcmp.gt.s32.totalorder %v4499, 0
    %v4501 = vsel %vm4500, %v4499, 0
    %v4502 = vshrl.u32 %v4501, 5
    %v4503 = vand.u32 %v4501, 31
    %v4504 = vsub.s32 32, %v4503
    %v4505 = vshrl.u32 683565275, %v4504
    %v4506 = vshll.u32 683565275, %v4503
    %v4507 = vshrl.u32 2475754826, %v4504
    %v4508 = vor.u32 %v4506, %v4507
    %v4509 = vshll.u32 2475754826, %v4503
    %v4510 = vshrl.u32 2131351028, %v4504
    %v4511 = vor.u32 %v4509, %v4510
    %v4512 = vshll.u32 2131351028, %v4503
    %v4513 = vshrl.u32 2102212464, %v4504
    %v4514 = vor.u32 %v4512, %v4513
    %v4515 = vshll.u32 2102212464, %v4503
    %v4516 = vshrl.u32 920167782, %v4504
    %v4517 = vor.u32 %v4515, %v4516
    %v4518 = vshll.u32 920167782, %v4503
    %v4519 = vshrl.u32 1326507024, %v4504
    %v4520 = vor.u32 %v4518, %v4519
    %vm4521 = vcmp.lt.s32.totalorder %v4502, 1
    %vm4522 = vcmp.lt.s32.totalorder %v4502, 2
    %vm4523 = vcmp.lt.s32.totalorder %v4502, 3
    %vm4524 = vcmp.lt.s32.totalorder %v4502, 4
    %v4525 = vsel %vm4521, %v4505, %v4508
    %v4526 = vsel %vm4524, %v4514, 2102212464
    %v4527 = vsel %vm4523, %v4511, %v4526
    %v4528 = vsel %vm4522, %v4525, %v4527
    %v4529 = vsel %vm4521, %v4508, %v4511
    %v4530 = vsel %vm4524, %v4517, 920167782
    %v4531 = vsel %vm4523, %v4514, %v4530
    %v4532 = vsel %vm4522, %v4529, %v4531
    %v4533 = vsel %vm4521, %v4511, %v4514
    %v4534 = vsel %vm4524, %v4520, 1326507024
    %v4535 = vsel %vm4523, %v4517, %v4534
    %v4536 = vsel %vm4522, %v4533, %v4535
    %v4537 = vshll.u32 %v4497, 8
    %v4538 = vmul.u32.u64.compose %v4537, %v4536
    %v4539 = vextract.low.u32 %v4538
    %v4540 = vextract.high.u32 %v4538
    %v4541 = vmul.u32.u64.compose %v4537, %v4532
    %v4542 = vextract.low.u32 %v4541
    %v4543 = vextract.high.u32 %v4541
    %v4544 = vmul.u32 %v4537, %v4528
    %v4545 = vadd.s32 %v4540, %v4542
    %vm4546 = vc.u32 %v4540, %v4542
    %v4547 = vadd.s32 %v4543, 1
    %v4548 = vsel %vm4546, %v4547, %v4543
    %v4549 = vadd.s32 %v4544, %v4548
    %v4550 = vadd.s32 %v4549, 536870912
    %v4551 = vshrl.u32 %v4550, 30
    %v4552 = vshll.u32 %v4551, 30
    %v4553 = vsub.s32 %v4549, %v4552
    %vm4554 = vcmp.lt.s32.totalorder %v4553, 0
    %v4555 = vsub.s32 0, %v4553
    %v4556 = vsel %vm4554, %v4555, %v4553
    %v4557 = vclz %v4556
    %v4558 = vsub.s32 %v4557, 2
    %vm4559 = vcmp.gt.s32.totalorder 0, %v4558
    %v4560 = vsel %vm4559, 0, %v4558
    %v4561 = vsub.s32 32, %v4560
    %v4562 = vshll.u32 %v4553, %v4560
    %v4563 = vshrl.u32 %v4545, %v4561
    %v4564 = vor.u32 %v4562, %v4563
    %v4565 = vsub.s32 4294967266, %v4560
    %v4566 = vadd.s32 %v4565, 127
    %v4567 = vshll.u32 %v4566, 23
    %v4568 = vor.u32 4788187, %v4567
    %v4569 = vand.u32 2147483647, %v4568
    %v4571 = vcvt.s32.f32 %v4564
    %v4572 = vmul.f32 %v4571, %v4569
    %v4573 = vxor.u32 %v4572, 2147483648
    %v4574 = vsel %vm4491, %v4573, %v4572
    %v4575 = vsub.s32 4, %v4551
    %v4576 = vsel %vm4491, %v4575, %v4551
    %v4577 = vsel %vm4490, %v3633, %v4574
    %v4578 = vsel %vm4490, 0, %v4576
    %v4579 = vcosq.f32.pop %v4577
    %v4580 = vsinq.f32.pop %v4577
    %vm4581 = vweird.f32 %v3633
    %v4582 = vadd.s32 %v4578, 3
    %v4583 = vand.u32 %v4582, 3
    %vm4584 = vcmp.lt.s32.totalorder %v4583, 2
    %vm4585 = vcmp.eq.s32.totalorder %v4583, 0
    %v4586 = vxor.u32 %v4580, 2147483648
    %v4587 = vsel %vm4585, %v4579, %v4586
    %vm4588 = vcmp.eq.s32.totalorder %v4583, 2
    %v4589 = vxor.u32 %v4579, 2147483648
    %v4590 = vsel %vm4588, %v4589, %v4580
    %v4591 = vsel %vm4584, %v4587, %v4590
    %v4592 = vsel %vm4581, nan, %v4591
    %v4593 = vand.u32 2147483647, %v3634
    %vm4594 = vcmp.le.f32.partialorder %v4593, 0.7853982
    %vm4595 = vcmp.lt.s32.totalorder %v3634, 0
    %v4596 = vand.u32 %v3634, 2139095040
    %v4597 = vshrl.u32 %v4596, 23
    %v4598 = vsub.s32 %v4597, 127
    %v4599 = vand.u32 2147483647, %v3634
    %v4600 = vand.u32 %v4599, 8388607
    %v4601 = vor.u32 %v4600, 8388608
    %v4602 = vsub.s32 0, %v4601
    %v4603 = vadd.s32 %v4598, 1
    %vm4604 = vcmp.gt.s32.totalorder %v4603, 0
    %v4605 = vsel %vm4604, %v4603, 0
    %v4606 = vshrl.u32 %v4605, 5
    %v4607 = vand.u32 %v4605, 31
    %v4608 = vsub.s32 32, %v4607
    %v4609 = vshrl.u32 683565275, %v4608
    %v4610 = vshll.u32 683565275, %v4607
    %v4611 = vshrl.u32 2475754826, %v4608
    %v4612 = vor.u32 %v4610, %v4611
    %v4613 = vshll.u32 2475754826, %v4607
    %v4614 = vshrl.u32 2131351028, %v4608
    %v4615 = vor.u32 %v4613, %v4614
    %v4616 = vshll.u32 2131351028, %v4607
    %v4617 = vshrl.u32 2102212464, %v4608
    %v4618 = vor.u32 %v4616, %v4617
    %v4619 = vshll.u32 2102212464, %v4607
    %v4620 = vshrl.u32 920167782, %v4608
    %v4621 = vor.u32 %v4619, %v4620
    %v4622 = vshll.u32 920167782, %v4607
    %v4623 = vshrl.u32 1326507024, %v4608
    %v4624 = vor.u32 %v4622, %v4623
    %vm4625 = vcmp.lt.s32.totalorder %v4606, 1
    %vm4626 = vcmp.lt.s32.totalorder %v4606, 2
    %vm4627 = vcmp.lt.s32.totalorder %v4606, 3
    %vm4628 = vcmp.lt.s32.totalorder %v4606, 4
    %v4629 = vsel %vm4625, %v4609, %v4612
    %v4630 = vsel %vm4628, %v4618, 2102212464
    %v4631 = vsel %vm4627, %v4615, %v4630
    %v4632 = vsel %vm4626, %v4629, %v4631
    %v4633 = vsel %vm4625, %v4612, %v4615
    %v4634 = vsel %vm4628, %v4621, 920167782
    %v4635 = vsel %vm4627, %v4618, %v4634
    %v4636 = vsel %vm4626, %v4633, %v4635
    %v4637 = vsel %vm4625, %v4615, %v4618
    %v4638 = vsel %vm4628, %v4624, 1326507024
    %v4639 = vsel %vm4627, %v4621, %v4638
    %v4640 = vsel %vm4626, %v4637, %v4639
    %v4641 = vshll.u32 %v4601, 8
    %v4642 = vmul.u32.u64.compose %v4641, %v4640
    %v4643 = vextract.low.u32 %v4642
    %v4644 = vextract.high.u32 %v4642
    %v4645 = vmul.u32.u64.compose %v4641, %v4636
    %v4646 = vextract.low.u32 %v4645
    %v4647 = vextract.high.u32 %v4645
    %v4648 = vmul.u32 %v4641, %v4632
    %v4649 = vadd.s32 %v4644, %v4646
    %vm4650 = vc.u32 %v4644, %v4646
    %v4651 = vadd.s32 %v4647, 1
    %v4652 = vsel %vm4650, %v4651, %v4647
    %v4653 = vadd.s32 %v4648, %v4652
    %v4654 = vadd.s32 %v4653, 536870912
    %v4655 = vshrl.u32 %v4654, 30
    %v4656 = vshll.u32 %v4655, 30
    %v4657 = vsub.s32 %v4653, %v4656
    %vm4658 = vcmp.lt.s32.totalorder %v4657, 0
    %v4659 = vsub.s32 0, %v4657
    %v4660 = vsel %vm4658, %v4659, %v4657
    %v4661 = vclz %v4660
    %v4662 = vsub.s32 %v4661, 2
    %vm4663 = vcmp.gt.s32.totalorder 0, %v4662
    %v4664 = vsel %vm4663, 0, %v4662
    %v4665 = vsub.s32 32, %v4664
    %v4666 = vshll.u32 %v4657, %v4664
    %v4667 = vshrl.u32 %v4649, %v4665
    %v4668 = vor.u32 %v4666, %v4667
    %v4669 = vsub.s32 4294967266, %v4664
    %v4670 = vadd.s32 %v4669, 127
    %v4671 = vshll.u32 %v4670, 23
    %v4672 = vor.u32 4788187, %v4671
    %v4673 = vand.u32 2147483647, %v4672
    %v4675 = vcvt.s32.f32 %v4668
    %v4676 = vmul.f32 %v4675, %v4673
    %v4677 = vxor.u32 %v4676, 2147483648
    %v4678 = vsel %vm4595, %v4677, %v4676
    %v4679 = vsub.s32 4, %v4655
    %v4680 = vsel %vm4595, %v4679, %v4655
    %v4681 = vsel %vm4594, %v3634, %v4678
    %v4682 = vsel %vm4594, 0, %v4680
    %v4683 = vcosq.f32.pop %v4681
    %v4684 = vsinq.f32.pop %v4681
    %vm4685 = vweird.f32 %v3634
    %v4686 = vadd.s32 %v4682, 3
    %v4687 = vand.u32 %v4686, 3
    %vm4688 = vcmp.lt.s32.totalorder %v4687, 2
    %vm4689 = vcmp.eq.s32.totalorder %v4687, 0
    %v4690 = vxor.u32 %v4684, 2147483648
    %v4691 = vsel %vm4689, %v4683, %v4690
    %vm4692 = vcmp.eq.s32.totalorder %v4687, 2
    %v4693 = vxor.u32 %v4683, 2147483648
    %v4694 = vsel %vm4692, %v4693, %v4684
    %v4695 = vsel %vm4688, %v4691, %v4694
    %v4696 = vsel %vm4685, nan, %v4695
    %v4697 = vand.u32 2147483647, %v3635
    %vm4698 = vcmp.le.f32.partialorder %v4697, 0.7853982
    %vm4699 = vcmp.lt.s32.totalorder %v3635, 0
    %v4700 = vand.u32 %v3635, 2139095040
    %v4701 = vshrl.u32 %v4700, 23
    %v4702 = vsub.s32 %v4701, 127
    %v4703 = vand.u32 2147483647, %v3635
    %v4704 = vand.u32 %v4703, 8388607
    %v4705 = vor.u32 %v4704, 8388608
    %v4706 = vsub.s32 0, %v4705
    %v4707 = vadd.s32 %v4702, 1
    %vm4708 = vcmp.gt.s32.totalorder %v4707, 0
    %v4709 = vsel %vm4708, %v4707, 0
    %v4710 = vshrl.u32 %v4709, 5
    %v4711 = vand.u32 %v4709, 31
    %v4712 = vsub.s32 32, %v4711
    %v4713 = vshrl.u32 683565275, %v4712
    %v4714 = vshll.u32 683565275, %v4711
    %v4715 = vshrl.u32 2475754826, %v4712
    %v4716 = vor.u32 %v4714, %v4715
    %v4717 = vshll.u32 2475754826, %v4711
    %v4718 = vshrl.u32 2131351028, %v4712
    %v4719 = vor.u32 %v4717, %v4718
    %v4720 = vshll.u32 2131351028, %v4711
    %v4721 = vshrl.u32 2102212464, %v4712
    %v4722 = vor.u32 %v4720, %v4721
    %v4723 = vshll.u32 2102212464, %v4711
    %v4724 = vshrl.u32 920167782, %v4712
    %v4725 = vor.u32 %v4723, %v4724
    %v4726 = vshll.u32 920167782, %v4711
    %v4727 = vshrl.u32 1326507024, %v4712
    %v4728 = vor.u32 %v4726, %v4727
    %vm4729 = vcmp.lt.s32.totalorder %v4710, 1
    %vm4730 = vcmp.lt.s32.totalorder %v4710, 2
    %vm4731 = vcmp.lt.s32.totalorder %v4710, 3
    %vm4732 = vcmp.lt.s32.totalorder %v4710, 4
    %v4733 = vsel %vm4729, %v4713, %v4716
    %v4734 = vsel %vm4732, %v4722, 2102212464
    %v4735 = vsel %vm4731, %v4719, %v4734
    %v4736 = vsel %vm4730, %v4733, %v4735
    %v4737 = vsel %vm4729, %v4716, %v4719
    %v4738 = vsel %vm4732, %v4725, 920167782
    %v4739 = vsel %vm4731, %v4722, %v4738
    %v4740 = vsel %vm4730, %v4737, %v4739
    %v4741 = vsel %vm4729, %v4719, %v4722
    %v4742 = vsel %vm4732, %v4728, 1326507024
    %v4743 = vsel %vm4731, %v4725, %v4742
    %v4744 = vsel %vm4730, %v4741, %v4743
    %v4745 = vshll.u32 %v4705, 8
    %v4746 = vmul.u32.u64.compose %v4745, %v4744
    %v4747 = vextract.low.u32 %v4746
    %v4748 = vextract.high.u32 %v4746
    %v4749 = vmul.u32.u64.compose %v4745, %v4740
    %v4750 = vextract.low.u32 %v4749
    %v4751 = vextract.high.u32 %v4749
    %v4752 = vmul.u32 %v4745, %v4736
    %v4753 = vadd.s32 %v4748, %v4750
    %vm4754 = vc.u32 %v4748, %v4750
    %v4755 = vadd.s32 %v4751, 1
    %v4756 = vsel %vm4754, %v4755, %v4751
    %v4757 = vadd.s32 %v4752, %v4756
    %v4758 = vadd.s32 %v4757, 536870912
    %v4759 = vshrl.u32 %v4758, 30
    %v4760 = vshll.u32 %v4759, 30
    %v4761 = vsub.s32 %v4757, %v4760
    %vm4762 = vcmp.lt.s32.totalorder %v4761, 0
    %v4763 = vsub.s32 0, %v4761
    %v4764 = vsel %vm4762, %v4763, %v4761
    %v4765 = vclz %v4764
    %v4766 = vsub.s32 %v4765, 2
    %vm4767 = vcmp.gt.s32.totalorder 0, %v4766
    %v4768 = vsel %vm4767, 0, %v4766
    %v4769 = vsub.s32 32, %v4768
    %v4770 = vshll.u32 %v4761, %v4768
    %v4771 = vshrl.u32 %v4753, %v4769
    %v4772 = vor.u32 %v4770, %v4771
    %v4773 = vsub.s32 4294967266, %v4768
    %v4774 = vadd.s32 %v4773, 127
    %v4775 = vshll.u32 %v4774, 23
    %v4776 = vor.u32 4788187, %v4775
    %v4777 = vand.u32 2147483647, %v4776
    %v4779 = vcvt.s32.f32 %v4772
    %v4780 = vmul.f32 %v4779, %v4777
    %v4781 = vxor.u32 %v4780, 2147483648
    %v4782 = vsel %vm4699, %v4781, %v4780
    %v4783 = vsub.s32 4, %v4759
    %v4784 = vsel %vm4699, %v4783, %v4759
    %v4785 = vsel %vm4698, %v3635, %v4782
    %v4786 = vsel %vm4698, 0, %v4784
    %v4787 = vcosq.f32.pop %v4785
    %v4788 = vsinq.f32.pop %v4785
    %vm4789 = vweird.f32 %v3635
    %v4790 = vadd.s32 %v4786, 3
    %v4791 = vand.u32 %v4790, 3
    %vm4792 = vcmp.lt.s32.totalorder %v4791, 2
    %vm4793 = vcmp.eq.s32.totalorder %v4791, 0
    %v4794 = vxor.u32 %v4788, 2147483648
    %v4795 = vsel %vm4793, %v4787, %v4794
    %vm4796 = vcmp.eq.s32.totalorder %v4791, 2
    %v4797 = vxor.u32 %v4787, 2147483648
    %v4798 = vsel %vm4796, %v4797, %v4788
    %v4799 = vsel %vm4792, %v4795, %v4798
    %v4800 = vsel %vm4789, nan, %v4799
    %v4801 = vand.u32 2147483647, %v3636
    %vm4802 = vcmp.le.f32.partialorder %v4801, 0.7853982
    %vm4803 = vcmp.lt.s32.totalorder %v3636, 0
    %v4804 = vand.u32 %v3636, 2139095040
    %v4805 = vshrl.u32 %v4804, 23
    %v4806 = vsub.s32 %v4805, 127
    %v4807 = vand.u32 2147483647, %v3636
    %v4808 = vand.u32 %v4807, 8388607
    %v4809 = vor.u32 %v4808, 8388608
    %v4810 = vsub.s32 0, %v4809
    %v4811 = vadd.s32 %v4806, 1
    %vm4812 = vcmp.gt.s32.totalorder %v4811, 0
    %v4813 = vsel %vm4812, %v4811, 0
    %v4814 = vshrl.u32 %v4813, 5
    %v4815 = vand.u32 %v4813, 31
    %v4816 = vsub.s32 32, %v4815
    %v4817 = vshrl.u32 683565275, %v4816
    %v4818 = vshll.u32 683565275, %v4815
    %v4819 = vshrl.u32 2475754826, %v4816
    %v4820 = vor.u32 %v4818, %v4819
    %v4821 = vshll.u32 2475754826, %v4815
    %v4822 = vshrl.u32 2131351028, %v4816
    %v4823 = vor.u32 %v4821, %v4822
    %v4824 = vshll.u32 2131351028, %v4815
    %v4825 = vshrl.u32 2102212464, %v4816
    %v4826 = vor.u32 %v4824, %v4825
    %v4827 = vshll.u32 2102212464, %v4815
    %v4828 = vshrl.u32 920167782, %v4816
    %v4829 = vor.u32 %v4827, %v4828
    %v4830 = vshll.u32 920167782, %v4815
    %v4831 = vshrl.u32 1326507024, %v4816
    %v4832 = vor.u32 %v4830, %v4831
    %vm4833 = vcmp.lt.s32.totalorder %v4814, 1
    %vm4834 = vcmp.lt.s32.totalorder %v4814, 2
    %vm4835 = vcmp.lt.s32.totalorder %v4814, 3
    %vm4836 = vcmp.lt.s32.totalorder %v4814, 4
    %v4837 = vsel %vm4833, %v4817, %v4820
    %v4838 = vsel %vm4836, %v4826, 2102212464
    %v4839 = vsel %vm4835, %v4823, %v4838
    %v4840 = vsel %vm4834, %v4837, %v4839
    %v4841 = vsel %vm4833, %v4820, %v4823
    %v4842 = vsel %vm4836, %v4829, 920167782
    %v4843 = vsel %vm4835, %v4826, %v4842
    %v4844 = vsel %vm4834, %v4841, %v4843
    %v4845 = vsel %vm4833, %v4823, %v4826
    %v4846 = vsel %vm4836, %v4832, 1326507024
    %v4847 = vsel %vm4835, %v4829, %v4846
    %v4848 = vsel %vm4834, %v4845, %v4847
    %v4849 = vshll.u32 %v4809, 8
    %v4850 = vmul.u32.u64.compose %v4849, %v4848
    %v4851 = vextract.low.u32 %v4850
    %v4852 = vextract.high.u32 %v4850
    %v4853 = vmul.u32.u64.compose %v4849, %v4844
    %v4854 = vextract.low.u32 %v4853
    %v4855 = vextract.high.u32 %v4853
    %v4856 = vmul.u32 %v4849, %v4840
    %v4857 = vadd.s32 %v4852, %v4854
    %vm4858 = vc.u32 %v4852, %v4854
    %v4859 = vadd.s32 %v4855, 1
    %v4860 = vsel %vm4858, %v4859, %v4855
    %v4861 = vadd.s32 %v4856, %v4860
    %v4862 = vadd.s32 %v4861, 536870912
    %v4863 = vshrl.u32 %v4862, 30
    %v4864 = vshll.u32 %v4863, 30
    %v4865 = vsub.s32 %v4861, %v4864
    %vm4866 = vcmp.lt.s32.totalorder %v4865, 0
    %v4867 = vsub.s32 0, %v4865
    %v4868 = vsel %vm4866, %v4867, %v4865
    %v4869 = vclz %v4868
    %v4870 = vsub.s32 %v4869, 2
    %vm4871 = vcmp.gt.s32.totalorder 0, %v4870
    %v4872 = vsel %vm4871, 0, %v4870
    %v4873 = vsub.s32 32, %v4872
    %v4874 = vshll.u32 %v4865, %v4872
    %v4875 = vshrl.u32 %v4857, %v4873
    %v4876 = vor.u32 %v4874, %v4875
    %v4877 = vsub.s32 4294967266, %v4872
    %v4878 = vadd.s32 %v4877, 127
    %v4879 = vshll.u32 %v4878, 23
    %v4880 = vor.u32 4788187, %v4879
    %v4881 = vand.u32 2147483647, %v4880
    %v4883 = vcvt.s32.f32 %v4876
    %v4884 = vmul.f32 %v4883, %v4881
    %v4885 = vxor.u32 %v4884, 2147483648
    %v4886 = vsel %vm4803, %v4885, %v4884
    %v4887 = vsub.s32 4, %v4863
    %v4888 = vsel %vm4803, %v4887, %v4863
    %v4889 = vsel %vm4802, %v3636, %v4886
    %v4890 = vsel %vm4802, 0, %v4888
    %v4891 = vcosq.f32.pop %v4889
    %v4892 = vsinq.f32.pop %v4889
    %vm4893 = vweird.f32 %v3636
    %v4894 = vadd.s32 %v4890, 3
    %v4895 = vand.u32 %v4894, 3
    %vm4896 = vcmp.lt.s32.totalorder %v4895, 2
    %vm4897 = vcmp.eq.s32.totalorder %v4895, 0
    %v4898 = vxor.u32 %v4892, 2147483648
    %v4899 = vsel %vm4897, %v4891, %v4898
    %vm4900 = vcmp.eq.s32.totalorder %v4895, 2
    %v4901 = vxor.u32 %v4891, 2147483648
    %v4902 = vsel %vm4900, %v4901, %v4892
    %v4903 = vsel %vm4896, %v4899, %v4902
    %v4904 = vsel %vm4893, nan, %v4903
    %v4905 = vand.u32 2147483647, %v3637
    %vm4906 = vcmp.le.f32.partialorder %v4905, 0.7853982
    %vm4907 = vcmp.lt.s32.totalorder %v3637, 0
    %v4908 = vand.u32 %v3637, 2139095040
    %v4909 = vshrl.u32 %v4908, 23
    %v4910 = vsub.s32 %v4909, 127
    %v4911 = vand.u32 2147483647, %v3637
    %v4912 = vand.u32 %v4911, 8388607
    %v4913 = vor.u32 %v4912, 8388608
    %v4914 = vsub.s32 0, %v4913
    %v4915 = vadd.s32 %v4910, 1
    %vm4916 = vcmp.gt.s32.totalorder %v4915, 0
    %v4917 = vsel %vm4916, %v4915, 0
    %v4918 = vshrl.u32 %v4917, 5
    %v4919 = vand.u32 %v4917, 31
    %v4920 = vsub.s32 32, %v4919
    %v4921 = vshrl.u32 683565275, %v4920
    %v4922 = vshll.u32 683565275, %v4919
    %v4923 = vshrl.u32 2475754826, %v4920
    %v4924 = vor.u32 %v4922, %v4923
    %v4925 = vshll.u32 2475754826, %v4919
    %v4926 = vshrl.u32 2131351028, %v4920
    %v4927 = vor.u32 %v4925, %v4926
    %v4928 = vshll.u32 2131351028, %v4919
    %v4929 = vshrl.u32 2102212464, %v4920
    %v4930 = vor.u32 %v4928, %v4929
    %v4931 = vshll.u32 2102212464, %v4919
    %v4932 = vshrl.u32 920167782, %v4920
    %v4933 = vor.u32 %v4931, %v4932
    %v4934 = vshll.u32 920167782, %v4919
    %v4935 = vshrl.u32 1326507024, %v4920
    %v4936 = vor.u32 %v4934, %v4935
    %vm4937 = vcmp.lt.s32.totalorder %v4918, 1
    %vm4938 = vcmp.lt.s32.totalorder %v4918, 2
    %vm4939 = vcmp.lt.s32.totalorder %v4918, 3
    %vm4940 = vcmp.lt.s32.totalorder %v4918, 4
    %v4941 = vsel %vm4937, %v4921, %v4924
    %v4942 = vsel %vm4940, %v4930, 2102212464
    %v4943 = vsel %vm4939, %v4927, %v4942
    %v4944 = vsel %vm4938, %v4941, %v4943
    %v4945 = vsel %vm4937, %v4924, %v4927
    %v4946 = vsel %vm4940, %v4933, 920167782
    %v4947 = vsel %vm4939, %v4930, %v4946
    %v4948 = vsel %vm4938, %v4945, %v4947
    %v4949 = vsel %vm4937, %v4927, %v4930
    %v4950 = vsel %vm4940, %v4936, 1326507024
    %v4951 = vsel %vm4939, %v4933, %v4950
    %v4952 = vsel %vm4938, %v4949, %v4951
    %v4953 = vshll.u32 %v4913, 8
    %v4954 = vmul.u32.u64.compose %v4953, %v4952
    %v4955 = vextract.low.u32 %v4954
    %v4956 = vextract.high.u32 %v4954
    %v4957 = vmul.u32.u64.compose %v4953, %v4948
    %v4958 = vextract.low.u32 %v4957
    %v4959 = vextract.high.u32 %v4957
    %v4960 = vmul.u32 %v4953, %v4944
    %v4961 = vadd.s32 %v4956, %v4958
    %vm4962 = vc.u32 %v4956, %v4958
    %v4963 = vadd.s32 %v4959, 1
    %v4964 = vsel %vm4962, %v4963, %v4959
    %v4965 = vadd.s32 %v4960, %v4964
    %v4966 = vadd.s32 %v4965, 536870912
    %v4967 = vshrl.u32 %v4966, 30
    %v4968 = vshll.u32 %v4967, 30
    %v4969 = vsub.s32 %v4965, %v4968
    %vm4970 = vcmp.lt.s32.totalorder %v4969, 0
    %v4971 = vsub.s32 0, %v4969
    %v4972 = vsel %vm4970, %v4971, %v4969
    %v4973 = vclz %v4972
    %v4974 = vsub.s32 %v4973, 2
    %vm4975 = vcmp.gt.s32.totalorder 0, %v4974
    %v4976 = vsel %vm4975, 0, %v4974
    %v4977 = vsub.s32 32, %v4976
    %v4978 = vshll.u32 %v4969, %v4976
    %v4979 = vshrl.u32 %v4961, %v4977
    %v4980 = vor.u32 %v4978, %v4979
    %v4981 = vsub.s32 4294967266, %v4976
    %v4982 = vadd.s32 %v4981, 127
    %v4983 = vshll.u32 %v4982, 23
    %v4984 = vor.u32 4788187, %v4983
    %v4985 = vand.u32 2147483647, %v4984
    %v4987 = vcvt.s32.f32 %v4980
    %v4988 = vmul.f32 %v4987, %v4985
    %v4989 = vxor.u32 %v4988, 2147483648
    %v4990 = vsel %vm4907, %v4989, %v4988
    %v4991 = vsub.s32 4, %v4967
    %v4992 = vsel %vm4907, %v4991, %v4967
    %v4993 = vsel %vm4906, %v3637, %v4990
    %v4994 = vsel %vm4906, 0, %v4992
    %v4995 = vcosq.f32.pop %v4993
    %v4996 = vsinq.f32.pop %v4993
    %vm4997 = vweird.f32 %v3637
    %v4998 = vadd.s32 %v4994, 3
    %v4999 = vand.u32 %v4998, 3
    %vm5000 = vcmp.lt.s32.totalorder %v4999, 2
    %vm5001 = vcmp.eq.s32.totalorder %v4999, 0
    %v5002 = vxor.u32 %v4996, 2147483648
    %v5003 = vsel %vm5001, %v4995, %v5002
    %vm5004 = vcmp.eq.s32.totalorder %v4999, 2
    %v5005 = vxor.u32 %v4995, 2147483648
    %v5006 = vsel %vm5004, %v5005, %v4996
    %v5007 = vsel %vm5000, %v5003, %v5006
    %v5008 = vsel %vm4997, nan, %v5007
    %v5009 = vand.u32 2147483647, %v3638
    %vm5010 = vcmp.le.f32.partialorder %v5009, 0.7853982
    %vm5011 = vcmp.lt.s32.totalorder %v3638, 0
    %v5012 = vand.u32 %v3638, 2139095040
    %v5013 = vshrl.u32 %v5012, 23
    %v5014 = vsub.s32 %v5013, 127
    %v5015 = vand.u32 2147483647, %v3638
    %v5016 = vand.u32 %v5015, 8388607
    %v5017 = vor.u32 %v5016, 8388608
    %v5018 = vsub.s32 0, %v5017
    %v5019 = vadd.s32 %v5014, 1
    %vm5020 = vcmp.gt.s32.totalorder %v5019, 0
    %v5021 = vsel %vm5020, %v5019, 0
    %v5022 = vshrl.u32 %v5021, 5
    %v5023 = vand.u32 %v5021, 31
    %v5024 = vsub.s32 32, %v5023
    %v5025 = vshrl.u32 683565275, %v5024
    %v5026 = vshll.u32 683565275, %v5023
    %v5027 = vshrl.u32 2475754826, %v5024
    %v5028 = vor.u32 %v5026, %v5027
    %v5029 = vshll.u32 2475754826, %v5023
    %v5030 = vshrl.u32 2131351028, %v5024
    %v5031 = vor.u32 %v5029, %v5030
    %v5032 = vshll.u32 2131351028, %v5023
    %v5033 = vshrl.u32 2102212464, %v5024
    %v5034 = vor.u32 %v5032, %v5033
    %v5035 = vshll.u32 2102212464, %v5023
    %v5036 = vshrl.u32 920167782, %v5024
    %v5037 = vor.u32 %v5035, %v5036
    %v5038 = vshll.u32 920167782, %v5023
    %v5039 = vshrl.u32 1326507024, %v5024
    %v5040 = vor.u32 %v5038, %v5039
    %vm5041 = vcmp.lt.s32.totalorder %v5022, 1
    %vm5042 = vcmp.lt.s32.totalorder %v5022, 2
    %vm5043 = vcmp.lt.s32.totalorder %v5022, 3
    %vm5044 = vcmp.lt.s32.totalorder %v5022, 4
    %v5045 = vsel %vm5041, %v5025, %v5028
    %v5046 = vsel %vm5044, %v5034, 2102212464
    %v5047 = vsel %vm5043, %v5031, %v5046
    %v5048 = vsel %vm5042, %v5045, %v5047
    %v5049 = vsel %vm5041, %v5028, %v5031
    %v5050 = vsel %vm5044, %v5037, 920167782
    %v5051 = vsel %vm5043, %v5034, %v5050
    %v5052 = vsel %vm5042, %v5049, %v5051
    %v5053 = vsel %vm5041, %v5031, %v5034
    %v5054 = vsel %vm5044, %v5040, 1326507024
    %v5055 = vsel %vm5043, %v5037, %v5054
    %v5056 = vsel %vm5042, %v5053, %v5055
    %v5057 = vshll.u32 %v5017, 8
    %v5058 = vmul.u32.u64.compose %v5057, %v5056
    %v5059 = vextract.low.u32 %v5058
    %v5060 = vextract.high.u32 %v5058
    %v5061 = vmul.u32.u64.compose %v5057, %v5052
    %v5062 = vextract.low.u32 %v5061
    %v5063 = vextract.high.u32 %v5061
    %v5064 = vmul.u32 %v5057, %v5048
    %v5065 = vadd.s32 %v5060, %v5062
    %vm5066 = vc.u32 %v5060, %v5062
    %v5067 = vadd.s32 %v5063, 1
    %v5068 = vsel %vm5066, %v5067, %v5063
    %v5069 = vadd.s32 %v5064, %v5068
    %v5070 = vadd.s32 %v5069, 536870912
    %v5071 = vshrl.u32 %v5070, 30
    %v5072 = vshll.u32 %v5071, 30
    %v5073 = vsub.s32 %v5069, %v5072
    %vm5074 = vcmp.lt.s32.totalorder %v5073, 0
    %v5075 = vsub.s32 0, %v5073
    %v5076 = vsel %vm5074, %v5075, %v5073
    %v5077 = vclz %v5076
    %v5078 = vsub.s32 %v5077, 2
    %vm5079 = vcmp.gt.s32.totalorder 0, %v5078
    %v5080 = vsel %vm5079, 0, %v5078
    %v5081 = vsub.s32 32, %v5080
    %v5082 = vshll.u32 %v5073, %v5080
    %v5083 = vshrl.u32 %v5065, %v5081
    %v5084 = vor.u32 %v5082, %v5083
    %v5085 = vsub.s32 4294967266, %v5080
    %v5086 = vadd.s32 %v5085, 127
    %v5087 = vshll.u32 %v5086, 23
    %v5088 = vor.u32 4788187, %v5087
    %v5089 = vand.u32 2147483647, %v5088
    %v5091 = vcvt.s32.f32 %v5084
    %v5092 = vmul.f32 %v5091, %v5089
    %v5093 = vxor.u32 %v5092, 2147483648
    %v5094 = vsel %vm5011, %v5093, %v5092
    %v5095 = vsub.s32 4, %v5071
    %v5096 = vsel %vm5011, %v5095, %v5071
    %v5097 = vsel %vm5010, %v3638, %v5094
    %v5098 = vsel %vm5010, 0, %v5096
    %v5099 = vcosq.f32.pop %v5097
    %v5100 = vsinq.f32.pop %v5097
    %vm5101 = vweird.f32 %v3638
    %v5102 = vadd.s32 %v5098, 3
    %v5103 = vand.u32 %v5102, 3
    %vm5104 = vcmp.lt.s32.totalorder %v5103, 2
    %vm5105 = vcmp.eq.s32.totalorder %v5103, 0
    %v5106 = vxor.u32 %v5100, 2147483648
    %v5107 = vsel %vm5105, %v5099, %v5106
    %vm5108 = vcmp.eq.s32.totalorder %v5103, 2
    %v5109 = vxor.u32 %v5099, 2147483648
    %v5110 = vsel %vm5108, %v5109, %v5100
    %v5111 = vsel %vm5104, %v5107, %v5110
    %v5112 = vsel %vm5101, nan, %v5111
    %v5113 = vand.u32 2147483647, %v3639
    %vm5114 = vcmp.le.f32.partialorder %v5113, 0.7853982
    %vm5115 = vcmp.lt.s32.totalorder %v3639, 0
    %v5116 = vand.u32 %v3639, 2139095040
    %v5117 = vshrl.u32 %v5116, 23
    %v5118 = vsub.s32 %v5117, 127
    %v5119 = vand.u32 2147483647, %v3639
    %v5120 = vand.u32 %v5119, 8388607
    %v5121 = vor.u32 %v5120, 8388608
    %v5122 = vsub.s32 0, %v5121
    %v5123 = vadd.s32 %v5118, 1
    %vm5124 = vcmp.gt.s32.totalorder %v5123, 0
    %v5125 = vsel %vm5124, %v5123, 0
    %v5126 = vshrl.u32 %v5125, 5
    %v5127 = vand.u32 %v5125, 31
    %v5128 = vsub.s32 32, %v5127
    %v5129 = vshrl.u32 683565275, %v5128
    %v5130 = vshll.u32 683565275, %v5127
    %v5131 = vshrl.u32 2475754826, %v5128
    %v5132 = vor.u32 %v5130, %v5131
    %v5133 = vshll.u32 2475754826, %v5127
    %v5134 = vshrl.u32 2131351028, %v5128
    %v5135 = vor.u32 %v5133, %v5134
    %v5136 = vshll.u32 2131351028, %v5127
    %v5137 = vshrl.u32 2102212464, %v5128
    %v5138 = vor.u32 %v5136, %v5137
    %v5139 = vshll.u32 2102212464, %v5127
    %v5140 = vshrl.u32 920167782, %v5128
    %v5141 = vor.u32 %v5139, %v5140
    %v5142 = vshll.u32 920167782, %v5127
    %v5143 = vshrl.u32 1326507024, %v5128
    %v5144 = vor.u32 %v5142, %v5143
    %vm5145 = vcmp.lt.s32.totalorder %v5126, 1
    %vm5146 = vcmp.lt.s32.totalorder %v5126, 2
    %vm5147 = vcmp.lt.s32.totalorder %v5126, 3
    %vm5148 = vcmp.lt.s32.totalorder %v5126, 4
    %v5149 = vsel %vm5145, %v5129, %v5132
    %v5150 = vsel %vm5148, %v5138, 2102212464
    %v5151 = vsel %vm5147, %v5135, %v5150
    %v5152 = vsel %vm5146, %v5149, %v5151
    %v5153 = vsel %vm5145, %v5132, %v5135
    %v5154 = vsel %vm5148, %v5141, 920167782
    %v5155 = vsel %vm5147, %v5138, %v5154
    %v5156 = vsel %vm5146, %v5153, %v5155
    %v5157 = vsel %vm5145, %v5135, %v5138
    %v5158 = vsel %vm5148, %v5144, 1326507024
    %v5159 = vsel %vm5147, %v5141, %v5158
    %v5160 = vsel %vm5146, %v5157, %v5159
    %v5161 = vshll.u32 %v5121, 8
    %v5162 = vmul.u32.u64.compose %v5161, %v5160
    %v5163 = vextract.low.u32 %v5162
    %v5164 = vextract.high.u32 %v5162
    %v5165 = vmul.u32.u64.compose %v5161, %v5156
    %v5166 = vextract.low.u32 %v5165
    %v5167 = vextract.high.u32 %v5165
    %v5168 = vmul.u32 %v5161, %v5152
    %v5169 = vadd.s32 %v5164, %v5166
    %vm5170 = vc.u32 %v5164, %v5166
    %v5171 = vadd.s32 %v5167, 1
    %v5172 = vsel %vm5170, %v5171, %v5167
    %v5173 = vadd.s32 %v5168, %v5172
    %v5174 = vadd.s32 %v5173, 536870912
    %v5175 = vshrl.u32 %v5174, 30
    %v5176 = vshll.u32 %v5175, 30
    %v5177 = vsub.s32 %v5173, %v5176
    %vm5178 = vcmp.lt.s32.totalorder %v5177, 0
    %v5179 = vsub.s32 0, %v5177
    %v5180 = vsel %vm5178, %v5179, %v5177
    %v5181 = vclz %v5180
    %v5182 = vsub.s32 %v5181, 2
    %vm5183 = vcmp.gt.s32.totalorder 0, %v5182
    %v5184 = vsel %vm5183, 0, %v5182
    %v5185 = vsub.s32 32, %v5184
    %v5186 = vshll.u32 %v5177, %v5184
    %v5187 = vshrl.u32 %v5169, %v5185
    %v5188 = vor.u32 %v5186, %v5187
    %v5189 = vsub.s32 4294967266, %v5184
    %v5190 = vadd.s32 %v5189, 127
    %v5191 = vshll.u32 %v5190, 23
    %v5192 = vor.u32 4788187, %v5191
    %v5193 = vand.u32 2147483647, %v5192
    %v5195 = vcvt.s32.f32 %v5188
    %v5196 = vmul.f32 %v5195, %v5193
    %v5197 = vxor.u32 %v5196, 2147483648
    %v5198 = vsel %vm5115, %v5197, %v5196
    %v5199 = vsub.s32 4, %v5175
    %v5200 = vsel %vm5115, %v5199, %v5175
    %v5201 = vsel %vm5114, %v3639, %v5198
    %v5202 = vsel %vm5114, 0, %v5200
    %v5203 = vcosq.f32.pop %v5201
    %v5204 = vsinq.f32.pop %v5201
    %vm5205 = vweird.f32 %v3639
    %v5206 = vadd.s32 %v5202, 3
    %v5207 = vand.u32 %v5206, 3
    %vm5208 = vcmp.lt.s32.totalorder %v5207, 2
    %vm5209 = vcmp.eq.s32.totalorder %v5207, 0
    %v5210 = vxor.u32 %v5204, 2147483648
    %v5211 = vsel %vm5209, %v5203, %v5210
    %vm5212 = vcmp.eq.s32.totalorder %v5207, 2
    %v5213 = vxor.u32 %v5203, 2147483648
    %v5214 = vsel %vm5212, %v5213, %v5204
    %v5215 = vsel %vm5208, %v5211, %v5214
    %v5216 = vsel %vm5205, nan, %v5215
    %v5217 = vand.u32 2147483647, %v3640
    %vm5218 = vcmp.le.f32.partialorder %v5217, 0.7853982
    %vm5219 = vcmp.lt.s32.totalorder %v3640, 0
    %v5220 = vand.u32 %v3640, 2139095040
    %v5221 = vshrl.u32 %v5220, 23
    %v5222 = vsub.s32 %v5221, 127
    %v5223 = vand.u32 2147483647, %v3640
    %v5224 = vand.u32 %v5223, 8388607
    %v5225 = vor.u32 %v5224, 8388608
    %v5226 = vsub.s32 0, %v5225
    %v5227 = vadd.s32 %v5222, 1
    %vm5228 = vcmp.gt.s32.totalorder %v5227, 0
    %v5229 = vsel %vm5228, %v5227, 0
    %v5230 = vshrl.u32 %v5229, 5
    %v5231 = vand.u32 %v5229, 31
    %v5232 = vsub.s32 32, %v5231
    %v5233 = vshrl.u32 683565275, %v5232
    %v5234 = vshll.u32 683565275, %v5231
    %v5235 = vshrl.u32 2475754826, %v5232
    %v5236 = vor.u32 %v5234, %v5235
    %v5237 = vshll.u32 2475754826, %v5231
    %v5238 = vshrl.u32 2131351028, %v5232
    %v5239 = vor.u32 %v5237, %v5238
    %v5240 = vshll.u32 2131351028, %v5231
    %v5241 = vshrl.u32 2102212464, %v5232
    %v5242 = vor.u32 %v5240, %v5241
    %v5243 = vshll.u32 2102212464, %v5231
    %v5244 = vshrl.u32 920167782, %v5232
    %v5245 = vor.u32 %v5243, %v5244
    %v5246 = vshll.u32 920167782, %v5231
    %v5247 = vshrl.u32 1326507024, %v5232
    %v5248 = vor.u32 %v5246, %v5247
    %vm5249 = vcmp.lt.s32.totalorder %v5230, 1
    %vm5250 = vcmp.lt.s32.totalorder %v5230, 2
    %vm5251 = vcmp.lt.s32.totalorder %v5230, 3
    %vm5252 = vcmp.lt.s32.totalorder %v5230, 4
    %v5253 = vsel %vm5249, %v5233, %v5236
    %v5254 = vsel %vm5252, %v5242, 2102212464
    %v5255 = vsel %vm5251, %v5239, %v5254
    %v5256 = vsel %vm5250, %v5253, %v5255
    %v5257 = vsel %vm5249, %v5236, %v5239
    %v5258 = vsel %vm5252, %v5245, 920167782
    %v5259 = vsel %vm5251, %v5242, %v5258
    %v5260 = vsel %vm5250, %v5257, %v5259
    %v5261 = vsel %vm5249, %v5239, %v5242
    %v5262 = vsel %vm5252, %v5248, 1326507024
    %v5263 = vsel %vm5251, %v5245, %v5262
    %v5264 = vsel %vm5250, %v5261, %v5263
    %v5265 = vshll.u32 %v5225, 8
    %v5266 = vmul.u32.u64.compose %v5265, %v5264
    %v5267 = vextract.low.u32 %v5266
    %v5268 = vextract.high.u32 %v5266
    %v5269 = vmul.u32.u64.compose %v5265, %v5260
    %v5270 = vextract.low.u32 %v5269
    %v5271 = vextract.high.u32 %v5269
    %v5272 = vmul.u32 %v5265, %v5256
    %v5273 = vadd.s32 %v5268, %v5270
    %vm5274 = vc.u32 %v5268, %v5270
    %v5275 = vadd.s32 %v5271, 1
    %v5276 = vsel %vm5274, %v5275, %v5271
    %v5277 = vadd.s32 %v5272, %v5276
    %v5278 = vadd.s32 %v5277, 536870912
    %v5279 = vshrl.u32 %v5278, 30
    %v5280 = vshll.u32 %v5279, 30
    %v5281 = vsub.s32 %v5277, %v5280
    %vm5282 = vcmp.lt.s32.totalorder %v5281, 0
    %v5283 = vsub.s32 0, %v5281
    %v5284 = vsel %vm5282, %v5283, %v5281
    %v5285 = vclz %v5284
    %v5286 = vsub.s32 %v5285, 2
    %vm5287 = vcmp.gt.s32.totalorder 0, %v5286
    %v5288 = vsel %vm5287, 0, %v5286
    %v5289 = vsub.s32 32, %v5288
    %v5290 = vshll.u32 %v5281, %v5288
    %v5291 = vshrl.u32 %v5273, %v5289
    %v5292 = vor.u32 %v5290, %v5291
    %v5293 = vsub.s32 4294967266, %v5288
    %v5294 = vadd.s32 %v5293, 127
    %v5295 = vshll.u32 %v5294, 23
    %v5296 = vor.u32 4788187, %v5295
    %v5297 = vand.u32 2147483647, %v5296
    %v5299 = vcvt.s32.f32 %v5292
    %v5300 = vmul.f32 %v5299, %v5297
    %v5301 = vxor.u32 %v5300, 2147483648
    %v5302 = vsel %vm5219, %v5301, %v5300
    %v5303 = vsub.s32 4, %v5279
    %v5304 = vsel %vm5219, %v5303, %v5279
    %v5305 = vsel %vm5218, %v3640, %v5302
    %v5306 = vsel %vm5218, 0, %v5304
    %v5307 = vcosq.f32.pop %v5305
    %v5308 = vsinq.f32.pop %v5305
    %vm5309 = vweird.f32 %v3640
    %v5310 = vadd.s32 %v5306, 3
    %v5311 = vand.u32 %v5310, 3
    %vm5312 = vcmp.lt.s32.totalorder %v5311, 2
    %vm5313 = vcmp.eq.s32.totalorder %v5311, 0
    %v5314 = vxor.u32 %v5308, 2147483648
    %v5315 = vsel %vm5313, %v5307, %v5314
    %vm5316 = vcmp.eq.s32.totalorder %v5311, 2
    %v5317 = vxor.u32 %v5307, 2147483648
    %v5318 = vsel %vm5316, %v5317, %v5308
    %v5319 = vsel %vm5312, %v5315, %v5318
    %v5320 = vsel %vm5309, nan, %v5319
    %v5321 = vand.u32 2147483647, %v3641
    %vm5322 = vcmp.le.f32.partialorder %v5321, 0.7853982
    %vm5323 = vcmp.lt.s32.totalorder %v3641, 0
    %v5324 = vand.u32 %v3641, 2139095040
    %v5325 = vshrl.u32 %v5324, 23
    %v5326 = vsub.s32 %v5325, 127
    %v5327 = vand.u32 2147483647, %v3641
    %v5328 = vand.u32 %v5327, 8388607
    %v5329 = vor.u32 %v5328, 8388608
    %v5330 = vsub.s32 0, %v5329
    %v5331 = vadd.s32 %v5326, 1
    %vm5332 = vcmp.gt.s32.totalorder %v5331, 0
    %v5333 = vsel %vm5332, %v5331, 0
    %v5334 = vshrl.u32 %v5333, 5
    %v5335 = vand.u32 %v5333, 31
    %v5336 = vsub.s32 32, %v5335
    %v5337 = vshrl.u32 683565275, %v5336
    %v5338 = vshll.u32 683565275, %v5335
    %v5339 = vshrl.u32 2475754826, %v5336
    %v5340 = vor.u32 %v5338, %v5339
    %v5341 = vshll.u32 2475754826, %v5335
    %v5342 = vshrl.u32 2131351028, %v5336
    %v5343 = vor.u32 %v5341, %v5342
    %v5344 = vshll.u32 2131351028, %v5335
    %v5345 = vshrl.u32 2102212464, %v5336
    %v5346 = vor.u32 %v5344, %v5345
    %v5347 = vshll.u32 2102212464, %v5335
    %v5348 = vshrl.u32 920167782, %v5336
    %v5349 = vor.u32 %v5347, %v5348
    %v5350 = vshll.u32 920167782, %v5335
    %v5351 = vshrl.u32 1326507024, %v5336
    %v5352 = vor.u32 %v5350, %v5351
    %vm5353 = vcmp.lt.s32.totalorder %v5334, 1
    %vm5354 = vcmp.lt.s32.totalorder %v5334, 2
    %vm5355 = vcmp.lt.s32.totalorder %v5334, 3
    %vm5356 = vcmp.lt.s32.totalorder %v5334, 4
    %v5357 = vsel %vm5353, %v5337, %v5340
    %v5358 = vsel %vm5356, %v5346, 2102212464
    %v5359 = vsel %vm5355, %v5343, %v5358
    %v5360 = vsel %vm5354, %v5357, %v5359
    %v5361 = vsel %vm5353, %v5340, %v5343
    %v5362 = vsel %vm5356, %v5349, 920167782
    %v5363 = vsel %vm5355, %v5346, %v5362
    %v5364 = vsel %vm5354, %v5361, %v5363
    %v5365 = vsel %vm5353, %v5343, %v5346
    %v5366 = vsel %vm5356, %v5352, 1326507024
    %v5367 = vsel %vm5355, %v5349, %v5366
    %v5368 = vsel %vm5354, %v5365, %v5367
    %v5369 = vshll.u32 %v5329, 8
    %v5370 = vmul.u32.u64.compose %v5369, %v5368
    %v5371 = vextract.low.u32 %v5370
    %v5372 = vextract.high.u32 %v5370
    %v5373 = vmul.u32.u64.compose %v5369, %v5364
    %v5374 = vextract.low.u32 %v5373
    %v5375 = vextract.high.u32 %v5373
    %v5376 = vmul.u32 %v5369, %v5360
    %v5377 = vadd.s32 %v5372, %v5374
    %vm5378 = vc.u32 %v5372, %v5374
    %v5379 = vadd.s32 %v5375, 1
    %v5380 = vsel %vm5378, %v5379, %v5375
    %v5381 = vadd.s32 %v5376, %v5380
    %v5382 = vadd.s32 %v5381, 536870912
    %v5383 = vshrl.u32 %v5382, 30
    %v5384 = vshll.u32 %v5383, 30
    %v5385 = vsub.s32 %v5381, %v5384
    %vm5386 = vcmp.lt.s32.totalorder %v5385, 0
    %v5387 = vsub.s32 0, %v5385
    %v5388 = vsel %vm5386, %v5387, %v5385
    %v5389 = vclz %v5388
    %v5390 = vsub.s32 %v5389, 2
    %vm5391 = vcmp.gt.s32.totalorder 0, %v5390
    %v5392 = vsel %vm5391, 0, %v5390
    %v5393 = vsub.s32 32, %v5392
    %v5394 = vshll.u32 %v5385, %v5392
    %v5395 = vshrl.u32 %v5377, %v5393
    %v5396 = vor.u32 %v5394, %v5395
    %v5397 = vsub.s32 4294967266, %v5392
    %v5398 = vadd.s32 %v5397, 127
    %v5399 = vshll.u32 %v5398, 23
    %v5400 = vor.u32 4788187, %v5399
    %v5401 = vand.u32 2147483647, %v5400
    %v5403 = vcvt.s32.f32 %v5396
    %v5404 = vmul.f32 %v5403, %v5401
    %v5405 = vxor.u32 %v5404, 2147483648
    %v5406 = vsel %vm5323, %v5405, %v5404
    %v5407 = vsub.s32 4, %v5383
    %v5408 = vsel %vm5323, %v5407, %v5383
    %v5409 = vsel %vm5322, %v3641, %v5406
    %v5410 = vsel %vm5322, 0, %v5408
    %v5411 = vcosq.f32.pop %v5409
    %v5412 = vsinq.f32.pop %v5409
    %vm5413 = vweird.f32 %v3641
    %v5414 = vadd.s32 %v5410, 3
    %v5415 = vand.u32 %v5414, 3
    %vm5416 = vcmp.lt.s32.totalorder %v5415, 2
    %vm5417 = vcmp.eq.s32.totalorder %v5415, 0
    %v5418 = vxor.u32 %v5412, 2147483648
    %v5419 = vsel %vm5417, %v5411, %v5418
    %vm5420 = vcmp.eq.s32.totalorder %v5415, 2
    %v5421 = vxor.u32 %v5411, 2147483648
    %v5422 = vsel %vm5420, %v5421, %v5412
    %v5423 = vsel %vm5416, %v5419, %v5422
    %v5424 = vsel %vm5413, nan, %v5423
    %v5425 = vand.u32 2147483647, %v3642
    %vm5426 = vcmp.le.f32.partialorder %v5425, 0.7853982
    %vm5427 = vcmp.lt.s32.totalorder %v3642, 0
    %v5428 = vand.u32 %v3642, 2139095040
    %v5429 = vshrl.u32 %v5428, 23
    %v5430 = vsub.s32 %v5429, 127
    %v5431 = vand.u32 2147483647, %v3642
    %v5432 = vand.u32 %v5431, 8388607
    %v5433 = vor.u32 %v5432, 8388608
    %v5434 = vsub.s32 0, %v5433
    %v5435 = vadd.s32 %v5430, 1
    %vm5436 = vcmp.gt.s32.totalorder %v5435, 0
    %v5437 = vsel %vm5436, %v5435, 0
    %v5438 = vshrl.u32 %v5437, 5
    %v5439 = vand.u32 %v5437, 31
    %v5440 = vsub.s32 32, %v5439
    %v5441 = vshrl.u32 683565275, %v5440
    %v5442 = vshll.u32 683565275, %v5439
    %v5443 = vshrl.u32 2475754826, %v5440
    %v5444 = vor.u32 %v5442, %v5443
    %v5445 = vshll.u32 2475754826, %v5439
    %v5446 = vshrl.u32 2131351028, %v5440
    %v5447 = vor.u32 %v5445, %v5446
    %v5448 = vshll.u32 2131351028, %v5439
    %v5449 = vshrl.u32 2102212464, %v5440
    %v5450 = vor.u32 %v5448, %v5449
    %v5451 = vshll.u32 2102212464, %v5439
    %v5452 = vshrl.u32 920167782, %v5440
    %v5453 = vor.u32 %v5451, %v5452
    %v5454 = vshll.u32 920167782, %v5439
    %v5455 = vshrl.u32 1326507024, %v5440
    %v5456 = vor.u32 %v5454, %v5455
    %vm5457 = vcmp.lt.s32.totalorder %v5438, 1
    %vm5458 = vcmp.lt.s32.totalorder %v5438, 2
    %vm5459 = vcmp.lt.s32.totalorder %v5438, 3
    %vm5460 = vcmp.lt.s32.totalorder %v5438, 4
    %v5461 = vsel %vm5457, %v5441, %v5444
    %v5462 = vsel %vm5460, %v5450, 2102212464
    %v5463 = vsel %vm5459, %v5447, %v5462
    %v5464 = vsel %vm5458, %v5461, %v5463
    %v5465 = vsel %vm5457, %v5444, %v5447
    %v5466 = vsel %vm5460, %v5453, 920167782
    %v5467 = vsel %vm5459, %v5450, %v5466
    %v5468 = vsel %vm5458, %v5465, %v5467
    %v5469 = vsel %vm5457, %v5447, %v5450
    %v5470 = vsel %vm5460, %v5456, 1326507024
    %v5471 = vsel %vm5459, %v5453, %v5470
    %v5472 = vsel %vm5458, %v5469, %v5471
    %v5473 = vshll.u32 %v5433, 8
    %v5474 = vmul.u32.u64.compose %v5473, %v5472
    %v5475 = vextract.low.u32 %v5474
    %v5476 = vextract.high.u32 %v5474
    %v5477 = vmul.u32.u64.compose %v5473, %v5468
    %v5478 = vextract.low.u32 %v5477
    %v5479 = vextract.high.u32 %v5477
    %v5480 = vmul.u32 %v5473, %v5464
    %v5481 = vadd.s32 %v5476, %v5478
    %vm5482 = vc.u32 %v5476, %v5478
    %v5483 = vadd.s32 %v5479, 1
    %v5484 = vsel %vm5482, %v5483, %v5479
    %v5485 = vadd.s32 %v5480, %v5484
    %v5486 = vadd.s32 %v5485, 536870912
    %v5487 = vshrl.u32 %v5486, 30
    %v5488 = vshll.u32 %v5487, 30
    %v5489 = vsub.s32 %v5485, %v5488
    %vm5490 = vcmp.lt.s32.totalorder %v5489, 0
    %v5491 = vsub.s32 0, %v5489
    %v5492 = vsel %vm5490, %v5491, %v5489
    %v5493 = vclz %v5492
    %v5494 = vsub.s32 %v5493, 2
    %vm5495 = vcmp.gt.s32.totalorder 0, %v5494
    %v5496 = vsel %vm5495, 0, %v5494
    %v5497 = vsub.s32 32, %v5496
    %v5498 = vshll.u32 %v5489, %v5496
    %v5499 = vshrl.u32 %v5481, %v5497
    %v5500 = vor.u32 %v5498, %v5499
    %v5501 = vsub.s32 4294967266, %v5496
    %v5502 = vadd.s32 %v5501, 127
    %v5503 = vshll.u32 %v5502, 23
    %v5504 = vor.u32 4788187, %v5503
    %v5505 = vand.u32 2147483647, %v5504
    %v5507 = vcvt.s32.f32 %v5500
    %v5508 = vmul.f32 %v5507, %v5505
    %v5509 = vxor.u32 %v5508, 2147483648
    %v5510 = vsel %vm5427, %v5509, %v5508
    %v5511 = vsub.s32 4, %v5487
    %v5512 = vsel %vm5427, %v5511, %v5487
    %v5513 = vsel %vm5426, %v3642, %v5510
    %v5514 = vsel %vm5426, 0, %v5512
    %v5515 = vcosq.f32.pop %v5513
    %v5516 = vsinq.f32.pop %v5513
    %vm5517 = vweird.f32 %v3642
    %v5518 = vadd.s32 %v5514, 3
    %v5519 = vand.u32 %v5518, 3
    %vm5520 = vcmp.lt.s32.totalorder %v5519, 2
    %vm5521 = vcmp.eq.s32.totalorder %v5519, 0
    %v5522 = vxor.u32 %v5516, 2147483648
    %v5523 = vsel %vm5521, %v5515, %v5522
    %vm5524 = vcmp.eq.s32.totalorder %v5519, 2
    %v5525 = vxor.u32 %v5515, 2147483648
    %v5526 = vsel %vm5524, %v5525, %v5516
    %v5527 = vsel %vm5520, %v5523, %v5526
    %v5528 = vsel %vm5517, nan, %v5527
    %v5529 = vand.u32 2147483647, %v3643
    %vm5530 = vcmp.le.f32.partialorder %v5529, 0.7853982
    %vm5531 = vcmp.lt.s32.totalorder %v3643, 0
    %v5532 = vand.u32 %v3643, 2139095040
    %v5533 = vshrl.u32 %v5532, 23
    %v5534 = vsub.s32 %v5533, 127
    %v5535 = vand.u32 2147483647, %v3643
    %v5536 = vand.u32 %v5535, 8388607
    %v5537 = vor.u32 %v5536, 8388608
    %v5538 = vsub.s32 0, %v5537
    %v5539 = vadd.s32 %v5534, 1
    %vm5540 = vcmp.gt.s32.totalorder %v5539, 0
    %v5541 = vsel %vm5540, %v5539, 0
    %v5542 = vshrl.u32 %v5541, 5
    %v5543 = vand.u32 %v5541, 31
    %v5544 = vsub.s32 32, %v5543
    %v5545 = vshrl.u32 683565275, %v5544
    %v5546 = vshll.u32 683565275, %v5543
    %v5547 = vshrl.u32 2475754826, %v5544
    %v5548 = vor.u32 %v5546, %v5547
    %v5549 = vshll.u32 2475754826, %v5543
    %v5550 = vshrl.u32 2131351028, %v5544
    %v5551 = vor.u32 %v5549, %v5550
    %v5552 = vshll.u32 2131351028, %v5543
    %v5553 = vshrl.u32 2102212464, %v5544
    %v5554 = vor.u32 %v5552, %v5553
    %v5555 = vshll.u32 2102212464, %v5543
    %v5556 = vshrl.u32 920167782, %v5544
    %v5557 = vor.u32 %v5555, %v5556
    %v5558 = vshll.u32 920167782, %v5543
    %v5559 = vshrl.u32 1326507024, %v5544
    %v5560 = vor.u32 %v5558, %v5559
    %vm5561 = vcmp.lt.s32.totalorder %v5542, 1
    %vm5562 = vcmp.lt.s32.totalorder %v5542, 2
    %vm5563 = vcmp.lt.s32.totalorder %v5542, 3
    %vm5564 = vcmp.lt.s32.totalorder %v5542, 4
    %v5565 = vsel %vm5561, %v5545, %v5548
    %v5566 = vsel %vm5564, %v5554, 2102212464
    %v5567 = vsel %vm5563, %v5551, %v5566
    %v5568 = vsel %vm5562, %v5565, %v5567
    %v5569 = vsel %vm5561, %v5548, %v5551
    %v5570 = vsel %vm5564, %v5557, 920167782
    %v5571 = vsel %vm5563, %v5554, %v5570
    %v5572 = vsel %vm5562, %v5569, %v5571
    %v5573 = vsel %vm5561, %v5551, %v5554
    %v5574 = vsel %vm5564, %v5560, 1326507024
    %v5575 = vsel %vm5563, %v5557, %v5574
    %v5576 = vsel %vm5562, %v5573, %v5575
    %v5577 = vshll.u32 %v5537, 8
    %v5578 = vmul.u32.u64.compose %v5577, %v5576
    %v5579 = vextract.low.u32 %v5578
    %v5580 = vextract.high.u32 %v5578
    %v5581 = vmul.u32.u64.compose %v5577, %v5572
    %v5582 = vextract.low.u32 %v5581
    %v5583 = vextract.high.u32 %v5581
    %v5584 = vmul.u32 %v5577, %v5568
    %v5585 = vadd.s32 %v5580, %v5582
    %vm5586 = vc.u32 %v5580, %v5582
    %v5587 = vadd.s32 %v5583, 1
    %v5588 = vsel %vm5586, %v5587, %v5583
    %v5589 = vadd.s32 %v5584, %v5588
    %v5590 = vadd.s32 %v5589, 536870912
    %v5591 = vshrl.u32 %v5590, 30
    %v5592 = vshll.u32 %v5591, 30
    %v5593 = vsub.s32 %v5589, %v5592
    %vm5594 = vcmp.lt.s32.totalorder %v5593, 0
    %v5595 = vsub.s32 0, %v5593
    %v5596 = vsel %vm5594, %v5595, %v5593
    %v5597 = vclz %v5596
    %v5598 = vsub.s32 %v5597, 2
    %vm5599 = vcmp.gt.s32.totalorder 0, %v5598
    %v5600 = vsel %vm5599, 0, %v5598
    %v5601 = vsub.s32 32, %v5600
    %v5602 = vshll.u32 %v5593, %v5600
    %v5603 = vshrl.u32 %v5585, %v5601
    %v5604 = vor.u32 %v5602, %v5603
    %v5605 = vsub.s32 4294967266, %v5600
    %v5606 = vadd.s32 %v5605, 127
    %v5607 = vshll.u32 %v5606, 23
    %v5608 = vor.u32 4788187, %v5607
    %v5609 = vand.u32 2147483647, %v5608
    %v5611 = vcvt.s32.f32 %v5604
    %v5612 = vmul.f32 %v5611, %v5609
    %v5613 = vxor.u32 %v5612, 2147483648
    %v5614 = vsel %vm5531, %v5613, %v5612
    %v5615 = vsub.s32 4, %v5591
    %v5616 = vsel %vm5531, %v5615, %v5591
    %v5617 = vsel %vm5530, %v3643, %v5614
    %v5618 = vsel %vm5530, 0, %v5616
    %v5619 = vcosq.f32.pop %v5617
    %v5620 = vsinq.f32.pop %v5617
    %vm5621 = vweird.f32 %v3643
    %v5622 = vadd.s32 %v5618, 3
    %v5623 = vand.u32 %v5622, 3
    %vm5624 = vcmp.lt.s32.totalorder %v5623, 2
    %vm5625 = vcmp.eq.s32.totalorder %v5623, 0
    %v5626 = vxor.u32 %v5620, 2147483648
    %v5627 = vsel %vm5625, %v5619, %v5626
    %vm5628 = vcmp.eq.s32.totalorder %v5623, 2
    %v5629 = vxor.u32 %v5619, 2147483648
    %v5630 = vsel %vm5628, %v5629, %v5620
    %v5631 = vsel %vm5624, %v5627, %v5630
    %v5632 = vsel %vm5621, nan, %v5631
    %v5633 = vand.u32 2147483647, %v3644
    %vm5634 = vcmp.le.f32.partialorder %v5633, 0.7853982
    %vm5635 = vcmp.lt.s32.totalorder %v3644, 0
    %v5636 = vand.u32 %v3644, 2139095040
    %v5637 = vshrl.u32 %v5636, 23
    %v5638 = vsub.s32 %v5637, 127
    %v5639 = vand.u32 2147483647, %v3644
    %v5640 = vand.u32 %v5639, 8388607
    %v5641 = vor.u32 %v5640, 8388608
    %v5642 = vsub.s32 0, %v5641
    %v5643 = vadd.s32 %v5638, 1
    %vm5644 = vcmp.gt.s32.totalorder %v5643, 0
    %v5645 = vsel %vm5644, %v5643, 0
    %v5646 = vshrl.u32 %v5645, 5
    %v5647 = vand.u32 %v5645, 31
    %v5648 = vsub.s32 32, %v5647
    %v5649 = vshrl.u32 683565275, %v5648
    %v5650 = vshll.u32 683565275, %v5647
    %v5651 = vshrl.u32 2475754826, %v5648
    %v5652 = vor.u32 %v5650, %v5651
    %v5653 = vshll.u32 2475754826, %v5647
    %v5654 = vshrl.u32 2131351028, %v5648
    %v5655 = vor.u32 %v5653, %v5654
    %v5656 = vshll.u32 2131351028, %v5647
    %v5657 = vshrl.u32 2102212464, %v5648
    %v5658 = vor.u32 %v5656, %v5657
    %v5659 = vshll.u32 2102212464, %v5647
    %v5660 = vshrl.u32 920167782, %v5648
    %v5661 = vor.u32 %v5659, %v5660
    %v5662 = vshll.u32 920167782, %v5647
    %v5663 = vshrl.u32 1326507024, %v5648
    %v5664 = vor.u32 %v5662, %v5663
    %vm5665 = vcmp.lt.s32.totalorder %v5646, 1
    %vm5666 = vcmp.lt.s32.totalorder %v5646, 2
    %vm5667 = vcmp.lt.s32.totalorder %v5646, 3
    %vm5668 = vcmp.lt.s32.totalorder %v5646, 4
    %v5669 = vsel %vm5665, %v5649, %v5652
    %v5670 = vsel %vm5668, %v5658, 2102212464
    %v5671 = vsel %vm5667, %v5655, %v5670
    %v5672 = vsel %vm5666, %v5669, %v5671
    %v5673 = vsel %vm5665, %v5652, %v5655
    %v5674 = vsel %vm5668, %v5661, 920167782
    %v5675 = vsel %vm5667, %v5658, %v5674
    %v5676 = vsel %vm5666, %v5673, %v5675
    %v5677 = vsel %vm5665, %v5655, %v5658
    %v5678 = vsel %vm5668, %v5664, 1326507024
    %v5679 = vsel %vm5667, %v5661, %v5678
    %v5680 = vsel %vm5666, %v5677, %v5679
    %v5681 = vshll.u32 %v5641, 8
    %v5682 = vmul.u32.u64.compose %v5681, %v5680
    %v5683 = vextract.low.u32 %v5682
    %v5684 = vextract.high.u32 %v5682
    %v5685 = vmul.u32.u64.compose %v5681, %v5676
    %v5686 = vextract.low.u32 %v5685
    %v5687 = vextract.high.u32 %v5685
    %v5688 = vmul.u32 %v5681, %v5672
    %v5689 = vadd.s32 %v5684, %v5686
    %vm5690 = vc.u32 %v5684, %v5686
    %v5691 = vadd.s32 %v5687, 1
    %v5692 = vsel %vm5690, %v5691, %v5687
    %v5693 = vadd.s32 %v5688, %v5692
    %v5694 = vadd.s32 %v5693, 536870912
    %v5695 = vshrl.u32 %v5694, 30
    %v5696 = vshll.u32 %v5695, 30
    %v5697 = vsub.s32 %v5693, %v5696
    %vm5698 = vcmp.lt.s32.totalorder %v5697, 0
    %v5699 = vsub.s32 0, %v5697
    %v5700 = vsel %vm5698, %v5699, %v5697
    %v5701 = vclz %v5700
    %v5702 = vsub.s32 %v5701, 2
    %vm5703 = vcmp.gt.s32.totalorder 0, %v5702
    %v5704 = vsel %vm5703, 0, %v5702
    %v5705 = vsub.s32 32, %v5704
    %v5706 = vshll.u32 %v5697, %v5704
    %v5707 = vshrl.u32 %v5689, %v5705
    %v5708 = vor.u32 %v5706, %v5707
    %v5709 = vsub.s32 4294967266, %v5704
    %v5710 = vadd.s32 %v5709, 127
    %v5711 = vshll.u32 %v5710, 23
    %v5712 = vor.u32 4788187, %v5711
    %v5713 = vand.u32 2147483647, %v5712
    %v5715 = vcvt.s32.f32 %v5708
    %v5716 = vmul.f32 %v5715, %v5713
    %v5717 = vxor.u32 %v5716, 2147483648
    %v5718 = vsel %vm5635, %v5717, %v5716
    %v5719 = vsub.s32 4, %v5695
    %v5720 = vsel %vm5635, %v5719, %v5695
    %v5721 = vsel %vm5634, %v3644, %v5718
    %v5722 = vsel %vm5634, 0, %v5720
    %v5723 = vcosq.f32.pop %v5721
    %v5724 = vsinq.f32.pop %v5721
    %vm5725 = vweird.f32 %v3644
    %v5726 = vadd.s32 %v5722, 3
    %v5727 = vand.u32 %v5726, 3
    %vm5728 = vcmp.lt.s32.totalorder %v5727, 2
    %vm5729 = vcmp.eq.s32.totalorder %v5727, 0
    %v5730 = vxor.u32 %v5724, 2147483648
    %v5731 = vsel %vm5729, %v5723, %v5730
    %vm5732 = vcmp.eq.s32.totalorder %v5727, 2
    %v5733 = vxor.u32 %v5723, 2147483648
    %v5734 = vsel %vm5732, %v5733, %v5724
    %v5735 = vsel %vm5728, %v5731, %v5734
    %v5736 = vsel %vm5725, nan, %v5735
    %v5737 = vand.u32 2147483647, %v3645
    %vm5738 = vcmp.le.f32.partialorder %v5737, 0.7853982
    %vm5739 = vcmp.lt.s32.totalorder %v3645, 0
    %v5740 = vand.u32 %v3645, 2139095040
    %v5741 = vshrl.u32 %v5740, 23
    %v5742 = vsub.s32 %v5741, 127
    %v5743 = vand.u32 2147483647, %v3645
    %v5744 = vand.u32 %v5743, 8388607
    %v5745 = vor.u32 %v5744, 8388608
    %v5746 = vsub.s32 0, %v5745
    %v5747 = vadd.s32 %v5742, 1
    %vm5748 = vcmp.gt.s32.totalorder %v5747, 0
    %v5749 = vsel %vm5748, %v5747, 0
    %v5750 = vshrl.u32 %v5749, 5
    %v5751 = vand.u32 %v5749, 31
    %v5752 = vsub.s32 32, %v5751
    %v5753 = vshrl.u32 683565275, %v5752
    %v5754 = vshll.u32 683565275, %v5751
    %v5755 = vshrl.u32 2475754826, %v5752
    %v5756 = vor.u32 %v5754, %v5755
    %v5757 = vshll.u32 2475754826, %v5751
    %v5758 = vshrl.u32 2131351028, %v5752
    %v5759 = vor.u32 %v5757, %v5758
    %v5760 = vshll.u32 2131351028, %v5751
    %v5761 = vshrl.u32 2102212464, %v5752
    %v5762 = vor.u32 %v5760, %v5761
    %v5763 = vshll.u32 2102212464, %v5751
    %v5764 = vshrl.u32 920167782, %v5752
    %v5765 = vor.u32 %v5763, %v5764
    %v5766 = vshll.u32 920167782, %v5751
    %v5767 = vshrl.u32 1326507024, %v5752
    %v5768 = vor.u32 %v5766, %v5767
    %vm5769 = vcmp.lt.s32.totalorder %v5750, 1
    %vm5770 = vcmp.lt.s32.totalorder %v5750, 2
    %vm5771 = vcmp.lt.s32.totalorder %v5750, 3
    %vm5772 = vcmp.lt.s32.totalorder %v5750, 4
    %v5773 = vsel %vm5769, %v5753, %v5756
    %v5774 = vsel %vm5772, %v5762, 2102212464
    %v5775 = vsel %vm5771, %v5759, %v5774
    %v5776 = vsel %vm5770, %v5773, %v5775
    %v5777 = vsel %vm5769, %v5756, %v5759
    %v5778 = vsel %vm5772, %v5765, 920167782
    %v5779 = vsel %vm5771, %v5762, %v5778
    %v5780 = vsel %vm5770, %v5777, %v5779
    %v5781 = vsel %vm5769, %v5759, %v5762
    %v5782 = vsel %vm5772, %v5768, 1326507024
    %v5783 = vsel %vm5771, %v5765, %v5782
    %v5784 = vsel %vm5770, %v5781, %v5783
    %v5785 = vshll.u32 %v5745, 8
    %v5786 = vmul.u32.u64.compose %v5785, %v5784
    %v5787 = vextract.low.u32 %v5786
    %v5788 = vextract.high.u32 %v5786
    %v5789 = vmul.u32.u64.compose %v5785, %v5780
    %v5790 = vextract.low.u32 %v5789
    %v5791 = vextract.high.u32 %v5789
    %v5792 = vmul.u32 %v5785, %v5776
    %v5793 = vadd.s32 %v5788, %v5790
    %vm5794 = vc.u32 %v5788, %v5790
    %v5795 = vadd.s32 %v5791, 1
    %v5796 = vsel %vm5794, %v5795, %v5791
    %v5797 = vadd.s32 %v5792, %v5796
    %v5798 = vadd.s32 %v5797, 536870912
    %v5799 = vshrl.u32 %v5798, 30
    %v5800 = vshll.u32 %v5799, 30
    %v5801 = vsub.s32 %v5797, %v5800
    %vm5802 = vcmp.lt.s32.totalorder %v5801, 0
    %v5803 = vsub.s32 0, %v5801
    %v5804 = vsel %vm5802, %v5803, %v5801
    %v5805 = vclz %v5804
    %v5806 = vsub.s32 %v5805, 2
    %vm5807 = vcmp.gt.s32.totalorder 0, %v5806
    %v5808 = vsel %vm5807, 0, %v5806
    %v5809 = vsub.s32 32, %v5808
    %v5810 = vshll.u32 %v5801, %v5808
    %v5811 = vshrl.u32 %v5793, %v5809
    %v5812 = vor.u32 %v5810, %v5811
    %v5813 = vsub.s32 4294967266, %v5808
    %v5814 = vadd.s32 %v5813, 127
    %v5815 = vshll.u32 %v5814, 23
    %v5816 = vor.u32 4788187, %v5815
    %v5817 = vand.u32 2147483647, %v5816
    %v5819 = vcvt.s32.f32 %v5812
    %v5820 = vmul.f32 %v5819, %v5817
    %v5821 = vxor.u32 %v5820, 2147483648
    %v5822 = vsel %vm5739, %v5821, %v5820
    %v5823 = vsub.s32 4, %v5799
    %v5824 = vsel %vm5739, %v5823, %v5799
    %v5825 = vsel %vm5738, %v3645, %v5822
    %v5826 = vsel %vm5738, 0, %v5824
    %v5827 = vcosq.f32.pop %v5825
    %v5828 = vsinq.f32.pop %v5825
    %vm5829 = vweird.f32 %v3645
    %v5830 = vadd.s32 %v5826, 3
    %v5831 = vand.u32 %v5830, 3
    %vm5832 = vcmp.lt.s32.totalorder %v5831, 2
    %vm5833 = vcmp.eq.s32.totalorder %v5831, 0
    %v5834 = vxor.u32 %v5828, 2147483648
    %v5835 = vsel %vm5833, %v5827, %v5834
    %vm5836 = vcmp.eq.s32.totalorder %v5831, 2
    %v5837 = vxor.u32 %v5827, 2147483648
    %v5838 = vsel %vm5836, %v5837, %v5828
    %v5839 = vsel %vm5832, %v5835, %v5838
    %v5840 = vsel %vm5829, nan, %v5839
    %v5841 = vand.u32 2147483647, %v3646
    %vm5842 = vcmp.le.f32.partialorder %v5841, 0.7853982
    %vm5843 = vcmp.lt.s32.totalorder %v3646, 0
    %v5844 = vand.u32 %v3646, 2139095040
    %v5845 = vshrl.u32 %v5844, 23
    %v5846 = vsub.s32 %v5845, 127
    %v5847 = vand.u32 2147483647, %v3646
    %v5848 = vand.u32 %v5847, 8388607
    %v5849 = vor.u32 %v5848, 8388608
    %v5850 = vsub.s32 0, %v5849
    %v5851 = vadd.s32 %v5846, 1
    %vm5852 = vcmp.gt.s32.totalorder %v5851, 0
    %v5853 = vsel %vm5852, %v5851, 0
    %v5854 = vshrl.u32 %v5853, 5
    %v5855 = vand.u32 %v5853, 31
    %v5856 = vsub.s32 32, %v5855
    %v5857 = vshrl.u32 683565275, %v5856
    %v5858 = vshll.u32 683565275, %v5855
    %v5859 = vshrl.u32 2475754826, %v5856
    %v5860 = vor.u32 %v5858, %v5859
    %v5861 = vshll.u32 2475754826, %v5855
    %v5862 = vshrl.u32 2131351028, %v5856
    %v5863 = vor.u32 %v5861, %v5862
    %v5864 = vshll.u32 2131351028, %v5855
    %v5865 = vshrl.u32 2102212464, %v5856
    %v5866 = vor.u32 %v5864, %v5865
    %v5867 = vshll.u32 2102212464, %v5855
    %v5868 = vshrl.u32 920167782, %v5856
    %v5869 = vor.u32 %v5867, %v5868
    %v5870 = vshll.u32 920167782, %v5855
    %v5871 = vshrl.u32 1326507024, %v5856
    %v5872 = vor.u32 %v5870, %v5871
    %vm5873 = vcmp.lt.s32.totalorder %v5854, 1
    %vm5874 = vcmp.lt.s32.totalorder %v5854, 2
    %vm5875 = vcmp.lt.s32.totalorder %v5854, 3
    %vm5876 = vcmp.lt.s32.totalorder %v5854, 4
    %v5877 = vsel %vm5873, %v5857, %v5860
    %v5878 = vsel %vm5876, %v5866, 2102212464
    %v5879 = vsel %vm5875, %v5863, %v5878
    %v5880 = vsel %vm5874, %v5877, %v5879
    %v5881 = vsel %vm5873, %v5860, %v5863
    %v5882 = vsel %vm5876, %v5869, 920167782
    %v5883 = vsel %vm5875, %v5866, %v5882
    %v5884 = vsel %vm5874, %v5881, %v5883
    %v5885 = vsel %vm5873, %v5863, %v5866
    %v5886 = vsel %vm5876, %v5872, 1326507024
    %v5887 = vsel %vm5875, %v5869, %v5886
    %v5888 = vsel %vm5874, %v5885, %v5887
    %v5889 = vshll.u32 %v5849, 8
    %v5890 = vmul.u32.u64.compose %v5889, %v5888
    %v5891 = vextract.low.u32 %v5890
    %v5892 = vextract.high.u32 %v5890
    %v5893 = vmul.u32.u64.compose %v5889, %v5884
    %v5894 = vextract.low.u32 %v5893
    %v5895 = vextract.high.u32 %v5893
    %v5896 = vmul.u32 %v5889, %v5880
    %v5897 = vadd.s32 %v5892, %v5894
    %vm5898 = vc.u32 %v5892, %v5894
    %v5899 = vadd.s32 %v5895, 1
    %v5900 = vsel %vm5898, %v5899, %v5895
    %v5901 = vadd.s32 %v5896, %v5900
    %v5902 = vadd.s32 %v5901, 536870912
    %v5903 = vshrl.u32 %v5902, 30
    %v5904 = vshll.u32 %v5903, 30
    %v5905 = vsub.s32 %v5901, %v5904
    %vm5906 = vcmp.lt.s32.totalorder %v5905, 0
    %v5907 = vsub.s32 0, %v5905
    %v5908 = vsel %vm5906, %v5907, %v5905
    %v5909 = vclz %v5908
    %v5910 = vsub.s32 %v5909, 2
    %vm5911 = vcmp.gt.s32.totalorder 0, %v5910
    %v5912 = vsel %vm5911, 0, %v5910
    %v5913 = vsub.s32 32, %v5912
    %v5914 = vshll.u32 %v5905, %v5912
    %v5915 = vshrl.u32 %v5897, %v5913
    %v5916 = vor.u32 %v5914, %v5915
    %v5917 = vsub.s32 4294967266, %v5912
    %v5918 = vadd.s32 %v5917, 127
    %v5919 = vshll.u32 %v5918, 23
    %v5920 = vor.u32 4788187, %v5919
    %v5921 = vand.u32 2147483647, %v5920
    %v5923 = vcvt.s32.f32 %v5916
    %v5924 = vmul.f32 %v5923, %v5921
    %v5925 = vxor.u32 %v5924, 2147483648
    %v5926 = vsel %vm5843, %v5925, %v5924
    %v5927 = vsub.s32 4, %v5903
    %v5928 = vsel %vm5843, %v5927, %v5903
    %v5929 = vsel %vm5842, %v3646, %v5926
    %v5930 = vsel %vm5842, 0, %v5928
    %v5931 = vcosq.f32.pop %v5929
    %v5932 = vsinq.f32.pop %v5929
    %vm5933 = vweird.f32 %v3646
    %v5934 = vadd.s32 %v5930, 3
    %v5935 = vand.u32 %v5934, 3
    %vm5936 = vcmp.lt.s32.totalorder %v5935, 2
    %vm5937 = vcmp.eq.s32.totalorder %v5935, 0
    %v5938 = vxor.u32 %v5932, 2147483648
    %v5939 = vsel %vm5937, %v5931, %v5938
    %vm5940 = vcmp.eq.s32.totalorder %v5935, 2
    %v5941 = vxor.u32 %v5931, 2147483648
    %v5942 = vsel %vm5940, %v5941, %v5932
    %v5943 = vsel %vm5936, %v5939, %v5942
    %v5944 = vsel %vm5933, nan, %v5943
    %v5945 = vand.u32 2147483647, %v3647
    %vm5946 = vcmp.le.f32.partialorder %v5945, 0.7853982
    %vm5947 = vcmp.lt.s32.totalorder %v3647, 0
    %v5948 = vand.u32 %v3647, 2139095040
    %v5949 = vshrl.u32 %v5948, 23
    %v5950 = vsub.s32 %v5949, 127
    %v5951 = vand.u32 2147483647, %v3647
    %v5952 = vand.u32 %v5951, 8388607
    %v5953 = vor.u32 %v5952, 8388608
    %v5954 = vsub.s32 0, %v5953
    %v5955 = vadd.s32 %v5950, 1
    %vm5956 = vcmp.gt.s32.totalorder %v5955, 0
    %v5957 = vsel %vm5956, %v5955, 0
    %v5958 = vshrl.u32 %v5957, 5
    %v5959 = vand.u32 %v5957, 31
    %v5960 = vsub.s32 32, %v5959
    %v5961 = vshrl.u32 683565275, %v5960
    %v5962 = vshll.u32 683565275, %v5959
    %v5963 = vshrl.u32 2475754826, %v5960
    %v5964 = vor.u32 %v5962, %v5963
    %v5965 = vshll.u32 2475754826, %v5959
    %v5966 = vshrl.u32 2131351028, %v5960
    %v5967 = vor.u32 %v5965, %v5966
    %v5968 = vshll.u32 2131351028, %v5959
    %v5969 = vshrl.u32 2102212464, %v5960
    %v5970 = vor.u32 %v5968, %v5969
    %v5971 = vshll.u32 2102212464, %v5959
    %v5972 = vshrl.u32 920167782, %v5960
    %v5973 = vor.u32 %v5971, %v5972
    %v5974 = vshll.u32 920167782, %v5959
    %v5975 = vshrl.u32 1326507024, %v5960
    %v5976 = vor.u32 %v5974, %v5975
    %vm5977 = vcmp.lt.s32.totalorder %v5958, 1
    %vm5978 = vcmp.lt.s32.totalorder %v5958, 2
    %vm5979 = vcmp.lt.s32.totalorder %v5958, 3
    %vm5980 = vcmp.lt.s32.totalorder %v5958, 4
    %v5981 = vsel %vm5977, %v5961, %v5964
    %v5982 = vsel %vm5980, %v5970, 2102212464
    %v5983 = vsel %vm5979, %v5967, %v5982
    %v5984 = vsel %vm5978, %v5981, %v5983
    %v5985 = vsel %vm5977, %v5964, %v5967
    %v5986 = vsel %vm5980, %v5973, 920167782
    %v5987 = vsel %vm5979, %v5970, %v5986
    %v5988 = vsel %vm5978, %v5985, %v5987
    %v5989 = vsel %vm5977, %v5967, %v5970
    %v5990 = vsel %vm5980, %v5976, 1326507024
    %v5991 = vsel %vm5979, %v5973, %v5990
    %v5992 = vsel %vm5978, %v5989, %v5991
    %v5993 = vshll.u32 %v5953, 8
    %v5994 = vmul.u32.u64.compose %v5993, %v5992
    %v5995 = vextract.low.u32 %v5994
    %v5996 = vextract.high.u32 %v5994
    %v5997 = vmul.u32.u64.compose %v5993, %v5988
    %v5998 = vextract.low.u32 %v5997
    %v5999 = vextract.high.u32 %v5997
    %v6000 = vmul.u32 %v5993, %v5984
    %v6001 = vadd.s32 %v5996, %v5998
    %vm6002 = vc.u32 %v5996, %v5998
    %v6003 = vadd.s32 %v5999, 1
    %v6004 = vsel %vm6002, %v6003, %v5999
    %v6005 = vadd.s32 %v6000, %v6004
    %v6006 = vadd.s32 %v6005, 536870912
    %v6007 = vshrl.u32 %v6006, 30
    %v6008 = vshll.u32 %v6007, 30
    %v6009 = vsub.s32 %v6005, %v6008
    %vm6010 = vcmp.lt.s32.totalorder %v6009, 0
    %v6011 = vsub.s32 0, %v6009
    %v6012 = vsel %vm6010, %v6011, %v6009
    %v6013 = vclz %v6012
    %v6014 = vsub.s32 %v6013, 2
    %vm6015 = vcmp.gt.s32.totalorder 0, %v6014
    %v6016 = vsel %vm6015, 0, %v6014
    %v6017 = vsub.s32 32, %v6016
    %v6018 = vshll.u32 %v6009, %v6016
    %v6019 = vshrl.u32 %v6001, %v6017
    %v6020 = vor.u32 %v6018, %v6019
    %v6021 = vsub.s32 4294967266, %v6016
    %v6022 = vadd.s32 %v6021, 127
    %v6023 = vshll.u32 %v6022, 23
    %v6024 = vor.u32 4788187, %v6023
    %v6025 = vand.u32 2147483647, %v6024
    %v6027 = vcvt.s32.f32 %v6020
    %v6028 = vmul.f32 %v6027, %v6025
    %v6029 = vxor.u32 %v6028, 2147483648
    %v6030 = vsel %vm5947, %v6029, %v6028
    %v6031 = vsub.s32 4, %v6007
    %v6032 = vsel %vm5947, %v6031, %v6007
    %v6033 = vsel %vm5946, %v3647, %v6030
    %v6034 = vsel %vm5946, 0, %v6032
    %v6035 = vcosq.f32.pop %v6033
    %v6036 = vsinq.f32.pop %v6033
    %vm6037 = vweird.f32 %v3647
    %v6038 = vadd.s32 %v6034, 3
    %v6039 = vand.u32 %v6038, 3
    %vm6040 = vcmp.lt.s32.totalorder %v6039, 2
    %vm6041 = vcmp.eq.s32.totalorder %v6039, 0
    %v6042 = vxor.u32 %v6036, 2147483648
    %v6043 = vsel %vm6041, %v6035, %v6042
    %vm6044 = vcmp.eq.s32.totalorder %v6039, 2
    %v6045 = vxor.u32 %v6035, 2147483648
    %v6046 = vsel %vm6044, %v6045, %v6036
    %v6047 = vsel %vm6040, %v6043, %v6046
    %v6048 = vsel %vm6037, nan, %v6047
    %v6049 = vand.u32 2147483647, %v3648
    %vm6050 = vcmp.le.f32.partialorder %v6049, 0.7853982
    %vm6051 = vcmp.lt.s32.totalorder %v3648, 0
    %v6052 = vand.u32 %v3648, 2139095040
    %v6053 = vshrl.u32 %v6052, 23
    %v6054 = vsub.s32 %v6053, 127
    %v6055 = vand.u32 2147483647, %v3648
    %v6056 = vand.u32 %v6055, 8388607
    %v6057 = vor.u32 %v6056, 8388608
    %v6058 = vsub.s32 0, %v6057
    %v6059 = vadd.s32 %v6054, 1
    %vm6060 = vcmp.gt.s32.totalorder %v6059, 0
    %v6061 = vsel %vm6060, %v6059, 0
    %v6062 = vshrl.u32 %v6061, 5
    %v6063 = vand.u32 %v6061, 31
    %v6064 = vsub.s32 32, %v6063
    %v6065 = vshrl.u32 683565275, %v6064
    %v6066 = vshll.u32 683565275, %v6063
    %v6067 = vshrl.u32 2475754826, %v6064
    %v6068 = vor.u32 %v6066, %v6067
    %v6069 = vshll.u32 2475754826, %v6063
    %v6070 = vshrl.u32 2131351028, %v6064
    %v6071 = vor.u32 %v6069, %v6070
    %v6072 = vshll.u32 2131351028, %v6063
    %v6073 = vshrl.u32 2102212464, %v6064
    %v6074 = vor.u32 %v6072, %v6073
    %v6075 = vshll.u32 2102212464, %v6063
    %v6076 = vshrl.u32 920167782, %v6064
    %v6077 = vor.u32 %v6075, %v6076
    %v6078 = vshll.u32 920167782, %v6063
    %v6079 = vshrl.u32 1326507024, %v6064
    %v6080 = vor.u32 %v6078, %v6079
    %vm6081 = vcmp.lt.s32.totalorder %v6062, 1
    %vm6082 = vcmp.lt.s32.totalorder %v6062, 2
    %vm6083 = vcmp.lt.s32.totalorder %v6062, 3
    %vm6084 = vcmp.lt.s32.totalorder %v6062, 4
    %v6085 = vsel %vm6081, %v6065, %v6068
    %v6086 = vsel %vm6084, %v6074, 2102212464
    %v6087 = vsel %vm6083, %v6071, %v6086
    %v6088 = vsel %vm6082, %v6085, %v6087
    %v6089 = vsel %vm6081, %v6068, %v6071
    %v6090 = vsel %vm6084, %v6077, 920167782
    %v6091 = vsel %vm6083, %v6074, %v6090
    %v6092 = vsel %vm6082, %v6089, %v6091
    %v6093 = vsel %vm6081, %v6071, %v6074
    %v6094 = vsel %vm6084, %v6080, 1326507024
    %v6095 = vsel %vm6083, %v6077, %v6094
    %v6096 = vsel %vm6082, %v6093, %v6095
    %v6097 = vshll.u32 %v6057, 8
    %v6098 = vmul.u32.u64.compose %v6097, %v6096
    %v6099 = vextract.low.u32 %v6098
    %v6100 = vextract.high.u32 %v6098
    %v6101 = vmul.u32.u64.compose %v6097, %v6092
    %v6102 = vextract.low.u32 %v6101
    %v6103 = vextract.high.u32 %v6101
    %v6104 = vmul.u32 %v6097, %v6088
    %v6105 = vadd.s32 %v6100, %v6102
    %vm6106 = vc.u32 %v6100, %v6102
    %v6107 = vadd.s32 %v6103, 1
    %v6108 = vsel %vm6106, %v6107, %v6103
    %v6109 = vadd.s32 %v6104, %v6108
    %v6110 = vadd.s32 %v6109, 536870912
    %v6111 = vshrl.u32 %v6110, 30
    %v6112 = vshll.u32 %v6111, 30
    %v6113 = vsub.s32 %v6109, %v6112
    %vm6114 = vcmp.lt.s32.totalorder %v6113, 0
    %v6115 = vsub.s32 0, %v6113
    %v6116 = vsel %vm6114, %v6115, %v6113
    %v6117 = vclz %v6116
    %v6118 = vsub.s32 %v6117, 2
    %vm6119 = vcmp.gt.s32.totalorder 0, %v6118
    %v6120 = vsel %vm6119, 0, %v6118
    %v6121 = vsub.s32 32, %v6120
    %v6122 = vshll.u32 %v6113, %v6120
    %v6123 = vshrl.u32 %v6105, %v6121
    %v6124 = vor.u32 %v6122, %v6123
    %v6125 = vsub.s32 4294967266, %v6120
    %v6126 = vadd.s32 %v6125, 127
    %v6127 = vshll.u32 %v6126, 23
    %v6128 = vor.u32 4788187, %v6127
    %v6129 = vand.u32 2147483647, %v6128
    %v6131 = vcvt.s32.f32 %v6124
    %v6132 = vmul.f32 %v6131, %v6129
    %v6133 = vxor.u32 %v6132, 2147483648
    %v6134 = vsel %vm6051, %v6133, %v6132
    %v6135 = vsub.s32 4, %v6111
    %v6136 = vsel %vm6051, %v6135, %v6111
    %v6137 = vsel %vm6050, %v3648, %v6134
    %v6138 = vsel %vm6050, 0, %v6136
    %v6139 = vcosq.f32.pop %v6137
    %v6140 = vsinq.f32.pop %v6137
    %vm6141 = vweird.f32 %v3648
    %v6142 = vadd.s32 %v6138, 3
    %v6143 = vand.u32 %v6142, 3
    %vm6144 = vcmp.lt.s32.totalorder %v6143, 2
    %vm6145 = vcmp.eq.s32.totalorder %v6143, 0
    %v6146 = vxor.u32 %v6140, 2147483648
    %v6147 = vsel %vm6145, %v6139, %v6146
    %vm6148 = vcmp.eq.s32.totalorder %v6143, 2
    %v6149 = vxor.u32 %v6139, 2147483648
    %v6150 = vsel %vm6148, %v6149, %v6140
    %v6151 = vsel %vm6144, %v6147, %v6150
    %v6152 = vsel %vm6141, nan, %v6151
    %v6153 = vand.u32 2147483647, %v3649
    %vm6154 = vcmp.le.f32.partialorder %v6153, 0.7853982
    %vm6155 = vcmp.lt.s32.totalorder %v3649, 0
    %v6156 = vand.u32 %v3649, 2139095040
    %v6157 = vshrl.u32 %v6156, 23
    %v6158 = vsub.s32 %v6157, 127
    %v6159 = vand.u32 2147483647, %v3649
    %v6160 = vand.u32 %v6159, 8388607
    %v6161 = vor.u32 %v6160, 8388608
    %v6162 = vsub.s32 0, %v6161
    %v6163 = vadd.s32 %v6158, 1
    %vm6164 = vcmp.gt.s32.totalorder %v6163, 0
    %v6165 = vsel %vm6164, %v6163, 0
    %v6166 = vshrl.u32 %v6165, 5
    %v6167 = vand.u32 %v6165, 31
    %v6168 = vsub.s32 32, %v6167
    %v6169 = vshrl.u32 683565275, %v6168
    %v6170 = vshll.u32 683565275, %v6167
    %v6171 = vshrl.u32 2475754826, %v6168
    %v6172 = vor.u32 %v6170, %v6171
    %v6173 = vshll.u32 2475754826, %v6167
    %v6174 = vshrl.u32 2131351028, %v6168
    %v6175 = vor.u32 %v6173, %v6174
    %v6176 = vshll.u32 2131351028, %v6167
    %v6177 = vshrl.u32 2102212464, %v6168
    %v6178 = vor.u32 %v6176, %v6177
    %v6179 = vshll.u32 2102212464, %v6167
    %v6180 = vshrl.u32 920167782, %v6168
    %v6181 = vor.u32 %v6179, %v6180
    %v6182 = vshll.u32 920167782, %v6167
    %v6183 = vshrl.u32 1326507024, %v6168
    %v6184 = vor.u32 %v6182, %v6183
    %vm6185 = vcmp.lt.s32.totalorder %v6166, 1
    %vm6186 = vcmp.lt.s32.totalorder %v6166, 2
    %vm6187 = vcmp.lt.s32.totalorder %v6166, 3
    %vm6188 = vcmp.lt.s32.totalorder %v6166, 4
    %v6189 = vsel %vm6185, %v6169, %v6172
    %v6190 = vsel %vm6188, %v6178, 2102212464
    %v6191 = vsel %vm6187, %v6175, %v6190
    %v6192 = vsel %vm6186, %v6189, %v6191
    %v6193 = vsel %vm6185, %v6172, %v6175
    %v6194 = vsel %vm6188, %v6181, 920167782
    %v6195 = vsel %vm6187, %v6178, %v6194
    %v6196 = vsel %vm6186, %v6193, %v6195
    %v6197 = vsel %vm6185, %v6175, %v6178
    %v6198 = vsel %vm6188, %v6184, 1326507024
    %v6199 = vsel %vm6187, %v6181, %v6198
    %v6200 = vsel %vm6186, %v6197, %v6199
    %v6201 = vshll.u32 %v6161, 8
    %v6202 = vmul.u32.u64.compose %v6201, %v6200
    %v6203 = vextract.low.u32 %v6202
    %v6204 = vextract.high.u32 %v6202
    %v6205 = vmul.u32.u64.compose %v6201, %v6196
    %v6206 = vextract.low.u32 %v6205
    %v6207 = vextract.high.u32 %v6205
    %v6208 = vmul.u32 %v6201, %v6192
    %v6209 = vadd.s32 %v6204, %v6206
    %vm6210 = vc.u32 %v6204, %v6206
    %v6211 = vadd.s32 %v6207, 1
    %v6212 = vsel %vm6210, %v6211, %v6207
    %v6213 = vadd.s32 %v6208, %v6212
    %v6214 = vadd.s32 %v6213, 536870912
    %v6215 = vshrl.u32 %v6214, 30
    %v6216 = vshll.u32 %v6215, 30
    %v6217 = vsub.s32 %v6213, %v6216
    %vm6218 = vcmp.lt.s32.totalorder %v6217, 0
    %v6219 = vsub.s32 0, %v6217
    %v6220 = vsel %vm6218, %v6219, %v6217
    %v6221 = vclz %v6220
    %v6222 = vsub.s32 %v6221, 2
    %vm6223 = vcmp.gt.s32.totalorder 0, %v6222
    %v6224 = vsel %vm6223, 0, %v6222
    %v6225 = vsub.s32 32, %v6224
    %v6226 = vshll.u32 %v6217, %v6224
    %v6227 = vshrl.u32 %v6209, %v6225
    %v6228 = vor.u32 %v6226, %v6227
    %v6229 = vsub.s32 4294967266, %v6224
    %v6230 = vadd.s32 %v6229, 127
    %v6231 = vshll.u32 %v6230, 23
    %v6232 = vor.u32 4788187, %v6231
    %v6233 = vand.u32 2147483647, %v6232
    %v6235 = vcvt.s32.f32 %v6228
    %v6236 = vmul.f32 %v6235, %v6233
    %v6237 = vxor.u32 %v6236, 2147483648
    %v6238 = vsel %vm6155, %v6237, %v6236
    %v6239 = vsub.s32 4, %v6215
    %v6240 = vsel %vm6155, %v6239, %v6215
    %v6241 = vsel %vm6154, %v3649, %v6238
    %v6242 = vsel %vm6154, 0, %v6240
    %v6243 = vcosq.f32.pop %v6241
    %v6244 = vsinq.f32.pop %v6241
    %vm6245 = vweird.f32 %v3649
    %v6246 = vadd.s32 %v6242, 3
    %v6247 = vand.u32 %v6246, 3
    %vm6248 = vcmp.lt.s32.totalorder %v6247, 2
    %vm6249 = vcmp.eq.s32.totalorder %v6247, 0
    %v6250 = vxor.u32 %v6244, 2147483648
    %v6251 = vsel %vm6249, %v6243, %v6250
    %vm6252 = vcmp.eq.s32.totalorder %v6247, 2
    %v6253 = vxor.u32 %v6243, 2147483648
    %v6254 = vsel %vm6252, %v6253, %v6244
    %v6255 = vsel %vm6248, %v6251, %v6254
    %v6256 = vsel %vm6245, nan, %v6255
    %v6257 = vand.u32 2147483647, %v3650
    %vm6258 = vcmp.le.f32.partialorder %v6257, 0.7853982
    %vm6259 = vcmp.lt.s32.totalorder %v3650, 0
    %v6260 = vand.u32 %v3650, 2139095040
    %v6261 = vshrl.u32 %v6260, 23
    %v6262 = vsub.s32 %v6261, 127
    %v6263 = vand.u32 2147483647, %v3650
    %v6264 = vand.u32 %v6263, 8388607
    %v6265 = vor.u32 %v6264, 8388608
    %v6266 = vsub.s32 0, %v6265
    %v6267 = vadd.s32 %v6262, 1
    %vm6268 = vcmp.gt.s32.totalorder %v6267, 0
    %v6269 = vsel %vm6268, %v6267, 0
    %v6270 = vshrl.u32 %v6269, 5
    %v6271 = vand.u32 %v6269, 31
    %v6272 = vsub.s32 32, %v6271
    %v6273 = vshrl.u32 683565275, %v6272
    %v6274 = vshll.u32 683565275, %v6271
    %v6275 = vshrl.u32 2475754826, %v6272
    %v6276 = vor.u32 %v6274, %v6275
    %v6277 = vshll.u32 2475754826, %v6271
    %v6278 = vshrl.u32 2131351028, %v6272
    %v6279 = vor.u32 %v6277, %v6278
    %v6280 = vshll.u32 2131351028, %v6271
    %v6281 = vshrl.u32 2102212464, %v6272
    %v6282 = vor.u32 %v6280, %v6281
    %v6283 = vshll.u32 2102212464, %v6271
    %v6284 = vshrl.u32 920167782, %v6272
    %v6285 = vor.u32 %v6283, %v6284
    %v6286 = vshll.u32 920167782, %v6271
    %v6287 = vshrl.u32 1326507024, %v6272
    %v6288 = vor.u32 %v6286, %v6287
    %vm6289 = vcmp.lt.s32.totalorder %v6270, 1
    %vm6290 = vcmp.lt.s32.totalorder %v6270, 2
    %vm6291 = vcmp.lt.s32.totalorder %v6270, 3
    %vm6292 = vcmp.lt.s32.totalorder %v6270, 4
    %v6293 = vsel %vm6289, %v6273, %v6276
    %v6294 = vsel %vm6292, %v6282, 2102212464
    %v6295 = vsel %vm6291, %v6279, %v6294
    %v6296 = vsel %vm6290, %v6293, %v6295
    %v6297 = vsel %vm6289, %v6276, %v6279
    %v6298 = vsel %vm6292, %v6285, 920167782
    %v6299 = vsel %vm6291, %v6282, %v6298
    %v6300 = vsel %vm6290, %v6297, %v6299
    %v6301 = vsel %vm6289, %v6279, %v6282
    %v6302 = vsel %vm6292, %v6288, 1326507024
    %v6303 = vsel %vm6291, %v6285, %v6302
    %v6304 = vsel %vm6290, %v6301, %v6303
    %v6305 = vshll.u32 %v6265, 8
    %v6306 = vmul.u32.u64.compose %v6305, %v6304
    %v6307 = vextract.low.u32 %v6306
    %v6308 = vextract.high.u32 %v6306
    %v6309 = vmul.u32.u64.compose %v6305, %v6300
    %v6310 = vextract.low.u32 %v6309
    %v6311 = vextract.high.u32 %v6309
    %v6312 = vmul.u32 %v6305, %v6296
    %v6313 = vadd.s32 %v6308, %v6310
    %vm6314 = vc.u32 %v6308, %v6310
    %v6315 = vadd.s32 %v6311, 1
    %v6316 = vsel %vm6314, %v6315, %v6311
    %v6317 = vadd.s32 %v6312, %v6316
    %v6318 = vadd.s32 %v6317, 536870912
    %v6319 = vshrl.u32 %v6318, 30
    %v6320 = vshll.u32 %v6319, 30
    %v6321 = vsub.s32 %v6317, %v6320
    %vm6322 = vcmp.lt.s32.totalorder %v6321, 0
    %v6323 = vsub.s32 0, %v6321
    %v6324 = vsel %vm6322, %v6323, %v6321
    %v6325 = vclz %v6324
    %v6326 = vsub.s32 %v6325, 2
    %vm6327 = vcmp.gt.s32.totalorder 0, %v6326
    %v6328 = vsel %vm6327, 0, %v6326
    %v6329 = vsub.s32 32, %v6328
    %v6330 = vshll.u32 %v6321, %v6328
    %v6331 = vshrl.u32 %v6313, %v6329
    %v6332 = vor.u32 %v6330, %v6331
    %v6333 = vsub.s32 4294967266, %v6328
    %v6334 = vadd.s32 %v6333, 127
    %v6335 = vshll.u32 %v6334, 23
    %v6336 = vor.u32 4788187, %v6335
    %v6337 = vand.u32 2147483647, %v6336
    %v6339 = vcvt.s32.f32 %v6332
    %v6340 = vmul.f32 %v6339, %v6337
    %v6341 = vxor.u32 %v6340, 2147483648
    %v6342 = vsel %vm6259, %v6341, %v6340
    %v6343 = vsub.s32 4, %v6319
    %v6344 = vsel %vm6259, %v6343, %v6319
    %v6345 = vsel %vm6258, %v3650, %v6342
    %v6346 = vsel %vm6258, 0, %v6344
    %v6347 = vcosq.f32.pop %v6345
    %v6348 = vsinq.f32.pop %v6345
    %vm6349 = vweird.f32 %v3650
    %v6350 = vadd.s32 %v6346, 3
    %v6351 = vand.u32 %v6350, 3
    %vm6352 = vcmp.lt.s32.totalorder %v6351, 2
    %vm6353 = vcmp.eq.s32.totalorder %v6351, 0
    %v6354 = vxor.u32 %v6348, 2147483648
    %v6355 = vsel %vm6353, %v6347, %v6354
    %vm6356 = vcmp.eq.s32.totalorder %v6351, 2
    %v6357 = vxor.u32 %v6347, 2147483648
    %v6358 = vsel %vm6356, %v6357, %v6348
    %v6359 = vsel %vm6352, %v6355, %v6358
    %v6360 = vsel %vm6349, nan, %v6359
    %v6361 = vand.u32 2147483647, %v3651
    %vm6362 = vcmp.le.f32.partialorder %v6361, 0.7853982
    %vm6363 = vcmp.lt.s32.totalorder %v3651, 0
    %v6364 = vand.u32 %v3651, 2139095040
    %v6365 = vshrl.u32 %v6364, 23
    %v6366 = vsub.s32 %v6365, 127
    %v6367 = vand.u32 2147483647, %v3651
    %v6368 = vand.u32 %v6367, 8388607
    %v6369 = vor.u32 %v6368, 8388608
    %v6370 = vsub.s32 0, %v6369
    %v6371 = vadd.s32 %v6366, 1
    %vm6372 = vcmp.gt.s32.totalorder %v6371, 0
    %v6373 = vsel %vm6372, %v6371, 0
    %v6374 = vshrl.u32 %v6373, 5
    %v6375 = vand.u32 %v6373, 31
    %v6376 = vsub.s32 32, %v6375
    %v6377 = vshrl.u32 683565275, %v6376
    %v6378 = vshll.u32 683565275, %v6375
    %v6379 = vshrl.u32 2475754826, %v6376
    %v6380 = vor.u32 %v6378, %v6379
    %v6381 = vshll.u32 2475754826, %v6375
    %v6382 = vshrl.u32 2131351028, %v6376
    %v6383 = vor.u32 %v6381, %v6382
    %v6384 = vshll.u32 2131351028, %v6375
    %v6385 = vshrl.u32 2102212464, %v6376
    %v6386 = vor.u32 %v6384, %v6385
    %v6387 = vshll.u32 2102212464, %v6375
    %v6388 = vshrl.u32 920167782, %v6376
    %v6389 = vor.u32 %v6387, %v6388
    %v6390 = vshll.u32 920167782, %v6375
    %v6391 = vshrl.u32 1326507024, %v6376
    %v6392 = vor.u32 %v6390, %v6391
    %vm6393 = vcmp.lt.s32.totalorder %v6374, 1
    %vm6394 = vcmp.lt.s32.totalorder %v6374, 2
    %vm6395 = vcmp.lt.s32.totalorder %v6374, 3
    %vm6396 = vcmp.lt.s32.totalorder %v6374, 4
    %v6397 = vsel %vm6393, %v6377, %v6380
    %v6398 = vsel %vm6396, %v6386, 2102212464
    %v6399 = vsel %vm6395, %v6383, %v6398
    %v6400 = vsel %vm6394, %v6397, %v6399
    %v6401 = vsel %vm6393, %v6380, %v6383
    %v6402 = vsel %vm6396, %v6389, 920167782
    %v6403 = vsel %vm6395, %v6386, %v6402
    %v6404 = vsel %vm6394, %v6401, %v6403
    %v6405 = vsel %vm6393, %v6383, %v6386
    %v6406 = vsel %vm6396, %v6392, 1326507024
    %v6407 = vsel %vm6395, %v6389, %v6406
    %v6408 = vsel %vm6394, %v6405, %v6407
    %v6409 = vshll.u32 %v6369, 8
    %v6410 = vmul.u32.u64.compose %v6409, %v6408
    %v6411 = vextract.low.u32 %v6410
    %v6412 = vextract.high.u32 %v6410
    %v6413 = vmul.u32.u64.compose %v6409, %v6404
    %v6414 = vextract.low.u32 %v6413
    %v6415 = vextract.high.u32 %v6413
    %v6416 = vmul.u32 %v6409, %v6400
    %v6417 = vadd.s32 %v6412, %v6414
    %vm6418 = vc.u32 %v6412, %v6414
    %v6419 = vadd.s32 %v6415, 1
    %v6420 = vsel %vm6418, %v6419, %v6415
    %v6421 = vadd.s32 %v6416, %v6420
    %v6422 = vadd.s32 %v6421, 536870912
    %v6423 = vshrl.u32 %v6422, 30
    %v6424 = vshll.u32 %v6423, 30
    %v6425 = vsub.s32 %v6421, %v6424
    %vm6426 = vcmp.lt.s32.totalorder %v6425, 0
    %v6427 = vsub.s32 0, %v6425
    %v6428 = vsel %vm6426, %v6427, %v6425
    %v6429 = vclz %v6428
    %v6430 = vsub.s32 %v6429, 2
    %vm6431 = vcmp.gt.s32.totalorder 0, %v6430
    %v6432 = vsel %vm6431, 0, %v6430
    %v6433 = vsub.s32 32, %v6432
    %v6434 = vshll.u32 %v6425, %v6432
    %v6435 = vshrl.u32 %v6417, %v6433
    %v6436 = vor.u32 %v6434, %v6435
    %v6437 = vsub.s32 4294967266, %v6432
    %v6438 = vadd.s32 %v6437, 127
    %v6439 = vshll.u32 %v6438, 23
    %v6440 = vor.u32 4788187, %v6439
    %v6441 = vand.u32 2147483647, %v6440
    %v6443 = vcvt.s32.f32 %v6436
    %v6444 = vmul.f32 %v6443, %v6441
    %v6445 = vxor.u32 %v6444, 2147483648
    %v6446 = vsel %vm6363, %v6445, %v6444
    %v6447 = vsub.s32 4, %v6423
    %v6448 = vsel %vm6363, %v6447, %v6423
    %v6449 = vsel %vm6362, %v3651, %v6446
    %v6450 = vsel %vm6362, 0, %v6448
    %v6451 = vcosq.f32.pop %v6449
    %v6452 = vsinq.f32.pop %v6449
    %vm6453 = vweird.f32 %v3651
    %v6454 = vadd.s32 %v6450, 3
    %v6455 = vand.u32 %v6454, 3
    %vm6456 = vcmp.lt.s32.totalorder %v6455, 2
    %vm6457 = vcmp.eq.s32.totalorder %v6455, 0
    %v6458 = vxor.u32 %v6452, 2147483648
    %v6459 = vsel %vm6457, %v6451, %v6458
    %vm6460 = vcmp.eq.s32.totalorder %v6455, 2
    %v6461 = vxor.u32 %v6451, 2147483648
    %v6462 = vsel %vm6460, %v6461, %v6452
    %v6463 = vsel %vm6456, %v6459, %v6462
    %v6464 = vsel %vm6453, nan, %v6463
    %v6465 = vand.u32 2147483647, %v3652
    %vm6466 = vcmp.le.f32.partialorder %v6465, 0.7853982
    %vm6467 = vcmp.lt.s32.totalorder %v3652, 0
    %v6468 = vand.u32 %v3652, 2139095040
    %v6469 = vshrl.u32 %v6468, 23
    %v6470 = vsub.s32 %v6469, 127
    %v6471 = vand.u32 2147483647, %v3652
    %v6472 = vand.u32 %v6471, 8388607
    %v6473 = vor.u32 %v6472, 8388608
    %v6474 = vsub.s32 0, %v6473
    %v6475 = vadd.s32 %v6470, 1
    %vm6476 = vcmp.gt.s32.totalorder %v6475, 0
    %v6477 = vsel %vm6476, %v6475, 0
    %v6478 = vshrl.u32 %v6477, 5
    %v6479 = vand.u32 %v6477, 31
    %v6480 = vsub.s32 32, %v6479
    %v6481 = vshrl.u32 683565275, %v6480
    %v6482 = vshll.u32 683565275, %v6479
    %v6483 = vshrl.u32 2475754826, %v6480
    %v6484 = vor.u32 %v6482, %v6483
    %v6485 = vshll.u32 2475754826, %v6479
    %v6486 = vshrl.u32 2131351028, %v6480
    %v6487 = vor.u32 %v6485, %v6486
    %v6488 = vshll.u32 2131351028, %v6479
    %v6489 = vshrl.u32 2102212464, %v6480
    %v6490 = vor.u32 %v6488, %v6489
    %v6491 = vshll.u32 2102212464, %v6479
    %v6492 = vshrl.u32 920167782, %v6480
    %v6493 = vor.u32 %v6491, %v6492
    %v6494 = vshll.u32 920167782, %v6479
    %v6495 = vshrl.u32 1326507024, %v6480
    %v6496 = vor.u32 %v6494, %v6495
    %vm6497 = vcmp.lt.s32.totalorder %v6478, 1
    %vm6498 = vcmp.lt.s32.totalorder %v6478, 2
    %vm6499 = vcmp.lt.s32.totalorder %v6478, 3
    %vm6500 = vcmp.lt.s32.totalorder %v6478, 4
    %v6501 = vsel %vm6497, %v6481, %v6484
    %v6502 = vsel %vm6500, %v6490, 2102212464
    %v6503 = vsel %vm6499, %v6487, %v6502
    %v6504 = vsel %vm6498, %v6501, %v6503
    %v6505 = vsel %vm6497, %v6484, %v6487
    %v6506 = vsel %vm6500, %v6493, 920167782
    %v6507 = vsel %vm6499, %v6490, %v6506
    %v6508 = vsel %vm6498, %v6505, %v6507
    %v6509 = vsel %vm6497, %v6487, %v6490
    %v6510 = vsel %vm6500, %v6496, 1326507024
    %v6511 = vsel %vm6499, %v6493, %v6510
    %v6512 = vsel %vm6498, %v6509, %v6511
    %v6513 = vshll.u32 %v6473, 8
    %v6514 = vmul.u32.u64.compose %v6513, %v6512
    %v6515 = vextract.low.u32 %v6514
    %v6516 = vextract.high.u32 %v6514
    %v6517 = vmul.u32.u64.compose %v6513, %v6508
    %v6518 = vextract.low.u32 %v6517
    %v6519 = vextract.high.u32 %v6517
    %v6520 = vmul.u32 %v6513, %v6504
    %v6521 = vadd.s32 %v6516, %v6518
    %vm6522 = vc.u32 %v6516, %v6518
    %v6523 = vadd.s32 %v6519, 1
    %v6524 = vsel %vm6522, %v6523, %v6519
    %v6525 = vadd.s32 %v6520, %v6524
    %v6526 = vadd.s32 %v6525, 536870912
    %v6527 = vshrl.u32 %v6526, 30
    %v6528 = vshll.u32 %v6527, 30
    %v6529 = vsub.s32 %v6525, %v6528
    %vm6530 = vcmp.lt.s32.totalorder %v6529, 0
    %v6531 = vsub.s32 0, %v6529
    %v6532 = vsel %vm6530, %v6531, %v6529
    %v6533 = vclz %v6532
    %v6534 = vsub.s32 %v6533, 2
    %vm6535 = vcmp.gt.s32.totalorder 0, %v6534
    %v6536 = vsel %vm6535, 0, %v6534
    %v6537 = vsub.s32 32, %v6536
    %v6538 = vshll.u32 %v6529, %v6536
    %v6539 = vshrl.u32 %v6521, %v6537
    %v6540 = vor.u32 %v6538, %v6539
    %v6541 = vsub.s32 4294967266, %v6536
    %v6542 = vadd.s32 %v6541, 127
    %v6543 = vshll.u32 %v6542, 23
    %v6544 = vor.u32 4788187, %v6543
    %v6545 = vand.u32 2147483647, %v6544
    %v6547 = vcvt.s32.f32 %v6540
    %v6548 = vmul.f32 %v6547, %v6545
    %v6549 = vxor.u32 %v6548, 2147483648
    %v6550 = vsel %vm6467, %v6549, %v6548
    %v6551 = vsub.s32 4, %v6527
    %v6552 = vsel %vm6467, %v6551, %v6527
    %v6553 = vsel %vm6466, %v3652, %v6550
    %v6554 = vsel %vm6466, 0, %v6552
    %v6555 = vcosq.f32.pop %v6553
    %v6556 = vsinq.f32.pop %v6553
    %vm6557 = vweird.f32 %v3652
    %v6558 = vadd.s32 %v6554, 3
    %v6559 = vand.u32 %v6558, 3
    %vm6560 = vcmp.lt.s32.totalorder %v6559, 2
    %vm6561 = vcmp.eq.s32.totalorder %v6559, 0
    %v6562 = vxor.u32 %v6556, 2147483648
    %v6563 = vsel %vm6561, %v6555, %v6562
    %vm6564 = vcmp.eq.s32.totalorder %v6559, 2
    %v6565 = vxor.u32 %v6555, 2147483648
    %v6566 = vsel %vm6564, %v6565, %v6556
    %v6567 = vsel %vm6560, %v6563, %v6566
    %v6568 = vsel %vm6557, nan, %v6567
    %v6569 = vand.u32 2147483647, %v3653
    %vm6570 = vcmp.le.f32.partialorder %v6569, 0.7853982
    %vm6571 = vcmp.lt.s32.totalorder %v3653, 0
    %v6572 = vand.u32 %v3653, 2139095040
    %v6573 = vshrl.u32 %v6572, 23
    %v6574 = vsub.s32 %v6573, 127
    %v6575 = vand.u32 2147483647, %v3653
    %v6576 = vand.u32 %v6575, 8388607
    %v6577 = vor.u32 %v6576, 8388608
    %v6578 = vsub.s32 0, %v6577
    %v6579 = vadd.s32 %v6574, 1
    %vm6580 = vcmp.gt.s32.totalorder %v6579, 0
    %v6581 = vsel %vm6580, %v6579, 0
    %v6582 = vshrl.u32 %v6581, 5
    %v6583 = vand.u32 %v6581, 31
    %v6584 = vsub.s32 32, %v6583
    %v6585 = vshrl.u32 683565275, %v6584
    %v6586 = vshll.u32 683565275, %v6583
    %v6587 = vshrl.u32 2475754826, %v6584
    %v6588 = vor.u32 %v6586, %v6587
    %v6589 = vshll.u32 2475754826, %v6583
    %v6590 = vshrl.u32 2131351028, %v6584
    %v6591 = vor.u32 %v6589, %v6590
    %v6592 = vshll.u32 2131351028, %v6583
    %v6593 = vshrl.u32 2102212464, %v6584
    %v6594 = vor.u32 %v6592, %v6593
    %v6595 = vshll.u32 2102212464, %v6583
    %v6596 = vshrl.u32 920167782, %v6584
    %v6597 = vor.u32 %v6595, %v6596
    %v6598 = vshll.u32 920167782, %v6583
    %v6599 = vshrl.u32 1326507024, %v6584
    %v6600 = vor.u32 %v6598, %v6599
    %vm6601 = vcmp.lt.s32.totalorder %v6582, 1
    %vm6602 = vcmp.lt.s32.totalorder %v6582, 2
    %vm6603 = vcmp.lt.s32.totalorder %v6582, 3
    %vm6604 = vcmp.lt.s32.totalorder %v6582, 4
    %v6605 = vsel %vm6601, %v6585, %v6588
    %v6606 = vsel %vm6604, %v6594, 2102212464
    %v6607 = vsel %vm6603, %v6591, %v6606
    %v6608 = vsel %vm6602, %v6605, %v6607
    %v6609 = vsel %vm6601, %v6588, %v6591
    %v6610 = vsel %vm6604, %v6597, 920167782
    %v6611 = vsel %vm6603, %v6594, %v6610
    %v6612 = vsel %vm6602, %v6609, %v6611
    %v6613 = vsel %vm6601, %v6591, %v6594
    %v6614 = vsel %vm6604, %v6600, 1326507024
    %v6615 = vsel %vm6603, %v6597, %v6614
    %v6616 = vsel %vm6602, %v6613, %v6615
    %v6617 = vshll.u32 %v6577, 8
    %v6618 = vmul.u32.u64.compose %v6617, %v6616
    %v6619 = vextract.low.u32 %v6618
    %v6620 = vextract.high.u32 %v6618
    %v6621 = vmul.u32.u64.compose %v6617, %v6612
    %v6622 = vextract.low.u32 %v6621
    %v6623 = vextract.high.u32 %v6621
    %v6624 = vmul.u32 %v6617, %v6608
    %v6625 = vadd.s32 %v6620, %v6622
    %vm6626 = vc.u32 %v6620, %v6622
    %v6627 = vadd.s32 %v6623, 1
    %v6628 = vsel %vm6626, %v6627, %v6623
    %v6629 = vadd.s32 %v6624, %v6628
    %v6630 = vadd.s32 %v6629, 536870912
    %v6631 = vshrl.u32 %v6630, 30
    %v6632 = vshll.u32 %v6631, 30
    %v6633 = vsub.s32 %v6629, %v6632
    %vm6634 = vcmp.lt.s32.totalorder %v6633, 0
    %v6635 = vsub.s32 0, %v6633
    %v6636 = vsel %vm6634, %v6635, %v6633
    %v6637 = vclz %v6636
    %v6638 = vsub.s32 %v6637, 2
    %vm6639 = vcmp.gt.s32.totalorder 0, %v6638
    %v6640 = vsel %vm6639, 0, %v6638
    %v6641 = vsub.s32 32, %v6640
    %v6642 = vshll.u32 %v6633, %v6640
    %v6643 = vshrl.u32 %v6625, %v6641
    %v6644 = vor.u32 %v6642, %v6643
    %v6645 = vsub.s32 4294967266, %v6640
    %v6646 = vadd.s32 %v6645, 127
    %v6647 = vshll.u32 %v6646, 23
    %v6648 = vor.u32 4788187, %v6647
    %v6649 = vand.u32 2147483647, %v6648
    %v6651 = vcvt.s32.f32 %v6644
    %v6652 = vmul.f32 %v6651, %v6649
    %v6653 = vxor.u32 %v6652, 2147483648
    %v6654 = vsel %vm6571, %v6653, %v6652
    %v6655 = vsub.s32 4, %v6631
    %v6656 = vsel %vm6571, %v6655, %v6631
    %v6657 = vsel %vm6570, %v3653, %v6654
    %v6658 = vsel %vm6570, 0, %v6656
    %v6659 = vcosq.f32.pop %v6657
    %v6660 = vsinq.f32.pop %v6657
    %vm6661 = vweird.f32 %v3653
    %v6662 = vadd.s32 %v6658, 3
    %v6663 = vand.u32 %v6662, 3
    %vm6664 = vcmp.lt.s32.totalorder %v6663, 2
    %vm6665 = vcmp.eq.s32.totalorder %v6663, 0
    %v6666 = vxor.u32 %v6660, 2147483648
    %v6667 = vsel %vm6665, %v6659, %v6666
    %vm6668 = vcmp.eq.s32.totalorder %v6663, 2
    %v6669 = vxor.u32 %v6659, 2147483648
    %v6670 = vsel %vm6668, %v6669, %v6660
    %v6671 = vsel %vm6664, %v6667, %v6670
    %v6672 = vsel %vm6661, nan, %v6671
    %v6673 = vand.u32 2147483647, %v3654
    %vm6674 = vcmp.le.f32.partialorder %v6673, 0.7853982
    %vm6675 = vcmp.lt.s32.totalorder %v3654, 0
    %v6676 = vand.u32 %v3654, 2139095040
    %v6677 = vshrl.u32 %v6676, 23
    %v6678 = vsub.s32 %v6677, 127
    %v6679 = vand.u32 2147483647, %v3654
    %v6680 = vand.u32 %v6679, 8388607
    %v6681 = vor.u32 %v6680, 8388608
    %v6682 = vsub.s32 0, %v6681
    %v6683 = vadd.s32 %v6678, 1
    %vm6684 = vcmp.gt.s32.totalorder %v6683, 0
    %v6685 = vsel %vm6684, %v6683, 0
    %v6686 = vshrl.u32 %v6685, 5
    %v6687 = vand.u32 %v6685, 31
    %v6688 = vsub.s32 32, %v6687
    %v6689 = vshrl.u32 683565275, %v6688
    %v6690 = vshll.u32 683565275, %v6687
    %v6691 = vshrl.u32 2475754826, %v6688
    %v6692 = vor.u32 %v6690, %v6691
    %v6693 = vshll.u32 2475754826, %v6687
    %v6694 = vshrl.u32 2131351028, %v6688
    %v6695 = vor.u32 %v6693, %v6694
    %v6696 = vshll.u32 2131351028, %v6687
    %v6697 = vshrl.u32 2102212464, %v6688
    %v6698 = vor.u32 %v6696, %v6697
    %v6699 = vshll.u32 2102212464, %v6687
    %v6700 = vshrl.u32 920167782, %v6688
    %v6701 = vor.u32 %v6699, %v6700
    %v6702 = vshll.u32 920167782, %v6687
    %v6703 = vshrl.u32 1326507024, %v6688
    %v6704 = vor.u32 %v6702, %v6703
    %vm6705 = vcmp.lt.s32.totalorder %v6686, 1
    %vm6706 = vcmp.lt.s32.totalorder %v6686, 2
    %vm6707 = vcmp.lt.s32.totalorder %v6686, 3
    %vm6708 = vcmp.lt.s32.totalorder %v6686, 4
    %v6709 = vsel %vm6705, %v6689, %v6692
    %v6710 = vsel %vm6708, %v6698, 2102212464
    %v6711 = vsel %vm6707, %v6695, %v6710
    %v6712 = vsel %vm6706, %v6709, %v6711
    %v6713 = vsel %vm6705, %v6692, %v6695
    %v6714 = vsel %vm6708, %v6701, 920167782
    %v6715 = vsel %vm6707, %v6698, %v6714
    %v6716 = vsel %vm6706, %v6713, %v6715
    %v6717 = vsel %vm6705, %v6695, %v6698
    %v6718 = vsel %vm6708, %v6704, 1326507024
    %v6719 = vsel %vm6707, %v6701, %v6718
    %v6720 = vsel %vm6706, %v6717, %v6719
    %v6721 = vshll.u32 %v6681, 8
    %v6722 = vmul.u32.u64.compose %v6721, %v6720
    %v6723 = vextract.low.u32 %v6722
    %v6724 = vextract.high.u32 %v6722
    %v6725 = vmul.u32.u64.compose %v6721, %v6716
    %v6726 = vextract.low.u32 %v6725
    %v6727 = vextract.high.u32 %v6725
    %v6728 = vmul.u32 %v6721, %v6712
    %v6729 = vadd.s32 %v6724, %v6726
    %vm6730 = vc.u32 %v6724, %v6726
    %v6731 = vadd.s32 %v6727, 1
    %v6732 = vsel %vm6730, %v6731, %v6727
    %v6733 = vadd.s32 %v6728, %v6732
    %v6734 = vadd.s32 %v6733, 536870912
    %v6735 = vshrl.u32 %v6734, 30
    %v6736 = vshll.u32 %v6735, 30
    %v6737 = vsub.s32 %v6733, %v6736
    %vm6738 = vcmp.lt.s32.totalorder %v6737, 0
    %v6739 = vsub.s32 0, %v6737
    %v6740 = vsel %vm6738, %v6739, %v6737
    %v6741 = vclz %v6740
    %v6742 = vsub.s32 %v6741, 2
    %vm6743 = vcmp.gt.s32.totalorder 0, %v6742
    %v6744 = vsel %vm6743, 0, %v6742
    %v6745 = vsub.s32 32, %v6744
    %v6746 = vshll.u32 %v6737, %v6744
    %v6747 = vshrl.u32 %v6729, %v6745
    %v6748 = vor.u32 %v6746, %v6747
    %v6749 = vsub.s32 4294967266, %v6744
    %v6750 = vadd.s32 %v6749, 127
    %v6751 = vshll.u32 %v6750, 23
    %v6752 = vor.u32 4788187, %v6751
    %v6753 = vand.u32 2147483647, %v6752
    %v6755 = vcvt.s32.f32 %v6748
    %v6756 = vmul.f32 %v6755, %v6753
    %v6757 = vxor.u32 %v6756, 2147483648
    %v6758 = vsel %vm6675, %v6757, %v6756
    %v6759 = vsub.s32 4, %v6735
    %v6760 = vsel %vm6675, %v6759, %v6735
    %v6761 = vsel %vm6674, %v3654, %v6758
    %v6762 = vsel %vm6674, 0, %v6760
    %v6763 = vcosq.f32.pop %v6761
    %v6764 = vsinq.f32.pop %v6761
    %vm6765 = vweird.f32 %v3654
    %v6766 = vadd.s32 %v6762, 3
    %v6767 = vand.u32 %v6766, 3
    %vm6768 = vcmp.lt.s32.totalorder %v6767, 2
    %vm6769 = vcmp.eq.s32.totalorder %v6767, 0
    %v6770 = vxor.u32 %v6764, 2147483648
    %v6771 = vsel %vm6769, %v6763, %v6770
    %vm6772 = vcmp.eq.s32.totalorder %v6767, 2
    %v6773 = vxor.u32 %v6763, 2147483648
    %v6774 = vsel %vm6772, %v6773, %v6764
    %v6775 = vsel %vm6768, %v6771, %v6774
    %v6776 = vsel %vm6765, nan, %v6775
    %v6777 = vand.u32 2147483647, %v3655
    %vm6778 = vcmp.le.f32.partialorder %v6777, 0.7853982
    %vm6779 = vcmp.lt.s32.totalorder %v3655, 0
    %v6780 = vand.u32 %v3655, 2139095040
    %v6781 = vshrl.u32 %v6780, 23
    %v6782 = vsub.s32 %v6781, 127
    %v6783 = vand.u32 2147483647, %v3655
    %v6784 = vand.u32 %v6783, 8388607
    %v6785 = vor.u32 %v6784, 8388608
    %v6786 = vsub.s32 0, %v6785
    %v6787 = vadd.s32 %v6782, 1
    %vm6788 = vcmp.gt.s32.totalorder %v6787, 0
    %v6789 = vsel %vm6788, %v6787, 0
    %v6790 = vshrl.u32 %v6789, 5
    %v6791 = vand.u32 %v6789, 31
    %v6792 = vsub.s32 32, %v6791
    %v6793 = vshrl.u32 683565275, %v6792
    %v6794 = vshll.u32 683565275, %v6791
    %v6795 = vshrl.u32 2475754826, %v6792
    %v6796 = vor.u32 %v6794, %v6795
    %v6797 = vshll.u32 2475754826, %v6791
    %v6798 = vshrl.u32 2131351028, %v6792
    %v6799 = vor.u32 %v6797, %v6798
    %v6800 = vshll.u32 2131351028, %v6791
    %v6801 = vshrl.u32 2102212464, %v6792
    %v6802 = vor.u32 %v6800, %v6801
    %v6803 = vshll.u32 2102212464, %v6791
    %v6804 = vshrl.u32 920167782, %v6792
    %v6805 = vor.u32 %v6803, %v6804
    %v6806 = vshll.u32 920167782, %v6791
    %v6807 = vshrl.u32 1326507024, %v6792
    %v6808 = vor.u32 %v6806, %v6807
    %vm6809 = vcmp.lt.s32.totalorder %v6790, 1
    %vm6810 = vcmp.lt.s32.totalorder %v6790, 2
    %vm6811 = vcmp.lt.s32.totalorder %v6790, 3
    %vm6812 = vcmp.lt.s32.totalorder %v6790, 4
    %v6813 = vsel %vm6809, %v6793, %v6796
    %v6814 = vsel %vm6812, %v6802, 2102212464
    %v6815 = vsel %vm6811, %v6799, %v6814
    %v6816 = vsel %vm6810, %v6813, %v6815
    %v6817 = vsel %vm6809, %v6796, %v6799
    %v6818 = vsel %vm6812, %v6805, 920167782
    %v6819 = vsel %vm6811, %v6802, %v6818
    %v6820 = vsel %vm6810, %v6817, %v6819
    %v6821 = vsel %vm6809, %v6799, %v6802
    %v6822 = vsel %vm6812, %v6808, 1326507024
    %v6823 = vsel %vm6811, %v6805, %v6822
    %v6824 = vsel %vm6810, %v6821, %v6823
    %v6825 = vshll.u32 %v6785, 8
    %v6826 = vmul.u32.u64.compose %v6825, %v6824
    %v6827 = vextract.low.u32 %v6826
    %v6828 = vextract.high.u32 %v6826
    %v6829 = vmul.u32.u64.compose %v6825, %v6820
    %v6830 = vextract.low.u32 %v6829
    %v6831 = vextract.high.u32 %v6829
    %v6832 = vmul.u32 %v6825, %v6816
    %v6833 = vadd.s32 %v6828, %v6830
    %vm6834 = vc.u32 %v6828, %v6830
    %v6835 = vadd.s32 %v6831, 1
    %v6836 = vsel %vm6834, %v6835, %v6831
    %v6837 = vadd.s32 %v6832, %v6836
    %v6838 = vadd.s32 %v6837, 536870912
    %v6839 = vshrl.u32 %v6838, 30
    %v6840 = vshll.u32 %v6839, 30
    %v6841 = vsub.s32 %v6837, %v6840
    %vm6842 = vcmp.lt.s32.totalorder %v6841, 0
    %v6843 = vsub.s32 0, %v6841
    %v6844 = vsel %vm6842, %v6843, %v6841
    %v6845 = vclz %v6844
    %v6846 = vsub.s32 %v6845, 2
    %vm6847 = vcmp.gt.s32.totalorder 0, %v6846
    %v6848 = vsel %vm6847, 0, %v6846
    %v6849 = vsub.s32 32, %v6848
    %v6850 = vshll.u32 %v6841, %v6848
    %v6851 = vshrl.u32 %v6833, %v6849
    %v6852 = vor.u32 %v6850, %v6851
    %v6853 = vsub.s32 4294967266, %v6848
    %v6854 = vadd.s32 %v6853, 127
    %v6855 = vshll.u32 %v6854, 23
    %v6856 = vor.u32 4788187, %v6855
    %v6857 = vand.u32 2147483647, %v6856
    %v6859 = vcvt.s32.f32 %v6852
    %v6860 = vmul.f32 %v6859, %v6857
    %v6861 = vxor.u32 %v6860, 2147483648
    %v6862 = vsel %vm6779, %v6861, %v6860
    %v6863 = vsub.s32 4, %v6839
    %v6864 = vsel %vm6779, %v6863, %v6839
    %v6865 = vsel %vm6778, %v3655, %v6862
    %v6866 = vsel %vm6778, 0, %v6864
    %v6867 = vcosq.f32.pop %v6865
    %v6868 = vsinq.f32.pop %v6865
    %vm6869 = vweird.f32 %v3655
    %v6870 = vadd.s32 %v6866, 3
    %v6871 = vand.u32 %v6870, 3
    %vm6872 = vcmp.lt.s32.totalorder %v6871, 2
    %vm6873 = vcmp.eq.s32.totalorder %v6871, 0
    %v6874 = vxor.u32 %v6868, 2147483648
    %v6875 = vsel %vm6873, %v6867, %v6874
    %vm6876 = vcmp.eq.s32.totalorder %v6871, 2
    %v6877 = vxor.u32 %v6867, 2147483648
    %v6878 = vsel %vm6876, %v6877, %v6868
    %v6879 = vsel %vm6872, %v6875, %v6878
    %v6880 = vsel %vm6869, nan, %v6879
    %v6881 = vand.u32 2147483647, %v3656
    %vm6882 = vcmp.le.f32.partialorder %v6881, 0.7853982
    %vm6883 = vcmp.lt.s32.totalorder %v3656, 0
    %v6884 = vand.u32 %v3656, 2139095040
    %v6885 = vshrl.u32 %v6884, 23
    %v6886 = vsub.s32 %v6885, 127
    %v6887 = vand.u32 2147483647, %v3656
    %v6888 = vand.u32 %v6887, 8388607
    %v6889 = vor.u32 %v6888, 8388608
    %v6890 = vsub.s32 0, %v6889
    %v6891 = vadd.s32 %v6886, 1
    %vm6892 = vcmp.gt.s32.totalorder %v6891, 0
    %v6893 = vsel %vm6892, %v6891, 0
    %v6894 = vshrl.u32 %v6893, 5
    %v6895 = vand.u32 %v6893, 31
    %v6896 = vsub.s32 32, %v6895
    %v6897 = vshrl.u32 683565275, %v6896
    %v6898 = vshll.u32 683565275, %v6895
    %v6899 = vshrl.u32 2475754826, %v6896
    %v6900 = vor.u32 %v6898, %v6899
    %v6901 = vshll.u32 2475754826, %v6895
    %v6902 = vshrl.u32 2131351028, %v6896
    %v6903 = vor.u32 %v6901, %v6902
    %v6904 = vshll.u32 2131351028, %v6895
    %v6905 = vshrl.u32 2102212464, %v6896
    %v6906 = vor.u32 %v6904, %v6905
    %v6907 = vshll.u32 2102212464, %v6895
    %v6908 = vshrl.u32 920167782, %v6896
    %v6909 = vor.u32 %v6907, %v6908
    %v6910 = vshll.u32 920167782, %v6895
    %v6911 = vshrl.u32 1326507024, %v6896
    %v6912 = vor.u32 %v6910, %v6911
    %vm6913 = vcmp.lt.s32.totalorder %v6894, 1
    %vm6914 = vcmp.lt.s32.totalorder %v6894, 2
    %vm6915 = vcmp.lt.s32.totalorder %v6894, 3
    %vm6916 = vcmp.lt.s32.totalorder %v6894, 4
    %v6917 = vsel %vm6913, %v6897, %v6900
    %v6918 = vsel %vm6916, %v6906, 2102212464
    %v6919 = vsel %vm6915, %v6903, %v6918
    %v6920 = vsel %vm6914, %v6917, %v6919
    %v6921 = vsel %vm6913, %v6900, %v6903
    %v6922 = vsel %vm6916, %v6909, 920167782
    %v6923 = vsel %vm6915, %v6906, %v6922
    %v6924 = vsel %vm6914, %v6921, %v6923
    %v6925 = vsel %vm6913, %v6903, %v6906
    %v6926 = vsel %vm6916, %v6912, 1326507024
    %v6927 = vsel %vm6915, %v6909, %v6926
    %v6928 = vsel %vm6914, %v6925, %v6927
    %v6929 = vshll.u32 %v6889, 8
    %v6930 = vmul.u32.u64.compose %v6929, %v6928
    %v6931 = vextract.low.u32 %v6930
    %v6932 = vextract.high.u32 %v6930
    %v6933 = vmul.u32.u64.compose %v6929, %v6924
    %v6934 = vextract.low.u32 %v6933
    %v6935 = vextract.high.u32 %v6933
    %v6936 = vmul.u32 %v6929, %v6920
    %v6937 = vadd.s32 %v6932, %v6934
    %vm6938 = vc.u32 %v6932, %v6934
    %v6939 = vadd.s32 %v6935, 1
    %v6940 = vsel %vm6938, %v6939, %v6935
    %v6941 = vadd.s32 %v6936, %v6940
    %v6942 = vadd.s32 %v6941, 536870912
    %v6943 = vshrl.u32 %v6942, 30
    %v6944 = vshll.u32 %v6943, 30
    %v6945 = vsub.s32 %v6941, %v6944
    %vm6946 = vcmp.lt.s32.totalorder %v6945, 0
    %v6947 = vsub.s32 0, %v6945
    %v6948 = vsel %vm6946, %v6947, %v6945
    %v6949 = vclz %v6948
    %v6950 = vsub.s32 %v6949, 2
    %vm6951 = vcmp.gt.s32.totalorder 0, %v6950
    %v6952 = vsel %vm6951, 0, %v6950
    %v6953 = vsub.s32 32, %v6952
    %v6954 = vshll.u32 %v6945, %v6952
    %v6955 = vshrl.u32 %v6937, %v6953
    %v6956 = vor.u32 %v6954, %v6955
    %v6957 = vsub.s32 4294967266, %v6952
    %v6958 = vadd.s32 %v6957, 127
    %v6959 = vshll.u32 %v6958, 23
    %v6960 = vor.u32 4788187, %v6959
    %v6961 = vand.u32 2147483647, %v6960
    %v6963 = vcvt.s32.f32 %v6956
    %v6964 = vmul.f32 %v6963, %v6961
    %v6965 = vxor.u32 %v6964, 2147483648
    %v6966 = vsel %vm6883, %v6965, %v6964
    %v6967 = vsub.s32 4, %v6943
    %v6968 = vsel %vm6883, %v6967, %v6943
    %v6969 = vsel %vm6882, %v3656, %v6966
    %v6970 = vsel %vm6882, 0, %v6968
    %v6971 = vcosq.f32.pop %v6969
    %v6972 = vsinq.f32.pop %v6969
    %vm6973 = vweird.f32 %v3656
    %v6974 = vadd.s32 %v6970, 3
    %v6975 = vand.u32 %v6974, 3
    %vm6976 = vcmp.lt.s32.totalorder %v6975, 2
    %vm6977 = vcmp.eq.s32.totalorder %v6975, 0
    %v6978 = vxor.u32 %v6972, 2147483648
    %v6979 = vsel %vm6977, %v6971, %v6978
    %vm6980 = vcmp.eq.s32.totalorder %v6975, 2
    %v6981 = vxor.u32 %v6971, 2147483648
    %v6982 = vsel %vm6980, %v6981, %v6972
    %v6983 = vsel %vm6976, %v6979, %v6982
    %v6984 = vsel %vm6973, nan, %v6983
    %v6985 = vmul.f32 %v3561, %v3760
    %v6986 = vmul.f32 %v3562, %v3864
    %v6987 = vmul.f32 %v3563, %v3968
    %v6988 = vmul.f32 %v3564, %v4072
    %v6989 = vmul.f32 %v3565, %v4176
    %v6990 = vmul.f32 %v3566, %v4280
    %v6991 = vmul.f32 %v3567, %v4384
    %v6992 = vmul.f32 %v3568, %v4488
    %v6993 = vmul.f32 %v3569, %v4592
    %v6994 = vmul.f32 %v3570, %v4696
    %v6995 = vmul.f32 %v3571, %v4800
    %v6996 = vmul.f32 %v3572, %v4904
    %v6997 = vmul.f32 %v3573, %v5008
    %v6998 = vmul.f32 %v3574, %v5112
    %v6999 = vmul.f32 %v3575, %v5216
    %v7000 = vmul.f32 %v3576, %v5320
    %v7001 = vmul.f32 %v3577, %v5424
    %v7002 = vmul.f32 %v3578, %v5528
    %v7003 = vmul.f32 %v3579, %v5632
    %v7004 = vmul.f32 %v3580, %v5736
    %v7005 = vmul.f32 %v3581, %v5840
    %v7006 = vmul.f32 %v3582, %v5944
    %v7007 = vmul.f32 %v3583, %v6048
    %v7008 = vmul.f32 %v3584, %v6152
    %v7009 = vmul.f32 %v3585, %v6256
    %v7010 = vmul.f32 %v3586, %v6360
    %v7011 = vmul.f32 %v3587, %v6464
    %v7012 = vmul.f32 %v3588, %v6568
    %v7013 = vmul.f32 %v3589, %v6672
    %v7014 = vmul.f32 %v3590, %v6776
    %v7015 = vmul.f32 %v3591, %v6880
    %v7016 = vmul.f32 %v3592, %v6984
    %7017 = vst [vmem:[#allocation10] sm:$0xff] %v6985
    %7018 = vst [vmem:[#allocation10 + $0x8] sm:$0xff] %v6986
    %7019 = vst [vmem:[#allocation10 + $0x10] sm:$0xff] %v6987
    %7020 = vst [vmem:[#allocation10 + $0x18] sm:$0xff] %v6988
    %7021 = vst [vmem:[#allocation10 + $0x20] sm:$0xff] %v6989
    %7022 = vst [vmem:[#allocation10 + $0x28] sm:$0xff] %v6990
    %7023 = vst [vmem:[#allocation10 + $0x30] sm:$0xff] %v6991
    %7024 = vst [vmem:[#allocation10 + $0x38] sm:$0xff] %v6992
    %7025 = vst [vmem:[#allocation10 + $0x40] sm:$0xff] %v6993
    %7026 = vst [vmem:[#allocation10 + $0x48] sm:$0xff] %v6994
    %7027 = vst [vmem:[#allocation10 + $0x50] sm:$0xff] %v6995
    %7028 = vst [vmem:[#allocation10 + $0x58] sm:$0xff] %v6996
    %7029 = vst [vmem:[#allocation10 + $0x60] sm:$0xff] %v6997
    %7030 = vst [vmem:[#allocation10 + $0x68] sm:$0xff] %v6998
    %7031 = vst [vmem:[#allocation10 + $0x70] sm:$0xff] %v6999
    %7032 = vst [vmem:[#allocation10 + $0x78] sm:$0xff] %v7000
    %7033 = vst [vmem:[#allocation10 + $0x80] sm:$0xff] %v7001
    %7034 = vst [vmem:[#allocation10 + $0x88] sm:$0xff] %v7002
    %7035 = vst [vmem:[#allocation10 + $0x90] sm:$0xff] %v7003
    %7036 = vst [vmem:[#allocation10 + $0x98] sm:$0xff] %v7004
    %7037 = vst [vmem:[#allocation10 + $0xa0] sm:$0xff] %v7005
    %7038 = vst [vmem:[#allocation10 + $0xa8] sm:$0xff] %v7006
    %7039 = vst [vmem:[#allocation10 + $0xb0] sm:$0xff] %v7007
    %7040 = vst [vmem:[#allocation10 + $0xb8] sm:$0xff] %v7008
    %7041 = vst [vmem:[#allocation10 + $0xc0] sm:$0xff] %v7009
    %7042 = vst [vmem:[#allocation10 + $0xc8] sm:$0xff] %v7010
    %7043 = vst [vmem:[#allocation10 + $0xd0] sm:$0xff] %v7011
    %7044 = vst [vmem:[#allocation10 + $0xd8] sm:$0xff] %v7012
    %7045 = vst [vmem:[#allocation10 + $0xe0] sm:$0xff] %v7013
    %7046 = vst [vmem:[#allocation10 + $0xe8] sm:$0xff] %v7014
    %7047 = vst [vmem:[#allocation10 + $0xf0] sm:$0xff] %v7015
    %7048 = vst [vmem:[#allocation10 + $0xf8] sm:$0xff] %v7016
    // Predicated region
    $region34: #{tpu_custom_call.1} parent=1 // pred_check
      _
    $region35: #{tpu_custom_call.1} parent=1 // pred_check_branch
      %7050 = sbr.rel (0) target = $region37
    $region36: #{tpu_custom_call.1} parent=1 // pred_region
      %s7052 = ssub.s32 4096, 4096
      %7053 = vsyncadd [#allocation4], %s7052
      %s7054 = sshll.u32 [#allocation10], 4
      %s7055 = int_to_ptr.vmem [resolvable:$true] %s7054
      %7060 = dma.vmem_to_hbm [thread:$0]  %s7055, 4096, %s4, [#allocation4], 512, 512, 32
    $region37: #{tpu_custom_call.1} parent=1 // pred_fallthru
      _
    // Predicated region
    $region38: #{tpu_custom_call.1} parent=1 // pred_check
      _
    $region39: #{tpu_custom_call.1} parent=1 // pred_check_branch
      %7062 = sbr.rel (0) target = $region41
    $region40: #{tpu_custom_call.1} parent=1 // pred_region
      %7063 = dma.done [#allocation4], 4096
    $region41: #{tpu_custom_call.1} parent=1 // pred_fallthru
      _
    %7064 = vsyncpa [#allocation3], 1
    %7065 = vsyncpa [#allocation6], 1
    %7066 = vsyncpa [#allocation9], 1
    %7067 = vsyncpa [#allocation4], 1

</llo_original>
